<compile_context>
chip_gen: v7x
topology: tpu7x:2x2x1
jax: 0.10.0
libtpu: 0.0.40
codegen_flags: <defaults>
</compile_context>

<pallas_src>
import functools
import itertools
import math

import jax
import jax.numpy as jnp
from jax.experimental import pallas as pl
from jax.experimental.pallas import tpu as pltpu


# ----------------------------- in-kernel helpers ---------------------------


def _layernorm(h, g, b, eps):
    mean = jnp.mean(h, axis=-1, keepdims=True)
    var = jnp.mean(jnp.square(h - mean), axis=-1, keepdims=True)
    return (h - mean) * jax.lax.rsqrt(var + eps) * g + b


def _mha(q_in, kv_in, wq, bq, wkv, bkv, wo, bo, nhead):
    """Multi-head attention on VMEM-resident values.

    q_in: (Sq, E) f32, kv_in: (Sk, E) f32; weights are bf16, biases f32.
    K/V projections are fused into one (E, 2E) matmul; heads are static
    dh-wide lane slices; the 1/sqrt(dh) scale is folded into q; softmax is
    normalized AFTER the PV matmul with an approx reciprocal; per-head
    contexts are concatenated once so wo is applied as a single matmul.
    """
    Sq, E = q_in.shape
    dh = E // nhead
    scale = 1.0 / math.sqrt(dh)

    q = jnp.dot(q_in.astype(wq.dtype), wq,
                preferred_element_type=jnp.float32) + bq              # (Sq, E)
    q = q * scale                                                     # fold scale into q
    kv = jnp.dot(kv_in.astype(wkv.dtype), wkv,
                 preferred_element_type=jnp.float32) + bkv            # (Sk, 2E)
    k = kv[:, :E]
    v = kv[:, E:]

    ctx_parts = []
    for h in range(nhead):                                            # small static unroll
        lo, hi = h * dh, (h + 1) * dh
        qh = q[:, lo:hi].astype(jnp.bfloat16)
        kh = k[:, lo:hi].astype(jnp.bfloat16)
        vh = v[:, lo:hi].astype(jnp.bfloat16)
        # q @ k^T without materializing a transpose: contract on dh.
        s = jax.lax.dot_general(qh, kh, (((1,), (1,)), ((), ())),
                                preferred_element_type=jnp.float32)   # (Sq, Sk)
        m = jnp.max(s, axis=-1, keepdims=True)
        p = jnp.exp(s - m)
        denom = jnp.sum(p, axis=-1, keepdims=True)
        oh = jnp.dot(p.astype(jnp.bfloat16), vh,
                     preferred_element_type=jnp.float32)              # (Sq, dh)
        oh = oh * pl.reciprocal(denom, approx=True)                   # normalize post-PV
        ctx_parts.append(oh)
    ctx = jnp.concatenate(ctx_parts, axis=-1)                         # (Sq, E)
    return jnp.dot(ctx.astype(wo.dtype), wo,
                   preferred_element_type=jnp.float32) + bo


def _ffn(h, w1, b1, w2, b2):
    f = jnp.dot(h.astype(w1.dtype), w1, preferred_element_type=jnp.float32) + b1
    f = jnp.maximum(f, 0.0)
    return jnp.dot(f.astype(w2.dtype), w2, preferred_element_type=jnp.float32) + b2


# ------------------------------ fused kernels ------------------------------


def _encoder_stack_kernel(x_ref,
                          wq, bq, wkv, bkv, wo, bo,
                          g1, b1,
                          w1, bf1, w2, bf2,
                          g2, b2,
                          gn, bn,
                          o_ref, act, *, nhead, eps, n_layers):
    l = pl.program_id(1)

    @pl.when(l == 0)
    def _():
        act[...] = x_ref[...]

    x = act[...]                                                      # (S, E)
    attn = _mha(x, x, wq[...], bq[...], wkv[...], bkv[...],
                wo[...], bo[...], nhead)
    h1 = _layernorm(x + attn, g1[...], b1[...], eps)
    ff = _ffn(h1, w1[...], bf1[...], w2[...], bf2[...])
    act[...] = _layernorm(h1 + ff, g2[...], b2[...], eps)

    @pl.when(l == n_layers - 1)
    def _():
        # Fused final encoder LayerNorm (nn.Transformer encoder.norm).
        o_ref[...] = _layernorm(act[...], gn[...], bn[...], eps)


def _decoder_stack_kernel(x_ref, mem_ref,
                          s_wq, s_bq, s_wkv, s_bkv, s_wo, s_bo,
                          g1, b1,
                          c_wq, c_bq, c_wkv, c_bkv, c_wo, c_bo,
                          g2, b2,
                          w1, bf1, w2, bf2,
                          g3, b3,
                          gn, bn,
                          o_ref, act, *, nhead, eps, n_layers):
    l = pl.program_id(1)

    @pl.when(l == 0)
    def _():
        act[...] = x_ref[...]

    x = act[...]                                                      # (St, E)
    mem = mem_ref[...]                                                # (Ss, E)
    sa = _mha(x, x, s_wq[...], s_bq[...], s_wkv[...], s_bkv[...],
              s_wo[...], s_bo[...], nhead)
    h1 = _layernorm(x + sa, g1[...], b1[...], eps)
    ca = _mha(h1, mem, c_wq[...], c_bq[...], c_wkv[...], c_bkv[...],
              c_wo[...], c_bo[...], nhead)
    h2 = _layernorm(h1 + ca, g2[...], b2[...], eps)
    ff = _ffn(h2, w1[...], bf1[...], w2[...], bf2[...])
    act[...] = _layernorm(h2 + ff, g3[...], b3[...], eps)

    @pl.when(l == n_layers - 1)
    def _():
        # Fused final decoder LayerNorm (nn.Transformer decoder.norm).
        o_ref[...] = _layernorm(act[...], gn[...], bn[...], eps)


def _fc_kernel(y_ref, w, bias, o_ref):
    y = y_ref[...]                                                    # (S, E) f32 (already normed)
    o_ref[...] = jnp.dot(y.astype(w.dtype), w[...],
                         preferred_element_type=jnp.float32) + bias[...]


# ------------------------------- wrappers ----------------------------------

_ENC_NAMES = ["wq", "bq", "wkv", "bkv", "wo", "bo", "g1", "b1",
              "w1", "bf1", "w2", "bf2", "g2", "b2"]
_DEC_NAMES = ["s_wq", "s_bq", "s_wkv", "s_bkv", "s_wo", "s_bo", "g1", "b1",
              "c_wq", "c_bq", "c_wkv", "c_bkv", "c_wo", "c_bo", "g2", "b2",
              "w1", "bf1", "w2", "bf2", "g3", "b3"]

_VMEM_LIMIT = 32 * 1024 * 1024   # safe on v5e (128 MiB) / v6e (128) / v7x (64)


def encoder_stack(x, layers, final_norm, nhead, eps=1e-5):
    B, S, E = x.shape
    L = layers["wq"].shape[0]
    ws = [layers[n] for n in _ENC_NAMES]
    in_specs = [pl.BlockSpec((None, S, E), lambda b, l: (b, 0, 0))]
    in_specs += [pl.BlockSpec((None,) + w.shape[1:], lambda b, l: (l, 0, 0))
                 for w in ws]
    in_specs += [pl.BlockSpec((1, E), lambda b, l: (0, 0))] * 2
    return pl.pallas_call(
        functools.partial(_encoder_stack_kernel, nhead=nhead, eps=eps,
                          n_layers=L),
        out_shape=jax.ShapeDtypeStruct((B, S, E), jnp.float32),
        grid=(B, L),
        in_specs=in_specs,
        out_specs=pl.BlockSpec((None, S, E), lambda b, l: (b, 0, 0)),
        scratch_shapes=[pltpu.VMEM((S, E), jnp.float32)],
        compiler_params=pltpu.CompilerParams(
            dimension_semantics=("parallel", "arbitrary"),
            vmem_limit_bytes=_VMEM_LIMIT),
    )(x, *ws, final_norm["g"], final_norm["b"])


def decoder_stack(x, memory, layers, final_norm, nhead, eps=1e-5):
    B, St, E = x.shape
    Ss = memory.shape[1]
    L = layers["s_wq"].shape[0]
    ws = [layers[n] for n in _DEC_NAMES]
    in_specs = [pl.BlockSpec((None, St, E), lambda b, l: (b, 0, 0)),
                pl.BlockSpec((None, Ss, E), lambda b, l: (b, 0, 0))]
    in_specs += [pl.BlockSpec((None,) + w.shape[1:], lambda b, l: (l, 0, 0))
                 for w in ws]
    in_specs += [pl.BlockSpec((1, E), lambda b, l: (0, 0))] * 2
    return pl.pallas_call(
        functools.partial(_decoder_stack_kernel, nhead=nhead, eps=eps,
                          n_layers=L),
        out_shape=jax.ShapeDtypeStruct((B, St, E), jnp.float32),
        grid=(B, L),
        in_specs=in_specs,
        out_specs=pl.BlockSpec((None, St, E), lambda b, l: (b, 0, 0)),
        scratch_shapes=[pltpu.VMEM((St, E), jnp.float32)],
        compiler_params=pltpu.CompilerParams(
            dimension_semantics=("parallel", "arbitrary"),
            vmem_limit_bytes=_VMEM_LIMIT),
    )(x, memory, *ws, final_norm["g"], final_norm["b"])


def fc_logits(y, fc_p):
    """fc Linear over the (already layer-normed) decoder output, tiled over vocab."""
    B, S, E = y.shape
    V = fc_p["b"].shape[-1]
    V_pad = ((V + 127) // 128) * 128
    w, b = fc_p["w"], fc_p["b"]
    if V_pad != V:
        w = jnp.pad(w, ((0, 0), (0, V_pad - V)))
        b = jnp.pad(b, ((0, 0), (0, V_pad - V)))
    # Widest lane-dense tile that divides the padded vocab (fewer grid steps,
    # unmasked vst stores, bigger fc-weight DMAs) while staying small in VMEM.
    tile_n = 512 if V_pad % 512 == 0 else (256 if V_pad % 256 == 0 else 128)
    nv = V_pad // tile_n
    out = pl.pallas_call(
        _fc_kernel,
        out_shape=jax.ShapeDtypeStruct((B, S, V_pad), jnp.float32),
        grid=(B, nv),
        in_specs=[pl.BlockSpec((None, S, E), lambda bb, n: (bb, 0, 0)),
                  pl.BlockSpec((E, tile_n), lambda bb, n: (0, n)),
                  pl.BlockSpec((1, tile_n), lambda bb, n: (0, n))],
        out_specs=pl.BlockSpec((None, S, tile_n), lambda bb, n: (bb, 0, n)),
        compiler_params=pltpu.CompilerParams(
            dimension_semantics=("parallel", "parallel"),
            vmem_limit_bytes=_VMEM_LIMIT),
    )(y, w, b)
    return out[:, :, :V] if V_pad != V else out


def transformer_model_forward(params, src, tgt, nhead):
    """src, tgt: (B, S, E) -> logits (tgt_seq, B, tgt_vocab) (PyTorch layout)."""
    memory = encoder_stack(src, params["encoder"]["layers"],
                           params["encoder"]["norm"], nhead)
    y = decoder_stack(tgt, memory, params["decoder"]["layers"],
                      params["decoder"]["norm"], nhead)
    out = fc_logits(y, params["fc"])                                  # (B, St, V)
    return jnp.transpose(out, (1, 0, 2))                              # (St, B, V)


# ----------------------------- parameter init ------------------------------


def init_params(key, d_model, n_enc, n_dec, dim_ff, tgt_vocab):
    """Per-layer weights stacked along a leading layer axis; matmul weights in
    bf16 (native MXU input dtype), biases / LayerNorm params in f32."""
    counter = itertools.count()
    E, F = d_model, dim_ff

    def nk():
        return jax.random.fold_in(key, next(counter))

    def lin(shape):
        return (jax.random.normal(nk(), shape, jnp.float32) * 0.02
                ).astype(jnp.bfloat16)

    def z(*s):
        return jnp.zeros(s, jnp.float32)

    def o(*s):
        return jnp.ones(s, jnp.float32)

    def attn(L, prefix=""):
        return {prefix + "wq": lin((L, E, E)), prefix + "bq": z(L, 1, E),
                prefix + "wkv": lin((L, E, 2 * E)), prefix + "bkv": z(L, 1, 2 * E),
                prefix + "wo": lin((L, E, E)), prefix + "bo": z(L, 1, E)}

    def ffn(L):
        return {"w1": lin((L, E, F)), "bf1": z(L, 1, F),
                "w2": lin((L, F, E)), "bf2": z(L, 1, E)}

    enc = {}
    enc.update(attn(n_enc))
    enc.update({"g1": o(n_enc, 1, E), "b1": z(n_enc, 1, E)})
    enc.update(ffn(n_enc))
    enc.update({"g2": o(n_enc, 1, E), "b2": z(n_enc, 1, E)})

    dec = {}
    dec.update(attn(n_dec, "s_"))
    dec.update({"g1": o(n_dec, 1, E), "b1": z(n_dec, 1, E)})
    dec.update(attn(n_dec, "c_"))
    dec.update({"g2": o(n_dec, 1, E), "b2": z(n_dec, 1, E)})
    dec.update(ffn(n_dec))
    dec.update({"g3": o(n_dec, 1, E), "b3": z(n_dec, 1, E)})

    return {"encoder": {"layers": enc, "norm": {"g": o(1, E), "b": z(1, E)}},
            "decoder": {"layers": dec, "norm": {"g": o(1, E), "b": z(1, E)}},
            "fc": {"w": lin((E, tgt_vocab)), "b": z(1, tgt_vocab)}}


# ---------------------------------- main -----------------------------------


if __name__ == "__main__":
    # Small shapes consistent with the module structure.
    d_model = 32
    nhead = 4
    num_encoder_layers = 2
    num_decoder_layers = 2
    dim_ff = 64
    tgt_vocab_size = 128
    batch = 2
    src_seq = 8
    tgt_seq = 8

    root = jax.random.PRNGKey(0)
    k_params, k_src, k_tgt = jax.random.split(root, 3)

    params = init_params(k_params, d_model, num_encoder_layers,
                         num_decoder_layers, dim_ff, tgt_vocab_size)

    src = jax.random.normal(k_src, (batch, src_seq, d_model), jnp.float32)
    tgt = jax.random.normal(k_tgt, (batch, tgt_seq, d_model), jnp.float32)

    fwd = jax.jit(functools.partial(transformer_model_forward, nhead=nhead))
    out = jax.block_until_ready(fwd(params, src, tgt))

    assert out.shape == (tgt_seq, batch, tgt_vocab_size), out.shape
    assert bool(jnp.all(jnp.isfinite(out)))
    print("KERNEL_OK")
</pallas_src>

<mosaic_0001>
module attributes {stable_mosaic.version = 11 : i64} {
  func.func @_encoder_stack_kernel(%arg0: i32, %arg1: i32, %arg2: memref<1x8x32xf32, #tpu.memory_space<vmem>>, %arg3: memref<1x32x32xbf16, #tpu.memory_space<vmem>>, %arg4: memref<1x1x32xf32, #tpu.memory_space<vmem>>, %arg5: memref<1x32x64xbf16, #tpu.memory_space<vmem>>, %arg6: memref<1x1x64xf32, #tpu.memory_space<vmem>>, %arg7: memref<1x32x32xbf16, #tpu.memory_space<vmem>>, %arg8: memref<1x1x32xf32, #tpu.memory_space<vmem>>, %arg9: memref<1x1x32xf32, #tpu.memory_space<vmem>>, %arg10: memref<1x1x32xf32, #tpu.memory_space<vmem>>, %arg11: memref<1x32x64xbf16, #tpu.memory_space<vmem>>, %arg12: memref<1x1x64xf32, #tpu.memory_space<vmem>>, %arg13: memref<1x64x32xbf16, #tpu.memory_space<vmem>>, %arg14: memref<1x1x32xf32, #tpu.memory_space<vmem>>, %arg15: memref<1x1x32xf32, #tpu.memory_space<vmem>>, %arg16: memref<1x1x32xf32, #tpu.memory_space<vmem>>, %arg17: memref<1x32xf32, #tpu.memory_space<vmem>>, %arg18: memref<1x32xf32, #tpu.memory_space<vmem>>, %arg19: memref<1x8x32xf32, #tpu.memory_space<vmem>>, %arg20: memref<8x32xf32, #tpu.memory_space<vmem>>) attributes {dimension_semantics = [#tpu.dimension_semantics<parallel>, #tpu.dimension_semantics<arbitrary>], iteration_bounds = array<i64: 2, 2>, scalar_prefetch = 0 : i64, scratch_operands = 1 : i64, tpu.core_type = #tpu.core_type<tc>, window_params = [{transform_indices = @transform_0, window_bounds = array<i64: 1, 8, 32>}, {transform_indices = @transform_1, window_bounds = array<i64: 1, 32, 32>}, {transform_indices = @transform_2, window_bounds = array<i64: 1, 1, 32>}, {transform_indices = @transform_3, window_bounds = array<i64: 1, 32, 64>}, {transform_indices = @transform_4, window_bounds = array<i64: 1, 1, 64>}, {transform_indices = @transform_5, window_bounds = array<i64: 1, 32, 32>}, {transform_indices = @transform_6, window_bounds = array<i64: 1, 1, 32>}, {transform_indices = @transform_7, window_bounds = array<i64: 1, 1, 32>}, {transform_indices = @transform_8, window_bounds = array<i64: 1, 1, 32>}, {transform_indices = @transform_9, window_bounds = array<i64: 1, 32, 64>}, {transform_indices = @transform_10, window_bounds = array<i64: 1, 1, 64>}, {transform_indices = @transform_11, window_bounds = array<i64: 1, 64, 32>}, {transform_indices = @transform_12, window_bounds = array<i64: 1, 1, 32>}, {transform_indices = @transform_13, window_bounds = array<i64: 1, 1, 32>}, {transform_indices = @transform_14, window_bounds = array<i64: 1, 1, 32>}, {pipeline_mode = #tpu.pipeline_mode<synchronous>, transform_indices = @transform_15, window_bounds = array<i64: 1, 32>}, {pipeline_mode = #tpu.pipeline_mode<synchronous>, transform_indices = @transform_16, window_bounds = array<i64: 1, 32>}, {transform_indices = @transform_17, window_bounds = array<i64: 1, 8, 32>}]} {
    %c0_i32 = arith.constant 0 : i32
    %0 = arith.cmpi eq, %arg1, %c0_i32 : i32
    %1 = arith.extui %0 : i1 to i32
    %c0_i32_0 = arith.constant 0 : i32
    %2 = arith.cmpi ne, %1, %c0_i32_0 : i32
    scf.if %2 {
      %c0_79 = arith.constant 0 : index
      %c0_80 = arith.constant 0 : index
      %c0_81 = arith.constant 0 : index
      %185 = vector.load %arg2[%c0_79, %c0_80, %c0_81] : memref<1x8x32xf32, #tpu.memory_space<vmem>>, vector<1x8x32xf32>
      %186 = vector.shape_cast %185 : vector<1x8x32xf32> to vector<8x32xf32>
      %c0_82 = arith.constant 0 : index
      %c0_83 = arith.constant 0 : index
      %187 = vector.load %arg20[%c0_82, %c0_83] : memref<8x32xf32, #tpu.memory_space<vmem>>, vector<8x32xf32>
      tpu.vector_store %arg20[%c0_82, %c0_83], %186 {strides = array<i32>} : memref<8x32xf32, #tpu.memory_space<vmem>>, vector<8x32xf32>,
    } else {
    }
    %c0 = arith.constant 0 : index
    %c0_1 = arith.constant 0 : index
    %3 = vector.load %arg20[%c0, %c0_1] : memref<8x32xf32, #tpu.memory_space<vmem>>, vector<8x32xf32>
    %c0_2 = arith.constant 0 : index
    %c0_3 = arith.constant 0 : index
    %c0_4 = arith.constant 0 : index
    %4 = vector.load %arg3[%c0_2, %c0_3, %c0_4] : memref<1x32x32xbf16, #tpu.memory_space<vmem>>, vector<1x32x32xbf16>
    %5 = vector.shape_cast %4 : vector<1x32x32xbf16> to vector<32x32xbf16>
    %c0_5 = arith.constant 0 : index
    %c0_6 = arith.constant 0 : index
    %c0_7 = arith.constant 0 : index
    %6 = vector.load %arg4[%c0_5, %c0_6, %c0_7] : memref<1x1x32xf32, #tpu.memory_space<vmem>>, vector<1x1x32xf32>
    %7 = vector.shape_cast %6 : vector<1x1x32xf32> to vector<1x32xf32>
    %c0_8 = arith.constant 0 : index
    %c0_9 = arith.constant 0 : index
    %c0_10 = arith.constant 0 : index
    %8 = vector.load %arg5[%c0_8, %c0_9, %c0_10] : memref<1x32x64xbf16, #tpu.memory_space<vmem>>, vector<1x32x64xbf16>
    %9 = vector.shape_cast %8 : vector<1x32x64xbf16> to vector<32x64xbf16>
    %c0_11 = arith.constant 0 : index
    %c0_12 = arith.constant 0 : index
    %c0_13 = arith.constant 0 : index
    %10 = vector.load %arg6[%c0_11, %c0_12, %c0_13] : memref<1x1x64xf32, #tpu.memory_space<vmem>>, vector<1x1x64xf32>
    %11 = vector.shape_cast %10 : vector<1x1x64xf32> to vector<1x64xf32>
    %c0_14 = arith.constant 0 : index
    %c0_15 = arith.constant 0 : index
    %c0_16 = arith.constant 0 : index
    %12 = vector.load %arg7[%c0_14, %c0_15, %c0_16] : memref<1x32x32xbf16, #tpu.memory_space<vmem>>, vector<1x32x32xbf16>
    %13 = vector.shape_cast %12 : vector<1x32x32xbf16> to vector<32x32xbf16>
    %c0_17 = arith.constant 0 : index
    %c0_18 = arith.constant 0 : index
    %c0_19 = arith.constant 0 : index
    %14 = vector.load %arg8[%c0_17, %c0_18, %c0_19] : memref<1x1x32xf32, #tpu.memory_space<vmem>>, vector<1x1x32xf32>
    %15 = vector.shape_cast %14 : vector<1x1x32xf32> to vector<1x32xf32>
    %16 = arith.truncf %3 : vector<8x32xf32> to vector<8x32xbf16>
    %cst = arith.constant dense<0.000000e+00> : vector<8x32xf32>
    %17 = tpu.matmul %16, %5, %cst {dimension_numbers = #tpu.dot_dimension_numbers<[1], [0], [0], [1], [0, 0, 1, 1], [], []>} : vector<8x32xbf16>, vector<32x32xbf16>, vector<8x32xf32> -> vector<8x32xf32>
    %18 = vector.broadcast %7 : vector<1x32xf32> to vector<8x32xf32>
    %19 = arith.addf %17, %18 : vector<8x32xf32>
    %cst_20 = arith.constant 0.353553385 : f32
    %20 = vector.broadcast %cst_20 : f32 to vector<8x32xf32>
    %21 = arith.mulf %19, %20 : vector<8x32xf32>
    %22 = arith.truncf %3 : vector<8x32xf32> to vector<8x32xbf16>
    %cst_21 = arith.constant dense<0.000000e+00> : vector<8x64xf32>
    %23 = tpu.matmul %22, %9, %cst_21 {dimension_numbers = #tpu.dot_dimension_numbers<[1], [0], [0], [1], [0, 0, 1, 1], [], []>} : vector<8x32xbf16>, vector<32x64xbf16>, vector<8x64xf32> -> vector<8x64xf32>
    %24 = vector.broadcast %11 : vector<1x64xf32> to vector<8x64xf32>
    %25 = arith.addf %23, %24 : vector<8x64xf32>
    %26 = vector.extract_strided_slice %25 {offsets = [0, 0], sizes = [8, 32], strides = [1, 1]} : vector<8x64xf32> to vector<8x32xf32>
    %27 = vector.extract_strided_slice %25 {offsets = [0, 32], sizes = [8, 32], strides = [1, 1]} : vector<8x64xf32> to vector<8x32xf32>
    %28 = vector.extract_strided_slice %21 {offsets = [0, 0], sizes = [8, 8], strides = [1, 1]} : vector<8x32xf32> to vector<8x8xf32>
    %29 = arith.truncf %28 : vector<8x8xf32> to vector<8x8xbf16>
    %30 = vector.extract_strided_slice %26 {offsets = [0, 0], sizes = [8, 8], strides = [1, 1]} : vector<8x32xf32> to vector<8x8xf32>
    %31 = arith.truncf %30 : vector<8x8xf32> to vector<8x8xbf16>
    %32 = vector.extract_strided_slice %27 {offsets = [0, 0], sizes = [8, 8], strides = [1, 1]} : vector<8x32xf32> to vector<8x8xf32>
    %33 = arith.truncf %32 : vector<8x8xf32> to vector<8x8xbf16>
    %cst_22 = arith.constant dense<0.000000e+00> : vector<8x8xf32>
    %34 = tpu.matmul %29, %31, %cst_22 {dimension_numbers = #tpu.dot_dimension_numbers<[1], [1], [0], [0], [0, 0, 1, 0], [], []>} : vector<8x8xbf16>, vector<8x8xbf16>, vector<8x8xf32> -> vector<8x8xf32>
    %cst_23 = arith.constant dense<0xFF800000> : vector<8xf32>
    %35 = vector.multi_reduction <maximumf>, %34, %cst_23 [1] : vector<8x8xf32> to vector<8xf32>
    %36 = vector.shape_cast %35 : vector<8xf32> to vector<8x1xf32>
    %37 = vector.broadcast %36 : vector<8x1xf32> to vector<8x8xf32>
    %38 = arith.subf %34, %37 : vector<8x8xf32>
    %39 = math.exp %38 : vector<8x8xf32>
    %cst_24 = arith.constant dense<0.000000e+00> : vector<8xf32>
    %40 = vector.multi_reduction <add>, %39, %cst_24 [1] : vector<8x8xf32> to vector<8xf32>
    %41 = vector.shape_cast %40 : vector<8xf32> to vector<8x1xf32>
    %42 = arith.truncf %39 : vector<8x8xf32> to vector<8x8xbf16>
    %cst_25 = arith.constant dense<0.000000e+00> : vector<8x8xf32>
    %43 = tpu.matmul %42, %33, %cst_25 {dimension_numbers = #tpu.dot_dimension_numbers<[1], [0], [0], [1], [0, 0, 1, 1], [], []>} : vector<8x8xbf16>, vector<8x8xbf16>, vector<8x8xf32> -> vector<8x8xf32>
    %44 = tpu.reciprocal %41 {approx = true} : vector<8x1xf32> -> vector<8x1xf32>
    %45 = vector.broadcast %44 : vector<8x1xf32> to vector<8x8xf32>
    %46 = arith.mulf %43, %45 : vector<8x8xf32>
    %47 = vector.extract_strided_slice %21 {offsets = [0, 8], sizes = [8, 8], strides = [1, 1]} : vector<8x32xf32> to vector<8x8xf32>
    %48 = arith.truncf %47 : vector<8x8xf32> to vector<8x8xbf16>
    %49 = vector.extract_strided_slice %26 {offsets = [0, 8], sizes = [8, 8], strides = [1, 1]} : vector<8x32xf32> to vector<8x8xf32>
    %50 = arith.truncf %49 : vector<8x8xf32> to vector<8x8xbf16>
    %51 = vector.extract_strided_slice %27 {offsets = [0, 8], sizes = [8, 8], strides = [1, 1]} : vector<8x32xf32> to vector<8x8xf32>
    %52 = arith.truncf %51 : vector<8x8xf32> to vector<8x8xbf16>
    %cst_26 = arith.constant dense<0.000000e+00> : vector<8x8xf32>
    %53 = tpu.matmul %48, %50, %cst_26 {dimension_numbers = #tpu.dot_dimension_numbers<[1], [1], [0], [0], [0, 0, 1, 0], [], []>} : vector<8x8xbf16>, vector<8x8xbf16>, vector<8x8xf32> -> vector<8x8xf32>
    %cst_27 = arith.constant dense<0xFF800000> : vector<8xf32>
    %54 = vector.multi_reduction <maximumf>, %53, %cst_27 [1] : vector<8x8xf32> to vector<8xf32>
    %55 = vector.shape_cast %54 : vector<8xf32> to vector<8x1xf32>
    %56 = vector.broadcast %55 : vector<8x1xf32> to vector<8x8xf32>
    %57 = arith.subf %53, %56 : vector<8x8xf32>
    %58 = math.exp %57 : vector<8x8xf32>
    %cst_28 = arith.constant dense<0.000000e+00> : vector<8xf32>
    %59 = vector.multi_reduction <add>, %58, %cst_28 [1] : vector<8x8xf32> to vector<8xf32>
    %60 = vector.shape_cast %59 : vector<8xf32> to vector<8x1xf32>
    %61 = arith.truncf %58 : vector<8x8xf32> to vector<8x8xbf16>
    %cst_29 = arith.constant dense<0.000000e+00> : vector<8x8xf32>
    %62 = tpu.matmul %61, %52, %cst_29 {dimension_numbers = #tpu.dot_dimension_numbers<[1], [0], [0], [1], [0, 0, 1, 1], [], []>} : vector<8x8xbf16>, vector<8x8xbf16>, vector<8x8xf32> -> vector<8x8xf32>
    %63 = tpu.reciprocal %60 {approx = true} : vector<8x1xf32> -> vector<8x1xf32>
    %64 = vector.broadcast %63 : vector<8x1xf32> to vector<8x8xf32>
    %65 = arith.mulf %62, %64 : vector<8x8xf32>
    %66 = vector.extract_strided_slice %21 {offsets = [0, 16], sizes = [8, 8], strides = [1, 1]} : vector<8x32xf32> to vector<8x8xf32>
    %67 = arith.truncf %66 : vector<8x8xf32> to vector<8x8xbf16>
    %68 = vector.extract_strided_slice %26 {offsets = [0, 16], sizes = [8, 8], strides = [1, 1]} : vector<8x32xf32> to vector<8x8xf32>
    %69 = arith.truncf %68 : vector<8x8xf32> to vector<8x8xbf16>
    %70 = vector.extract_strided_slice %27 {offsets = [0, 16], sizes = [8, 8], strides = [1, 1]} : vector<8x32xf32> to vector<8x8xf32>
    %71 = arith.truncf %70 : vector<8x8xf32> to vector<8x8xbf16>
    %cst_30 = arith.constant dense<0.000000e+00> : vector<8x8xf32>
    %72 = tpu.matmul %67, %69, %cst_30 {dimension_numbers = #tpu.dot_dimension_numbers<[1], [1], [0], [0], [0, 0, 1, 0], [], []>} : vector<8x8xbf16>, vector<8x8xbf16>, vector<8x8xf32> -> vector<8x8xf32>
    %cst_31 = arith.constant dense<0xFF800000> : vector<8xf32>
    %73 = vector.multi_reduction <maximumf>, %72, %cst_31 [1] : vector<8x8xf32> to vector<8xf32>
    %74 = vector.shape_cast %73 : vector<8xf32> to vector<8x1xf32>
    %75 = vector.broadcast %74 : vector<8x1xf32> to vector<8x8xf32>
    %76 = arith.subf %72, %75 : vector<8x8xf32>
    %77 = math.exp %76 : vector<8x8xf32>
    %cst_32 = arith.constant dense<0.000000e+00> : vector<8xf32>
    %78 = vector.multi_reduction <add>, %77, %cst_32 [1] : vector<8x8xf32> to vector<8xf32>
    %79 = vector.shape_cast %78 : vector<8xf32> to vector<8x1xf32>
    %80 = arith.truncf %77 : vector<8x8xf32> to vector<8x8xbf16>
    %cst_33 = arith.constant dense<0.000000e+00> : vector<8x8xf32>
    %81 = tpu.matmul %80, %71, %cst_33 {dimension_numbers = #tpu.dot_dimension_numbers<[1], [0], [0], [1], [0, 0, 1, 1], [], []>} : vector<8x8xbf16>, vector<8x8xbf16>, vector<8x8xf32> -> vector<8x8xf32>
    %82 = tpu.reciprocal %79 {approx = true} : vector<8x1xf32> -> vector<8x1xf32>
    %83 = vector.broadcast %82 : vector<8x1xf32> to vector<8x8xf32>
    %84 = arith.mulf %81, %83 : vector<8x8xf32>
    %85 = vector.extract_strided_slice %21 {offsets = [0, 24], sizes = [8, 8], strides = [1, 1]} : vector<8x32xf32> to vector<8x8xf32>
    %86 = arith.truncf %85 : vector<8x8xf32> to vector<8x8xbf16>
    %87 = vector.extract_strided_slice %26 {offsets = [0, 24], sizes = [8, 8], strides = [1, 1]} : vector<8x32xf32> to vector<8x8xf32>
    %88 = arith.truncf %87 : vector<8x8xf32> to vector<8x8xbf16>
    %89 = vector.extract_strided_slice %27 {offsets = [0, 24], sizes = [8, 8], strides = [1, 1]} : vector<8x32xf32> to vector<8x8xf32>
    %90 = arith.truncf %89 : vector<8x8xf32> to vector<8x8xbf16>
    %cst_34 = arith.constant dense<0.000000e+00> : vector<8x8xf32>
    %91 = tpu.matmul %86, %88, %cst_34 {dimension_numbers = #tpu.dot_dimension_numbers<[1], [1], [0], [0], [0, 0, 1, 0], [], []>} : vector<8x8xbf16>, vector<8x8xbf16>, vector<8x8xf32> -> vector<8x8xf32>
    %cst_35 = arith.constant dense<0xFF800000> : vector<8xf32>
    %92 = vector.multi_reduction <maximumf>, %91, %cst_35 [1] : vector<8x8xf32> to vector<8xf32>
    %93 = vector.shape_cast %92 : vector<8xf32> to vector<8x1xf32>
    %94 = vector.broadcast %93 : vector<8x1xf32> to vector<8x8xf32>
    %95 = arith.subf %91, %94 : vector<8x8xf32>
    %96 = math.exp %95 : vector<8x8xf32>
    %cst_36 = arith.constant dense<0.000000e+00> : vector<8xf32>
    %97 = vector.multi_reduction <add>, %96, %cst_36 [1] : vector<8x8xf32> to vector<8xf32>
    %98 = vector.shape_cast %97 : vector<8xf32> to vector<8x1xf32>
    %99 = arith.truncf %96 : vector<8x8xf32> to vector<8x8xbf16>
    %cst_37 = arith.constant dense<0.000000e+00> : vector<8x8xf32>
    %100 = tpu.matmul %99, %90, %cst_37 {dimension_numbers = #tpu.dot_dimension_numbers<[1], [0], [0], [1], [0, 0, 1, 1], [], []>} : vector<8x8xbf16>, vector<8x8xbf16>, vector<8x8xf32> -> vector<8x8xf32>
    %101 = tpu.reciprocal %98 {approx = true} : vector<8x1xf32> -> vector<8x1xf32>
    %102 = vector.broadcast %101 : vector<8x1xf32> to vector<8x8xf32>
    %103 = arith.mulf %100, %102 : vector<8x8xf32>
    %104 = tpu.concatenate %46, %65, %84, %103 in 1 : vector<8x8xf32>, vector<8x8xf32>, vector<8x8xf32>, vector<8x8xf32> -> vector<8x32xf32>
    %105 = arith.truncf %104 : vector<8x32xf32> to vector<8x32xbf16>
    %cst_38 = arith.constant dense<0.000000e+00> : vector<8x32xf32>
    %106 = tpu.matmul %105, %13, %cst_38 {dimension_numbers = #tpu.dot_dimension_numbers<[1], [0], [0], [1], [0, 0, 1, 1], [], []>} : vector<8x32xbf16>, vector<32x32xbf16>, vector<8x32xf32> -> vector<8x32xf32>
    %107 = vector.broadcast %15 : vector<1x32xf32> to vector<8x32xf32>
    %108 = arith.addf %106, %107 : vector<8x32xf32>
    %109 = arith.addf %3, %108 : vector<8x32xf32>
    %c0_39 = arith.constant 0 : index
    %c0_40 = arith.constant 0 : index
    %c0_41 = arith.constant 0 : index
    %110 = vector.load %arg9[%c0_39, %c0_40, %c0_41] : memref<1x1x32xf32, #tpu.memory_space<vmem>>, vector<1x1x32xf32>
    %111 = vector.shape_cast %110 : vector<1x1x32xf32> to vector<1x32xf32>
    %c0_42 = arith.constant 0 : index
    %c0_43 = arith.constant 0 : index
    %c0_44 = arith.constant 0 : index
    %112 = vector.load %arg10[%c0_42, %c0_43, %c0_44] : memref<1x1x32xf32, #tpu.memory_space<vmem>>, vector<1x1x32xf32>
    %113 = vector.shape_cast %112 : vector<1x1x32xf32> to vector<1x32xf32>
    %cst_45 = arith.constant dense<0.000000e+00> : vector<8xf32>
    %114 = vector.multi_reduction <add>, %109, %cst_45 [1] : vector<8x32xf32> to vector<8xf32>
    %115 = vector.shape_cast %114 : vector<8xf32> to vector<8x1xf32>
    %cst_46 = arith.constant 3.200000e+01 : f32
    %116 = vector.broadcast %cst_46 : f32 to vector<8x1xf32>
    %117 = arith.divf %115, %116 : vector<8x1xf32>
    %118 = vector.broadcast %117 : vector<8x1xf32> to vector<8x32xf32>
    %119 = arith.subf %109, %118 : vector<8x32xf32>
    %120 = arith.mulf %119, %119 : vector<8x32xf32>
    %cst_47 = arith.constant dense<0.000000e+00> : vector<8xf32>
    %121 = vector.multi_reduction <add>, %120, %cst_47 [1] : vector<8x32xf32> to vector<8xf32>
    %122 = vector.shape_cast %121 : vector<8xf32> to vector<8x1xf32>
    %cst_48 = arith.constant 3.200000e+01 : f32
    %123 = vector.broadcast %cst_48 : f32 to vector<8x1xf32>
    %124 = arith.divf %122, %123 : vector<8x1xf32>
    %125 = vector.broadcast %117 : vector<8x1xf32> to vector<8x32xf32>
    %126 = arith.subf %109, %125 : vector<8x32xf32>
    %cst_49 = arith.constant 9.99999974E-6 : f32
    %127 = vector.broadcast %cst_49 : f32 to vector<8x1xf32>
    %128 = arith.addf %124, %127 : vector<8x1xf32>
    %129 = math.rsqrt %128 : vector<8x1xf32>
    %130 = vector.broadcast %129 : vector<8x1xf32> to vector<8x32xf32>
    %131 = arith.mulf %126, %130 : vector<8x32xf32>
    %132 = vector.broadcast %111 : vector<1x32xf32> to vector<8x32xf32>
    %133 = arith.mulf %131, %132 : vector<8x32xf32>
    %134 = vector.broadcast %113 : vector<1x32xf32> to vector<8x32xf32>
    %135 = arith.addf %133, %134 : vector<8x32xf32>
    %c0_50 = arith.constant 0 : index
    %c0_51 = arith.constant 0 : index
    %c0_52 = arith.constant 0 : index
    %136 = vector.load %arg11[%c0_50, %c0_51, %c0_52] : memref<1x32x64xbf16, #tpu.memory_space<vmem>>, vector<1x32x64xbf16>
    %137 = vector.shape_cast %136 : vector<1x32x64xbf16> to vector<32x64xbf16>
    %c0_53 = arith.constant 0 : index
    %c0_54 = arith.constant 0 : index
    %c0_55 = arith.constant 0 : index
    %138 = vector.load %arg12[%c0_53, %c0_54, %c0_55] : memref<1x1x64xf32, #tpu.memory_space<vmem>>, vector<1x1x64xf32>
    %139 = vector.shape_cast %138 : vector<1x1x64xf32> to vector<1x64xf32>
    %c0_56 = arith.constant 0 : index
    %c0_57 = arith.constant 0 : index
    %c0_58 = arith.constant 0 : index
    %140 = vector.load %arg13[%c0_56, %c0_57, %c0_58] : memref<1x64x32xbf16, #tpu.memory_space<vmem>>, vector<1x64x32xbf16>
    %141 = vector.shape_cast %140 : vector<1x64x32xbf16> to vector<64x32xbf16>
    %c0_59 = arith.constant 0 : index
    %c0_60 = arith.constant 0 : index
    %c0_61 = arith.constant 0 : index
    %142 = vector.load %arg14[%c0_59, %c0_60, %c0_61] : memref<1x1x32xf32, #tpu.memory_space<vmem>>, vector<1x1x32xf32>
    %143 = vector.shape_cast %142 : vector<1x1x32xf32> to vector<1x32xf32>
    %144 = arith.truncf %135 : vector<8x32xf32> to vector<8x32xbf16>
    %cst_62 = arith.constant dense<0.000000e+00> : vector<8x64xf32>
    %145 = tpu.matmul %144, %137, %cst_62 {dimension_numbers = #tpu.dot_dimension_numbers<[1], [0], [0], [1], [0, 0, 1, 1], [], []>} : vector<8x32xbf16>, vector<32x64xbf16>, vector<8x64xf32> -> vector<8x64xf32>
    %146 = vector.broadcast %139 : vector<1x64xf32> to vector<8x64xf32>
    %147 = arith.addf %145, %146 : vector<8x64xf32>
    %cst_63 = arith.constant 0.000000e+00 : f32
    %148 = vector.broadcast %cst_63 : f32 to vector<8x64xf32>
    %149 = arith.maximumf %147, %148 : vector<8x64xf32>
    %150 = arith.truncf %149 : vector<8x64xf32> to vector<8x64xbf16>
    %cst_64 = arith.constant dense<0.000000e+00> : vector<8x32xf32>
    %151 = tpu.matmul %150, %141, %cst_64 {dimension_numbers = #tpu.dot_dimension_numbers<[1], [0], [0], [1], [0, 0, 1, 1], [], []>} : vector<8x64xbf16>, vector<64x32xbf16>, vector<8x32xf32> -> vector<8x32xf32>
    %152 = vector.broadcast %143 : vector<1x32xf32> to vector<8x32xf32>
    %153 = arith.addf %151, %152 : vector<8x32xf32>
    %154 = arith.addf %135, %153 : vector<8x32xf32>
    %c0_65 = arith.constant 0 : index
    %c0_66 = arith.constant 0 : index
    %c0_67 = arith.constant 0 : index
    %155 = vector.load %arg15[%c0_65, %c0_66, %c0_67] : memref<1x1x32xf32, #tpu.memory_space<vmem>>, vector<1x1x32xf32>
    %156 = vector.shape_cast %155 : vector<1x1x32xf32> to vector<1x32xf32>
    %c0_68 = arith.constant 0 : index
    %c0_69 = arith.constant 0 : index
    %c0_70 = arith.constant 0 : index
    %157 = vector.load %arg16[%c0_68, %c0_69, %c0_70] : memref<1x1x32xf32, #tpu.memory_space<vmem>>, vector<1x1x32xf32>
    %158 = vector.shape_cast %157 : vector<1x1x32xf32> to vector<1x32xf32>
    %cst_71 = arith.constant dense<0.000000e+00> : vector<8xf32>
    %159 = vector.multi_reduction <add>, %154, %cst_71 [1] : vector<8x32xf32> to vector<8xf32>
    %160 = vector.shape_cast %159 : vector<8xf32> to vector<8x1xf32>
    %cst_72 = arith.constant 3.200000e+01 : f32
    %161 = vector.broadcast %cst_72 : f32 to vector<8x1xf32>
    %162 = arith.divf %160, %161 : vector<8x1xf32>
    %163 = vector.broadcast %162 : vector<8x1xf32> to vector<8x32xf32>
    %164 = arith.subf %154, %163 : vector<8x32xf32>
    %165 = arith.mulf %164, %164 : vector<8x32xf32>
    %cst_73 = arith.constant dense<0.000000e+00> : vector<8xf32>
    %166 = vector.multi_reduction <add>, %165, %cst_73 [1] : vector<8x32xf32> to vector<8xf32>
    %167 = vector.shape_cast %166 : vector<8xf32> to vector<8x1xf32>
    %cst_74 = arith.constant 3.200000e+01 : f32
    %168 = vector.broadcast %cst_74 : f32 to vector<8x1xf32>
    %169 = arith.divf %167, %168 : vector<8x1xf32>
    %170 = vector.broadcast %162 : vector<8x1xf32> to vector<8x32xf32>
    %171 = arith.subf %154, %170 : vector<8x32xf32>
    %cst_75 = arith.constant 9.99999974E-6 : f32
    %172 = vector.broadcast %cst_75 : f32 to vector<8x1xf32>
    %173 = arith.addf %169, %172 : vector<8x1xf32>
    %174 = math.rsqrt %173 : vector<8x1xf32>
    %175 = vector.broadcast %174 : vector<8x1xf32> to vector<8x32xf32>
    %176 = arith.mulf %171, %175 : vector<8x32xf32>
    %177 = vector.broadcast %156 : vector<1x32xf32> to vector<8x32xf32>
    %178 = arith.mulf %176, %177 : vector<8x32xf32>
    %179 = vector.broadcast %158 : vector<1x32xf32> to vector<8x32xf32>
    %180 = arith.addf %178, %179 : vector<8x32xf32>
    %c0_76 = arith.constant 0 : index
    %c0_77 = arith.constant 0 : index
    %181 = vector.load %arg20[%c0_76, %c0_77] : memref<8x32xf32, #tpu.memory_space<vmem>>, vector<8x32xf32>
    tpu.vector_store %arg20[%c0_76, %c0_77], %180 {strides = array<i32>} : memref<8x32xf32, #tpu.memory_space<vmem>>, vector<8x32xf32>,
    %c1_i32 = arith.constant 1 : i32
    %182 = arith.cmpi eq, %arg1, %c1_i32 : i32
    %183 = arith.extui %182 : i1 to i32
    %c0_i32_78 = arith.constant 0 : i32
    %184 = arith.cmpi ne, %183, %c0_i32_78 : i32
    scf.if %184 {
      %c0_79 = arith.constant 0 : index
      %c0_80 = arith.constant 0 : index
      %185 = vector.load %arg20[%c0_79, %c0_80] : memref<8x32xf32, #tpu.memory_space<vmem>>, vector<8x32xf32>
      %c0_81 = arith.constant 0 : index
      %c0_82 = arith.constant 0 : index
      %186 = vector.load %arg17[%c0_81, %c0_82] : memref<1x32xf32, #tpu.memory_space<vmem>>, vector<1x32xf32>
      %c0_83 = arith.constant 0 : index
      %c0_84 = arith.constant 0 : index
      %187 = vector.load %arg18[%c0_83, %c0_84] : memref<1x32xf32, #tpu.memory_space<vmem>>, vector<1x32xf32>
      %cst_85 = arith.constant dense<0.000000e+00> : vector<8xf32>
      %188 = vector.multi_reduction <add>, %185, %cst_85 [1] : vector<8x32xf32> to vector<8xf32>
      %189 = vector.shape_cast %188 : vector<8xf32> to vector<8x1xf32>
      %cst_86 = arith.constant 3.200000e+01 : f32
      %190 = vector.broadcast %cst_86 : f32 to vector<8x1xf32>
      %191 = arith.divf %189, %190 : vector<8x1xf32>
      %192 = vector.broadcast %191 : vector<8x1xf32> to vector<8x32xf32>
      %193 = arith.subf %185, %192 : vector<8x32xf32>
      %194 = arith.mulf %193, %193 : vector<8x32xf32>
      %cst_87 = arith.constant dense<0.000000e+00> : vector<8xf32>
      %195 = vector.multi_reduction <add>, %194, %cst_87 [1] : vector<8x32xf32> to vector<8xf32>
      %196 = vector.shape_cast %195 : vector<8xf32> to vector<8x1xf32>
      %cst_88 = arith.constant 3.200000e+01 : f32
      %197 = vector.broadcast %cst_88 : f32 to vector<8x1xf32>
      %198 = arith.divf %196, %197 : vector<8x1xf32>
      %199 = vector.broadcast %191 : vector<8x1xf32> to vector<8x32xf32>
      %200 = arith.subf %185, %199 : vector<8x32xf32>
      %cst_89 = arith.constant 9.99999974E-6 : f32
      %201 = vector.broadcast %cst_89 : f32 to vector<8x1xf32>
      %202 = arith.addf %198, %201 : vector<8x1xf32>
      %203 = math.rsqrt %202 : vector<8x1xf32>
      %204 = vector.broadcast %203 : vector<8x1xf32> to vector<8x32xf32>
      %205 = arith.mulf %200, %204 : vector<8x32xf32>
      %206 = vector.broadcast %186 : vector<1x32xf32> to vector<8x32xf32>
      %207 = arith.mulf %205, %206 : vector<8x32xf32>
      %208 = vector.broadcast %187 : vector<1x32xf32> to vector<8x32xf32>
      %209 = arith.addf %207, %208 : vector<8x32xf32>
      %c0_90 = arith.constant 0 : index
      %c0_91 = arith.constant 0 : index
      %c0_92 = arith.constant 0 : index
      %210 = vector.load %arg19[%c0_90, %c0_91, %c0_92] : memref<1x8x32xf32, #tpu.memory_space<vmem>>, vector<1x8x32xf32>
      %211 = vector.shape_cast %210 : vector<1x8x32xf32> to vector<8x32xf32>
      %212 = vector.shape_cast %209 : vector<8x32xf32> to vector<1x8x32xf32>
      tpu.vector_store %arg19[%c0_90, %c0_91, %c0_92], %212 {strides = array<i32>} : memref<1x8x32xf32, #tpu.memory_space<vmem>>, vector<1x8x32xf32>,
    } else {
    }
    return
  }
  func.func @transform_0(%arg0: i32, %arg1: i32) -> (i32, i32, i32) {
    %c0_i32 = arith.constant 0 : i32
    %c0_i32_0 = arith.constant 0 : i32
    %c0_i32_1 = arith.constant 0 : i32
    return %arg0, %c0_i32, %c0_i32_0 : i32, i32, i32
  }
  func.func @transform_1(%arg0: i32, %arg1: i32) -> (i32, i32, i32) {
    %c0_i32 = arith.constant 0 : i32
    %c0_i32_0 = arith.constant 0 : i32
    %c0_i32_1 = arith.constant 0 : i32
    return %arg1, %c0_i32, %c0_i32_0 : i32, i32, i32
  }
  func.func @transform_2(%arg0: i32, %arg1: i32) -> (i32, i32, i32) {
    %c0_i32 = arith.constant 0 : i32
    %c0_i32_0 = arith.constant 0 : i32
    %c0_i32_1 = arith.constant 0 : i32
    return %arg1, %c0_i32, %c0_i32_0 : i32, i32, i32
  }
  func.func @transform_3(%arg0: i32, %arg1: i32) -> (i32, i32, i32) {
    %c0_i32 = arith.constant 0 : i32
    %c0_i32_0 = arith.constant 0 : i32
    %c0_i32_1 = arith.constant 0 : i32
    return %arg1, %c0_i32, %c0_i32_0 : i32, i32, i32
  }
  func.func @transform_4(%arg0: i32, %arg1: i32) -> (i32, i32, i32) {
    %c0_i32 = arith.constant 0 : i32
    %c0_i32_0 = arith.constant 0 : i32
    %c0_i32_1 = arith.constant 0 : i32
    return %arg1, %c0_i32, %c0_i32_0 : i32, i32, i32
  }
  func.func @transform_5(%arg0: i32, %arg1: i32) -> (i32, i32, i32) {
    %c0_i32 = arith.constant 0 : i32
    %c0_i32_0 = arith.constant 0 : i32
    %c0_i32_1 = arith.constant 0 : i32
    return %arg1, %c0_i32, %c0_i32_0 : i32, i32, i32
  }
  func.func @transform_6(%arg0: i32, %arg1: i32) -> (i32, i32, i32) {
    %c0_i32 = arith.constant 0 : i32
    %c0_i32_0 = arith.constant 0 : i32
    %c0_i32_1 = arith.constant 0 : i32
    return %arg1, %c0_i32, %c0_i32_0 : i32, i32, i32
  }
  func.func @transform_7(%arg0: i32, %arg1: i32) -> (i32, i32, i32) {
    %c0_i32 = arith.constant 0 : i32
    %c0_i32_0 = arith.constant 0 : i32
    %c0_i32_1 = arith.constant 0 : i32
    return %arg1, %c0_i32, %c0_i32_0 : i32, i32, i32
  }
  func.func @transform_8(%arg0: i32, %arg1: i32) -> (i32, i32, i32) {
    %c0_i32 = arith.constant 0 : i32
    %c0_i32_0 = arith.constant 0 : i32
    %c0_i32_1 = arith.constant 0 : i32
    return %arg1, %c0_i32, %c0_i32_0 : i32, i32, i32
  }
  func.func @transform_9(%arg0: i32, %arg1: i32) -> (i32, i32, i32) {
    %c0_i32 = arith.constant 0 : i32
    %c0_i32_0 = arith.constant 0 : i32
    %c0_i32_1 = arith.constant 0 : i32
    return %arg1, %c0_i32, %c0_i32_0 : i32, i32, i32
  }
  func.func @transform_10(%arg0: i32, %arg1: i32) -> (i32, i32, i32) {
    %c0_i32 = arith.constant 0 : i32
    %c0_i32_0 = arith.constant 0 : i32
    %c0_i32_1 = arith.constant 0 : i32
    return %arg1, %c0_i32, %c0_i32_0 : i32, i32, i32
  }
  func.func @transform_11(%arg0: i32, %arg1: i32) -> (i32, i32, i32) {
    %c0_i32 = arith.constant 0 : i32
    %c0_i32_0 = arith.constant 0 : i32
    %c0_i32_1 = arith.constant 0 : i32
    return %arg1, %c0_i32, %c0_i32_0 : i32, i32, i32
  }
  func.func @transform_12(%arg0: i32, %arg1: i32) -> (i32, i32, i32) {
    %c0_i32 = arith.constant 0 : i32
    %c0_i32_0 = arith.constant 0 : i32
    %c0_i32_1 = arith.constant 0 : i32
    return %arg1, %c0_i32, %c0_i32_0 : i32, i32, i32
  }
  func.func @transform_13(%arg0: i32, %arg1: i32) -> (i32, i32, i32) {
    %c0_i32 = arith.constant 0 : i32
    %c0_i32_0 = arith.constant 0 : i32
    %c0_i32_1 = arith.constant 0 : i32
    return %arg1, %c0_i32, %c0_i32_0 : i32, i32, i32
  }
  func.func @transform_14(%arg0: i32, %arg1: i32) -> (i32, i32, i32) {
    %c0_i32 = arith.constant 0 : i32
    %c0_i32_0 = arith.constant 0 : i32
    %c0_i32_1 = arith.constant 0 : i32
    return %arg1, %c0_i32, %c0_i32_0 : i32, i32, i32
  }
  func.func @transform_15(%arg0: i32, %arg1: i32) -> (i32, i32) {
    %c0_i32 = arith.constant 0 : i32
    %c0_i32_0 = arith.constant 0 : i32
    %c0_i32_1 = arith.constant 0 : i32
    return %c0_i32, %c0_i32_0 : i32, i32
  }
  func.func @transform_16(%arg0: i32, %arg1: i32) -> (i32, i32) {
    %c0_i32 = arith.constant 0 : i32
    %c0_i32_0 = arith.constant 0 : i32
    %c0_i32_1 = arith.constant 0 : i32
    return %c0_i32, %c0_i32_0 : i32, i32
  }
  func.func @transform_17(%arg0: i32, %arg1: i32) -> (i32, i32, i32) {
    %c0_i32 = arith.constant 0 : i32
    %c0_i32_0 = arith.constant 0 : i32
    %c0_i32_1 = arith.constant 0 : i32
    return %arg0, %c0_i32, %c0_i32_0 : i32, i32, i32
  }
}

module attributes {stable_mosaic.version = 11 : i64} {
  func.func @_fc_kernel(%arg0: i32, %arg1: i32, %arg2: memref<1x8x32xf32, #tpu.memory_space<vmem>>, %arg3: memref<32x128xbf16, #tpu.memory_space<vmem>>, %arg4: memref<1x128xf32, #tpu.memory_space<vmem>>, %arg5: memref<1x8x128xf32, #tpu.memory_space<vmem>>) attributes {dimension_semantics = [#tpu.dimension_semantics<parallel>, #tpu.dimension_semantics<parallel>], iteration_bounds = array<i64: 2, 1>, scalar_prefetch = 0 : i64, scratch_operands = 0 : i64, tpu.core_type = #tpu.core_type<tc>, window_params = [{transform_indices = @transform_0, window_bounds = array<i64: 1, 8, 32>}, {transform_indices = @transform_1, window_bounds = array<i64: 32, 128>}, {transform_indices = @transform_2, window_bounds = array<i64: 1, 128>}, {transform_indices = @transform_3, window_bounds = array<i64: 1, 8, 128>}]} {
    %c0 = arith.constant 0 : index
    %c0_0 = arith.constant 0 : index
    %c0_1 = arith.constant 0 : index
    %0 = vector.load %arg2[%c0, %c0_0, %c0_1] : memref<1x8x32xf32, #tpu.memory_space<vmem>>, vector<1x8x32xf32>
    %1 = vector.shape_cast %0 : vector<1x8x32xf32> to vector<8x32xf32>
    %2 = arith.truncf %1 : vector<8x32xf32> to vector<8x32xbf16>
    %c0_2 = arith.constant 0 : index
    %c0_3 = arith.constant 0 : index
    %3 = vector.load %arg3[%c0_2, %c0_3] : memref<32x128xbf16, #tpu.memory_space<vmem>>, vector<32x128xbf16>
    %cst = arith.constant dense<0.000000e+00> : vector<8x128xf32>
    %4 = tpu.matmul %2, %3, %cst {dimension_numbers = #tpu.dot_dimension_numbers<[1], [0], [0], [1], [0, 0, 1, 1], [], []>} : vector<8x32xbf16>, vector<32x128xbf16>, vector<8x128xf32> -> vector<8x128xf32>
    %c0_4 = arith.constant 0 : index
    %c0_5 = arith.constant 0 : index
    %5 = vector.load %arg4[%c0_4, %c0_5] : memref<1x128xf32, #tpu.memory_space<vmem>>, vector<1x128xf32>
    %6 = vector.broadcast %5 : vector<1x128xf32> to vector<8x128xf32>
    %7 = arith.addf %4, %6 : vector<8x128xf32>
    %c0_6 = arith.constant 0 : index
    %c0_7 = arith.constant 0 : index
    %c0_8 = arith.constant 0 : index
    %8 = vector.load %arg5[%c0_6, %c0_7, %c0_8] : memref<1x8x128xf32, #tpu.memory_space<vmem>>, vector<1x8x128xf32>
    %9 = vector.shape_cast %8 : vector<1x8x128xf32> to vector<8x128xf32>
    %10 = vector.shape_cast %7 : vector<8x128xf32> to vector<1x8x128xf32>
    tpu.vector_store %arg5[%c0_6, %c0_7, %c0_8], %10 {strides = array<i32>} : memref<1x8x128xf32, #tpu.memory_space<vmem>>, vector<1x8x128xf32>,
    return
  }
  func.func @transform_0(%arg0: i32, %arg1: i32) -> (i32, i32, i32) {
    %c0_i32 = arith.constant 0 : i32
    %c0_i32_0 = arith.constant 0 : i32
    %c0_i32_1 = arith.constant 0 : i32
    return %arg0, %c0_i32, %c0_i32_0 : i32, i32, i32
  }
  func.func @transform_1(%arg0: i32, %arg1: i32) -> (i32, i32) {
    %c0_i32 = arith.constant 0 : i32
    %c0_i32_0 = arith.constant 0 : i32
    return %c0_i32, %arg1 : i32, i32
  }
  func.func @transform_2(%arg0: i32, %arg1: i32) -> (i32, i32) {
    %c0_i32 = arith.constant 0 : i32
    %c0_i32_0 = arith.constant 0 : i32
    return %c0_i32, %arg1 : i32, i32
  }
  func.func @transform_3(%arg0: i32, %arg1: i32) -> (i32, i32, i32) {
    %c0_i32 = arith.constant 0 : i32
    %c0_i32_0 = arith.constant 0 : i32
    return %arg0, %c0_i32, %arg1 : i32, i32, i32
  }
}

module attributes {stable_mosaic.version = 11 : i64} {
  func.func @_decoder_stack_kernel(%arg0: i32, %arg1: i32, %arg2: memref<1x8x32xf32, #tpu.memory_space<vmem>>, %arg3: memref<1x8x32xf32, #tpu.memory_space<vmem>>, %arg4: memref<1x32x32xbf16, #tpu.memory_space<vmem>>, %arg5: memref<1x1x32xf32, #tpu.memory_space<vmem>>, %arg6: memref<1x32x64xbf16, #tpu.memory_space<vmem>>, %arg7: memref<1x1x64xf32, #tpu.memory_space<vmem>>, %arg8: memref<1x32x32xbf16, #tpu.memory_space<vmem>>, %arg9: memref<1x1x32xf32, #tpu.memory_space<vmem>>, %arg10: memref<1x1x32xf32, #tpu.memory_space<vmem>>, %arg11: memref<1x1x32xf32, #tpu.memory_space<vmem>>, %arg12: memref<1x32x32xbf16, #tpu.memory_space<vmem>>, %arg13: memref<1x1x32xf32, #tpu.memory_space<vmem>>, %arg14: memref<1x32x64xbf16, #tpu.memory_space<vmem>>, %arg15: memref<1x1x64xf32, #tpu.memory_space<vmem>>, %arg16: memref<1x32x32xbf16, #tpu.memory_space<vmem>>, %arg17: memref<1x1x32xf32, #tpu.memory_space<vmem>>, %arg18: memref<1x1x32xf32, #tpu.memory_space<vmem>>, %arg19: memref<1x1x32xf32, #tpu.memory_space<vmem>>, %arg20: memref<1x32x64xbf16, #tpu.memory_space<vmem>>, %arg21: memref<1x1x64xf32, #tpu.memory_space<vmem>>, %arg22: memref<1x64x32xbf16, #tpu.memory_space<vmem>>, %arg23: memref<1x1x32xf32, #tpu.memory_space<vmem>>, %arg24: memref<1x1x32xf32, #tpu.memory_space<vmem>>, %arg25: memref<1x1x32xf32, #tpu.memory_space<vmem>>, %arg26: memref<1x32xf32, #tpu.memory_space<vmem>>, %arg27: memref<1x32xf32, #tpu.memory_space<vmem>>, %arg28: memref<1x8x32xf32, #tpu.memory_space<vmem>>, %arg29: memref<8x32xf32, #tpu.memory_space<vmem>>) attributes {dimension_semantics = [#tpu.dimension_semantics<parallel>, #tpu.dimension_semantics<arbitrary>], iteration_bounds = array<i64: 2, 2>, scalar_prefetch = 0 : i64, scratch_operands = 1 : i64, tpu.core_type = #tpu.core_type<tc>, window_params = [{transform_indices = @transform_0, window_bounds = array<i64: 1, 8, 32>}, {transform_indices = @transform_1, window_bounds = array<i64: 1, 8, 32>}, {transform_indices = @transform_2, window_bounds = array<i64: 1, 32, 32>}, {transform_indices = @transform_3, window_bounds = array<i64: 1, 1, 32>}, {transform_indices = @transform_4, window_bounds = array<i64: 1, 32, 64>}, {transform_indices = @transform_5, window_bounds = array<i64: 1, 1, 64>}, {transform_indices = @transform_6, window_bounds = array<i64: 1, 32, 32>}, {transform_indices = @transform_7, window_bounds = array<i64: 1, 1, 32>}, {transform_indices = @transform_8, window_bounds = array<i64: 1, 1, 32>}, {transform_indices = @transform_9, window_bounds = array<i64: 1, 1, 32>}, {transform_indices = @transform_10, window_bounds = array<i64: 1, 32, 32>}, {transform_indices = @transform_11, window_bounds = array<i64: 1, 1, 32>}, {transform_indices = @transform_12, window_bounds = array<i64: 1, 32, 64>}, {transform_indices = @transform_13, window_bounds = array<i64: 1, 1, 64>}, {transform_indices = @transform_14, window_bounds = array<i64: 1, 32, 32>}, {transform_indices = @transform_15, window_bounds = array<i64: 1, 1, 32>}, {transform_indices = @transform_16, window_bounds = array<i64: 1, 1, 32>}, {transform_indices = @transform_17, window_bounds = array<i64: 1, 1, 32>}, {transform_indices = @transform_18, window_bounds = array<i64: 1, 32, 64>}, {transform_indices = @transform_19, window_bounds = array<i64: 1, 1, 64>}, {transform_indices = @transform_20, window_bounds = array<i64: 1, 64, 32>}, {transform_indices = @transform_21, window_bounds = array<i64: 1, 1, 32>}, {transform_indices = @transform_22, window_bounds = array<i64: 1, 1, 32>}, {transform_indices = @transform_23, window_bounds = array<i64: 1, 1, 32>}, {pipeline_mode = #tpu.pipeline_mode<synchronous>, transform_indices = @transform_24, window_bounds = array<i64: 1, 32>}, {pipeline_mode = #tpu.pipeline_mode<synchronous>, transform_indices = @transform_25, window_bounds = array<i64: 1, 32>}, {transform_indices = @transform_26, window_bounds = array<i64: 1, 8, 32>}]} {
    %c0_i32 = arith.constant 0 : i32
    %0 = arith.cmpi eq, %arg1, %c0_i32 : i32
    %1 = arith.extui %0 : i1 to i32
    %c0_i32_0 = arith.constant 0 : i32
    %2 = arith.cmpi ne, %1, %c0_i32_0 : i32
    scf.if %2 {
      %c0_131 = arith.constant 0 : index
      %c0_132 = arith.constant 0 : index
      %c0_133 = arith.constant 0 : index
      %319 = vector.load %arg2[%c0_131, %c0_132, %c0_133] : memref<1x8x32xf32, #tpu.memory_space<vmem>>, vector<1x8x32xf32>
      %320 = vector.shape_cast %319 : vector<1x8x32xf32> to vector<8x32xf32>
      %c0_134 = arith.constant 0 : index
      %c0_135 = arith.constant 0 : index
      %321 = vector.load %arg29[%c0_134, %c0_135] : memref<8x32xf32, #tpu.memory_space<vmem>>, vector<8x32xf32>
      tpu.vector_store %arg29[%c0_134, %c0_135], %320 {strides = array<i32>} : memref<8x32xf32, #tpu.memory_space<vmem>>, vector<8x32xf32>,
    } else {
    }
    %c0 = arith.constant 0 : index
    %c0_1 = arith.constant 0 : index
    %3 = vector.load %arg29[%c0, %c0_1] : memref<8x32xf32, #tpu.memory_space<vmem>>, vector<8x32xf32>
    %c0_2 = arith.constant 0 : index
    %c0_3 = arith.constant 0 : index
    %c0_4 = arith.constant 0 : index
    %4 = vector.load %arg3[%c0_2, %c0_3, %c0_4] : memref<1x8x32xf32, #tpu.memory_space<vmem>>, vector<1x8x32xf32>
    %5 = vector.shape_cast %4 : vector<1x8x32xf32> to vector<8x32xf32>
    %c0_5 = arith.constant 0 : index
    %c0_6 = arith.constant 0 : index
    %c0_7 = arith.constant 0 : index
    %6 = vector.load %arg4[%c0_5, %c0_6, %c0_7] : memref<1x32x32xbf16, #tpu.memory_space<vmem>>, vector<1x32x32xbf16>
    %7 = vector.shape_cast %6 : vector<1x32x32xbf16> to vector<32x32xbf16>
    %c0_8 = arith.constant 0 : index
    %c0_9 = arith.constant 0 : index
    %c0_10 = arith.constant 0 : index
    %8 = vector.load %arg5[%c0_8, %c0_9, %c0_10] : memref<1x1x32xf32, #tpu.memory_space<vmem>>, vector<1x1x32xf32>
    %9 = vector.shape_cast %8 : vector<1x1x32xf32> to vector<1x32xf32>
    %c0_11 = arith.constant 0 : index
    %c0_12 = arith.constant 0 : index
    %c0_13 = arith.constant 0 : index
    %10 = vector.load %arg6[%c0_11, %c0_12, %c0_13] : memref<1x32x64xbf16, #tpu.memory_space<vmem>>, vector<1x32x64xbf16>
    %11 = vector.shape_cast %10 : vector<1x32x64xbf16> to vector<32x64xbf16>
    %c0_14 = arith.constant 0 : index
    %c0_15 = arith.constant 0 : index
    %c0_16 = arith.constant 0 : index
    %12 = vector.load %arg7[%c0_14, %c0_15, %c0_16] : memref<1x1x64xf32, #tpu.memory_space<vmem>>, vector<1x1x64xf32>
    %13 = vector.shape_cast %12 : vector<1x1x64xf32> to vector<1x64xf32>
    %c0_17 = arith.constant 0 : index
    %c0_18 = arith.constant 0 : index
    %c0_19 = arith.constant 0 : index
    %14 = vector.load %arg8[%c0_17, %c0_18, %c0_19] : memref<1x32x32xbf16, #tpu.memory_space<vmem>>, vector<1x32x32xbf16>
    %15 = vector.shape_cast %14 : vector<1x32x32xbf16> to vector<32x32xbf16>
    %c0_20 = arith.constant 0 : index
    %c0_21 = arith.constant 0 : index
    %c0_22 = arith.constant 0 : index
    %16 = vector.load %arg9[%c0_20, %c0_21, %c0_22] : memref<1x1x32xf32, #tpu.memory_space<vmem>>, vector<1x1x32xf32>
    %17 = vector.shape_cast %16 : vector<1x1x32xf32> to vector<1x32xf32>
    %18 = arith.truncf %3 : vector<8x32xf32> to vector<8x32xbf16>
    %cst = arith.constant dense<0.000000e+00> : vector<8x32xf32>
    %19 = tpu.matmul %18, %7, %cst {dimension_numbers = #tpu.dot_dimension_numbers<[1], [0], [0], [1], [0, 0, 1, 1], [], []>} : vector<8x32xbf16>, vector<32x32xbf16>, vector<8x32xf32> -> vector<8x32xf32>
    %20 = vector.broadcast %9 : vector<1x32xf32> to vector<8x32xf32>
    %21 = arith.addf %19, %20 : vector<8x32xf32>
    %cst_23 = arith.constant 0.353553385 : f32
    %22 = vector.broadcast %cst_23 : f32 to vector<8x32xf32>
    %23 = arith.mulf %21, %22 : vector<8x32xf32>
    %24 = arith.truncf %3 : vector<8x32xf32> to vector<8x32xbf16>
    %cst_24 = arith.constant dense<0.000000e+00> : vector<8x64xf32>
    %25 = tpu.matmul %24, %11, %cst_24 {dimension_numbers = #tpu.dot_dimension_numbers<[1], [0], [0], [1], [0, 0, 1, 1], [], []>} : vector<8x32xbf16>, vector<32x64xbf16>, vector<8x64xf32> -> vector<8x64xf32>
    %26 = vector.broadcast %13 : vector<1x64xf32> to vector<8x64xf32>
    %27 = arith.addf %25, %26 : vector<8x64xf32>
    %28 = vector.extract_strided_slice %27 {offsets = [0, 0], sizes = [8, 32], strides = [1, 1]} : vector<8x64xf32> to vector<8x32xf32>
    %29 = vector.extract_strided_slice %27 {offsets = [0, 32], sizes = [8, 32], strides = [1, 1]} : vector<8x64xf32> to vector<8x32xf32>
    %30 = vector.extract_strided_slice %23 {offsets = [0, 0], sizes = [8, 8], strides = [1, 1]} : vector<8x32xf32> to vector<8x8xf32>
    %31 = arith.truncf %30 : vector<8x8xf32> to vector<8x8xbf16>
    %32 = vector.extract_strided_slice %28 {offsets = [0, 0], sizes = [8, 8], strides = [1, 1]} : vector<8x32xf32> to vector<8x8xf32>
    %33 = arith.truncf %32 : vector<8x8xf32> to vector<8x8xbf16>
    %34 = vector.extract_strided_slice %29 {offsets = [0, 0], sizes = [8, 8], strides = [1, 1]} : vector<8x32xf32> to vector<8x8xf32>
    %35 = arith.truncf %34 : vector<8x8xf32> to vector<8x8xbf16>
    %cst_25 = arith.constant dense<0.000000e+00> : vector<8x8xf32>
    %36 = tpu.matmul %31, %33, %cst_25 {dimension_numbers = #tpu.dot_dimension_numbers<[1], [1], [0], [0], [0, 0, 1, 0], [], []>} : vector<8x8xbf16>, vector<8x8xbf16>, vector<8x8xf32> -> vector<8x8xf32>
    %cst_26 = arith.constant dense<0xFF800000> : vector<8xf32>
    %37 = vector.multi_reduction <maximumf>, %36, %cst_26 [1] : vector<8x8xf32> to vector<8xf32>
    %38 = vector.shape_cast %37 : vector<8xf32> to vector<8x1xf32>
    %39 = vector.broadcast %38 : vector<8x1xf32> to vector<8x8xf32>
    %40 = arith.subf %36, %39 : vector<8x8xf32>
    %41 = math.exp %40 : vector<8x8xf32>
    %cst_27 = arith.constant dense<0.000000e+00> : vector<8xf32>
    %42 = vector.multi_reduction <add>, %41, %cst_27 [1] : vector<8x8xf32> to vector<8xf32>
    %43 = vector.shape_cast %42 : vector<8xf32> to vector<8x1xf32>
    %44 = arith.truncf %41 : vector<8x8xf32> to vector<8x8xbf16>
    %cst_28 = arith.constant dense<0.000000e+00> : vector<8x8xf32>
    %45 = tpu.matmul %44, %35, %cst_28 {dimension_numbers = #tpu.dot_dimension_numbers<[1], [0], [0], [1], [0, 0, 1, 1], [], []>} : vector<8x8xbf16>, vector<8x8xbf16>, vector<8x8xf32> -> vector<8x8xf32>
    %46 = tpu.reciprocal %43 {approx = true} : vector<8x1xf32> -> vector<8x1xf32>
    %47 = vector.broadcast %46 : vector<8x1xf32> to vector<8x8xf32>
    %48 = arith.mulf %45, %47 : vector<8x8xf32>
    %49 = vector.extract_strided_slice %23 {offsets = [0, 8], sizes = [8, 8], strides = [1, 1]} : vector<8x32xf32> to vector<8x8xf32>
    %50 = arith.truncf %49 : vector<8x8xf32> to vector<8x8xbf16>
    %51 = vector.extract_strided_slice %28 {offsets = [0, 8], sizes = [8, 8], strides = [1, 1]} : vector<8x32xf32> to vector<8x8xf32>
    %52 = arith.truncf %51 : vector<8x8xf32> to vector<8x8xbf16>
    %53 = vector.extract_strided_slice %29 {offsets = [0, 8], sizes = [8, 8], strides = [1, 1]} : vector<8x32xf32> to vector<8x8xf32>
    %54 = arith.truncf %53 : vector<8x8xf32> to vector<8x8xbf16>
    %cst_29 = arith.constant dense<0.000000e+00> : vector<8x8xf32>
    %55 = tpu.matmul %50, %52, %cst_29 {dimension_numbers = #tpu.dot_dimension_numbers<[1], [1], [0], [0], [0, 0, 1, 0], [], []>} : vector<8x8xbf16>, vector<8x8xbf16>, vector<8x8xf32> -> vector<8x8xf32>
    %cst_30 = arith.constant dense<0xFF800000> : vector<8xf32>
    %56 = vector.multi_reduction <maximumf>, %55, %cst_30 [1] : vector<8x8xf32> to vector<8xf32>
    %57 = vector.shape_cast %56 : vector<8xf32> to vector<8x1xf32>
    %58 = vector.broadcast %57 : vector<8x1xf32> to vector<8x8xf32>
    %59 = arith.subf %55, %58 : vector<8x8xf32>
    %60 = math.exp %59 : vector<8x8xf32>
    %cst_31 = arith.constant dense<0.000000e+00> : vector<8xf32>
    %61 = vector.multi_reduction <add>, %60, %cst_31 [1] : vector<8x8xf32> to vector<8xf32>
    %62 = vector.shape_cast %61 : vector<8xf32> to vector<8x1xf32>
    %63 = arith.truncf %60 : vector<8x8xf32> to vector<8x8xbf16>
    %cst_32 = arith.constant dense<0.000000e+00> : vector<8x8xf32>
    %64 = tpu.matmul %63, %54, %cst_32 {dimension_numbers = #tpu.dot_dimension_numbers<[1], [0], [0], [1], [0, 0, 1, 1], [], []>} : vector<8x8xbf16>, vector<8x8xbf16>, vector<8x8xf32> -> vector<8x8xf32>
    %65 = tpu.reciprocal %62 {approx = true} : vector<8x1xf32> -> vector<8x1xf32>
    %66 = vector.broadcast %65 : vector<8x1xf32> to vector<8x8xf32>
    %67 = arith.mulf %64, %66 : vector<8x8xf32>
    %68 = vector.extract_strided_slice %23 {offsets = [0, 16], sizes = [8, 8], strides = [1, 1]} : vector<8x32xf32> to vector<8x8xf32>
    %69 = arith.truncf %68 : vector<8x8xf32> to vector<8x8xbf16>
    %70 = vector.extract_strided_slice %28 {offsets = [0, 16], sizes = [8, 8], strides = [1, 1]} : vector<8x32xf32> to vector<8x8xf32>
    %71 = arith.truncf %70 : vector<8x8xf32> to vector<8x8xbf16>
    %72 = vector.extract_strided_slice %29 {offsets = [0, 16], sizes = [8, 8], strides = [1, 1]} : vector<8x32xf32> to vector<8x8xf32>
    %73 = arith.truncf %72 : vector<8x8xf32> to vector<8x8xbf16>
    %cst_33 = arith.constant dense<0.000000e+00> : vector<8x8xf32>
    %74 = tpu.matmul %69, %71, %cst_33 {dimension_numbers = #tpu.dot_dimension_numbers<[1], [1], [0], [0], [0, 0, 1, 0], [], []>} : vector<8x8xbf16>, vector<8x8xbf16>, vector<8x8xf32> -> vector<8x8xf32>
    %cst_34 = arith.constant dense<0xFF800000> : vector<8xf32>
    %75 = vector.multi_reduction <maximumf>, %74, %cst_34 [1] : vector<8x8xf32> to vector<8xf32>
    %76 = vector.shape_cast %75 : vector<8xf32> to vector<8x1xf32>
    %77 = vector.broadcast %76 : vector<8x1xf32> to vector<8x8xf32>
    %78 = arith.subf %74, %77 : vector<8x8xf32>
    %79 = math.exp %78 : vector<8x8xf32>
    %cst_35 = arith.constant dense<0.000000e+00> : vector<8xf32>
    %80 = vector.multi_reduction <add>, %79, %cst_35 [1] : vector<8x8xf32> to vector<8xf32>
    %81 = vector.shape_cast %80 : vector<8xf32> to vector<8x1xf32>
    %82 = arith.truncf %79 : vector<8x8xf32> to vector<8x8xbf16>
    %cst_36 = arith.constant dense<0.000000e+00> : vector<8x8xf32>
    %83 = tpu.matmul %82, %73, %cst_36 {dimension_numbers = #tpu.dot_dimension_numbers<[1], [0], [0], [1], [0, 0, 1, 1], [], []>} : vector<8x8xbf16>, vector<8x8xbf16>, vector<8x8xf32> -> vector<8x8xf32>
    %84 = tpu.reciprocal %81 {approx = true} : vector<8x1xf32> -> vector<8x1xf32>
    %85 = vector.broadcast %84 : vector<8x1xf32> to vector<8x8xf32>
    %86 = arith.mulf %83, %85 : vector<8x8xf32>
    %87 = vector.extract_strided_slice %23 {offsets = [0, 24], sizes = [8, 8], strides = [1, 1]} : vector<8x32xf32> to vector<8x8xf32>
    %88 = arith.truncf %87 : vector<8x8xf32> to vector<8x8xbf16>
    %89 = vector.extract_strided_slice %28 {offsets = [0, 24], sizes = [8, 8], strides = [1, 1]} : vector<8x32xf32> to vector<8x8xf32>
    %90 = arith.truncf %89 : vector<8x8xf32> to vector<8x8xbf16>
    %91 = vector.extract_strided_slice %29 {offsets = [0, 24], sizes = [8, 8], strides = [1, 1]} : vector<8x32xf32> to vector<8x8xf32>
    %92 = arith.truncf %91 : vector<8x8xf32> to vector<8x8xbf16>
    %cst_37 = arith.constant dense<0.000000e+00> : vector<8x8xf32>
    %93 = tpu.matmul %88, %90, %cst_37 {dimension_numbers = #tpu.dot_dimension_numbers<[1], [1], [0], [0], [0, 0, 1, 0], [], []>} : vector<8x8xbf16>, vector<8x8xbf16>, vector<8x8xf32> -> vector<8x8xf32>
    %cst_38 = arith.constant dense<0xFF800000> : vector<8xf32>
    %94 = vector.multi_reduction <maximumf>, %93, %cst_38 [1] : vector<8x8xf32> to vector<8xf32>
    %95 = vector.shape_cast %94 : vector<8xf32> to vector<8x1xf32>
    %96 = vector.broadcast %95 : vector<8x1xf32> to vector<8x8xf32>
    %97 = arith.subf %93, %96 : vector<8x8xf32>
    %98 = math.exp %97 : vector<8x8xf32>
    %cst_39 = arith.constant dense<0.000000e+00> : vector<8xf32>
    %99 = vector.multi_reduction <add>, %98, %cst_39 [1] : vector<8x8xf32> to vector<8xf32>
    %100 = vector.shape_cast %99 : vector<8xf32> to vector<8x1xf32>
    %101 = arith.truncf %98 : vector<8x8xf32> to vector<8x8xbf16>
    %cst_40 = arith.constant dense<0.000000e+00> : vector<8x8xf32>
    %102 = tpu.matmul %101, %92, %cst_40 {dimension_numbers = #tpu.dot_dimension_numbers<[1], [0], [0], [1], [0, 0, 1, 1], [], []>} : vector<8x8xbf16>, vector<8x8xbf16>, vector<8x8xf32> -> vector<8x8xf32>
    %103 = tpu.reciprocal %100 {approx = true} : vector<8x1xf32> -> vector<8x1xf32>
    %104 = vector.broadcast %103 : vector<8x1xf32> to vector<8x8xf32>
    %105 = arith.mulf %102, %104 : vector<8x8xf32>
    %106 = tpu.concatenate %48, %67, %86, %105 in 1 : vector<8x8xf32>, vector<8x8xf32>, vector<8x8xf32>, vector<8x8xf32> -> vector<8x32xf32>
    %107 = arith.truncf %106 : vector<8x32xf32> to vector<8x32xbf16>
    %cst_41 = arith.constant dense<0.000000e+00> : vector<8x32xf32>
    %108 = tpu.matmul %107, %15, %cst_41 {dimension_numbers = #tpu.dot_dimension_numbers<[1], [0], [0], [1], [0, 0, 1, 1], [], []>} : vector<8x32xbf16>, vector<32x32xbf16>, vector<8x32xf32> -> vector<8x32xf32>
    %109 = vector.broadcast %17 : vector<1x32xf32> to vector<8x32xf32>
    %110 = arith.addf %108, %109 : vector<8x32xf32>
    %111 = arith.addf %3, %110 : vector<8x32xf32>
    %c0_42 = arith.constant 0 : index
    %c0_43 = arith.constant 0 : index
    %c0_44 = arith.constant 0 : index
    %112 = vector.load %arg10[%c0_42, %c0_43, %c0_44] : memref<1x1x32xf32, #tpu.memory_space<vmem>>, vector<1x1x32xf32>
    %113 = vector.shape_cast %112 : vector<1x1x32xf32> to vector<1x32xf32>
    %c0_45 = arith.constant 0 : index
    %c0_46 = arith.constant 0 : index
    %c0_47 = arith.constant 0 : index
    %114 = vector.load %arg11[%c0_45, %c0_46, %c0_47] : memref<1x1x32xf32, #tpu.memory_space<vmem>>, vector<1x1x32xf32>
    %115 = vector.shape_cast %114 : vector<1x1x32xf32> to vector<1x32xf32>
    %cst_48 = arith.constant dense<0.000000e+00> : vector<8xf32>
    %116 = vector.multi_reduction <add>, %111, %cst_48 [1] : vector<8x32xf32> to vector<8xf32>
    %117 = vector.shape_cast %116 : vector<8xf32> to vector<8x1xf32>
    %cst_49 = arith.constant 3.200000e+01 : f32
    %118 = vector.broadcast %cst_49 : f32 to vector<8x1xf32>
    %119 = arith.divf %117, %118 : vector<8x1xf32>
    %120 = vector.broadcast %119 : vector<8x1xf32> to vector<8x32xf32>
    %121 = arith.subf %111, %120 : vector<8x32xf32>
    %122 = arith.mulf %121, %121 : vector<8x32xf32>
    %cst_50 = arith.constant dense<0.000000e+00> : vector<8xf32>
    %123 = vector.multi_reduction <add>, %122, %cst_50 [1] : vector<8x32xf32> to vector<8xf32>
    %124 = vector.shape_cast %123 : vector<8xf32> to vector<8x1xf32>
    %cst_51 = arith.constant 3.200000e+01 : f32
    %125 = vector.broadcast %cst_51 : f32 to vector<8x1xf32>
    %126 = arith.divf %124, %125 : vector<8x1xf32>
    %127 = vector.broadcast %119 : vector<8x1xf32> to vector<8x32xf32>
    %128 = arith.subf %111, %127 : vector<8x32xf32>
    %cst_52 = arith.constant 9.99999974E-6 : f32
    %129 = vector.broadcast %cst_52 : f32 to vector<8x1xf32>
    %130 = arith.addf %126, %129 : vector<8x1xf32>
    %131 = math.rsqrt %130 : vector<8x1xf32>
    %132 = vector.broadcast %131 : vector<8x1xf32> to vector<8x32xf32>
    %133 = arith.mulf %128, %132 : vector<8x32xf32>
    %134 = vector.broadcast %113 : vector<1x32xf32> to vector<8x32xf32>
    %135 = arith.mulf %133, %134 : vector<8x32xf32>
    %136 = vector.broadcast %115 : vector<1x32xf32> to vector<8x32xf32>
    %137 = arith.addf %135, %136 : vector<8x32xf32>
    %c0_53 = arith.constant 0 : index
    %c0_54 = arith.constant 0 : index
    %c0_55 = arith.constant 0 : index
    %138 = vector.load %arg12[%c0_53, %c0_54, %c0_55] : memref<1x32x32xbf16, #tpu.memory_space<vmem>>, vector<1x32x32xbf16>
    %139 = vector.shape_cast %138 : vector<1x32x32xbf16> to vector<32x32xbf16>
    %c0_56 = arith.constant 0 : index
    %c0_57 = arith.constant 0 : index
    %c0_58 = arith.constant 0 : index
    %140 = vector.load %arg13[%c0_56, %c0_57, %c0_58] : memref<1x1x32xf32, #tpu.memory_space<vmem>>, vector<1x1x32xf32>
    %141 = vector.shape_cast %140 : vector<1x1x32xf32> to vector<1x32xf32>
    %c0_59 = arith.constant 0 : index
    %c0_60 = arith.constant 0 : index
    %c0_61 = arith.constant 0 : index
    %142 = vector.load %arg14[%c0_59, %c0_60, %c0_61] : memref<1x32x64xbf16, #tpu.memory_space<vmem>>, vector<1x32x64xbf16>
    %143 = vector.shape_cast %142 : vector<1x32x64xbf16> to vector<32x64xbf16>
    %c0_62 = arith.constant 0 : index
    %c0_63 = arith.constant 0 : index
    %c0_64 = arith.constant 0 : index
    %144 = vector.load %arg15[%c0_62, %c0_63, %c0_64] : memref<1x1x64xf32, #tpu.memory_space<vmem>>, vector<1x1x64xf32>
    %145 = vector.shape_cast %144 : vector<1x1x64xf32> to vector<1x64xf32>
    %c0_65 = arith.constant 0 : index
    %c0_66 = arith.constant 0 : index
    %c0_67 = arith.constant 0 : index
    %146 = vector.load %arg16[%c0_65, %c0_66, %c0_67] : memref<1x32x32xbf16, #tpu.memory_space<vmem>>, vector<1x32x32xbf16>
    %147 = vector.shape_cast %146 : vector<1x32x32xbf16> to vector<32x32xbf16>
    %c0_68 = arith.constant 0 : index
    %c0_69 = arith.constant 0 : index
    %c0_70 = arith.constant 0 : index
    %148 = vector.load %arg17[%c0_68, %c0_69, %c0_70] : memref<1x1x32xf32, #tpu.memory_space<vmem>>, vector<1x1x32xf32>
    %149 = vector.shape_cast %148 : vector<1x1x32xf32> to vector<1x32xf32>
    %150 = arith.truncf %137 : vector<8x32xf32> to vector<8x32xbf16>
    %cst_71 = arith.constant dense<0.000000e+00> : vector<8x32xf32>
    %151 = tpu.matmul %150, %139, %cst_71 {dimension_numbers = #tpu.dot_dimension_numbers<[1], [0], [0], [1], [0, 0, 1, 1], [], []>} : vector<8x32xbf16>, vector<32x32xbf16>, vector<8x32xf32> -> vector<8x32xf32>
    %152 = vector.broadcast %141 : vector<1x32xf32> to vector<8x32xf32>
    %153 = arith.addf %151, %152 : vector<8x32xf32>
    %cst_72 = arith.constant 0.353553385 : f32
    %154 = vector.broadcast %cst_72 : f32 to vector<8x32xf32>
    %155 = arith.mulf %153, %154 : vector<8x32xf32>
    %156 = arith.truncf %5 : vector<8x32xf32> to vector<8x32xbf16>
    %cst_73 = arith.constant dense<0.000000e+00> : vector<8x64xf32>
    %157 = tpu.matmul %156, %143, %cst_73 {dimension_numbers = #tpu.dot_dimension_numbers<[1], [0], [0], [1], [0, 0, 1, 1], [], []>} : vector<8x32xbf16>, vector<32x64xbf16>, vector<8x64xf32> -> vector<8x64xf32>
    %158 = vector.broadcast %145 : vector<1x64xf32> to vector<8x64xf32>
    %159 = arith.addf %157, %158 : vector<8x64xf32>
    %160 = vector.extract_strided_slice %159 {offsets = [0, 0], sizes = [8, 32], strides = [1, 1]} : vector<8x64xf32> to vector<8x32xf32>
    %161 = vector.extract_strided_slice %159 {offsets = [0, 32], sizes = [8, 32], strides = [1, 1]} : vector<8x64xf32> to vector<8x32xf32>
    %162 = vector.extract_strided_slice %155 {offsets = [0, 0], sizes = [8, 8], strides = [1, 1]} : vector<8x32xf32> to vector<8x8xf32>
    %163 = arith.truncf %162 : vector<8x8xf32> to vector<8x8xbf16>
    %164 = vector.extract_strided_slice %160 {offsets = [0, 0], sizes = [8, 8], strides = [1, 1]} : vector<8x32xf32> to vector<8x8xf32>
    %165 = arith.truncf %164 : vector<8x8xf32> to vector<8x8xbf16>
    %166 = vector.extract_strided_slice %161 {offsets = [0, 0], sizes = [8, 8], strides = [1, 1]} : vector<8x32xf32> to vector<8x8xf32>
    %167 = arith.truncf %166 : vector<8x8xf32> to vector<8x8xbf16>
    %cst_74 = arith.constant dense<0.000000e+00> : vector<8x8xf32>
    %168 = tpu.matmul %163, %165, %cst_74 {dimension_numbers = #tpu.dot_dimension_numbers<[1], [1], [0], [0], [0, 0, 1, 0], [], []>} : vector<8x8xbf16>, vector<8x8xbf16>, vector<8x8xf32> -> vector<8x8xf32>
    %cst_75 = arith.constant dense<0xFF800000> : vector<8xf32>
    %169 = vector.multi_reduction <maximumf>, %168, %cst_75 [1] : vector<8x8xf32> to vector<8xf32>
    %170 = vector.shape_cast %169 : vector<8xf32> to vector<8x1xf32>
    %171 = vector.broadcast %170 : vector<8x1xf32> to vector<8x8xf32>
    %172 = arith.subf %168, %171 : vector<8x8xf32>
    %173 = math.exp %172 : vector<8x8xf32>
    %cst_76 = arith.constant dense<0.000000e+00> : vector<8xf32>
    %174 = vector.multi_reduction <add>, %173, %cst_76 [1] : vector<8x8xf32> to vector<8xf32>
    %175 = vector.shape_cast %174 : vector<8xf32> to vector<8x1xf32>
    %176 = arith.truncf %173 : vector<8x8xf32> to vector<8x8xbf16>
    %cst_77 = arith.constant dense<0.000000e+00> : vector<8x8xf32>
    %177 = tpu.matmul %176, %167, %cst_77 {dimension_numbers = #tpu.dot_dimension_numbers<[1], [0], [0], [1], [0, 0, 1, 1], [], []>} : vector<8x8xbf16>, vector<8x8xbf16>, vector<8x8xf32> -> vector<8x8xf32>
    %178 = tpu.reciprocal %175 {approx = true} : vector<8x1xf32> -> vector<8x1xf32>
    %179 = vector.broadcast %178 : vector<8x1xf32> to vector<8x8xf32>
    %180 = arith.mulf %177, %179 : vector<8x8xf32>
    %181 = vector.extract_strided_slice %155 {offsets = [0, 8], sizes = [8, 8], strides = [1, 1]} : vector<8x32xf32> to vector<8x8xf32>
    %182 = arith.truncf %181 : vector<8x8xf32> to vector<8x8xbf16>
    %183 = vector.extract_strided_slice %160 {offsets = [0, 8], sizes = [8, 8], strides = [1, 1]} : vector<8x32xf32> to vector<8x8xf32>
    %184 = arith.truncf %183 : vector<8x8xf32> to vector<8x8xbf16>
    %185 = vector.extract_strided_slice %161 {offsets = [0, 8], sizes = [8, 8], strides = [1, 1]} : vector<8x32xf32> to vector<8x8xf32>
    %186 = arith.truncf %185 : vector<8x8xf32> to vector<8x8xbf16>
    %cst_78 = arith.constant dense<0.000000e+00> : vector<8x8xf32>
    %187 = tpu.matmul %182, %184, %cst_78 {dimension_numbers = #tpu.dot_dimension_numbers<[1], [1], [0], [0], [0, 0, 1, 0], [], []>} : vector<8x8xbf16>, vector<8x8xbf16>, vector<8x8xf32> -> vector<8x8xf32>
    %cst_79 = arith.constant dense<0xFF800000> : vector<8xf32>
    %188 = vector.multi_reduction <maximumf>, %187, %cst_79 [1] : vector<8x8xf32> to vector<8xf32>
    %189 = vector.shape_cast %188 : vector<8xf32> to vector<8x1xf32>
    %190 = vector.broadcast %189 : vector<8x1xf32> to vector<8x8xf32>
    %191 = arith.subf %187, %190 : vector<8x8xf32>
    %192 = math.exp %191 : vector<8x8xf32>
    %cst_80 = arith.constant dense<0.000000e+00> : vector<8xf32>
    %193 = vector.multi_reduction <add>, %192, %cst_80 [1] : vector<8x8xf32> to vector<8xf32>
    %194 = vector.shape_cast %193 : vector<8xf32> to vector<8x1xf32>
    %195 = arith.truncf %192 : vector<8x8xf32> to vector<8x8xbf16>
    %cst_81 = arith.constant dense<0.000000e+00> : vector<8x8xf32>
    %196 = tpu.matmul %195, %186, %cst_81 {dimension_numbers = #tpu.dot_dimension_numbers<[1], [0], [0], [1], [0, 0, 1, 1], [], []>} : vector<8x8xbf16>, vector<8x8xbf16>, vector<8x8xf32> -> vector<8x8xf32>
    %197 = tpu.reciprocal %194 {approx = true} : vector<8x1xf32> -> vector<8x1xf32>
    %198 = vector.broadcast %197 : vector<8x1xf32> to vector<8x8xf32>
    %199 = arith.mulf %196, %198 : vector<8x8xf32>
    %200 = vector.extract_strided_slice %155 {offsets = [0, 16], sizes = [8, 8], strides = [1, 1]} : vector<8x32xf32> to vector<8x8xf32>
    %201 = arith.truncf %200 : vector<8x8xf32> to vector<8x8xbf16>
    %202 = vector.extract_strided_slice %160 {offsets = [0, 16], sizes = [8, 8], strides = [1, 1]} : vector<8x32xf32> to vector<8x8xf32>
    %203 = arith.truncf %202 : vector<8x8xf32> to vector<8x8xbf16>
    %204 = vector.extract_strided_slice %161 {offsets = [0, 16], sizes = [8, 8], strides = [1, 1]} : vector<8x32xf32> to vector<8x8xf32>
    %205 = arith.truncf %204 : vector<8x8xf32> to vector<8x8xbf16>
    %cst_82 = arith.constant dense<0.000000e+00> : vector<8x8xf32>
    %206 = tpu.matmul %201, %203, %cst_82 {dimension_numbers = #tpu.dot_dimension_numbers<[1], [1], [0], [0], [0, 0, 1, 0], [], []>} : vector<8x8xbf16>, vector<8x8xbf16>, vector<8x8xf32> -> vector<8x8xf32>
    %cst_83 = arith.constant dense<0xFF800000> : vector<8xf32>
    %207 = vector.multi_reduction <maximumf>, %206, %cst_83 [1] : vector<8x8xf32> to vector<8xf32>
    %208 = vector.shape_cast %207 : vector<8xf32> to vector<8x1xf32>
    %209 = vector.broadcast %208 : vector<8x1xf32> to vector<8x8xf32>
    %210 = arith.subf %206, %209 : vector<8x8xf32>
    %211 = math.exp %210 : vector<8x8xf32>
    %cst_84 = arith.constant dense<0.000000e+00> : vector<8xf32>
    %212 = vector.multi_reduction <add>, %211, %cst_84 [1] : vector<8x8xf32> to vector<8xf32>
    %213 = vector.shape_cast %212 : vector<8xf32> to vector<8x1xf32>
    %214 = arith.truncf %211 : vector<8x8xf32> to vector<8x8xbf16>
    %cst_85 = arith.constant dense<0.000000e+00> : vector<8x8xf32>
    %215 = tpu.matmul %214, %205, %cst_85 {dimension_numbers = #tpu.dot_dimension_numbers<[1], [0], [0], [1], [0, 0, 1, 1], [], []>} : vector<8x8xbf16>, vector<8x8xbf16>, vector<8x8xf32> -> vector<8x8xf32>
    %216 = tpu.reciprocal %213 {approx = true} : vector<8x1xf32> -> vector<8x1xf32>
    %217 = vector.broadcast %216 : vector<8x1xf32> to vector<8x8xf32>
    %218 = arith.mulf %215, %217 : vector<8x8xf32>
    %219 = vector.extract_strided_slice %155 {offsets = [0, 24], sizes = [8, 8], strides = [1, 1]} : vector<8x32xf32> to vector<8x8xf32>
    %220 = arith.truncf %219 : vector<8x8xf32> to vector<8x8xbf16>
    %221 = vector.extract_strided_slice %160 {offsets = [0, 24], sizes = [8, 8], strides = [1, 1]} : vector<8x32xf32> to vector<8x8xf32>
    %222 = arith.truncf %221 : vector<8x8xf32> to vector<8x8xbf16>
    %223 = vector.extract_strided_slice %161 {offsets = [0, 24], sizes = [8, 8], strides = [1, 1]} : vector<8x32xf32> to vector<8x8xf32>
    %224 = arith.truncf %223 : vector<8x8xf32> to vector<8x8xbf16>
    %cst_86 = arith.constant dense<0.000000e+00> : vector<8x8xf32>
    %225 = tpu.matmul %220, %222, %cst_86 {dimension_numbers = #tpu.dot_dimension_numbers<[1], [1], [0], [0], [0, 0, 1, 0], [], []>} : vector<8x8xbf16>, vector<8x8xbf16>, vector<8x8xf32> -> vector<8x8xf32>
    %cst_87 = arith.constant dense<0xFF800000> : vector<8xf32>
    %226 = vector.multi_reduction <maximumf>, %225, %cst_87 [1] : vector<8x8xf32> to vector<8xf32>
    %227 = vector.shape_cast %226 : vector<8xf32> to vector<8x1xf32>
    %228 = vector.broadcast %227 : vector<8x1xf32> to vector<8x8xf32>
    %229 = arith.subf %225, %228 : vector<8x8xf32>
    %230 = math.exp %229 : vector<8x8xf32>
    %cst_88 = arith.constant dense<0.000000e+00> : vector<8xf32>
    %231 = vector.multi_reduction <add>, %230, %cst_88 [1] : vector<8x8xf32> to vector<8xf32>
    %232 = vector.shape_cast %231 : vector<8xf32> to vector<8x1xf32>
    %233 = arith.truncf %230 : vector<8x8xf32> to vector<8x8xbf16>
    %cst_89 = arith.constant dense<0.000000e+00> : vector<8x8xf32>
    %234 = tpu.matmul %233, %224, %cst_89 {dimension_numbers = #tpu.dot_dimension_numbers<[1], [0], [0], [1], [0, 0, 1, 1], [], []>} : vector<8x8xbf16>, vector<8x8xbf16>, vector<8x8xf32> -> vector<8x8xf32>
    %235 = tpu.reciprocal %232 {approx = true} : vector<8x1xf32> -> vector<8x1xf32>
    %236 = vector.broadcast %235 : vector<8x1xf32> to vector<8x8xf32>
    %237 = arith.mulf %234, %236 : vector<8x8xf32>
    %238 = tpu.concatenate %180, %199, %218, %237 in 1 : vector<8x8xf32>, vector<8x8xf32>, vector<8x8xf32>, vector<8x8xf32> -> vector<8x32xf32>
    %239 = arith.truncf %238 : vector<8x32xf32> to vector<8x32xbf16>
    %cst_90 = arith.constant dense<0.000000e+00> : vector<8x32xf32>
    %240 = tpu.matmul %239, %147, %cst_90 {dimension_numbers = #tpu.dot_dimension_numbers<[1], [0], [0], [1], [0, 0, 1, 1], [], []>} : vector<8x32xbf16>, vector<32x32xbf16>, vector<8x32xf32> -> vector<8x32xf32>
    %241 = vector.broadcast %149 : vector<1x32xf32> to vector<8x32xf32>
    %242 = arith.addf %240, %241 : vector<8x32xf32>
    %243 = arith.addf %137, %242 : vector<8x32xf32>
    %c0_91 = arith.constant 0 : index
    %c0_92 = arith.constant 0 : index
    %c0_93 = arith.constant 0 : index
    %244 = vector.load %arg18[%c0_91, %c0_92, %c0_93] : memref<1x1x32xf32, #tpu.memory_space<vmem>>, vector<1x1x32xf32>
    %245 = vector.shape_cast %244 : vector<1x1x32xf32> to vector<1x32xf32>
    %c0_94 = arith.constant 0 : index
    %c0_95 = arith.constant 0 : index
    %c0_96 = arith.constant 0 : index
    %246 = vector.load %arg19[%c0_94, %c0_95, %c0_96] : memref<1x1x32xf32, #tpu.memory_space<vmem>>, vector<1x1x32xf32>
    %247 = vector.shape_cast %246 : vector<1x1x32xf32> to vector<1x32xf32>
    %cst_97 = arith.constant dense<0.000000e+00> : vector<8xf32>
    %248 = vector.multi_reduction <add>, %243, %cst_97 [1] : vector<8x32xf32> to vector<8xf32>
    %249 = vector.shape_cast %248 : vector<8xf32> to vector<8x1xf32>
    %cst_98 = arith.constant 3.200000e+01 : f32
    %250 = vector.broadcast %cst_98 : f32 to vector<8x1xf32>
    %251 = arith.divf %249, %250 : vector<8x1xf32>
    %252 = vector.broadcast %251 : vector<8x1xf32> to vector<8x32xf32>
    %253 = arith.subf %243, %252 : vector<8x32xf32>
    %254 = arith.mulf %253, %253 : vector<8x32xf32>
    %cst_99 = arith.constant dense<0.000000e+00> : vector<8xf32>
    %255 = vector.multi_reduction <add>, %254, %cst_99 [1] : vector<8x32xf32> to vector<8xf32>
    %256 = vector.shape_cast %255 : vector<8xf32> to vector<8x1xf32>
    %cst_100 = arith.constant 3.200000e+01 : f32
    %257 = vector.broadcast %cst_100 : f32 to vector<8x1xf32>
    %258 = arith.divf %256, %257 : vector<8x1xf32>
    %259 = vector.broadcast %251 : vector<8x1xf32> to vector<8x32xf32>
    %260 = arith.subf %243, %259 : vector<8x32xf32>
    %cst_101 = arith.constant 9.99999974E-6 : f32
    %261 = vector.broadcast %cst_101 : f32 to vector<8x1xf32>
    %262 = arith.addf %258, %261 : vector<8x1xf32>
    %263 = math.rsqrt %262 : vector<8x1xf32>
    %264 = vector.broadcast %263 : vector<8x1xf32> to vector<8x32xf32>
    %265 = arith.mulf %260, %264 : vector<8x32xf32>
    %266 = vector.broadcast %245 : vector<1x32xf32> to vector<8x32xf32>
    %267 = arith.mulf %265, %266 : vector<8x32xf32>
    %268 = vector.broadcast %247 : vector<1x32xf32> to vector<8x32xf32>
    %269 = arith.addf %267, %268 : vector<8x32xf32>
    %c0_102 = arith.constant 0 : index
    %c0_103 = arith.constant 0 : index
    %c0_104 = arith.constant 0 : index
    %270 = vector.load %arg20[%c0_102, %c0_103, %c0_104] : memref<1x32x64xbf16, #tpu.memory_space<vmem>>, vector<1x32x64xbf16>
    %271 = vector.shape_cast %270 : vector<1x32x64xbf16> to vector<32x64xbf16>
    %c0_105 = arith.constant 0 : index
    %c0_106 = arith.constant 0 : index
    %c0_107 = arith.constant 0 : index
    %272 = vector.load %arg21[%c0_105, %c0_106, %c0_107] : memref<1x1x64xf32, #tpu.memory_space<vmem>>, vector<1x1x64xf32>
    %273 = vector.shape_cast %272 : vector<1x1x64xf32> to vector<1x64xf32>
    %c0_108 = arith.constant 0 : index
    %c0_109 = arith.constant 0 : index
    %c0_110 = arith.constant 0 : index
    %274 = vector.load %arg22[%c0_108, %c0_109, %c0_110] : memref<1x64x32xbf16, #tpu.memory_space<vmem>>, vector<1x64x32xbf16>
    %275 = vector.shape_cast %274 : vector<1x64x32xbf16> to vector<64x32xbf16>
    %c0_111 = arith.constant 0 : index
    %c0_112 = arith.constant 0 : index
    %c0_113 = arith.constant 0 : index
    %276 = vector.load %arg23[%c0_111, %c0_112, %c0_113] : memref<1x1x32xf32, #tpu.memory_space<vmem>>, vector<1x1x32xf32>
    %277 = vector.shape_cast %276 : vector<1x1x32xf32> to vector<1x32xf32>
    %278 = arith.truncf %269 : vector<8x32xf32> to vector<8x32xbf16>
    %cst_114 = arith.constant dense<0.000000e+00> : vector<8x64xf32>
    %279 = tpu.matmul %278, %271, %cst_114 {dimension_numbers = #tpu.dot_dimension_numbers<[1], [0], [0], [1], [0, 0, 1, 1], [], []>} : vector<8x32xbf16>, vector<32x64xbf16>, vector<8x64xf32> -> vector<8x64xf32>
    %280 = vector.broadcast %273 : vector<1x64xf32> to vector<8x64xf32>
    %281 = arith.addf %279, %280 : vector<8x64xf32>
    %cst_115 = arith.constant 0.000000e+00 : f32
    %282 = vector.broadcast %cst_115 : f32 to vector<8x64xf32>
    %283 = arith.maximumf %281, %282 : vector<8x64xf32>
    %284 = arith.truncf %283 : vector<8x64xf32> to vector<8x64xbf16>
    %cst_116 = arith.constant dense<0.000000e+00> : vector<8x32xf32>
    %285 = tpu.matmul %284, %275, %cst_116 {dimension_numbers = #tpu.dot_dimension_numbers<[1], [0], [0], [1], [0, 0, 1, 1], [], []>} : vector<8x64xbf16>, vector<64x32xbf16>, vector<8x32xf32> -> vector<8x32xf32>
    %286 = vector.broadcast %277 : vector<1x32xf32> to vector<8x32xf32>
    %287 = arith.addf %285, %286 : vector<8x32xf32>
    %288 = arith.addf %269, %287 : vector<8x32xf32>
    %c0_117 = arith.constant 0 : index
    %c0_118 = arith.constant 0 : index
    %c0_119 = arith.constant 0 : index
    %289 = vector.load %arg24[%c0_117, %c0_118, %c0_119] : memref<1x1x32xf32, #tpu.memory_space<vmem>>, vector<1x1x32xf32>
    %290 = vector.shape_cast %289 : vector<1x1x32xf32> to vector<1x32xf32>
    %c0_120 = arith.constant 0 : index
    %c0_121 = arith.constant 0 : index
    %c0_122 = arith.constant 0 : index
    %291 = vector.load %arg25[%c0_120, %c0_121, %c0_122] : memref<1x1x32xf32, #tpu.memory_space<vmem>>, vector<1x1x32xf32>
    %292 = vector.shape_cast %291 : vector<1x1x32xf32> to vector<1x32xf32>
    %cst_123 = arith.constant dense<0.000000e+00> : vector<8xf32>
    %293 = vector.multi_reduction <add>, %288, %cst_123 [1] : vector<8x32xf32> to vector<8xf32>
    %294 = vector.shape_cast %293 : vector<8xf32> to vector<8x1xf32>
    %cst_124 = arith.constant 3.200000e+01 : f32
    %295 = vector.broadcast %cst_124 : f32 to vector<8x1xf32>
    %296 = arith.divf %294, %295 : vector<8x1xf32>
    %297 = vector.broadcast %296 : vector<8x1xf32> to vector<8x32xf32>
    %298 = arith.subf %288, %297 : vector<8x32xf32>
    %299 = arith.mulf %298, %298 : vector<8x32xf32>
    %cst_125 = arith.constant dense<0.000000e+00> : vector<8xf32>
    %300 = vector.multi_reduction <add>, %299, %cst_125 [1] : vector<8x32xf32> to vector<8xf32>
    %301 = vector.shape_cast %300 : vector<8xf32> to vector<8x1xf32>
    %cst_126 = arith.constant 3.200000e+01 : f32
    %302 = vector.broadcast %cst_126 : f32 to vector<8x1xf32>
    %303 = arith.divf %301, %302 : vector<8x1xf32>
    %304 = vector.broadcast %296 : vector<8x1xf32> to vector<8x32xf32>
    %305 = arith.subf %288, %304 : vector<8x32xf32>
    %cst_127 = arith.constant 9.99999974E-6 : f32
    %306 = vector.broadcast %cst_127 : f32 to vector<8x1xf32>
    %307 = arith.addf %303, %306 : vector<8x1xf32>
    %308 = math.rsqrt %307 : vector<8x1xf32>
    %309 = vector.broadcast %308 : vector<8x1xf32> to vector<8x32xf32>
    %310 = arith.mulf %305, %309 : vector<8x32xf32>
    %311 = vector.broadcast %290 : vector<1x32xf32> to vector<8x32xf32>
    %312 = arith.mulf %310, %311 : vector<8x32xf32>
    %313 = vector.broadcast %292 : vector<1x32xf32> to vector<8x32xf32>
    %314 = arith.addf %312, %313 : vector<8x32xf32>
    %c0_128 = arith.constant 0 : index
    %c0_129 = arith.constant 0 : index
    %315 = vector.load %arg29[%c0_128, %c0_129] : memref<8x32xf32, #tpu.memory_space<vmem>>, vector<8x32xf32>
    tpu.vector_store %arg29[%c0_128, %c0_129], %314 {strides = array<i32>} : memref<8x32xf32, #tpu.memory_space<vmem>>, vector<8x32xf32>,
    %c1_i32 = arith.constant 1 : i32
    %316 = arith.cmpi eq, %arg1, %c1_i32 : i32
    %317 = arith.extui %316 : i1 to i32
    %c0_i32_130 = arith.constant 0 : i32
    %318 = arith.cmpi ne, %317, %c0_i32_130 : i32
    scf.if %318 {
      %c0_131 = arith.constant 0 : index
      %c0_132 = arith.constant 0 : index
      %319 = vector.load %arg29[%c0_131, %c0_132] : memref<8x32xf32, #tpu.memory_space<vmem>>, vector<8x32xf32>
      %c0_133 = arith.constant 0 : index
      %c0_134 = arith.constant 0 : index
      %320 = vector.load %arg26[%c0_133, %c0_134] : memref<1x32xf32, #tpu.memory_space<vmem>>, vector<1x32xf32>
      %c0_135 = arith.constant 0 : index
      %c0_136 = arith.constant 0 : index
      %321 = vector.load %arg27[%c0_135, %c0_136] : memref<1x32xf32, #tpu.memory_space<vmem>>, vector<1x32xf32>
      %cst_137 = arith.constant dense<0.000000e+00> : vector<8xf32>
      %322 = vector.multi_reduction <add>, %319, %cst_137 [1] : vector<8x32xf32> to vector<8xf32>
      %323 = vector.shape_cast %322 : vector<8xf32> to vector<8x1xf32>
      %cst_138 = arith.constant 3.200000e+01 : f32
      %324 = vector.broadcast %cst_138 : f32 to vector<8x1xf32>
      %325 = arith.divf %323, %324 : vector<8x1xf32>
      %326 = vector.broadcast %325 : vector<8x1xf32> to vector<8x32xf32>
      %327 = arith.subf %319, %326 : vector<8x32xf32>
      %328 = arith.mulf %327, %327 : vector<8x32xf32>
      %cst_139 = arith.constant dense<0.000000e+00> : vector<8xf32>
      %329 = vector.multi_reduction <add>, %328, %cst_139 [1] : vector<8x32xf32> to vector<8xf32>
      %330 = vector.shape_cast %329 : vector<8xf32> to vector<8x1xf32>
      %cst_140 = arith.constant 3.200000e+01 : f32
      %331 = vector.broadcast %cst_140 : f32 to vector<8x1xf32>
      %332 = arith.divf %330, %331 : vector<8x1xf32>
      %333 = vector.broadcast %325 : vector<8x1xf32> to vector<8x32xf32>
      %334 = arith.subf %319, %333 : vector<8x32xf32>
      %cst_141 = arith.constant 9.99999974E-6 : f32
      %335 = vector.broadcast %cst_141 : f32 to vector<8x1xf32>
      %336 = arith.addf %332, %335 : vector<8x1xf32>
      %337 = math.rsqrt %336 : vector<8x1xf32>
      %338 = vector.broadcast %337 : vector<8x1xf32> to vector<8x32xf32>
      %339 = arith.mulf %334, %338 : vector<8x32xf32>
      %340 = vector.broadcast %320 : vector<1x32xf32> to vector<8x32xf32>
      %341 = arith.mulf %339, %340 : vector<8x32xf32>
      %342 = vector.broadcast %321 : vector<1x32xf32> to vector<8x32xf32>
      %343 = arith.addf %341, %342 : vector<8x32xf32>
      %c0_142 = arith.constant 0 : index
      %c0_143 = arith.constant 0 : index
      %c0_144 = arith.constant 0 : index
      %344 = vector.load %arg28[%c0_142, %c0_143, %c0_144] : memref<1x8x32xf32, #tpu.memory_space<vmem>>, vector<1x8x32xf32>
      %345 = vector.shape_cast %344 : vector<1x8x32xf32> to vector<8x32xf32>
      %346 = vector.shape_cast %343 : vector<8x32xf32> to vector<1x8x32xf32>
      tpu.vector_store %arg28[%c0_142, %c0_143, %c0_144], %346 {strides = array<i32>} : memref<1x8x32xf32, #tpu.memory_space<vmem>>, vector<1x8x32xf32>,
    } else {
    }
    return
  }
  func.func @transform_0(%arg0: i32, %arg1: i32) -> (i32, i32, i32) {
    %c0_i32 = arith.constant 0 : i32
    %c0_i32_0 = arith.constant 0 : i32
    %c0_i32_1 = arith.constant 0 : i32
    return %arg0, %c0_i32, %c0_i32_0 : i32, i32, i32
  }
  func.func @transform_1(%arg0: i32, %arg1: i32) -> (i32, i32, i32) {
    %c0_i32 = arith.constant 0 : i32
    %c0_i32_0 = arith.constant 0 : i32
    %c0_i32_1 = arith.constant 0 : i32
    return %arg0, %c0_i32, %c0_i32_0 : i32, i32, i32
  }
  func.func @transform_2(%arg0: i32, %arg1: i32) -> (i32, i32, i32) {
    %c0_i32 = arith.constant 0 : i32
    %c0_i32_0 = arith.constant 0 : i32
    %c0_i32_1 = arith.constant 0 : i32
    return %arg1, %c0_i32, %c0_i32_0 : i32, i32, i32
  }
  func.func @transform_3(%arg0: i32, %arg1: i32) -> (i32, i32, i32) {
    %c0_i32 = arith.constant 0 : i32
    %c0_i32_0 = arith.constant 0 : i32
    %c0_i32_1 = arith.constant 0 : i32
    return %arg1, %c0_i32, %c0_i32_0 : i32, i32, i32
  }
  func.func @transform_4(%arg0: i32, %arg1: i32) -> (i32, i32, i32) {
    %c0_i32 = arith.constant 0 : i32
    %c0_i32_0 = arith.constant 0 : i32
    %c0_i32_1 = arith.constant 0 : i32
    return %arg1, %c0_i32, %c0_i32_0 : i32, i32, i32
  }
  func.func @transform_5(%arg0: i32, %arg1: i32) -> (i32, i32, i32) {
    %c0_i32 = arith.constant 0 : i32
    %c0_i32_0 = arith.constant 0 : i32
    %c0_i32_1 = arith.constant 0 : i32
    return %arg1, %c0_i32, %c0_i32_0 : i32, i32, i32
  }
  func.func @transform_6(%arg0: i32, %arg1: i32) -> (i32, i32, i32) {
    %c0_i32 = arith.constant 0 : i32
    %c0_i32_0 = arith.constant 0 : i32
    %c0_i32_1 = arith.constant 0 : i32
    return %arg1, %c0_i32, %c0_i32_0 : i32, i32, i32
  }
  func.func @transform_7(%arg0: i32, %arg1: i32) -> (i32, i32, i32) {
    %c0_i32 = arith.constant 0 : i32
    %c0_i32_0 = arith.constant 0 : i32
    %c0_i32_1 = arith.constant 0 : i32
    return %arg1, %c0_i32, %c0_i32_0 : i32, i32, i32
  }
  func.func @transform_8(%arg0: i32, %arg1: i32) -> (i32, i32, i32) {
    %c0_i32 = arith.constant 0 : i32
    %c0_i32_0 = arith.constant 0 : i32
    %c0_i32_1 = arith.constant 0 : i32
    return %arg1, %c0_i32, %c0_i32_0 : i32, i32, i32
  }
  func.func @transform_9(%arg0: i32, %arg1: i32) -> (i32, i32, i32) {
    %c0_i32 = arith.constant 0 : i32
    %c0_i32_0 = arith.constant 0 : i32
    %c0_i32_1 = arith.constant 0 : i32
    return %arg1, %c0_i32, %c0_i32_0 : i32, i32, i32
  }
  func.func @transform_10(%arg0: i32, %arg1: i32) -> (i32, i32, i32) {
    %c0_i32 = arith.constant 0 : i32
    %c0_i32_0 = arith.constant 0 : i32
    %c0_i32_1 = arith.constant 0 : i32
    return %arg1, %c0_i32, %c0_i32_0 : i32, i32, i32
  }
  func.func @transform_11(%arg0: i32, %arg1: i32) -> (i32, i32, i32) {
    %c0_i32 = arith.constant 0 : i32
    %c0_i32_0 = arith.constant 0 : i32
    %c0_i32_1 = arith.constant 0 : i32
    return %arg1, %c0_i32, %c0_i32_0 : i32, i32, i32
  }
  func.func @transform_12(%arg0: i32, %arg1: i32) -> (i32, i32, i32) {
    %c0_i32 = arith.constant 0 : i32
    %c0_i32_0 = arith.constant 0 : i32
    %c0_i32_1 = arith.constant 0 : i32
    return %arg1, %c0_i32, %c0_i32_0 : i32, i32, i32
  }
  func.func @transform_13(%arg0: i32, %arg1: i32) -> (i32, i32, i32) {
    %c0_i32 = arith.constant 0 : i32
    %c0_i32_0 = arith.constant 0 : i32
    %c0_i32_1 = arith.constant 0 : i32
    return %arg1, %c0_i32, %c0_i32_0 : i32, i32, i32
  }
  func.func @transform_14(%arg0: i32, %arg1: i32) -> (i32, i32, i32) {
    %c0_i32 = arith.constant 0 : i32
    %c0_i32_0 = arith.constant 0 : i32
    %c0_i32_1 = arith.constant 0 : i32
    return %arg1, %c0_i32, %c0_i32_0 : i32, i32, i32
  }
  func.func @transform_15(%arg0: i32, %arg1: i32) -> (i32, i32, i32) {
    %c0_i32 = arith.constant 0 : i32
    %c0_i32_0 = arith.constant 0 : i32
    %c0_i32_1 = arith.constant 0 : i32
    return %arg1, %c0_i32, %c0_i32_0 : i32, i32, i32
  }
  func.func @transform_16(%arg0: i32, %arg1: i32) -> (i32, i32, i32) {
    %c0_i32 = arith.constant 0 : i32
    %c0_i32_0 = arith.constant 0 : i32
    %c0_i32_1 = arith.constant 0 : i32
    return %arg1, %c0_i32, %c0_i32_0 : i32, i32, i32
  }
  func.func @transform_17(%arg0: i32, %arg1: i32) -> (i32, i32, i32) {
    %c0_i32 = arith.constant 0 : i32
    %c0_i32_0 = arith.constant 0 : i32
    %c0_i32_1 = arith.constant 0 : i32
    return %arg1, %c0_i32, %c0_i32_0 : i32, i32, i32
  }
  func.func @transform_18(%arg0: i32, %arg1: i32) -> (i32, i32, i32) {
    %c0_i32 = arith.constant 0 : i32
    %c0_i32_0 = arith.constant 0 : i32
    %c0_i32_1 = arith.constant 0 : i32
    return %arg1, %c0_i32, %c0_i32_0 : i32, i32, i32
  }
  func.func @transform_19(%arg0: i32, %arg1: i32) -> (i32, i32, i32) {
    %c0_i32 = arith.constant 0 : i32
    %c0_i32_0 = arith.constant 0 : i32
    %c0_i32_1 = arith.constant 0 : i32
    return %arg1, %c0_i32, %c0_i32_0 : i32, i32, i32
  }
  func.func @transform_20(%arg0: i32, %arg1: i32) -> (i32, i32, i32) {
    %c0_i32 = arith.constant 0 : i32
    %c0_i32_0 = arith.constant 0 : i32
    %c0_i32_1 = arith.constant 0 : i32
    return %arg1, %c0_i32, %c0_i32_0 : i32, i32, i32
  }
  func.func @transform_21(%arg0: i32, %arg1: i32) -> (i32, i32, i32) {
    %c0_i32 = arith.constant 0 : i32
    %c0_i32_0 = arith.constant 0 : i32
    %c0_i32_1 = arith.constant 0 : i32
    return %arg1, %c0_i32, %c0_i32_0 : i32, i32, i32
  }
  func.func @transform_22(%arg0: i32, %arg1: i32) -> (i32, i32, i32) {
    %c0_i32 = arith.constant 0 : i32
    %c0_i32_0 = arith.constant 0 : i32
    %c0_i32_1 = arith.constant 0 : i32
    return %arg1, %c0_i32, %c0_i32_0 : i32, i32, i32
  }
  func.func @transform_23(%arg0: i32, %arg1: i32) -> (i32, i32, i32) {
    %c0_i32 = arith.constant 0 : i32
    %c0_i32_0 = arith.constant 0 : i32
    %c0_i32_1 = arith.constant 0 : i32
    return %arg1, %c0_i32, %c0_i32_0 : i32, i32, i32
  }
  func.func @transform_24(%arg0: i32, %arg1: i32) -> (i32, i32) {
    %c0_i32 = arith.constant 0 : i32
    %c0_i32_0 = arith.constant 0 : i32
    %c0_i32_1 = arith.constant 0 : i32
    return %c0_i32, %c0_i32_0 : i32, i32
  }
  func.func @transform_25(%arg0: i32, %arg1: i32) -> (i32, i32) {
    %c0_i32 = arith.constant 0 : i32
    %c0_i32_0 = arith.constant 0 : i32
    %c0_i32_1 = arith.constant 0 : i32
    return %c0_i32, %c0_i32_0 : i32, i32
  }
  func.func @transform_26(%arg0: i32, %arg1: i32) -> (i32, i32, i32) {
    %c0_i32 = arith.constant 0 : i32
    %c0_i32_0 = arith.constant 0 : i32
    %c0_i32_1 = arith.constant 0 : i32
    return %arg0, %c0_i32, %c0_i32_0 : i32, i32, i32
  }
}

</mosaic_0001>

<llo_original>
// kernel: transformer_model_forward.5
$region0: #{transformer_model_forward.5}
  #allocation0 [shape = 'u32[]', space=smem, size = 0x4, offset = 0x4, fixed_abs, tag = 'smem constant byte address 0x4 - core index']
  #allocation1 [shape = 'u32[144,128]{1,0:T(1,128)}', space=vmem, size = 0x12000, scoped, tag = 'internal scratch']
  %s0 = inlined_call_operand.vmem [shape: f32[2,8,32], index: 0, kind: input, shape index: {}]
  %s1 = inlined_call_operand.vmem [shape: bf16[32,128], index: 1, kind: input, shape index: {}]
  %s2 = inlined_call_operand.vmem [shape: f32[1,128], index: 2, kind: input, shape index: {}]
  %s3 = inlined_call_operand.vmem [shape: f32[2,8,128], index: 3, kind: output, shape index: {}]
  %s4 = sld [smem:[#allocation0]]
  $region45: #{transformer_model_forward.5} parent=0
    _
  %s6 = ssub.s32 1, %s4
  %s7 = scalar_select 0, %s6, %s4
  loop: start=0, step=1, limit=4
  $region2: #{transformer_model_forward.5} parent=0 // loop_pre_header
    _
  $region3: #{transformer_model_forward.5} parent=0 // loop_header
    %s9 = sphi 0, %s13
    %p10 = scmp.ge.s32.totalorder %s9, 4
    %s16 = sphi 0, %s28
    %s17 = sphi 0, %s24
    %s18 = sphi 0, %s16
    %s19 = sphi 0, %s17
    %s20 = sphi 0, %s18
    %s21 = sphi 0, %s19
    %s31 = sphi 0, %s33
    %s34 = sphi 0, %s31
    %s35 = sphi 0, %s34
    %s51 = sphi 0, %s35
    %s57 = sphi 0, %s59
    %s60 = sphi 0, %s57
    %s61 = sphi 0, %s60
    %s77 = sphi 0, %s61
    %s83 = sphi 0, %s85
    %s86 = sphi 0, %s83
    %s87 = sphi 0, %s86
    %s103 = sphi 0, %s87
    %s111 = sphi 0, %s113
    %s114 = sphi 0, %s111
    %s115 = sphi 0, %s114
    %s131 = sphi 0, %s115
  $region4: #{transformer_model_forward.5} parent=0 // loop_header_branch
    %12 = sbr.rel (%p10) target = $region8
  $region5: #{transformer_model_forward.5} parent=0 // loop_body
    %s14 = ssub.s32 %s9, 1
    %s15 = ssub.s32 %s9, 2
    %s22 = sadd.s32 1, %s17
    %p23 = scmp.ge.s32.totalorder %s22, 1
    %s24 = scalar_select %p23, 0, %s22
    %s25 = sadd.s32 1, %s16
    %s26 = scalar_select %p23, %s25, %s16
    %p27 = scmp.ge.s32.totalorder %s26, 2
    %s28 = scalar_select %p27, 0, %s26
    %s29 = ssub.s32 %s16, %s28
    %p30 = scmp.eq.s32.totalorder %s29, 0
    %s32 = sadd.s32 %s31, 1
    %s33 = scalar_select %p30, %s31, %s32
    %p36 = pneg %p30
    %p37 = scmp.eq.s32.totalorder %s9, 1
    %p38 = por %p36, %p37
    %p39 = scmp.ne.s32.totalorder %s31, %s34
    %p40 = scmp.eq.s32.totalorder %s9, 0
    %p41 = por %p39, %p40
    %p42 = scmp.ne.s32.totalorder %s31, %s34
    %p43 = scmp.eq.s32.totalorder %s14, 1
    %p44 = por %p42, %p43
    %p45 = scmp.ne.s32.totalorder %s34, %s35
    %p46 = scmp.eq.s32.totalorder %s14, 0
    %p47 = por %p45, %p46
    %p48 = scmp.ne.s32.totalorder %s34, %s35
    %p49 = scmp.eq.s32.totalorder %s15, 1
    %p50 = por %p48, %p49
    %p52 = scmp.ne.s32.totalorder %s35, %s51
    %p53 = scmp.eq.s32.totalorder %s15, 0
    %p54 = por %p52, %p53
    %s55 = ssub.s32 %s17, %s24
    %p56 = scmp.eq.s32.totalorder %s55, 0
    %s58 = sadd.s32 %s57, 1
    %s59 = scalar_select %p56, %s57, %s58
    %p62 = pneg %p56
    %p63 = scmp.eq.s32.totalorder %s9, 1
    %p64 = por %p62, %p63
    %p65 = scmp.ne.s32.totalorder %s57, %s60
    %p66 = scmp.eq.s32.totalorder %s9, 0
    %p67 = por %p65, %p66
    %p68 = scmp.ne.s32.totalorder %s57, %s60
    %p69 = scmp.eq.s32.totalorder %s14, 1
    %p70 = por %p68, %p69
    %p71 = scmp.ne.s32.totalorder %s60, %s61
    %p72 = scmp.eq.s32.totalorder %s14, 0
    %p73 = por %p71, %p72
    %p74 = scmp.ne.s32.totalorder %s60, %s61
    %p75 = scmp.eq.s32.totalorder %s15, 1
    %p76 = por %p74, %p75
    %p78 = scmp.ne.s32.totalorder %s61, %s77
    %p79 = scmp.eq.s32.totalorder %s15, 0
    %p80 = por %p78, %p79
    %s81 = ssub.s32 %s17, %s24
    %p82 = scmp.eq.s32.totalorder %s81, 0
    %s84 = sadd.s32 %s83, 1
    %s85 = scalar_select %p82, %s83, %s84
    %p88 = pneg %p82
    %p89 = scmp.eq.s32.totalorder %s9, 1
    %p90 = por %p88, %p89
    %p91 = scmp.ne.s32.totalorder %s83, %s86
    %p92 = scmp.eq.s32.totalorder %s9, 0
    %p93 = por %p91, %p92
    %p94 = scmp.ne.s32.totalorder %s83, %s86
    %p95 = scmp.eq.s32.totalorder %s14, 1
    %p96 = por %p94, %p95
    %p97 = scmp.ne.s32.totalorder %s86, %s87
    %p98 = scmp.eq.s32.totalorder %s14, 0
    %p99 = por %p97, %p98
    %p100 = scmp.ne.s32.totalorder %s86, %s87
    %p101 = scmp.eq.s32.totalorder %s15, 1
    %p102 = por %p100, %p101
    %p104 = scmp.ne.s32.totalorder %s87, %s103
    %p105 = scmp.eq.s32.totalorder %s15, 0
    %p106 = por %p104, %p105
    %s107 = ssub.s32 %s16, %s28
    %s108 = ssub.s32 %s17, %s24
    %s109 = sor.u32 %s107, %s108
    %p110 = scmp.eq.s32.totalorder %s109, 0
    %s112 = sadd.s32 %s111, 1
    %s113 = scalar_select %p110, %s111, %s112
    %p116 = pneg %p110
    %p117 = scmp.eq.s32.totalorder %s9, 1
    %p118 = por %p116, %p117
    %p119 = scmp.ne.s32.totalorder %s111, %s114
    %p120 = scmp.eq.s32.totalorder %s9, 0
    %p121 = por %p119, %p120
    %p122 = scmp.ne.s32.totalorder %s111, %s114
    %p123 = scmp.eq.s32.totalorder %s14, 1
    %p124 = por %p122, %p123
    %p125 = scmp.ne.s32.totalorder %s114, %s115
    %p126 = scmp.eq.s32.totalorder %s14, 0
    %p127 = por %p125, %p126
    %p128 = scmp.ne.s32.totalorder %s114, %s115
    %p129 = scmp.eq.s32.totalorder %s15, 1
    %p130 = por %p128, %p129
    %p132 = scmp.ne.s32.totalorder %s115, %s131
    %p133 = scmp.eq.s32.totalorder %s15, 0
    %p134 = por %p132, %p133
    %p135 = scmp.le.s32.totalorder 1, %s9
    %p136 = scmp.lt.s32.totalorder %s9, 3
    %p137 = pnand %p135, %p136
    %p138 = pneg %p137
    // Predicated region
    $region9: #{transformer_model_forward.5} parent=5 // pred_check
      _
    $region10: #{transformer_model_forward.5} parent=5 // pred_check_branch
      %140 = sbr.rel (%p137) target = $region12
    $region11: #{transformer_model_forward.5} parent=5 // pred_region
      %s141 = ssub.s32 %s9, 1
      // Predicated region
      $region13: #{transformer_model_forward.5} parent=11 // pred_check
        %p142 = pneg %p73
      $region14: #{transformer_model_forward.5} parent=11 // pred_check_branch
        %144 = sbr.rel (%p142) target = $region16
      $region15: #{transformer_model_forward.5} parent=11 // pred_region
        %p145 = scmp.lt.s32.totalorder %s19, 0
        %s146 = scalar_select %p145, %s19, 0
        %s147 = smul.addr %s146, 4
        %s148 = scalar_lea.vmem %s1, %s147
      $region16: #{transformer_model_forward.5} parent=11 // pred_fallthru
        _
      // Predicated region
      $region17: #{transformer_model_forward.5} parent=11 // pred_check
        %p149 = pneg %p99
      $region18: #{transformer_model_forward.5} parent=11 // pred_check_branch
        %151 = sbr.rel (%p149) target = $region20
      $region19: #{transformer_model_forward.5} parent=11 // pred_region
        %p152 = scmp.lt.s32.totalorder %s19, 0
        %s153 = scalar_select %p152, %s19, 0
        %s154 = scalar_lea.vmem %s2, %s153
      $region20: #{transformer_model_forward.5} parent=11 // pred_fallthru
        _
    $region12: #{transformer_model_forward.5} parent=5 // pred_fallthru
      _
    %p155 = scmp.lt.s32.totalorder %s9, 2
    // Predicated region
    $region21: #{transformer_model_forward.5} parent=5 // pred_check
      %p156 = pneg %p155
    $region22: #{transformer_model_forward.5} parent=5 // pred_check_branch
      %158 = sbr.rel (%p156) target = $region24
    $region23: #{transformer_model_forward.5} parent=5 // pred_region
      // Predicated region
      $region25: #{transformer_model_forward.5} parent=23 // pred_check
        %p159 = pneg %p41
      $region26: #{transformer_model_forward.5} parent=23 // pred_check_branch
        %161 = sbr.rel (%p159) target = $region28
      $region27: #{transformer_model_forward.5} parent=23 // pred_region
        %p162 = scmp.lt.s32.totalorder %s16, 1
        %s163 = scalar_select %p162, %s16, 1
        %s164 = smul.addr %s163, 8
        %s165 = scalar_lea.vmem %s0, %s164
      $region28: #{transformer_model_forward.5} parent=23 // pred_fallthru
        _
    $region24: #{transformer_model_forward.5} parent=5 // pred_fallthru
      _
    %p166 = scmp.le.s32.totalorder 1, %s9
    %p167 = scmp.lt.s32.totalorder %s9, 3
    %p168 = pnand %p166, %p167
    %p169 = pneg %p168
    // Predicated region
    $region29: #{transformer_model_forward.5} parent=5 // pred_check
      _
    $region30: #{transformer_model_forward.5} parent=5 // pred_check_branch
      %171 = sbr.rel (%p168) target = $region32
    $region31: #{transformer_model_forward.5} parent=5 // pred_region
      %s172 = ssub.s32 %s9, 1
      %p173 = scmp.lt.s32.totalorder %s18, 1
      %s174 = scalar_select %p173, %s18, 1
      %s175 = smul.addr %s174, 8
      %s176 = scalar_lea.vmem %s0, %s175
      %p177 = pneg %p47
      %p178 = pneg %p44
      %p179 = scmp.lt.s32.totalorder %s19, 0
      %s180 = scalar_select %p179, %s19, 0
      %s181 = smul.addr %s180, 4
      %s182 = scalar_lea.vmem %s1, %s181
      %p183 = pneg %p73
      %p184 = pneg %p70
      %p185 = scmp.lt.s32.totalorder %s19, 0
      %s186 = scalar_select %p185, %s19, 0
      %s187 = scalar_lea.vmem %s2, %s186
      %p188 = pneg %p99
      %p189 = pneg %p96
      %p190 = pneg %p127
      %p191 = pneg %p124
      %p192 = scmp.lt.s32.totalorder %s18, 1
      %s193 = scalar_select %p192, %s18, 1
      %p194 = scmp.lt.s32.totalorder %s19, 0
      %s195 = scalar_select %p194, %s19, 0
      %s196 = sadd.s32 %s195, %s193
      %s197 = smul.addr %s196, 8
      %s198 = scalar_lea.vmem %s3, %s197
      %p199 = scmp.lt.s32.totalorder %s18, 1
      %s200 = scalar_select %p199, %s18, 1
      %s201 = smul.addr %s200, 8
      %s202 = scalar_lea.vmem %s0, %s201
      %p203 = scmp.lt.s32.totalorder %s19, 0
      %s204 = scalar_select %p203, %s19, 0
      %s205 = smul.addr %s204, 4
      %s206 = scalar_lea.vmem %s1, %s205
      %p207 = scmp.lt.s32.totalorder %s19, 0
      %s208 = scalar_select %p207, %s19, 0
      %s209 = scalar_lea.vmem %s2, %s208
      %p210 = scmp.lt.s32.totalorder %s18, 1
      %s211 = scalar_select %p210, %s18, 1
      %p212 = scmp.lt.s32.totalorder %s19, 0
      %s213 = scalar_select %p212, %s19, 0
      %s214 = sadd.s32 %s213, %s211
      %s215 = smul.addr %s214, 8
      %s216 = scalar_lea.vmem %s3, %s215
      %v218 = vld [vmem:[%s202] sm:$0xff]
      %v219 = vpack.c.bf16 %v218, %v218
      %v220 = vld [vmem:[%s206] sm:$0xf]
      %v221 = vld [vmem:[%s206 + $0x4] sm:$0xf]
      %v222 = vld [vmem:[%s206 + $0x8] sm:$0xf]
      %v223 = vld [vmem:[%s206 + $0xc] sm:$0xf]
      %v224 = vld [vmem:[%s209] sm:$0x1]
      %v226 = vlaneseq
      %v227 = vshrl.u32 %v226, 7
      %v228 = vsub.s32 0, %v227
      %v229 = vrot.slane %v224, %v228
      %v235 = vunpack.c.l.b16 %v220
      %v236 = vunpack.c.l.b16 %v221
      %v237 = vunpack.c.l.b16 %v222
      %v238 = vunpack.c.l.b16 %v223
      %v239 = vpack.c.b16 %v236, %v235
      %v240 = vpack.c.b16 %v238, %v237
      %vm243 = vcmask 261120
      %v245 = vsel %vm243, %v219, 0
      %247 = vmatprep.subr.bf16.mxu0 0
      %248 = vmatpush1.bf16.msra.mxu0 %v239
      %249 = vmatprep.subr.bf16.mxu0 0
      %250 = vmatpush1.bf16.msra.mxu0 %v240
      %251 = vmatprep.subr.bf16.mxu0 0
      %252 = vmatpush1.bf16.msra.mxu0 0
      %253 = vmatprep.subr.bf16.mxu0 0
      %254 = vmatpush1.bf16.msra.mxu0 0
      %255 = vmatprep.subr.bf16.mxu0 0
      %256 = vmatpush1.bf16.msra.mxu0 0
      %257 = vmatprep.subr.bf16.mxu0 0
      %258 = vmatpush1.bf16.msra.mxu0 0
      %259 = vmatprep.subr.bf16.mxu0 0
      %260 = vmatpush1.bf16.msra.mxu0 0
      %261 = vmatprep.subr.bf16.mxu0 0
      %262 = vmatpush1.bf16.msra.mxu0 0
      %263 = vmatprep.subr.bf16.mxu0 0
      %264 = vmatpush1.bf16.msra.mxu0 0
      %265 = vmatprep.subr.bf16.mxu0 0
      %266 = vmatpush1.bf16.msra.mxu0 0
      %267 = vmatprep.subr.bf16.mxu0 0
      %268 = vmatpush1.bf16.msra.mxu0 0
      %269 = vmatprep.subr.bf16.mxu0 0
      %270 = vmatpush1.bf16.msra.mxu0 0
      %271 = vmatprep.subr.bf16.mxu0 0
      %272 = vmatpush1.bf16.msra.mxu0 0
      %273 = vmatprep.subr.bf16.mxu0 0
      %274 = vmatpush1.bf16.msra.mxu0 0
      %275 = vmatprep.subr.bf16.mxu0 0
      %276 = vmatpush1.bf16.msra.mxu0 0
      %277 = vmatprep.subr.bf16.mxu0 0
      %278 = vmatpush1.bf16.msra.mxu0 0
      %279 = vmatprep.mubr.bf16.mxu0 0
      %280 = vmatmul.mubr.bf16.gmra.mrb[0].mxu0 %v245
      %v281 = vpop.f32.mrb[0].mxu0
      %v282 = vadd.f32 %v229, %v281
      %v283 = vpop.f32.mrb[0].mxu0
      %v284 = vpop.f32.mrb[0].mxu0
      %v285 = vpop.f32.mrb[0].mxu0
      %286 = vdwg.mxu0
      %287 = vst [vmem:[%s216] sm:$0xff] %v282
      %p288 = scmp.lt.s32.totalorder %s18, 1
      %s289 = scalar_select %p288, %s18, 1
      %p290 = scmp.lt.s32.totalorder %s19, 0
      %s291 = scalar_select %p290, %s19, 0
      %s292 = sadd.s32 %s291, %s289
      %s293 = smul.addr %s292, 8
      %s294 = scalar_lea.vmem %s3, %s293
      // Predicated region
      $region33: #{transformer_model_forward.5} parent=31 // pred_check
        %p295 = pneg %p124
      $region34: #{transformer_model_forward.5} parent=31 // pred_check_branch
        %297 = sbr.rel (%p295) target = $region36
      $region35: #{transformer_model_forward.5} parent=31 // pred_region
        _
      $region36: #{transformer_model_forward.5} parent=31 // pred_fallthru
        _
    $region32: #{transformer_model_forward.5} parent=5 // pred_fallthru
      _
    %p298 = scmp.le.s32.totalorder 2, %s9
    // Predicated region
    $region37: #{transformer_model_forward.5} parent=5 // pred_check
      %p299 = pneg %p298
    $region38: #{transformer_model_forward.5} parent=5 // pred_check_branch
      %301 = sbr.rel (%p299) target = $region40
    $region39: #{transformer_model_forward.5} parent=5 // pred_region
      %s302 = ssub.s32 %s9, 2
      // Predicated region
      $region41: #{transformer_model_forward.5} parent=39 // pred_check
        %p303 = pneg %p130
      $region42: #{transformer_model_forward.5} parent=39 // pred_check_branch
        %305 = sbr.rel (%p303) target = $region44
      $region43: #{transformer_model_forward.5} parent=39 // pred_region
        %p306 = scmp.lt.s32.totalorder %s20, 1
        %s307 = scalar_select %p306, %s20, 1
        %p308 = scmp.lt.s32.totalorder %s21, 0
        %s309 = scalar_select %p308, %s21, 0
        %s310 = sadd.s32 %s309, %s307
        %s311 = smul.addr %s310, 8
        %s312 = scalar_lea.vmem %s3, %s311
      $region44: #{transformer_model_forward.5} parent=39 // pred_fallthru
        _
    $region40: #{transformer_model_forward.5} parent=5 // pred_fallthru
      _
  $region6: #{transformer_model_forward.5} parent=0 // loop_footer
    %s13 = sadd.s32 1, %s9
  $region7: #{transformer_model_forward.5} parent=0 // loop_footer_branch
    %8 = sbr.rel target = $region3
  $region8: #{transformer_model_forward.5} parent=0 // loop_exit
    _

// kernel: transformer_model_forward.3
$region0: #{transformer_model_forward.3}
  #allocation0 [shape = 'u32[]', space=smem, size = 0x4, offset = 0x4, fixed_abs, tag = 'smem constant byte address 0x4 - core index']
  #allocation1 [shape = 'u32[144,128]{1,0:T(1,128)}', space=vmem, size = 0x12000, scoped, tag = 'internal scratch']
  #allocation2 [shape = 'f32[8,32]{1,0:T(8,128)}', space=vmem, size = 0x1000, scoped, tag = 'scratch operand']
  %s0 = inlined_call_operand.vmem [shape: f32[2,8,32], index: 0, kind: input, shape index: {}]
  %s1 = inlined_call_operand.vmem [shape: bf16[2,32,32], index: 1, kind: input, shape index: {}]
  %s2 = inlined_call_operand.vmem [shape: f32[2,1,32], index: 2, kind: input, shape index: {}]
  %s3 = inlined_call_operand.vmem [shape: bf16[2,32,64], index: 3, kind: input, shape index: {}]
  %s4 = inlined_call_operand.vmem [shape: f32[2,1,64], index: 4, kind: input, shape index: {}]
  %s5 = inlined_call_operand.vmem [shape: bf16[2,32,32], index: 5, kind: input, shape index: {}]
  %s6 = inlined_call_operand.vmem [shape: f32[2,1,32], index: 6, kind: input, shape index: {}]
  %s7 = inlined_call_operand.vmem [shape: f32[2,1,32], index: 7, kind: input, shape index: {}]
  %s8 = inlined_call_operand.vmem [shape: f32[2,1,32], index: 8, kind: input, shape index: {}]
  %s9 = inlined_call_operand.vmem [shape: bf16[2,32,64], index: 9, kind: input, shape index: {}]
  %s10 = inlined_call_operand.vmem [shape: f32[2,1,64], index: 10, kind: input, shape index: {}]
  %s11 = inlined_call_operand.vmem [shape: bf16[2,64,32], index: 11, kind: input, shape index: {}]
  %s12 = inlined_call_operand.vmem [shape: f32[2,1,32], index: 12, kind: input, shape index: {}]
  %s13 = inlined_call_operand.vmem [shape: f32[2,1,32], index: 13, kind: input, shape index: {}]
  %s14 = inlined_call_operand.vmem [shape: f32[2,1,32], index: 14, kind: input, shape index: {}]
  %s15 = inlined_call_operand.vmem [shape: f32[1,32], index: 15, kind: input, shape index: {}]
  %s16 = inlined_call_operand.vmem [shape: f32[1,32], index: 16, kind: input, shape index: {}]
  %s17 = inlined_call_operand.vmem [shape: f32[2,8,32], index: 17, kind: output, shape index: {}]
  %s18 = sld [smem:[#allocation0]]
  $region109: #{transformer_model_forward.3} parent=0
    _
  %s20 = ssub.s32 1, %s18
  %s21 = scalar_select 0, %s20, %s18
  loop: start=0, step=1, limit=6
  $region2: #{transformer_model_forward.3} parent=0 // loop_pre_header
    _
  $region3: #{transformer_model_forward.3} parent=0 // loop_header
    %s23 = sphi 0, %s27
    %p24 = scmp.ge.s32.totalorder %s23, 6
    %s30 = sphi 0, %s42
    %s31 = sphi 0, %s38
    %s32 = sphi 0, %s30
    %s33 = sphi 0, %s31
    %s34 = sphi 0, %s32
    %s35 = sphi 0, %s33
    %s45 = sphi 0, %s47
    %s48 = sphi 0, %s45
    %s49 = sphi 0, %s48
    %s65 = sphi 0, %s49
    %s71 = sphi 0, %s73
    %s74 = sphi 0, %s71
    %s75 = sphi 0, %s74
    %s91 = sphi 0, %s75
    %s97 = sphi 0, %s99
    %s100 = sphi 0, %s97
    %s101 = sphi 0, %s100
    %s117 = sphi 0, %s101
    %s123 = sphi 0, %s125
    %s126 = sphi 0, %s123
    %s127 = sphi 0, %s126
    %s143 = sphi 0, %s127
    %s149 = sphi 0, %s151
    %s152 = sphi 0, %s149
    %s153 = sphi 0, %s152
    %s169 = sphi 0, %s153
    %s175 = sphi 0, %s177
    %s178 = sphi 0, %s175
    %s179 = sphi 0, %s178
    %s195 = sphi 0, %s179
    %s201 = sphi 0, %s203
    %s204 = sphi 0, %s201
    %s205 = sphi 0, %s204
    %s221 = sphi 0, %s205
    %s227 = sphi 0, %s229
    %s230 = sphi 0, %s227
    %s231 = sphi 0, %s230
    %s247 = sphi 0, %s231
    %s253 = sphi 0, %s255
    %s256 = sphi 0, %s253
    %s257 = sphi 0, %s256
    %s273 = sphi 0, %s257
    %s279 = sphi 0, %s281
    %s282 = sphi 0, %s279
    %s283 = sphi 0, %s282
    %s299 = sphi 0, %s283
    %s305 = sphi 0, %s307
    %s308 = sphi 0, %s305
    %s309 = sphi 0, %s308
    %s325 = sphi 0, %s309
    %s331 = sphi 0, %s333
    %s334 = sphi 0, %s331
    %s335 = sphi 0, %s334
    %s351 = sphi 0, %s335
    %s357 = sphi 0, %s359
    %s360 = sphi 0, %s357
    %s361 = sphi 0, %s360
    %s377 = sphi 0, %s361
    %s383 = sphi 0, %s385
    %s386 = sphi 0, %s383
    %s387 = sphi 0, %s386
    %s403 = sphi 0, %s387
    %s409 = sphi 0, %s411
    %s412 = sphi 0, %s409
    %s413 = sphi 0, %s412
    %s429 = sphi 0, %s413
    %s433 = sphi 0, %s433
    %s435 = sphi 0, %s433
    %s436 = sphi 0, %s435
    %s450 = sphi 0, %s436
    %s454 = sphi 0, %s454
    %s456 = sphi 0, %s454
    %s457 = sphi 0, %s456
    %s471 = sphi 0, %s457
    %s477 = sphi 0, %s479
    %s480 = sphi 0, %s477
    %s481 = sphi 0, %s480
    %s497 = sphi 0, %s481
  $region4: #{transformer_model_forward.3} parent=0 // loop_header_branch
    %26 = sbr.rel (%p24) target = $region8
  $region5: #{transformer_model_forward.3} parent=0 // loop_body
    %s28 = ssub.s32 %s23, 1
    %s29 = ssub.s32 %s23, 2
    %s36 = sadd.s32 1, %s31
    %p37 = scmp.ge.s32.totalorder %s36, 2
    %s38 = scalar_select %p37, 0, %s36
    %s39 = sadd.s32 1, %s30
    %s40 = scalar_select %p37, %s39, %s30
    %p41 = scmp.ge.s32.totalorder %s40, 2
    %s42 = scalar_select %p41, 0, %s40
    %s43 = ssub.s32 %s30, %s42
    %p44 = scmp.eq.s32.totalorder %s43, 0
    %s46 = sadd.s32 %s45, 1
    %s47 = scalar_select %p44, %s45, %s46
    %p50 = pneg %p44
    %p51 = scmp.eq.s32.totalorder %s23, 3
    %p52 = por %p50, %p51
    %p53 = scmp.ne.s32.totalorder %s45, %s48
    %p54 = scmp.eq.s32.totalorder %s23, 0
    %p55 = por %p53, %p54
    %p56 = scmp.ne.s32.totalorder %s45, %s48
    %p57 = scmp.eq.s32.totalorder %s28, 3
    %p58 = por %p56, %p57
    %p59 = scmp.ne.s32.totalorder %s48, %s49
    %p60 = scmp.eq.s32.totalorder %s28, 0
    %p61 = por %p59, %p60
    %p62 = scmp.ne.s32.totalorder %s48, %s49
    %p63 = scmp.eq.s32.totalorder %s29, 3
    %p64 = por %p62, %p63
    %p66 = scmp.ne.s32.totalorder %s49, %s65
    %p67 = scmp.eq.s32.totalorder %s29, 0
    %p68 = por %p66, %p67
    %s69 = ssub.s32 %s31, %s38
    %p70 = scmp.eq.s32.totalorder %s69, 0
    %s72 = sadd.s32 %s71, 1
    %s73 = scalar_select %p70, %s71, %s72
    %p76 = pneg %p70
    %p77 = scmp.eq.s32.totalorder %s23, 3
    %p78 = por %p76, %p77
    %p79 = scmp.ne.s32.totalorder %s71, %s74
    %p80 = scmp.eq.s32.totalorder %s23, 0
    %p81 = por %p79, %p80
    %p82 = scmp.ne.s32.totalorder %s71, %s74
    %p83 = scmp.eq.s32.totalorder %s28, 3
    %p84 = por %p82, %p83
    %p85 = scmp.ne.s32.totalorder %s74, %s75
    %p86 = scmp.eq.s32.totalorder %s28, 0
    %p87 = por %p85, %p86
    %p88 = scmp.ne.s32.totalorder %s74, %s75
    %p89 = scmp.eq.s32.totalorder %s29, 3
    %p90 = por %p88, %p89
    %p92 = scmp.ne.s32.totalorder %s75, %s91
    %p93 = scmp.eq.s32.totalorder %s29, 0
    %p94 = por %p92, %p93
    %s95 = ssub.s32 %s31, %s38
    %p96 = scmp.eq.s32.totalorder %s95, 0
    %s98 = sadd.s32 %s97, 1
    %s99 = scalar_select %p96, %s97, %s98
    %p102 = pneg %p96
    %p103 = scmp.eq.s32.totalorder %s23, 3
    %p104 = por %p102, %p103
    %p105 = scmp.ne.s32.totalorder %s97, %s100
    %p106 = scmp.eq.s32.totalorder %s23, 0
    %p107 = por %p105, %p106
    %p108 = scmp.ne.s32.totalorder %s97, %s100
    %p109 = scmp.eq.s32.totalorder %s28, 3
    %p110 = por %p108, %p109
    %p111 = scmp.ne.s32.totalorder %s100, %s101
    %p112 = scmp.eq.s32.totalorder %s28, 0
    %p113 = por %p111, %p112
    %p114 = scmp.ne.s32.totalorder %s100, %s101
    %p115 = scmp.eq.s32.totalorder %s29, 3
    %p116 = por %p114, %p115
    %p118 = scmp.ne.s32.totalorder %s101, %s117
    %p119 = scmp.eq.s32.totalorder %s29, 0
    %p120 = por %p118, %p119
    %s121 = ssub.s32 %s31, %s38
    %p122 = scmp.eq.s32.totalorder %s121, 0
    %s124 = sadd.s32 %s123, 1
    %s125 = scalar_select %p122, %s123, %s124
    %p128 = pneg %p122
    %p129 = scmp.eq.s32.totalorder %s23, 3
    %p130 = por %p128, %p129
    %p131 = scmp.ne.s32.totalorder %s123, %s126
    %p132 = scmp.eq.s32.totalorder %s23, 0
    %p133 = por %p131, %p132
    %p134 = scmp.ne.s32.totalorder %s123, %s126
    %p135 = scmp.eq.s32.totalorder %s28, 3
    %p136 = por %p134, %p135
    %p137 = scmp.ne.s32.totalorder %s126, %s127
    %p138 = scmp.eq.s32.totalorder %s28, 0
    %p139 = por %p137, %p138
    %p140 = scmp.ne.s32.totalorder %s126, %s127
    %p141 = scmp.eq.s32.totalorder %s29, 3
    %p142 = por %p140, %p141
    %p144 = scmp.ne.s32.totalorder %s127, %s143
    %p145 = scmp.eq.s32.totalorder %s29, 0
    %p146 = por %p144, %p145
    %s147 = ssub.s32 %s31, %s38
    %p148 = scmp.eq.s32.totalorder %s147, 0
    %s150 = sadd.s32 %s149, 1
    %s151 = scalar_select %p148, %s149, %s150
    %p154 = pneg %p148
    %p155 = scmp.eq.s32.totalorder %s23, 3
    %p156 = por %p154, %p155
    %p157 = scmp.ne.s32.totalorder %s149, %s152
    %p158 = scmp.eq.s32.totalorder %s23, 0
    %p159 = por %p157, %p158
    %p160 = scmp.ne.s32.totalorder %s149, %s152
    %p161 = scmp.eq.s32.totalorder %s28, 3
    %p162 = por %p160, %p161
    %p163 = scmp.ne.s32.totalorder %s152, %s153
    %p164 = scmp.eq.s32.totalorder %s28, 0
    %p165 = por %p163, %p164
    %p166 = scmp.ne.s32.totalorder %s152, %s153
    %p167 = scmp.eq.s32.totalorder %s29, 3
    %p168 = por %p166, %p167
    %p170 = scmp.ne.s32.totalorder %s153, %s169
    %p171 = scmp.eq.s32.totalorder %s29, 0
    %p172 = por %p170, %p171
    %s173 = ssub.s32 %s31, %s38
    %p174 = scmp.eq.s32.totalorder %s173, 0
    %s176 = sadd.s32 %s175, 1
    %s177 = scalar_select %p174, %s175, %s176
    %p180 = pneg %p174
    %p181 = scmp.eq.s32.totalorder %s23, 3
    %p182 = por %p180, %p181
    %p183 = scmp.ne.s32.totalorder %s175, %s178
    %p184 = scmp.eq.s32.totalorder %s23, 0
    %p185 = por %p183, %p184
    %p186 = scmp.ne.s32.totalorder %s175, %s178
    %p187 = scmp.eq.s32.totalorder %s28, 3
    %p188 = por %p186, %p187
    %p189 = scmp.ne.s32.totalorder %s178, %s179
    %p190 = scmp.eq.s32.totalorder %s28, 0
    %p191 = por %p189, %p190
    %p192 = scmp.ne.s32.totalorder %s178, %s179
    %p193 = scmp.eq.s32.totalorder %s29, 3
    %p194 = por %p192, %p193
    %p196 = scmp.ne.s32.totalorder %s179, %s195
    %p197 = scmp.eq.s32.totalorder %s29, 0
    %p198 = por %p196, %p197
    %s199 = ssub.s32 %s31, %s38
    %p200 = scmp.eq.s32.totalorder %s199, 0
    %s202 = sadd.s32 %s201, 1
    %s203 = scalar_select %p200, %s201, %s202
    %p206 = pneg %p200
    %p207 = scmp.eq.s32.totalorder %s23, 3
    %p208 = por %p206, %p207
    %p209 = scmp.ne.s32.totalorder %s201, %s204
    %p210 = scmp.eq.s32.totalorder %s23, 0
    %p211 = por %p209, %p210
    %p212 = scmp.ne.s32.totalorder %s201, %s204
    %p213 = scmp.eq.s32.totalorder %s28, 3
    %p214 = por %p212, %p213
    %p215 = scmp.ne.s32.totalorder %s204, %s205
    %p216 = scmp.eq.s32.totalorder %s28, 0
    %p217 = por %p215, %p216
    %p218 = scmp.ne.s32.totalorder %s204, %s205
    %p219 = scmp.eq.s32.totalorder %s29, 3
    %p220 = por %p218, %p219
    %p222 = scmp.ne.s32.totalorder %s205, %s221
    %p223 = scmp.eq.s32.totalorder %s29, 0
    %p224 = por %p222, %p223
    %s225 = ssub.s32 %s31, %s38
    %p226 = scmp.eq.s32.totalorder %s225, 0
    %s228 = sadd.s32 %s227, 1
    %s229 = scalar_select %p226, %s227, %s228
    %p232 = pneg %p226
    %p233 = scmp.eq.s32.totalorder %s23, 3
    %p234 = por %p232, %p233
    %p235 = scmp.ne.s32.totalorder %s227, %s230
    %p236 = scmp.eq.s32.totalorder %s23, 0
    %p237 = por %p235, %p236
    %p238 = scmp.ne.s32.totalorder %s227, %s230
    %p239 = scmp.eq.s32.totalorder %s28, 3
    %p240 = por %p238, %p239
    %p241 = scmp.ne.s32.totalorder %s230, %s231
    %p242 = scmp.eq.s32.totalorder %s28, 0
    %p243 = por %p241, %p242
    %p244 = scmp.ne.s32.totalorder %s230, %s231
    %p245 = scmp.eq.s32.totalorder %s29, 3
    %p246 = por %p244, %p245
    %p248 = scmp.ne.s32.totalorder %s231, %s247
    %p249 = scmp.eq.s32.totalorder %s29, 0
    %p250 = por %p248, %p249
    %s251 = ssub.s32 %s31, %s38
    %p252 = scmp.eq.s32.totalorder %s251, 0
    %s254 = sadd.s32 %s253, 1
    %s255 = scalar_select %p252, %s253, %s254
    %p258 = pneg %p252
    %p259 = scmp.eq.s32.totalorder %s23, 3
    %p260 = por %p258, %p259
    %p261 = scmp.ne.s32.totalorder %s253, %s256
    %p262 = scmp.eq.s32.totalorder %s23, 0
    %p263 = por %p261, %p262
    %p264 = scmp.ne.s32.totalorder %s253, %s256
    %p265 = scmp.eq.s32.totalorder %s28, 3
    %p266 = por %p264, %p265
    %p267 = scmp.ne.s32.totalorder %s256, %s257
    %p268 = scmp.eq.s32.totalorder %s28, 0
    %p269 = por %p267, %p268
    %p270 = scmp.ne.s32.totalorder %s256, %s257
    %p271 = scmp.eq.s32.totalorder %s29, 3
    %p272 = por %p270, %p271
    %p274 = scmp.ne.s32.totalorder %s257, %s273
    %p275 = scmp.eq.s32.totalorder %s29, 0
    %p276 = por %p274, %p275
    %s277 = ssub.s32 %s31, %s38
    %p278 = scmp.eq.s32.totalorder %s277, 0
    %s280 = sadd.s32 %s279, 1
    %s281 = scalar_select %p278, %s279, %s280
    %p284 = pneg %p278
    %p285 = scmp.eq.s32.totalorder %s23, 3
    %p286 = por %p284, %p285
    %p287 = scmp.ne.s32.totalorder %s279, %s282
    %p288 = scmp.eq.s32.totalorder %s23, 0
    %p289 = por %p287, %p288
    %p290 = scmp.ne.s32.totalorder %s279, %s282
    %p291 = scmp.eq.s32.totalorder %s28, 3
    %p292 = por %p290, %p291
    %p293 = scmp.ne.s32.totalorder %s282, %s283
    %p294 = scmp.eq.s32.totalorder %s28, 0
    %p295 = por %p293, %p294
    %p296 = scmp.ne.s32.totalorder %s282, %s283
    %p297 = scmp.eq.s32.totalorder %s29, 3
    %p298 = por %p296, %p297
    %p300 = scmp.ne.s32.totalorder %s283, %s299
    %p301 = scmp.eq.s32.totalorder %s29, 0
    %p302 = por %p300, %p301
    %s303 = ssub.s32 %s31, %s38
    %p304 = scmp.eq.s32.totalorder %s303, 0
    %s306 = sadd.s32 %s305, 1
    %s307 = scalar_select %p304, %s305, %s306
    %p310 = pneg %p304
    %p311 = scmp.eq.s32.totalorder %s23, 3
    %p312 = por %p310, %p311
    %p313 = scmp.ne.s32.totalorder %s305, %s308
    %p314 = scmp.eq.s32.totalorder %s23, 0
    %p315 = por %p313, %p314
    %p316 = scmp.ne.s32.totalorder %s305, %s308
    %p317 = scmp.eq.s32.totalorder %s28, 3
    %p318 = por %p316, %p317
    %p319 = scmp.ne.s32.totalorder %s308, %s309
    %p320 = scmp.eq.s32.totalorder %s28, 0
    %p321 = por %p319, %p320
    %p322 = scmp.ne.s32.totalorder %s308, %s309
    %p323 = scmp.eq.s32.totalorder %s29, 3
    %p324 = por %p322, %p323
    %p326 = scmp.ne.s32.totalorder %s309, %s325
    %p327 = scmp.eq.s32.totalorder %s29, 0
    %p328 = por %p326, %p327
    %s329 = ssub.s32 %s31, %s38
    %p330 = scmp.eq.s32.totalorder %s329, 0
    %s332 = sadd.s32 %s331, 1
    %s333 = scalar_select %p330, %s331, %s332
    %p336 = pneg %p330
    %p337 = scmp.eq.s32.totalorder %s23, 3
    %p338 = por %p336, %p337
    %p339 = scmp.ne.s32.totalorder %s331, %s334
    %p340 = scmp.eq.s32.totalorder %s23, 0
    %p341 = por %p339, %p340
    %p342 = scmp.ne.s32.totalorder %s331, %s334
    %p343 = scmp.eq.s32.totalorder %s28, 3
    %p344 = por %p342, %p343
    %p345 = scmp.ne.s32.totalorder %s334, %s335
    %p346 = scmp.eq.s32.totalorder %s28, 0
    %p347 = por %p345, %p346
    %p348 = scmp.ne.s32.totalorder %s334, %s335
    %p349 = scmp.eq.s32.totalorder %s29, 3
    %p350 = por %p348, %p349
    %p352 = scmp.ne.s32.totalorder %s335, %s351
    %p353 = scmp.eq.s32.totalorder %s29, 0
    %p354 = por %p352, %p353
    %s355 = ssub.s32 %s31, %s38
    %p356 = scmp.eq.s32.totalorder %s355, 0
    %s358 = sadd.s32 %s357, 1
    %s359 = scalar_select %p356, %s357, %s358
    %p362 = pneg %p356
    %p363 = scmp.eq.s32.totalorder %s23, 3
    %p364 = por %p362, %p363
    %p365 = scmp.ne.s32.totalorder %s357, %s360
    %p366 = scmp.eq.s32.totalorder %s23, 0
    %p367 = por %p365, %p366
    %p368 = scmp.ne.s32.totalorder %s357, %s360
    %p369 = scmp.eq.s32.totalorder %s28, 3
    %p370 = por %p368, %p369
    %p371 = scmp.ne.s32.totalorder %s360, %s361
    %p372 = scmp.eq.s32.totalorder %s28, 0
    %p373 = por %p371, %p372
    %p374 = scmp.ne.s32.totalorder %s360, %s361
    %p375 = scmp.eq.s32.totalorder %s29, 3
    %p376 = por %p374, %p375
    %p378 = scmp.ne.s32.totalorder %s361, %s377
    %p379 = scmp.eq.s32.totalorder %s29, 0
    %p380 = por %p378, %p379
    %s381 = ssub.s32 %s31, %s38
    %p382 = scmp.eq.s32.totalorder %s381, 0
    %s384 = sadd.s32 %s383, 1
    %s385 = scalar_select %p382, %s383, %s384
    %p388 = pneg %p382
    %p389 = scmp.eq.s32.totalorder %s23, 3
    %p390 = por %p388, %p389
    %p391 = scmp.ne.s32.totalorder %s383, %s386
    %p392 = scmp.eq.s32.totalorder %s23, 0
    %p393 = por %p391, %p392
    %p394 = scmp.ne.s32.totalorder %s383, %s386
    %p395 = scmp.eq.s32.totalorder %s28, 3
    %p396 = por %p394, %p395
    %p397 = scmp.ne.s32.totalorder %s386, %s387
    %p398 = scmp.eq.s32.totalorder %s28, 0
    %p399 = por %p397, %p398
    %p400 = scmp.ne.s32.totalorder %s386, %s387
    %p401 = scmp.eq.s32.totalorder %s29, 3
    %p402 = por %p400, %p401
    %p404 = scmp.ne.s32.totalorder %s387, %s403
    %p405 = scmp.eq.s32.totalorder %s29, 0
    %p406 = por %p404, %p405
    %s407 = ssub.s32 %s31, %s38
    %p408 = scmp.eq.s32.totalorder %s407, 0
    %s410 = sadd.s32 %s409, 1
    %s411 = scalar_select %p408, %s409, %s410
    %p414 = pneg %p408
    %p415 = scmp.eq.s32.totalorder %s23, 3
    %p416 = por %p414, %p415
    %p417 = scmp.ne.s32.totalorder %s409, %s412
    %p418 = scmp.eq.s32.totalorder %s23, 0
    %p419 = por %p417, %p418
    %p420 = scmp.ne.s32.totalorder %s409, %s412
    %p421 = scmp.eq.s32.totalorder %s28, 3
    %p422 = por %p420, %p421
    %p423 = scmp.ne.s32.totalorder %s412, %s413
    %p424 = scmp.eq.s32.totalorder %s28, 0
    %p425 = por %p423, %p424
    %p426 = scmp.ne.s32.totalorder %s412, %s413
    %p427 = scmp.eq.s32.totalorder %s29, 3
    %p428 = por %p426, %p427
    %p430 = scmp.ne.s32.totalorder %s413, %s429
    %p431 = scmp.eq.s32.totalorder %s29, 0
    %p432 = por %p430, %p431
    %s434 = sadd.s32 %s433, 1
    %p437 = scmp.eq.s32.totalorder %s23, 3
    %p438 = scmp.ne.s32.totalorder %s433, %s435
    %p439 = scmp.eq.s32.totalorder %s23, 0
    %p440 = por %p438, %p439
    %p441 = scmp.ne.s32.totalorder %s433, %s435
    %p442 = scmp.eq.s32.totalorder %s28, 3
    %p443 = por %p441, %p442
    %p444 = scmp.ne.s32.totalorder %s435, %s436
    %p445 = scmp.eq.s32.totalorder %s28, 0
    %p446 = por %p444, %p445
    %p447 = scmp.ne.s32.totalorder %s435, %s436
    %p448 = scmp.eq.s32.totalorder %s29, 3
    %p449 = por %p447, %p448
    %p451 = scmp.ne.s32.totalorder %s436, %s450
    %p452 = scmp.eq.s32.totalorder %s29, 0
    %p453 = por %p451, %p452
    %s455 = sadd.s32 %s454, 1
    %p458 = scmp.eq.s32.totalorder %s23, 3
    %p459 = scmp.ne.s32.totalorder %s454, %s456
    %p460 = scmp.eq.s32.totalorder %s23, 0
    %p461 = por %p459, %p460
    %p462 = scmp.ne.s32.totalorder %s454, %s456
    %p463 = scmp.eq.s32.totalorder %s28, 3
    %p464 = por %p462, %p463
    %p465 = scmp.ne.s32.totalorder %s456, %s457
    %p466 = scmp.eq.s32.totalorder %s28, 0
    %p467 = por %p465, %p466
    %p468 = scmp.ne.s32.totalorder %s456, %s457
    %p469 = scmp.eq.s32.totalorder %s29, 3
    %p470 = por %p468, %p469
    %p472 = scmp.ne.s32.totalorder %s457, %s471
    %p473 = scmp.eq.s32.totalorder %s29, 0
    %p474 = por %p472, %p473
    %s475 = ssub.s32 %s30, %s42
    %p476 = scmp.eq.s32.totalorder %s475, 0
    %s478 = sadd.s32 %s477, 1
    %s479 = scalar_select %p476, %s477, %s478
    %p482 = pneg %p476
    %p483 = scmp.eq.s32.totalorder %s23, 3
    %p484 = por %p482, %p483
    %p485 = scmp.ne.s32.totalorder %s477, %s480
    %p486 = scmp.eq.s32.totalorder %s23, 0
    %p487 = por %p485, %p486
    %p488 = scmp.ne.s32.totalorder %s477, %s480
    %p489 = scmp.eq.s32.totalorder %s28, 3
    %p490 = por %p488, %p489
    %p491 = scmp.ne.s32.totalorder %s480, %s481
    %p492 = scmp.eq.s32.totalorder %s28, 0
    %p493 = por %p491, %p492
    %p494 = scmp.ne.s32.totalorder %s480, %s481
    %p495 = scmp.eq.s32.totalorder %s29, 3
    %p496 = por %p494, %p495
    %p498 = scmp.ne.s32.totalorder %s481, %s497
    %p499 = scmp.eq.s32.totalorder %s29, 0
    %p500 = por %p498, %p499
    %p501 = scmp.le.s32.totalorder 1, %s23
    %p502 = scmp.lt.s32.totalorder %s23, 5
    %p503 = pnand %p501, %p502
    %p504 = pneg %p503
    // Predicated region
    $region9: #{transformer_model_forward.3} parent=5 // pred_check
      _
    $region10: #{transformer_model_forward.3} parent=5 // pred_check_branch
      %506 = sbr.rel (%p503) target = $region12
    $region11: #{transformer_model_forward.3} parent=5 // pred_region
      %s507 = ssub.s32 %s23, 1
      // Predicated region
      $region13: #{transformer_model_forward.3} parent=11 // pred_check
        %p508 = pneg %p446
      $region14: #{transformer_model_forward.3} parent=11 // pred_check_branch
        %510 = sbr.rel (%p508) target = $region16
      $region15: #{transformer_model_forward.3} parent=11 // pred_region
        _
      $region16: #{transformer_model_forward.3} parent=11 // pred_fallthru
        _
      // Predicated region
      $region17: #{transformer_model_forward.3} parent=11 // pred_check
        %p511 = pneg %p467
      $region18: #{transformer_model_forward.3} parent=11 // pred_check_branch
        %513 = sbr.rel (%p511) target = $region20
      $region19: #{transformer_model_forward.3} parent=11 // pred_region
        _
      $region20: #{transformer_model_forward.3} parent=11 // pred_fallthru
        _
    $region12: #{transformer_model_forward.3} parent=5 // pred_fallthru
      _
    %p514 = scmp.lt.s32.totalorder %s23, 4
    // Predicated region
    $region21: #{transformer_model_forward.3} parent=5 // pred_check
      %p515 = pneg %p514
    $region22: #{transformer_model_forward.3} parent=5 // pred_check_branch
      %517 = sbr.rel (%p515) target = $region24
    $region23: #{transformer_model_forward.3} parent=5 // pred_region
      // Predicated region
      $region25: #{transformer_model_forward.3} parent=23 // pred_check
        %p518 = pneg %p55
      $region26: #{transformer_model_forward.3} parent=23 // pred_check_branch
        %520 = sbr.rel (%p518) target = $region28
      $region27: #{transformer_model_forward.3} parent=23 // pred_region
        %p521 = scmp.lt.s32.totalorder %s30, 1
        %s522 = scalar_select %p521, %s30, 1
        %s523 = smul.addr %s522, 8
        %s524 = scalar_lea.vmem %s0, %s523
      $region28: #{transformer_model_forward.3} parent=23 // pred_fallthru
        _
      // Predicated region
      $region29: #{transformer_model_forward.3} parent=23 // pred_check
        %p525 = pneg %p81
      $region30: #{transformer_model_forward.3} parent=23 // pred_check_branch
        %527 = sbr.rel (%p525) target = $region32
      $region31: #{transformer_model_forward.3} parent=23 // pred_region
        %p528 = scmp.lt.s32.totalorder %s31, 1
        %s529 = scalar_select %p528, %s31, 1
        %s530 = smul.addr %s529, 4
        %s531 = smul.addr %s530, 4
        %s532 = scalar_lea.vmem %s1, %s531
      $region32: #{transformer_model_forward.3} parent=23 // pred_fallthru
        _
      // Predicated region
      $region33: #{transformer_model_forward.3} parent=23 // pred_check
        %p533 = pneg %p107
      $region34: #{transformer_model_forward.3} parent=23 // pred_check_branch
        %535 = sbr.rel (%p533) target = $region36
      $region35: #{transformer_model_forward.3} parent=23 // pred_region
        %p536 = scmp.lt.s32.totalorder %s31, 1
        %s537 = scalar_select %p536, %s31, 1
        %s538 = scalar_lea.vmem %s2, %s537
      $region36: #{transformer_model_forward.3} parent=23 // pred_fallthru
        _
      // Predicated region
      $region37: #{transformer_model_forward.3} parent=23 // pred_check
        %p539 = pneg %p133
      $region38: #{transformer_model_forward.3} parent=23 // pred_check_branch
        %541 = sbr.rel (%p539) target = $region40
      $region39: #{transformer_model_forward.3} parent=23 // pred_region
        %p542 = scmp.lt.s32.totalorder %s31, 1
        %s543 = scalar_select %p542, %s31, 1
        %s544 = smul.addr %s543, 4
        %s545 = smul.addr %s544, 4
        %s546 = scalar_lea.vmem %s3, %s545
      $region40: #{transformer_model_forward.3} parent=23 // pred_fallthru
        _
      // Predicated region
      $region41: #{transformer_model_forward.3} parent=23 // pred_check
        %p547 = pneg %p159
      $region42: #{transformer_model_forward.3} parent=23 // pred_check_branch
        %549 = sbr.rel (%p547) target = $region44
      $region43: #{transformer_model_forward.3} parent=23 // pred_region
        %p550 = scmp.lt.s32.totalorder %s31, 1
        %s551 = scalar_select %p550, %s31, 1
        %s552 = scalar_lea.vmem %s4, %s551
      $region44: #{transformer_model_forward.3} parent=23 // pred_fallthru
        _
      // Predicated region
      $region45: #{transformer_model_forward.3} parent=23 // pred_check
        %p553 = pneg %p185
      $region46: #{transformer_model_forward.3} parent=23 // pred_check_branch
        %555 = sbr.rel (%p553) target = $region48
      $region47: #{transformer_model_forward.3} parent=23 // pred_region
        %p556 = scmp.lt.s32.totalorder %s31, 1
        %s557 = scalar_select %p556, %s31, 1
        %s558 = smul.addr %s557, 4
        %s559 = smul.addr %s558, 4
        %s560 = scalar_lea.vmem %s5, %s559
      $region48: #{transformer_model_forward.3} parent=23 // pred_fallthru
        _
      // Predicated region
      $region49: #{transformer_model_forward.3} parent=23 // pred_check
        %p561 = pneg %p211
      $region50: #{transformer_model_forward.3} parent=23 // pred_check_branch
        %563 = sbr.rel (%p561) target = $region52
      $region51: #{transformer_model_forward.3} parent=23 // pred_region
        %p564 = scmp.lt.s32.totalorder %s31, 1
        %s565 = scalar_select %p564, %s31, 1
        %s566 = scalar_lea.vmem %s6, %s565
      $region52: #{transformer_model_forward.3} parent=23 // pred_fallthru
        _
      // Predicated region
      $region53: #{transformer_model_forward.3} parent=23 // pred_check
        %p567 = pneg %p237
      $region54: #{transformer_model_forward.3} parent=23 // pred_check_branch
        %569 = sbr.rel (%p567) target = $region56
      $region55: #{transformer_model_forward.3} parent=23 // pred_region
        %p570 = scmp.lt.s32.totalorder %s31, 1
        %s571 = scalar_select %p570, %s31, 1
        %s572 = scalar_lea.vmem %s7, %s571
      $region56: #{transformer_model_forward.3} parent=23 // pred_fallthru
        _
      // Predicated region
      $region57: #{transformer_model_forward.3} parent=23 // pred_check
        %p573 = pneg %p263
      $region58: #{transformer_model_forward.3} parent=23 // pred_check_branch
        %575 = sbr.rel (%p573) target = $region60
      $region59: #{transformer_model_forward.3} parent=23 // pred_region
        %p576 = scmp.lt.s32.totalorder %s31, 1
        %s577 = scalar_select %p576, %s31, 1
        %s578 = scalar_lea.vmem %s8, %s577
      $region60: #{transformer_model_forward.3} parent=23 // pred_fallthru
        _
      // Predicated region
      $region61: #{transformer_model_forward.3} parent=23 // pred_check
        %p579 = pneg %p289
      $region62: #{transformer_model_forward.3} parent=23 // pred_check_branch
        %581 = sbr.rel (%p579) target = $region64
      $region63: #{transformer_model_forward.3} parent=23 // pred_region
        %p582 = scmp.lt.s32.totalorder %s31, 1
        %s583 = scalar_select %p582, %s31, 1
        %s584 = smul.addr %s583, 4
        %s585 = smul.addr %s584, 4
        %s586 = scalar_lea.vmem %s9, %s585
      $region64: #{transformer_model_forward.3} parent=23 // pred_fallthru
        _
      // Predicated region
      $region65: #{transformer_model_forward.3} parent=23 // pred_check
        %p587 = pneg %p315
      $region66: #{transformer_model_forward.3} parent=23 // pred_check_branch
        %589 = sbr.rel (%p587) target = $region68
      $region67: #{transformer_model_forward.3} parent=23 // pred_region
        %p590 = scmp.lt.s32.totalorder %s31, 1
        %s591 = scalar_select %p590, %s31, 1
        %s592 = scalar_lea.vmem %s10, %s591
      $region68: #{transformer_model_forward.3} parent=23 // pred_fallthru
        _
      // Predicated region
      $region69: #{transformer_model_forward.3} parent=23 // pred_check
        %p593 = pneg %p341
      $region70: #{transformer_model_forward.3} parent=23 // pred_check_branch
        %595 = sbr.rel (%p593) target = $region72
      $region71: #{transformer_model_forward.3} parent=23 // pred_region
        %p596 = scmp.lt.s32.totalorder %s31, 1
        %s597 = scalar_select %p596, %s31, 1
        %s598 = smul.addr %s597, 8
        %s599 = smul.addr %s598, 4
        %s600 = scalar_lea.vmem %s11, %s599
      $region72: #{transformer_model_forward.3} parent=23 // pred_fallthru
        _
      // Predicated region
      $region73: #{transformer_model_forward.3} parent=23 // pred_check
        %p601 = pneg %p367
      $region74: #{transformer_model_forward.3} parent=23 // pred_check_branch
        %603 = sbr.rel (%p601) target = $region76
      $region75: #{transformer_model_forward.3} parent=23 // pred_region
        %p604 = scmp.lt.s32.totalorder %s31, 1
        %s605 = scalar_select %p604, %s31, 1
        %s606 = scalar_lea.vmem %s12, %s605
      $region76: #{transformer_model_forward.3} parent=23 // pred_fallthru
        _
      // Predicated region
      $region77: #{transformer_model_forward.3} parent=23 // pred_check
        %p607 = pneg %p393
      $region78: #{transformer_model_forward.3} parent=23 // pred_check_branch
        %609 = sbr.rel (%p607) target = $region80
      $region79: #{transformer_model_forward.3} parent=23 // pred_region
        %p610 = scmp.lt.s32.totalorder %s31, 1
        %s611 = scalar_select %p610, %s31, 1
        %s612 = scalar_lea.vmem %s13, %s611
      $region80: #{transformer_model_forward.3} parent=23 // pred_fallthru
        _
      // Predicated region
      $region81: #{transformer_model_forward.3} parent=23 // pred_check
        %p613 = pneg %p419
      $region82: #{transformer_model_forward.3} parent=23 // pred_check_branch
        %615 = sbr.rel (%p613) target = $region84
      $region83: #{transformer_model_forward.3} parent=23 // pred_region
        %p616 = scmp.lt.s32.totalorder %s31, 1
        %s617 = scalar_select %p616, %s31, 1
        %s618 = scalar_lea.vmem %s14, %s617
      $region84: #{transformer_model_forward.3} parent=23 // pred_fallthru
        _
    $region24: #{transformer_model_forward.3} parent=5 // pred_fallthru
      _
    %p619 = scmp.le.s32.totalorder 1, %s23
    %p620 = scmp.lt.s32.totalorder %s23, 5
    %p621 = pnand %p619, %p620
    %p622 = pneg %p621
    // Predicated region
    $region85: #{transformer_model_forward.3} parent=5 // pred_check
      _
    $region86: #{transformer_model_forward.3} parent=5 // pred_check_branch
      %624 = sbr.rel (%p621) target = $region88
    $region87: #{transformer_model_forward.3} parent=5 // pred_region
      %s625 = ssub.s32 %s23, 1
      %p626 = scmp.lt.s32.totalorder %s32, 1
      %s627 = scalar_select %p626, %s32, 1
      %s628 = smul.addr %s627, 8
      %s629 = scalar_lea.vmem %s0, %s628
      %p630 = pneg %p61
      %p631 = pneg %p58
      %p632 = scmp.lt.s32.totalorder %s33, 1
      %s633 = scalar_select %p632, %s33, 1
      %s634 = smul.addr %s633, 4
      %s635 = smul.addr %s634, 4
      %s636 = scalar_lea.vmem %s1, %s635
      %p637 = pneg %p87
      %p638 = pneg %p84
      %p639 = scmp.lt.s32.totalorder %s33, 1
      %s640 = scalar_select %p639, %s33, 1
      %s641 = scalar_lea.vmem %s2, %s640
      %p642 = pneg %p113
      %p643 = pneg %p110
      %p644 = scmp.lt.s32.totalorder %s33, 1
      %s645 = scalar_select %p644, %s33, 1
      %s646 = smul.addr %s645, 4
      %s647 = smul.addr %s646, 4
      %s648 = scalar_lea.vmem %s3, %s647
      %p649 = pneg %p139
      %p650 = pneg %p136
      %p651 = scmp.lt.s32.totalorder %s33, 1
      %s652 = scalar_select %p651, %s33, 1
      %s653 = scalar_lea.vmem %s4, %s652
      %p654 = pneg %p165
      %p655 = pneg %p162
      %p656 = scmp.lt.s32.totalorder %s33, 1
      %s657 = scalar_select %p656, %s33, 1
      %s658 = smul.addr %s657, 4
      %s659 = smul.addr %s658, 4
      %s660 = scalar_lea.vmem %s5, %s659
      %p661 = pneg %p191
      %p662 = pneg %p188
      %p663 = scmp.lt.s32.totalorder %s33, 1
      %s664 = scalar_select %p663, %s33, 1
      %s665 = scalar_lea.vmem %s6, %s664
      %p666 = pneg %p217
      %p667 = pneg %p214
      %p668 = scmp.lt.s32.totalorder %s33, 1
      %s669 = scalar_select %p668, %s33, 1
      %s670 = scalar_lea.vmem %s7, %s669
      %p671 = pneg %p243
      %p672 = pneg %p240
      %p673 = scmp.lt.s32.totalorder %s33, 1
      %s674 = scalar_select %p673, %s33, 1
      %s675 = scalar_lea.vmem %s8, %s674
      %p676 = pneg %p269
      %p677 = pneg %p266
      %p678 = scmp.lt.s32.totalorder %s33, 1
      %s679 = scalar_select %p678, %s33, 1
      %s680 = smul.addr %s679, 4
      %s681 = smul.addr %s680, 4
      %s682 = scalar_lea.vmem %s9, %s681
      %p683 = pneg %p295
      %p684 = pneg %p292
      %p685 = scmp.lt.s32.totalorder %s33, 1
      %s686 = scalar_select %p685, %s33, 1
      %s687 = scalar_lea.vmem %s10, %s686
      %p688 = pneg %p321
      %p689 = pneg %p318
      %p690 = scmp.lt.s32.totalorder %s33, 1
      %s691 = scalar_select %p690, %s33, 1
      %s692 = smul.addr %s691, 8
      %s693 = smul.addr %s692, 4
      %s694 = scalar_lea.vmem %s11, %s693
      %p695 = pneg %p347
      %p696 = pneg %p344
      %p697 = scmp.lt.s32.totalorder %s33, 1
      %s698 = scalar_select %p697, %s33, 1
      %s699 = scalar_lea.vmem %s12, %s698
      %p700 = pneg %p373
      %p701 = pneg %p370
      %p702 = scmp.lt.s32.totalorder %s33, 1
      %s703 = scalar_select %p702, %s33, 1
      %s704 = scalar_lea.vmem %s13, %s703
      %p705 = pneg %p399
      %p706 = pneg %p396
      %p707 = scmp.lt.s32.totalorder %s33, 1
      %s708 = scalar_select %p707, %s33, 1
      %s709 = scalar_lea.vmem %s14, %s708
      %p710 = pneg %p425
      %p711 = pneg %p422
      %p712 = pneg %p446
      %p713 = pneg %p443
      %p714 = pneg %p467
      %p715 = pneg %p464
      %p716 = pneg %p493
      %p717 = pneg %p490
      %p718 = scmp.lt.s32.totalorder %s32, 1
      %s719 = scalar_select %p718, %s32, 1
      %s720 = smul.addr %s719, 8
      %s721 = scalar_lea.vmem %s17, %s720
      %p722 = scmp.lt.s32.totalorder %s32, 1
      %s723 = scalar_select %p722, %s32, 1
      %s724 = smul.addr %s723, 8
      %s725 = scalar_lea.vmem %s0, %s724
      %p726 = scmp.lt.s32.totalorder %s33, 1
      %s727 = scalar_select %p726, %s33, 1
      %s728 = smul.addr %s727, 4
      %s729 = smul.addr %s728, 4
      %s730 = scalar_lea.vmem %s1, %s729
      %p731 = scmp.lt.s32.totalorder %s33, 1
      %s732 = scalar_select %p731, %s33, 1
      %s733 = scalar_lea.vmem %s2, %s732
      %p734 = scmp.lt.s32.totalorder %s33, 1
      %s735 = scalar_select %p734, %s33, 1
      %s736 = smul.addr %s735, 4
      %s737 = smul.addr %s736, 4
      %s738 = scalar_lea.vmem %s3, %s737
      %p739 = scmp.lt.s32.totalorder %s33, 1
      %s740 = scalar_select %p739, %s33, 1
      %s741 = scalar_lea.vmem %s4, %s740
      %p742 = scmp.lt.s32.totalorder %s33, 1
      %s743 = scalar_select %p742, %s33, 1
      %s744 = smul.addr %s743, 4
      %s745 = smul.addr %s744, 4
      %s746 = scalar_lea.vmem %s5, %s745
      %p747 = scmp.lt.s32.totalorder %s33, 1
      %s748 = scalar_select %p747, %s33, 1
      %s749 = scalar_lea.vmem %s6, %s748
      %p750 = scmp.lt.s32.totalorder %s33, 1
      %s751 = scalar_select %p750, %s33, 1
      %s752 = scalar_lea.vmem %s7, %s751
      %p753 = scmp.lt.s32.totalorder %s33, 1
      %s754 = scalar_select %p753, %s33, 1
      %s755 = scalar_lea.vmem %s8, %s754
      %p756 = scmp.lt.s32.totalorder %s33, 1
      %s757 = scalar_select %p756, %s33, 1
      %s758 = smul.addr %s757, 4
      %s759 = smul.addr %s758, 4
      %s760 = scalar_lea.vmem %s9, %s759
      %p761 = scmp.lt.s32.totalorder %s33, 1
      %s762 = scalar_select %p761, %s33, 1
      %s763 = scalar_lea.vmem %s10, %s762
      %p764 = scmp.lt.s32.totalorder %s33, 1
      %s765 = scalar_select %p764, %s33, 1
      %s766 = smul.addr %s765, 8
      %s767 = smul.addr %s766, 4
      %s768 = scalar_lea.vmem %s11, %s767
      %p769 = scmp.lt.s32.totalorder %s33, 1
      %s770 = scalar_select %p769, %s33, 1
      %s771 = scalar_lea.vmem %s12, %s770
      %p772 = scmp.lt.s32.totalorder %s33, 1
      %s773 = scalar_select %p772, %s33, 1
      %s774 = scalar_lea.vmem %s13, %s773
      %p775 = scmp.lt.s32.totalorder %s33, 1
      %s776 = scalar_select %p775, %s33, 1
      %s777 = scalar_lea.vmem %s14, %s776
      %p778 = scmp.lt.s32.totalorder %s32, 1
      %s779 = scalar_select %p778, %s32, 1
      %s780 = smul.addr %s779, 8
      %s781 = scalar_lea.vmem %s17, %s780
      %p783 = scmp.eq.s32.totalorder %s33, 0
      // Predicated region
      $region89: #{transformer_model_forward.3} parent=87 // pred_check
        %p784 = pneg %p783
      $region90: #{transformer_model_forward.3} parent=87 // pred_check_branch
        %786 = sbr.rel (%p784) target = $region92
      $region91: #{transformer_model_forward.3} parent=87 // pred_region
        %v787 = vld [vmem:[%s725] sm:$0xff]
        %vm788 = vcmask 261120
        %789 = vst.msk [vmem:[#allocation2] sm:$0xff] %vm788, %v787
      $region92: #{transformer_model_forward.3} parent=87 // pred_fallthru
        _
      %v790 = vld [vmem:[#allocation2] sm:$0xff]
      %v791 = vld [vmem:[%s730] sm:$0xf]
      %v792 = vld [vmem:[%s730 + $0x4] sm:$0xf]
      %v793 = vld [vmem:[%s730 + $0x8] sm:$0xf]
      %v794 = vld [vmem:[%s730 + $0xc] sm:$0xf]
      %v795 = vld [vmem:[%s733] sm:$0x1]
      %v796 = vld [vmem:[%s738] sm:$0xf]
      %v797 = vld [vmem:[%s738 + $0x4] sm:$0xf]
      %v798 = vld [vmem:[%s738 + $0x8] sm:$0xf]
      %v799 = vld [vmem:[%s738 + $0xc] sm:$0xf]
      %v800 = vld [vmem:[%s741] sm:$0x1]
      %v801 = vld [vmem:[%s746] sm:$0xf]
      %v802 = vld [vmem:[%s746 + $0x4] sm:$0xf]
      %v803 = vld [vmem:[%s746 + $0x8] sm:$0xf]
      %v804 = vld [vmem:[%s746 + $0xc] sm:$0xf]
      %v805 = vld [vmem:[%s749] sm:$0x1]
      %v806 = vpack.c.bf16 %v790, %v790
      %v808 = vlaneseq
      %v809 = vshrl.u32 %v808, 7
      %v810 = vsub.s32 0, %v809
      %v811 = vrot.slane %v795, %v810
      %v817 = vunpack.c.l.b16 %v791
      %v818 = vunpack.c.l.b16 %v792
      %v819 = vunpack.c.l.b16 %v793
      %v820 = vunpack.c.l.b16 %v794
      %v821 = vpack.c.b16 %v818, %v817
      %v822 = vpack.c.b16 %v820, %v819
      %vm825 = vcmask 261120
      %v827 = vsel %vm825, %v806, 0
      %829 = vmatprep.subr.bf16.mxu0 0
      %830 = vmatpush1.bf16.msra.mxu0 %v821
      %831 = vmatprep.subr.bf16.mxu0 0
      %832 = vmatpush1.bf16.msra.mxu0 %v822
      %833 = vmatprep.subr.bf16.mxu0 0
      %834 = vmatpush1.bf16.msra.mxu0 0
      %835 = vmatprep.subr.bf16.mxu0 0
      %836 = vmatpush1.bf16.msra.mxu0 0
      %837 = vmatprep.subr.bf16.mxu0 0
      %838 = vmatpush1.bf16.msra.mxu0 0
      %839 = vmatprep.subr.bf16.mxu0 0
      %840 = vmatpush1.bf16.msra.mxu0 0
      %841 = vmatprep.subr.bf16.mxu0 0
      %842 = vmatpush1.bf16.msra.mxu0 0
      %843 = vmatprep.subr.bf16.mxu0 0
      %844 = vmatpush1.bf16.msra.mxu0 0
      %845 = vmatprep.subr.bf16.mxu0 0
      %846 = vmatpush1.bf16.msra.mxu0 0
      %847 = vmatprep.subr.bf16.mxu0 0
      %848 = vmatpush1.bf16.msra.mxu0 0
      %849 = vmatprep.subr.bf16.mxu0 0
      %850 = vmatpush1.bf16.msra.mxu0 0
      %851 = vmatprep.subr.bf16.mxu0 0
      %852 = vmatpush1.bf16.msra.mxu0 0
      %853 = vmatprep.subr.bf16.mxu0 0
      %854 = vmatpush1.bf16.msra.mxu0 0
      %855 = vmatprep.subr.bf16.mxu0 0
      %856 = vmatpush1.bf16.msra.mxu0 0
      %857 = vmatprep.subr.bf16.mxu0 0
      %858 = vmatpush1.bf16.msra.mxu0 0
      %859 = vmatprep.subr.bf16.mxu0 0
      %860 = vmatpush1.bf16.msra.mxu0 0
      %861 = vmatprep.mubr.bf16.mxu0 0
      %862 = vmatmul.mubr.bf16.gmra.mrb[0].mxu0 %v827
      %v863 = vpop.f32.mrb[0].mxu0
      %v864 = vadd.f32 %v811, %v863
      %v865 = vpop.f32.mrb[0].mxu0
      %v866 = vpop.f32.mrb[0].mxu0
      %v867 = vpop.f32.mrb[0].mxu0
      %868 = vdwg.mxu0
      %v869 = vmul.f32 %v864, 0.35355338
      %v871 = vlaneseq
      %v872 = vshrl.u32 %v871, 7
      %v873 = vsub.s32 0, %v872
      %v874 = vrot.slane %v800, %v873
      %v880 = vunpack.c.l.b16 %v796
      %v881 = vunpack.c.l.b16 %v797
      %v882 = vunpack.c.l.b16 %v798
      %v883 = vunpack.c.l.b16 %v799
      %v884 = vpack.c.b16 %v881, %v880
      %v885 = vpack.c.b16 %v883, %v882
      %888 = vmatprep.subr.bf16.mxu0 0
      %889 = vmatpush1.bf16.msra.mxu0 %v884
      %890 = vmatprep.subr.bf16.mxu0 0
      %891 = vmatpush1.bf16.msra.mxu0 %v885
      %892 = vmatprep.subr.bf16.mxu0 0
      %893 = vmatpush1.bf16.msra.mxu0 0
      %894 = vmatprep.subr.bf16.mxu0 0
      %895 = vmatpush1.bf16.msra.mxu0 0
      %896 = vmatprep.subr.bf16.mxu0 0
      %897 = vmatpush1.bf16.msra.mxu0 0
      %898 = vmatprep.subr.bf16.mxu0 0
      %899 = vmatpush1.bf16.msra.mxu0 0
      %900 = vmatprep.subr.bf16.mxu0 0
      %901 = vmatpush1.bf16.msra.mxu0 0
      %902 = vmatprep.subr.bf16.mxu0 0
      %903 = vmatpush1.bf16.msra.mxu0 0
      %904 = vmatprep.subr.bf16.mxu0 0
      %905 = vmatpush1.bf16.msra.mxu0 0
      %906 = vmatprep.subr.bf16.mxu0 0
      %907 = vmatpush1.bf16.msra.mxu0 0
      %908 = vmatprep.subr.bf16.mxu0 0
      %909 = vmatpush1.bf16.msra.mxu0 0
      %910 = vmatprep.subr.bf16.mxu0 0
      %911 = vmatpush1.bf16.msra.mxu0 0
      %912 = vmatprep.subr.bf16.mxu0 0
      %913 = vmatpush1.bf16.msra.mxu0 0
      %914 = vmatprep.subr.bf16.mxu0 0
      %915 = vmatpush1.bf16.msra.mxu0 0
      %916 = vmatprep.subr.bf16.mxu0 0
      %917 = vmatpush1.bf16.msra.mxu0 0
      %918 = vmatprep.subr.bf16.mxu0 0
      %919 = vmatpush1.bf16.msra.mxu0 0
      %920 = vmatprep.mubr.bf16.mxu0 0
      %921 = vmatmul.mubr.bf16.gmra.mrb[0].mxu0 %v827
      %v922 = vpop.f32.mrb[0].mxu0
      %v923 = vadd.f32 %v874, %v922
      %v924 = vpop.f32.mrb[0].mxu0
      %v925 = vpop.f32.mrb[0].mxu0
      %v926 = vpop.f32.mrb[0].mxu0
      %927 = vdwg.mxu0
      %v928 = vpack.c.bf16 %v869, %v869
      %v929 = vpack.c.bf16 %v923, %v923
      %vm930 = vcmask 64512
      %v932 = vsel %vm930, %v928, 0
      %v935 = vsel %vm930, %v929, 0
      %937 = vmatprep.subr.bf16.mxu0 0
      %938 = vmatpush1.bf16.xpose.msra.mxu0 %v935
      %939 = vmatprep.subr.bf16.mxu0 0
      %940 = vmatpush1.bf16.xpose.msra.mxu0 0
      %941 = vmatprep.subr.bf16.mxu0 0
      %942 = vmatpush1.bf16.xpose.msra.mxu0 0
      %943 = vmatprep.subr.bf16.mxu0 0
      %944 = vmatpush1.bf16.xpose.msra.mxu0 0
      %945 = vmatprep.subr.bf16.mxu0 0
      %946 = vmatpush1.bf16.xpose.msra.mxu0 0
      %947 = vmatprep.subr.bf16.mxu0 0
      %948 = vmatpush1.bf16.xpose.msra.mxu0 0
      %949 = vmatprep.subr.bf16.mxu0 0
      %950 = vmatpush1.bf16.xpose.msra.mxu0 0
      %951 = vmatprep.subr.bf16.mxu0 0
      %952 = vmatpush1.bf16.xpose.msra.mxu0 0
      %953 = vmatprep.subr.bf16.mxu0 0
      %954 = vmatpush1.bf16.xpose.msra.mxu0 0
      %955 = vmatprep.subr.bf16.mxu0 0
      %956 = vmatpush1.bf16.xpose.msra.mxu0 0
      %957 = vmatprep.subr.bf16.mxu0 0
      %958 = vmatpush1.bf16.xpose.msra.mxu0 0
      %959 = vmatprep.subr.bf16.mxu0 0
      %960 = vmatpush1.bf16.xpose.msra.mxu0 0
      %961 = vmatprep.subr.bf16.mxu0 0
      %962 = vmatpush1.bf16.xpose.msra.mxu0 0
      %963 = vmatprep.subr.bf16.mxu0 0
      %964 = vmatpush1.bf16.xpose.msra.mxu0 0
      %965 = vmatprep.subr.bf16.mxu0 0
      %966 = vmatpush1.bf16.xpose.msra.mxu0 0
      %967 = vmatprep.subr.bf16.mxu0 0
      %968 = vmatpush1.bf16.xpose.msra.mxu0 0
      %969 = vmatprep.mubr.bf16.mxu0 0
      %970 = vmatmul.mubr.bf16.gmra.mrb[0].mxu0 %v932
      %v971 = vpop.f32.mrb[0].mxu0
      %v972 = vadd.f32 0.0, %v971
      %v973 = vpop.f32.mrb[0].mxu0
      %v974 = vpop.f32.mrb[0].mxu0
      %v975 = vpop.f32.mrb[0].mxu0
      %976 = vdwg.mxu0
      %v977 = vsel %vm930, %v972, -inf
      %978 = vmax.xlane.f32.xlu0 %v977
      %v979 = vpop.xlane.xlu0 %978
      %v980 = vsub.f32 %v972, %v979
      %v981 = vmul.f32 %v980, 1.442695
      %v982 = vpow.pop %v981
      %v983 = vsel %vm930, %v982, 0.0
      %984 = vadd.xlane.f32.xlu0 %v983
      %v985 = vpop.xlane.xlu0 %984
      %v986 = vpack.c.bf16 %v982, %v982
      %988 = vrot.lane.b32.xlu0 %v929, 96
      %v989 = vpop.permute.xlu0 %988
      %v991 = vsel %vm930, %v986, 0
      %vm993 = vcmask 1043456
      %v995 = vsel %vm993, %v989, 0
      %997 = vmatprep.subr.bf16.mxu0 0
      %998 = vmatpush1.bf16.msra.mxu0 %v995
      %999 = vmatprep.subr.bf16.mxu0 0
      %1000 = vmatpush1.bf16.msra.mxu0 0
      %1001 = vmatprep.subr.bf16.mxu0 0
      %1002 = vmatpush1.bf16.msra.mxu0 0
      %1003 = vmatprep.subr.bf16.mxu0 0
      %1004 = vmatpush1.bf16.msra.mxu0 0
      %1005 = vmatprep.subr.bf16.mxu0 0
      %1006 = vmatpush1.bf16.msra.mxu0 0
      %1007 = vmatprep.subr.bf16.mxu0 0
      %1008 = vmatpush1.bf16.msra.mxu0 0
      %1009 = vmatprep.subr.bf16.mxu0 0
      %1010 = vmatpush1.bf16.msra.mxu0 0
      %1011 = vmatprep.subr.bf16.mxu0 0
      %1012 = vmatpush1.bf16.msra.mxu0 0
      %1013 = vmatprep.subr.bf16.mxu0 0
      %1014 = vmatpush1.bf16.msra.mxu0 0
      %1015 = vmatprep.subr.bf16.mxu0 0
      %1016 = vmatpush1.bf16.msra.mxu0 0
      %1017 = vmatprep.subr.bf16.mxu0 0
      %1018 = vmatpush1.bf16.msra.mxu0 0
      %1019 = vmatprep.subr.bf16.mxu0 0
      %1020 = vmatpush1.bf16.msra.mxu0 0
      %1021 = vmatprep.subr.bf16.mxu0 0
      %1022 = vmatpush1.bf16.msra.mxu0 0
      %1023 = vmatprep.subr.bf16.mxu0 0
      %1024 = vmatpush1.bf16.msra.mxu0 0
      %1025 = vmatprep.subr.bf16.mxu0 0
      %1026 = vmatpush1.bf16.msra.mxu0 0
      %1027 = vmatprep.subr.bf16.mxu0 0
      %1028 = vmatpush1.bf16.msra.mxu0 0
      %1029 = vmatprep.mubr.bf16.mxu0 0
      %1030 = vmatmul.mubr.bf16.gmra.mrb[0].mxu0 %v991
      %v1031 = vpop.f32.mrb[0].mxu0
      %v1032 = vadd.f32 0.0, %v1031
      %v1033 = vpop.f32.mrb[0].mxu0
      %v1034 = vpop.f32.mrb[0].mxu0
      %v1035 = vpop.f32.mrb[0].mxu0
      %1036 = vdwg.mxu0
      %v1037 = vrcp.pop %v985
      %v1038 = vmul.f32 %v1032, %v1037
      %1040 = vrot.lane.b32.xlu0 %v928, 120
      %v1041 = vpop.permute.xlu0 %1040
      %1042 = vrot.lane.b32.xlu0 %v929, 120
      %v1043 = vpop.permute.xlu0 %1042
      %v1045 = vsel %vm930, %v1041, 0
      %v1048 = vsel %vm930, %v1043, 0
      %1050 = vmatprep.subr.bf16.mxu0 0
      %1051 = vmatpush1.bf16.xpose.msra.mxu0 %v1048
      %1052 = vmatprep.subr.bf16.mxu0 0
      %1053 = vmatpush1.bf16.xpose.msra.mxu0 0
      %1054 = vmatprep.subr.bf16.mxu0 0
      %1055 = vmatpush1.bf16.xpose.msra.mxu0 0
      %1056 = vmatprep.subr.bf16.mxu0 0
      %1057 = vmatpush1.bf16.xpose.msra.mxu0 0
      %1058 = vmatprep.subr.bf16.mxu0 0
      %1059 = vmatpush1.bf16.xpose.msra.mxu0 0
      %1060 = vmatprep.subr.bf16.mxu0 0
      %1061 = vmatpush1.bf16.xpose.msra.mxu0 0
      %1062 = vmatprep.subr.bf16.mxu0 0
      %1063 = vmatpush1.bf16.xpose.msra.mxu0 0
      %1064 = vmatprep.subr.bf16.mxu0 0
      %1065 = vmatpush1.bf16.xpose.msra.mxu0 0
      %1066 = vmatprep.subr.bf16.mxu0 0
      %1067 = vmatpush1.bf16.xpose.msra.mxu0 0
      %1068 = vmatprep.subr.bf16.mxu0 0
      %1069 = vmatpush1.bf16.xpose.msra.mxu0 0
      %1070 = vmatprep.subr.bf16.mxu0 0
      %1071 = vmatpush1.bf16.xpose.msra.mxu0 0
      %1072 = vmatprep.subr.bf16.mxu0 0
      %1073 = vmatpush1.bf16.xpose.msra.mxu0 0
      %1074 = vmatprep.subr.bf16.mxu0 0
      %1075 = vmatpush1.bf16.xpose.msra.mxu0 0
      %1076 = vmatprep.subr.bf16.mxu0 0
      %1077 = vmatpush1.bf16.xpose.msra.mxu0 0
      %1078 = vmatprep.subr.bf16.mxu0 0
      %1079 = vmatpush1.bf16.xpose.msra.mxu0 0
      %1080 = vmatprep.subr.bf16.mxu0 0
      %1081 = vmatpush1.bf16.xpose.msra.mxu0 0
      %1082 = vmatprep.mubr.bf16.mxu0 0
      %1083 = vmatmul.mubr.bf16.gmra.mrb[0].mxu0 %v1045
      %v1084 = vpop.f32.mrb[0].mxu0
      %v1085 = vadd.f32 0.0, %v1084
      %v1086 = vpop.f32.mrb[0].mxu0
      %v1087 = vpop.f32.mrb[0].mxu0
      %v1088 = vpop.f32.mrb[0].mxu0
      %1089 = vdwg.mxu0
      %v1090 = vsel %vm930, %v1085, -inf
      %1091 = vmax.xlane.f32.xlu0 %v1090
      %v1092 = vpop.xlane.xlu0 %1091
      %v1093 = vsub.f32 %v1085, %v1092
      %v1094 = vmul.f32 %v1093, 1.442695
      %v1095 = vpow.pop %v1094
      %v1096 = vsel %vm930, %v1095, 0.0
      %1097 = vadd.xlane.f32.xlu0 %v1096
      %v1098 = vpop.xlane.xlu0 %1097
      %v1099 = vpack.c.bf16 %v1095, %v1095
      %1100 = vrot.lane.b32.xlu0 %v929, 88
      %v1101 = vpop.permute.xlu0 %1100
      %v1103 = vsel %vm930, %v1099, 0
      %v1106 = vsel %vm993, %v1101, 0
      %1108 = vmatprep.subr.bf16.mxu0 0
      %1109 = vmatpush1.bf16.msra.mxu0 %v1106
      %1110 = vmatprep.subr.bf16.mxu0 0
      %1111 = vmatpush1.bf16.msra.mxu0 0
      %1112 = vmatprep.subr.bf16.mxu0 0
      %1113 = vmatpush1.bf16.msra.mxu0 0
      %1114 = vmatprep.subr.bf16.mxu0 0
      %1115 = vmatpush1.bf16.msra.mxu0 0
      %1116 = vmatprep.subr.bf16.mxu0 0
      %1117 = vmatpush1.bf16.msra.mxu0 0
      %1118 = vmatprep.subr.bf16.mxu0 0
      %1119 = vmatpush1.bf16.msra.mxu0 0
      %1120 = vmatprep.subr.bf16.mxu0 0
      %1121 = vmatpush1.bf16.msra.mxu0 0
      %1122 = vmatprep.subr.bf16.mxu0 0
      %1123 = vmatpush1.bf16.msra.mxu0 0
      %1124 = vmatprep.subr.bf16.mxu0 0
      %1125 = vmatpush1.bf16.msra.mxu0 0
      %1126 = vmatprep.subr.bf16.mxu0 0
      %1127 = vmatpush1.bf16.msra.mxu0 0
      %1128 = vmatprep.subr.bf16.mxu0 0
      %1129 = vmatpush1.bf16.msra.mxu0 0
      %1130 = vmatprep.subr.bf16.mxu0 0
      %1131 = vmatpush1.bf16.msra.mxu0 0
      %1132 = vmatprep.subr.bf16.mxu0 0
      %1133 = vmatpush1.bf16.msra.mxu0 0
      %1134 = vmatprep.subr.bf16.mxu0 0
      %1135 = vmatpush1.bf16.msra.mxu0 0
      %1136 = vmatprep.subr.bf16.mxu0 0
      %1137 = vmatpush1.bf16.msra.mxu0 0
      %1138 = vmatprep.subr.bf16.mxu0 0
      %1139 = vmatpush1.bf16.msra.mxu0 0
      %1140 = vmatprep.mubr.bf16.mxu0 0
      %1141 = vmatmul.mubr.bf16.gmra.mrb[0].mxu0 %v1103
      %v1142 = vpop.f32.mrb[0].mxu0
      %v1143 = vadd.f32 0.0, %v1142
      %v1144 = vpop.f32.mrb[0].mxu0
      %v1145 = vpop.f32.mrb[0].mxu0
      %v1146 = vpop.f32.mrb[0].mxu0
      %1147 = vdwg.mxu0
      %v1148 = vrcp.pop %v1098
      %v1149 = vmul.f32 %v1143, %v1148
      %1150 = vrot.lane.b32.xlu0 %v928, 112
      %v1151 = vpop.permute.xlu0 %1150
      %1152 = vrot.lane.b32.xlu0 %v929, 112
      %v1153 = vpop.permute.xlu0 %1152
      %v1155 = vsel %vm930, %v1151, 0
      %v1158 = vsel %vm930, %v1153, 0
      %1160 = vmatprep.subr.bf16.mxu0 0
      %1161 = vmatpush1.bf16.xpose.msra.mxu0 %v1158
      %1162 = vmatprep.subr.bf16.mxu0 0
      %1163 = vmatpush1.bf16.xpose.msra.mxu0 0
      %1164 = vmatprep.subr.bf16.mxu0 0
      %1165 = vmatpush1.bf16.xpose.msra.mxu0 0
      %1166 = vmatprep.subr.bf16.mxu0 0
      %1167 = vmatpush1.bf16.xpose.msra.mxu0 0
      %1168 = vmatprep.subr.bf16.mxu0 0
      %1169 = vmatpush1.bf16.xpose.msra.mxu0 0
      %1170 = vmatprep.subr.bf16.mxu0 0
      %1171 = vmatpush1.bf16.xpose.msra.mxu0 0
      %1172 = vmatprep.subr.bf16.mxu0 0
      %1173 = vmatpush1.bf16.xpose.msra.mxu0 0
      %1174 = vmatprep.subr.bf16.mxu0 0
      %1175 = vmatpush1.bf16.xpose.msra.mxu0 0
      %1176 = vmatprep.subr.bf16.mxu0 0
      %1177 = vmatpush1.bf16.xpose.msra.mxu0 0
      %1178 = vmatprep.subr.bf16.mxu0 0
      %1179 = vmatpush1.bf16.xpose.msra.mxu0 0
      %1180 = vmatprep.subr.bf16.mxu0 0
      %1181 = vmatpush1.bf16.xpose.msra.mxu0 0
      %1182 = vmatprep.subr.bf16.mxu0 0
      %1183 = vmatpush1.bf16.xpose.msra.mxu0 0
      %1184 = vmatprep.subr.bf16.mxu0 0
      %1185 = vmatpush1.bf16.xpose.msra.mxu0 0
      %1186 = vmatprep.subr.bf16.mxu0 0
      %1187 = vmatpush1.bf16.xpose.msra.mxu0 0
      %1188 = vmatprep.subr.bf16.mxu0 0
      %1189 = vmatpush1.bf16.xpose.msra.mxu0 0
      %1190 = vmatprep.subr.bf16.mxu0 0
      %1191 = vmatpush1.bf16.xpose.msra.mxu0 0
      %1192 = vmatprep.mubr.bf16.mxu0 0
      %1193 = vmatmul.mubr.bf16.gmra.mrb[0].mxu0 %v1155
      %v1194 = vpop.f32.mrb[0].mxu0
      %v1195 = vadd.f32 0.0, %v1194
      %v1196 = vpop.f32.mrb[0].mxu0
      %v1197 = vpop.f32.mrb[0].mxu0
      %v1198 = vpop.f32.mrb[0].mxu0
      %1199 = vdwg.mxu0
      %v1200 = vsel %vm930, %v1195, -inf
      %1201 = vmax.xlane.f32.xlu0 %v1200
      %v1202 = vpop.xlane.xlu0 %1201
      %v1203 = vsub.f32 %v1195, %v1202
      %v1204 = vmul.f32 %v1203, 1.442695
      %v1205 = vpow.pop %v1204
      %v1206 = vsel %vm930, %v1205, 0.0
      %1207 = vadd.xlane.f32.xlu0 %v1206
      %v1208 = vpop.xlane.xlu0 %1207
      %v1209 = vpack.c.bf16 %v1205, %v1205
      %1210 = vrot.lane.b32.xlu0 %v929, 80
      %v1211 = vpop.permute.xlu0 %1210
      %v1213 = vsel %vm930, %v1209, 0
      %v1216 = vsel %vm993, %v1211, 0
      %1218 = vmatprep.subr.bf16.mxu0 0
      %1219 = vmatpush1.bf16.msra.mxu0 %v1216
      %1220 = vmatprep.subr.bf16.mxu0 0
      %1221 = vmatpush1.bf16.msra.mxu0 0
      %1222 = vmatprep.subr.bf16.mxu0 0
      %1223 = vmatpush1.bf16.msra.mxu0 0
      %1224 = vmatprep.subr.bf16.mxu0 0
      %1225 = vmatpush1.bf16.msra.mxu0 0
      %1226 = vmatprep.subr.bf16.mxu0 0
      %1227 = vmatpush1.bf16.msra.mxu0 0
      %1228 = vmatprep.subr.bf16.mxu0 0
      %1229 = vmatpush1.bf16.msra.mxu0 0
      %1230 = vmatprep.subr.bf16.mxu0 0
      %1231 = vmatpush1.bf16.msra.mxu0 0
      %1232 = vmatprep.subr.bf16.mxu0 0
      %1233 = vmatpush1.bf16.msra.mxu0 0
      %1234 = vmatprep.subr.bf16.mxu0 0
      %1235 = vmatpush1.bf16.msra.mxu0 0
      %1236 = vmatprep.subr.bf16.mxu0 0
      %1237 = vmatpush1.bf16.msra.mxu0 0
      %1238 = vmatprep.subr.bf16.mxu0 0
      %1239 = vmatpush1.bf16.msra.mxu0 0
      %1240 = vmatprep.subr.bf16.mxu0 0
      %1241 = vmatpush1.bf16.msra.mxu0 0
      %1242 = vmatprep.subr.bf16.mxu0 0
      %1243 = vmatpush1.bf16.msra.mxu0 0
      %1244 = vmatprep.subr.bf16.mxu0 0
      %1245 = vmatpush1.bf16.msra.mxu0 0
      %1246 = vmatprep.subr.bf16.mxu0 0
      %1247 = vmatpush1.bf16.msra.mxu0 0
      %1248 = vmatprep.subr.bf16.mxu0 0
      %1249 = vmatpush1.bf16.msra.mxu0 0
      %1250 = vmatprep.mubr.bf16.mxu0 0
      %1251 = vmatmul.mubr.bf16.gmra.mrb[0].mxu0 %v1213
      %v1252 = vpop.f32.mrb[0].mxu0
      %v1253 = vadd.f32 0.0, %v1252
      %v1254 = vpop.f32.mrb[0].mxu0
      %v1255 = vpop.f32.mrb[0].mxu0
      %v1256 = vpop.f32.mrb[0].mxu0
      %1257 = vdwg.mxu0
      %v1258 = vrcp.pop %v1208
      %v1259 = vmul.f32 %v1253, %v1258
      %1260 = vrot.lane.b32.xlu0 %v928, 104
      %v1261 = vpop.permute.xlu0 %1260
      %1262 = vrot.lane.b32.xlu0 %v929, 104
      %v1263 = vpop.permute.xlu0 %1262
      %v1265 = vsel %vm930, %v1261, 0
      %v1268 = vsel %vm930, %v1263, 0
      %1270 = vmatprep.subr.bf16.mxu0 0
      %1271 = vmatpush1.bf16.xpose.msra.mxu0 %v1268
      %1272 = vmatprep.subr.bf16.mxu0 0
      %1273 = vmatpush1.bf16.xpose.msra.mxu0 0
      %1274 = vmatprep.subr.bf16.mxu0 0
      %1275 = vmatpush1.bf16.xpose.msra.mxu0 0
      %1276 = vmatprep.subr.bf16.mxu0 0
      %1277 = vmatpush1.bf16.xpose.msra.mxu0 0
      %1278 = vmatprep.subr.bf16.mxu0 0
      %1279 = vmatpush1.bf16.xpose.msra.mxu0 0
      %1280 = vmatprep.subr.bf16.mxu0 0
      %1281 = vmatpush1.bf16.xpose.msra.mxu0 0
      %1282 = vmatprep.subr.bf16.mxu0 0
      %1283 = vmatpush1.bf16.xpose.msra.mxu0 0
      %1284 = vmatprep.subr.bf16.mxu0 0
      %1285 = vmatpush1.bf16.xpose.msra.mxu0 0
      %1286 = vmatprep.subr.bf16.mxu0 0
      %1287 = vmatpush1.bf16.xpose.msra.mxu0 0
      %1288 = vmatprep.subr.bf16.mxu0 0
      %1289 = vmatpush1.bf16.xpose.msra.mxu0 0
      %1290 = vmatprep.subr.bf16.mxu0 0
      %1291 = vmatpush1.bf16.xpose.msra.mxu0 0
      %1292 = vmatprep.subr.bf16.mxu0 0
      %1293 = vmatpush1.bf16.xpose.msra.mxu0 0
      %1294 = vmatprep.subr.bf16.mxu0 0
      %1295 = vmatpush1.bf16.xpose.msra.mxu0 0
      %1296 = vmatprep.subr.bf16.mxu0 0
      %1297 = vmatpush1.bf16.xpose.msra.mxu0 0
      %1298 = vmatprep.subr.bf16.mxu0 0
      %1299 = vmatpush1.bf16.xpose.msra.mxu0 0
      %1300 = vmatprep.subr.bf16.mxu0 0
      %1301 = vmatpush1.bf16.xpose.msra.mxu0 0
      %1302 = vmatprep.mubr.bf16.mxu0 0
      %1303 = vmatmul.mubr.bf16.gmra.mrb[0].mxu0 %v1265
      %v1304 = vpop.f32.mrb[0].mxu0
      %v1305 = vadd.f32 0.0, %v1304
      %v1306 = vpop.f32.mrb[0].mxu0
      %v1307 = vpop.f32.mrb[0].mxu0
      %v1308 = vpop.f32.mrb[0].mxu0
      %1309 = vdwg.mxu0
      %v1310 = vsel %vm930, %v1305, -inf
      %1311 = vmax.xlane.f32.xlu0 %v1310
      %v1312 = vpop.xlane.xlu0 %1311
      %v1313 = vsub.f32 %v1305, %v1312
      %v1314 = vmul.f32 %v1313, 1.442695
      %v1315 = vpow.pop %v1314
      %v1316 = vsel %vm930, %v1315, 0.0
      %1317 = vadd.xlane.f32.xlu0 %v1316
      %v1318 = vpop.xlane.xlu0 %1317
      %v1319 = vpack.c.bf16 %v1315, %v1315
      %1320 = vrot.lane.b32.xlu0 %v929, 72
      %v1321 = vpop.permute.xlu0 %1320
      %v1323 = vsel %vm930, %v1319, 0
      %v1326 = vsel %vm993, %v1321, 0
      %1328 = vmatprep.subr.bf16.mxu0 0
      %1329 = vmatpush1.bf16.msra.mxu0 %v1326
      %1330 = vmatprep.subr.bf16.mxu0 0
      %1331 = vmatpush1.bf16.msra.mxu0 0
      %1332 = vmatprep.subr.bf16.mxu0 0
      %1333 = vmatpush1.bf16.msra.mxu0 0
      %1334 = vmatprep.subr.bf16.mxu0 0
      %1335 = vmatpush1.bf16.msra.mxu0 0
      %1336 = vmatprep.subr.bf16.mxu0 0
      %1337 = vmatpush1.bf16.msra.mxu0 0
      %1338 = vmatprep.subr.bf16.mxu0 0
      %1339 = vmatpush1.bf16.msra.mxu0 0
      %1340 = vmatprep.subr.bf16.mxu0 0
      %1341 = vmatpush1.bf16.msra.mxu0 0
      %1342 = vmatprep.subr.bf16.mxu0 0
      %1343 = vmatpush1.bf16.msra.mxu0 0
      %1344 = vmatprep.subr.bf16.mxu0 0
      %1345 = vmatpush1.bf16.msra.mxu0 0
      %1346 = vmatprep.subr.bf16.mxu0 0
      %1347 = vmatpush1.bf16.msra.mxu0 0
      %1348 = vmatprep.subr.bf16.mxu0 0
      %1349 = vmatpush1.bf16.msra.mxu0 0
      %1350 = vmatprep.subr.bf16.mxu0 0
      %1351 = vmatpush1.bf16.msra.mxu0 0
      %1352 = vmatprep.subr.bf16.mxu0 0
      %1353 = vmatpush1.bf16.msra.mxu0 0
      %1354 = vmatprep.subr.bf16.mxu0 0
      %1355 = vmatpush1.bf16.msra.mxu0 0
      %1356 = vmatprep.subr.bf16.mxu0 0
      %1357 = vmatpush1.bf16.msra.mxu0 0
      %1358 = vmatprep.subr.bf16.mxu0 0
      %1359 = vmatpush1.bf16.msra.mxu0 0
      %1360 = vmatprep.mubr.bf16.mxu0 0
      %1361 = vmatmul.mubr.bf16.gmra.mrb[0].mxu0 %v1323
      %v1362 = vpop.f32.mrb[0].mxu0
      %v1363 = vadd.f32 0.0, %v1362
      %v1364 = vpop.f32.mrb[0].mxu0
      %v1365 = vpop.f32.mrb[0].mxu0
      %v1366 = vpop.f32.mrb[0].mxu0
      %1367 = vdwg.mxu0
      %v1368 = vrcp.pop %v1318
      %v1369 = vmul.f32 %v1363, %v1368
      %1371 = vrot.lane.b32.xlu0 %v1149, 8
      %v1372 = vpop.permute.xlu0 %1371
      %1375 = vrot.lane.b32.xlu0 %v1259, 16
      %v1376 = vpop.permute.xlu0 %1375
      %1379 = vrot.lane.b32.xlu0 %v1369, 24
      %v1380 = vpop.permute.xlu0 %1379
      %v1382 = vsel %vm930, %v1038, %v1372
      %vm1383 = vcmask 130048
      %v1384 = vsel %vm1383, %v1382, %v1376
      %vm1385 = vcmask 195584
      %v1386 = vsel %vm1385, %v1384, %v1380
      %v1387 = vpack.c.bf16 %v1386, %v1386
      %v1389 = vlaneseq
      %v1390 = vshrl.u32 %v1389, 7
      %v1391 = vsub.s32 0, %v1390
      %v1392 = vrot.slane %v805, %v1391
      %v1398 = vunpack.c.l.b16 %v801
      %v1399 = vunpack.c.l.b16 %v802
      %v1400 = vunpack.c.l.b16 %v803
      %v1401 = vunpack.c.l.b16 %v804
      %v1402 = vpack.c.b16 %v1399, %v1398
      %v1403 = vpack.c.b16 %v1401, %v1400
      %v1407 = vsel %vm825, %v1387, 0
      %1409 = vmatprep.subr.bf16.mxu0 0
      %1410 = vmatpush1.bf16.msra.mxu0 %v1402
      %1411 = vmatprep.subr.bf16.mxu0 0
      %1412 = vmatpush1.bf16.msra.mxu0 %v1403
      %1413 = vmatprep.subr.bf16.mxu0 0
      %1414 = vmatpush1.bf16.msra.mxu0 0
      %1415 = vmatprep.subr.bf16.mxu0 0
      %1416 = vmatpush1.bf16.msra.mxu0 0
      %1417 = vmatprep.subr.bf16.mxu0 0
      %1418 = vmatpush1.bf16.msra.mxu0 0
      %1419 = vmatprep.subr.bf16.mxu0 0
      %1420 = vmatpush1.bf16.msra.mxu0 0
      %1421 = vmatprep.subr.bf16.mxu0 0
      %1422 = vmatpush1.bf16.msra.mxu0 0
      %1423 = vmatprep.subr.bf16.mxu0 0
      %1424 = vmatpush1.bf16.msra.mxu0 0
      %1425 = vmatprep.subr.bf16.mxu0 0
      %1426 = vmatpush1.bf16.msra.mxu0 0
      %1427 = vmatprep.subr.bf16.mxu0 0
      %1428 = vmatpush1.bf16.msra.mxu0 0
      %1429 = vmatprep.subr.bf16.mxu0 0
      %1430 = vmatpush1.bf16.msra.mxu0 0
      %1431 = vmatprep.subr.bf16.mxu0 0
      %1432 = vmatpush1.bf16.msra.mxu0 0
      %1433 = vmatprep.subr.bf16.mxu0 0
      %1434 = vmatpush1.bf16.msra.mxu0 0
      %1435 = vmatprep.subr.bf16.mxu0 0
      %1436 = vmatpush1.bf16.msra.mxu0 0
      %1437 = vmatprep.subr.bf16.mxu0 0
      %1438 = vmatpush1.bf16.msra.mxu0 0
      %1439 = vmatprep.subr.bf16.mxu0 0
      %1440 = vmatpush1.bf16.msra.mxu0 0
      %1441 = vmatprep.mubr.bf16.mxu0 0
      %1442 = vmatmul.mubr.bf16.gmra.mrb[0].mxu0 %v1407
      %v1443 = vpop.f32.mrb[0].mxu0
      %v1444 = vadd.f32 %v1392, %v1443
      %v1445 = vpop.f32.mrb[0].mxu0
      %v1446 = vpop.f32.mrb[0].mxu0
      %v1447 = vpop.f32.mrb[0].mxu0
      %1448 = vdwg.mxu0
      %v1449 = vadd.f32 %v790, %v1444
      %v1450 = vld [vmem:[%s752] sm:$0x1]
      %v1451 = vld [vmem:[%s755] sm:$0x1]
      %v1452 = vsel %vm825, %v1449, 0.0
      %1453 = vadd.xlane.f32.xlu0 %v1452
      %v1454 = vpop.xlane.xlu0 %1453
      %v1455 = vrcp.pop 32.0
      %v1456 = vmul.f32 %v1454, %v1455
      %v1457 = vsub.f32 %v1449, %v1456
      %v1458 = vmul.f32 %v1457, %v1457
      %v1459 = vsel %vm825, %v1458, 0.0
      %1460 = vadd.xlane.f32.xlu0 %v1459
      %v1461 = vpop.xlane.xlu0 %1460
      %v1462 = vmul.f32 %v1461, %v1455
      %v1463 = vadd.f32 %v1462, 1e-05
      %v1464 = vrsqrt.pop %v1463
      %v1465 = vmul.f32 %v1457, %v1464
      %v1467 = vlaneseq
      %v1468 = vshrl.u32 %v1467, 7
      %v1469 = vsub.s32 0, %v1468
      %v1470 = vrot.slane %v1450, %v1469
      %v1472 = vmul.f32 %v1465, %v1470
      %v1474 = vlaneseq
      %v1475 = vshrl.u32 %v1474, 7
      %v1476 = vsub.s32 0, %v1475
      %v1477 = vrot.slane %v1451, %v1476
      %v1479 = vadd.f32 %v1472, %v1477
      %v1480 = vld [vmem:[%s760] sm:$0xf]
      %v1481 = vld [vmem:[%s760 + $0x4] sm:$0xf]
      %v1482 = vld [vmem:[%s760 + $0x8] sm:$0xf]
      %v1483 = vld [vmem:[%s760 + $0xc] sm:$0xf]
      %v1484 = vld [vmem:[%s763] sm:$0x1]
      %v1485 = vld [vmem:[%s768] sm:$0xf]
      %v1486 = vld [vmem:[%s768 + $0x4] sm:$0xf]
      %v1487 = vld [vmem:[%s768 + $0x8] sm:$0xf]
      %v1488 = vld [vmem:[%s768 + $0xc] sm:$0xf]
      %v1489 = vld [vmem:[%s768 + $0x10] sm:$0xf]
      %v1490 = vld [vmem:[%s768 + $0x14] sm:$0xf]
      %v1491 = vld [vmem:[%s768 + $0x18] sm:$0xf]
      %v1492 = vld [vmem:[%s768 + $0x1c] sm:$0xf]
      %v1493 = vld [vmem:[%s771] sm:$0x1]
      %v1494 = vpack.c.bf16 %v1479, %v1479
      %v1496 = vlaneseq
      %v1497 = vshrl.u32 %v1496, 7
      %v1498 = vsub.s32 0, %v1497
      %v1499 = vrot.slane %v1484, %v1498
      %v1505 = vunpack.c.l.b16 %v1480
      %v1506 = vunpack.c.l.b16 %v1481
      %v1507 = vunpack.c.l.b16 %v1482
      %v1508 = vunpack.c.l.b16 %v1483
      %v1509 = vpack.c.b16 %v1506, %v1505
      %v1510 = vpack.c.b16 %v1508, %v1507
      %v1514 = vsel %vm825, %v1494, 0
      %1516 = vmatprep.subr.bf16.mxu0 0
      %1517 = vmatpush1.bf16.msra.mxu0 %v1509
      %1518 = vmatprep.subr.bf16.mxu0 0
      %1519 = vmatpush1.bf16.msra.mxu0 %v1510
      %1520 = vmatprep.subr.bf16.mxu0 0
      %1521 = vmatpush1.bf16.msra.mxu0 0
      %1522 = vmatprep.subr.bf16.mxu0 0
      %1523 = vmatpush1.bf16.msra.mxu0 0
      %1524 = vmatprep.subr.bf16.mxu0 0
      %1525 = vmatpush1.bf16.msra.mxu0 0
      %1526 = vmatprep.subr.bf16.mxu0 0
      %1527 = vmatpush1.bf16.msra.mxu0 0
      %1528 = vmatprep.subr.bf16.mxu0 0
      %1529 = vmatpush1.bf16.msra.mxu0 0
      %1530 = vmatprep.subr.bf16.mxu0 0
      %1531 = vmatpush1.bf16.msra.mxu0 0
      %1532 = vmatprep.subr.bf16.mxu0 0
      %1533 = vmatpush1.bf16.msra.mxu0 0
      %1534 = vmatprep.subr.bf16.mxu0 0
      %1535 = vmatpush1.bf16.msra.mxu0 0
      %1536 = vmatprep.subr.bf16.mxu0 0
      %1537 = vmatpush1.bf16.msra.mxu0 0
      %1538 = vmatprep.subr.bf16.mxu0 0
      %1539 = vmatpush1.bf16.msra.mxu0 0
      %1540 = vmatprep.subr.bf16.mxu0 0
      %1541 = vmatpush1.bf16.msra.mxu0 0
      %1542 = vmatprep.subr.bf16.mxu0 0
      %1543 = vmatpush1.bf16.msra.mxu0 0
      %1544 = vmatprep.subr.bf16.mxu0 0
      %1545 = vmatpush1.bf16.msra.mxu0 0
      %1546 = vmatprep.subr.bf16.mxu0 0
      %1547 = vmatpush1.bf16.msra.mxu0 0
      %1548 = vmatprep.mubr.bf16.mxu0 0
      %1549 = vmatmul.mubr.bf16.gmra.mrb[0].mxu0 %v1514
      %v1550 = vpop.f32.mrb[0].mxu0
      %v1551 = vadd.f32 %v1499, %v1550
      %v1552 = vpop.f32.mrb[0].mxu0
      %v1553 = vpop.f32.mrb[0].mxu0
      %v1554 = vpop.f32.mrb[0].mxu0
      %1555 = vdwg.mxu0
      %v1556 = vmax.f32 %v1551, 0.0
      %v1557 = vpack.c.bf16 %v1556, %v1556
      %v1559 = vlaneseq
      %v1560 = vshrl.u32 %v1559, 7
      %v1561 = vsub.s32 0, %v1560
      %v1562 = vrot.slane %v1493, %v1561
      %v1572 = vunpack.c.l.b16 %v1485
      %v1573 = vunpack.c.l.b16 %v1486
      %v1574 = vunpack.c.l.b16 %v1487
      %v1575 = vunpack.c.l.b16 %v1488
      %v1576 = vunpack.c.l.b16 %v1489
      %v1577 = vunpack.c.l.b16 %v1490
      %v1578 = vunpack.c.l.b16 %v1491
      %v1579 = vunpack.c.l.b16 %v1492
      %v1580 = vpack.c.b16 %v1573, %v1572
      %v1581 = vpack.c.b16 %v1575, %v1574
      %v1582 = vpack.c.b16 %v1577, %v1576
      %v1583 = vpack.c.b16 %v1579, %v1578
      %vm1588 = vcmask 523264
      %v1590 = vsel %vm1588, %v1557, 0
      %1592 = vmatprep.subr.bf16.mxu0 0
      %1593 = vmatpush1.bf16.msra.mxu0 %v1580
      %1594 = vmatprep.subr.bf16.mxu0 0
      %1595 = vmatpush1.bf16.msra.mxu0 %v1581
      %1596 = vmatprep.subr.bf16.mxu0 0
      %1597 = vmatpush1.bf16.msra.mxu0 %v1582
      %1598 = vmatprep.subr.bf16.mxu0 0
      %1599 = vmatpush1.bf16.msra.mxu0 %v1583
      %1600 = vmatprep.subr.bf16.mxu0 0
      %1601 = vmatpush1.bf16.msra.mxu0 0
      %1602 = vmatprep.subr.bf16.mxu0 0
      %1603 = vmatpush1.bf16.msra.mxu0 0
      %1604 = vmatprep.subr.bf16.mxu0 0
      %1605 = vmatpush1.bf16.msra.mxu0 0
      %1606 = vmatprep.subr.bf16.mxu0 0
      %1607 = vmatpush1.bf16.msra.mxu0 0
      %1608 = vmatprep.subr.bf16.mxu0 0
      %1609 = vmatpush1.bf16.msra.mxu0 0
      %1610 = vmatprep.subr.bf16.mxu0 0
      %1611 = vmatpush1.bf16.msra.mxu0 0
      %1612 = vmatprep.subr.bf16.mxu0 0
      %1613 = vmatpush1.bf16.msra.mxu0 0
      %1614 = vmatprep.subr.bf16.mxu0 0
      %1615 = vmatpush1.bf16.msra.mxu0 0
      %1616 = vmatprep.subr.bf16.mxu0 0
      %1617 = vmatpush1.bf16.msra.mxu0 0
      %1618 = vmatprep.subr.bf16.mxu0 0
      %1619 = vmatpush1.bf16.msra.mxu0 0
      %1620 = vmatprep.subr.bf16.mxu0 0
      %1621 = vmatpush1.bf16.msra.mxu0 0
      %1622 = vmatprep.subr.bf16.mxu0 0
      %1623 = vmatpush1.bf16.msra.mxu0 0
      %1624 = vmatprep.mubr.bf16.mxu0 0
      %1625 = vmatmul.mubr.bf16.gmra.mrb[0].mxu0 %v1590
      %v1626 = vpop.f32.mrb[0].mxu0
      %v1627 = vadd.f32 %v1562, %v1626
      %v1628 = vpop.f32.mrb[0].mxu0
      %v1629 = vpop.f32.mrb[0].mxu0
      %v1630 = vpop.f32.mrb[0].mxu0
      %1631 = vdwg.mxu0
      %v1632 = vadd.f32 %v1479, %v1627
      %v1633 = vld [vmem:[%s774] sm:$0x1]
      %v1634 = vld [vmem:[%s777] sm:$0x1]
      %v1635 = vsel %vm825, %v1632, 0.0
      %1636 = vadd.xlane.f32.xlu0 %v1635
      %v1637 = vpop.xlane.xlu0 %1636
      %v1638 = vmul.f32 %v1637, %v1455
      %v1639 = vsub.f32 %v1632, %v1638
      %v1640 = vmul.f32 %v1639, %v1639
      %v1641 = vsel %vm825, %v1640, 0.0
      %1642 = vadd.xlane.f32.xlu0 %v1641
      %v1643 = vpop.xlane.xlu0 %1642
      %v1644 = vmul.f32 %v1643, %v1455
      %v1645 = vadd.f32 %v1644, 1e-05
      %v1646 = vrsqrt.pop %v1645
      %v1647 = vmul.f32 %v1639, %v1646
      %v1649 = vlaneseq
      %v1650 = vshrl.u32 %v1649, 7
      %v1651 = vsub.s32 0, %v1650
      %v1652 = vrot.slane %v1633, %v1651
      %v1654 = vmul.f32 %v1647, %v1652
      %v1656 = vlaneseq
      %v1657 = vshrl.u32 %v1656, 7
      %v1658 = vsub.s32 0, %v1657
      %v1659 = vrot.slane %v1634, %v1658
      %v1661 = vadd.f32 %v1654, %v1659
      %1662 = vst.msk [vmem:[#allocation2] sm:$0xff] %vm825, %v1661
      %p1663 = scmp.eq.s32.totalorder %s33, 1
      // Predicated region
      $region93: #{transformer_model_forward.3} parent=87 // pred_check
        %p1664 = pneg %p1663
      $region94: #{transformer_model_forward.3} parent=87 // pred_check_branch
        %1666 = sbr.rel (%p1664) target = $region96
      $region95: #{transformer_model_forward.3} parent=87 // pred_region
        %v1667 = vld [vmem:[#allocation2] sm:$0xff]
        %v1668 = vld [vmem:[%s15] sm:$0x1]
        %v1669 = vld [vmem:[%s16] sm:$0x1]
        %v1670 = vsel %vm825, %v1667, 0.0
        %1671 = vadd.xlane.f32.xlu0 %v1670
        %v1672 = vpop.xlane.xlu0 %1671
        %v1673 = vmul.f32 %v1672, %v1455
        %v1674 = vsub.f32 %v1667, %v1673
        %v1675 = vmul.f32 %v1674, %v1674
        %v1676 = vsel %vm825, %v1675, 0.0
        %1677 = vadd.xlane.f32.xlu0 %v1676
        %v1678 = vpop.xlane.xlu0 %1677
        %v1679 = vmul.f32 %v1678, %v1455
        %v1680 = vadd.f32 %v1679, 1e-05
        %v1681 = vrsqrt.pop %v1680
        %v1682 = vmul.f32 %v1674, %v1681
        %v1684 = vlaneseq
        %v1685 = vshrl.u32 %v1684, 7
        %v1686 = vsub.s32 0, %v1685
        %v1687 = vrot.slane %v1668, %v1686
        %v1689 = vmul.f32 %v1682, %v1687
        %v1691 = vlaneseq
        %v1692 = vshrl.u32 %v1691, 7
        %v1693 = vsub.s32 0, %v1692
        %v1694 = vrot.slane %v1669, %v1693
        %v1696 = vadd.f32 %v1689, %v1694
        %1697 = vst.msk [vmem:[%s781] sm:$0xff] %vm825, %v1696
      $region96: #{transformer_model_forward.3} parent=87 // pred_fallthru
        _
      %p1698 = scmp.lt.s32.totalorder %s32, 1
      %s1699 = scalar_select %p1698, %s32, 1
      %s1700 = smul.addr %s1699, 8
      %s1701 = scalar_lea.vmem %s17, %s1700
      // Predicated region
      $region97: #{transformer_model_forward.3} parent=87 // pred_check
        %p1702 = pneg %p490
      $region98: #{transformer_model_forward.3} parent=87 // pred_check_branch
        %1704 = sbr.rel (%p1702) target = $region100
      $region99: #{transformer_model_forward.3} parent=87 // pred_region
        _
      $region100: #{transformer_model_forward.3} parent=87 // pred_fallthru
        _
    $region88: #{transformer_model_forward.3} parent=5 // pred_fallthru
      _
    %p1705 = scmp.le.s32.totalorder 2, %s23
    // Predicated region
    $region101: #{transformer_model_forward.3} parent=5 // pred_check
      %p1706 = pneg %p1705
    $region102: #{transformer_model_forward.3} parent=5 // pred_check_branch
      %1708 = sbr.rel (%p1706) target = $region104
    $region103: #{transformer_model_forward.3} parent=5 // pred_region
      %s1709 = ssub.s32 %s23, 2
      // Predicated region
      $region105: #{transformer_model_forward.3} parent=103 // pred_check
        %p1710 = pneg %p496
      $region106: #{transformer_model_forward.3} parent=103 // pred_check_branch
        %1712 = sbr.rel (%p1710) target = $region108
      $region107: #{transformer_model_forward.3} parent=103 // pred_region
        %p1713 = scmp.lt.s32.totalorder %s34, 1
        %s1714 = scalar_select %p1713, %s34, 1
        %s1715 = smul.addr %s1714, 8
        %s1716 = scalar_lea.vmem %s17, %s1715
      $region108: #{transformer_model_forward.3} parent=103 // pred_fallthru
        _
    $region104: #{transformer_model_forward.3} parent=5 // pred_fallthru
      _
  $region6: #{transformer_model_forward.3} parent=0 // loop_footer
    %s27 = sadd.s32 1, %s23
  $region7: #{transformer_model_forward.3} parent=0 // loop_footer_branch
    %22 = sbr.rel target = $region3
  $region8: #{transformer_model_forward.3} parent=0 // loop_exit
    _

// kernel: transformer_model_forward.4
$region0: #{transformer_model_forward.4}
  #allocation0 [shape = 'u32[]', space=smem, size = 0x4, offset = 0x4, fixed_abs, tag = 'smem constant byte address 0x4 - core index']
  #allocation1 [shape = 'u32[144,128]{1,0:T(1,128)}', space=vmem, size = 0x12000, scoped, tag = 'internal scratch']
  #allocation2 [shape = 'f32[8,32]{1,0:T(8,128)}', space=vmem, size = 0x1000, scoped, tag = 'scratch operand']
  %s0 = inlined_call_operand.vmem [shape: f32[2,8,32], index: 0, kind: input, shape index: {}]
  %s1 = inlined_call_operand.vmem [shape: f32[2,8,32], index: 1, kind: input, shape index: {}]
  %s2 = inlined_call_operand.vmem [shape: bf16[2,32,32], index: 2, kind: input, shape index: {}]
  %s3 = inlined_call_operand.vmem [shape: f32[2,1,32], index: 3, kind: input, shape index: {}]
  %s4 = inlined_call_operand.vmem [shape: bf16[2,32,64], index: 4, kind: input, shape index: {}]
  %s5 = inlined_call_operand.vmem [shape: f32[2,1,64], index: 5, kind: input, shape index: {}]
  %s6 = inlined_call_operand.vmem [shape: bf16[2,32,32], index: 6, kind: input, shape index: {}]
  %s7 = inlined_call_operand.vmem [shape: f32[2,1,32], index: 7, kind: input, shape index: {}]
  %s8 = inlined_call_operand.vmem [shape: f32[2,1,32], index: 8, kind: input, shape index: {}]
  %s9 = inlined_call_operand.vmem [shape: f32[2,1,32], index: 9, kind: input, shape index: {}]
  %s10 = inlined_call_operand.vmem [shape: bf16[2,32,32], index: 10, kind: input, shape index: {}]
  %s11 = inlined_call_operand.vmem [shape: f32[2,1,32], index: 11, kind: input, shape index: {}]
  %s12 = inlined_call_operand.vmem [shape: bf16[2,32,64], index: 12, kind: input, shape index: {}]
  %s13 = inlined_call_operand.vmem [shape: f32[2,1,64], index: 13, kind: input, shape index: {}]
  %s14 = inlined_call_operand.vmem [shape: bf16[2,32,32], index: 14, kind: input, shape index: {}]
  %s15 = inlined_call_operand.vmem [shape: f32[2,1,32], index: 15, kind: input, shape index: {}]
  %s16 = inlined_call_operand.vmem [shape: f32[2,1,32], index: 16, kind: input, shape index: {}]
  %s17 = inlined_call_operand.vmem [shape: f32[2,1,32], index: 17, kind: input, shape index: {}]
  %s18 = inlined_call_operand.vmem [shape: bf16[2,32,64], index: 18, kind: input, shape index: {}]
  %s19 = inlined_call_operand.vmem [shape: f32[2,1,64], index: 19, kind: input, shape index: {}]
  %s20 = inlined_call_operand.vmem [shape: bf16[2,64,32], index: 20, kind: input, shape index: {}]
  %s21 = inlined_call_operand.vmem [shape: f32[2,1,32], index: 21, kind: input, shape index: {}]
  %s22 = inlined_call_operand.vmem [shape: f32[2,1,32], index: 22, kind: input, shape index: {}]
  %s23 = inlined_call_operand.vmem [shape: f32[2,1,32], index: 23, kind: input, shape index: {}]
  %s24 = inlined_call_operand.hbm [shape: f32[1,32], index: 24, kind: input, shape index: {}]
  %s25 = inlined_call_operand.hbm [shape: f32[1,32], index: 25, kind: input, shape index: {}]
  %s26 = inlined_call_operand.vmem [shape: f32[2,8,32], index: 26, kind: output, shape index: {}]
  %s27 = sld [smem:[#allocation0]]
  $region153: #{transformer_model_forward.4} parent=0
    _
  %s29 = ssub.s32 1, %s27
  %s30 = scalar_select 0, %s29, %s27
  $region1: #{transformer_model_forward.4} parent=0
    #allocation3 [shape = 'u8[512]{0}', space=vmem, size = 0x400, scoped, tag = 'input window, operand 24, single buffered']
    #allocation4 [shape = 's32[2]{0}', space=sflag, size = 0x8, scoped, tag = 'scoped memory for transformer_model_forward.4']
    #allocation5 [shape = 'u8[512]{0}', space=vmem, size = 0x400, scoped, tag = 'input window, operand 25, single buffered']
    #allocation6 [shape = 's32[1]{0}', space=sflag, size = 0x4, scoped, tag = 'scoped memory for transformer_model_forward.4']
    %31 = vsyncpa [#allocation4], 0
    %32 = vsyncpa [#allocation6], 0
    loop: start=0, step=1, limit=6
    $region2: #{transformer_model_forward.4} parent=1 // loop_pre_header
      _
    $region3: #{transformer_model_forward.4} parent=1 // loop_header
      %s34 = sphi 0, %s38
      %p35 = scmp.ge.s32.totalorder %s34, 6
      %s41 = sphi 0, %s53
      %s42 = sphi 0, %s49
      %s43 = sphi 0, %s41
      %s44 = sphi 0, %s42
      %s45 = sphi 0, %s43
      %s46 = sphi 0, %s44
      %s56 = sphi 0, %s58
      %s59 = sphi 0, %s56
      %s60 = sphi 0, %s59
      %s76 = sphi 0, %s60
      %s82 = sphi 0, %s84
      %s85 = sphi 0, %s82
      %s86 = sphi 0, %s85
      %s102 = sphi 0, %s86
      %s108 = sphi 0, %s110
      %s111 = sphi 0, %s108
      %s112 = sphi 0, %s111
      %s128 = sphi 0, %s112
      %s134 = sphi 0, %s136
      %s137 = sphi 0, %s134
      %s138 = sphi 0, %s137
      %s154 = sphi 0, %s138
      %s160 = sphi 0, %s162
      %s163 = sphi 0, %s160
      %s164 = sphi 0, %s163
      %s180 = sphi 0, %s164
      %s186 = sphi 0, %s188
      %s189 = sphi 0, %s186
      %s190 = sphi 0, %s189
      %s206 = sphi 0, %s190
      %s212 = sphi 0, %s214
      %s215 = sphi 0, %s212
      %s216 = sphi 0, %s215
      %s232 = sphi 0, %s216
      %s238 = sphi 0, %s240
      %s241 = sphi 0, %s238
      %s242 = sphi 0, %s241
      %s258 = sphi 0, %s242
      %s264 = sphi 0, %s266
      %s267 = sphi 0, %s264
      %s268 = sphi 0, %s267
      %s284 = sphi 0, %s268
      %s290 = sphi 0, %s292
      %s293 = sphi 0, %s290
      %s294 = sphi 0, %s293
      %s310 = sphi 0, %s294
      %s316 = sphi 0, %s318
      %s319 = sphi 0, %s316
      %s320 = sphi 0, %s319
      %s336 = sphi 0, %s320
      %s342 = sphi 0, %s344
      %s345 = sphi 0, %s342
      %s346 = sphi 0, %s345
      %s362 = sphi 0, %s346
      %s368 = sphi 0, %s370
      %s371 = sphi 0, %s368
      %s372 = sphi 0, %s371
      %s388 = sphi 0, %s372
      %s394 = sphi 0, %s396
      %s397 = sphi 0, %s394
      %s398 = sphi 0, %s397
      %s414 = sphi 0, %s398
      %s420 = sphi 0, %s422
      %s423 = sphi 0, %s420
      %s424 = sphi 0, %s423
      %s440 = sphi 0, %s424
      %s446 = sphi 0, %s448
      %s449 = sphi 0, %s446
      %s450 = sphi 0, %s449
      %s466 = sphi 0, %s450
      %s472 = sphi 0, %s474
      %s475 = sphi 0, %s472
      %s476 = sphi 0, %s475
      %s492 = sphi 0, %s476
      %s498 = sphi 0, %s500
      %s501 = sphi 0, %s498
      %s502 = sphi 0, %s501
      %s518 = sphi 0, %s502
      %s524 = sphi 0, %s526
      %s527 = sphi 0, %s524
      %s528 = sphi 0, %s527
      %s544 = sphi 0, %s528
      %s550 = sphi 0, %s552
      %s553 = sphi 0, %s550
      %s554 = sphi 0, %s553
      %s570 = sphi 0, %s554
      %s576 = sphi 0, %s578
      %s579 = sphi 0, %s576
      %s580 = sphi 0, %s579
      %s596 = sphi 0, %s580
      %s602 = sphi 0, %s604
      %s605 = sphi 0, %s602
      %s606 = sphi 0, %s605
      %s622 = sphi 0, %s606
      %s628 = sphi 0, %s630
      %s631 = sphi 0, %s628
      %s632 = sphi 0, %s631
      %s648 = sphi 0, %s632
      %s654 = sphi 0, %s656
      %s657 = sphi 0, %s654
      %s658 = sphi 0, %s657
      %s674 = sphi 0, %s658
      %s678 = sphi 0, %s678
      %s680 = sphi 0, %s678
      %s681 = sphi 0, %s680
      %s695 = sphi 0, %s681
      %s699 = sphi 0, %s699
      %s701 = sphi 0, %s699
      %s702 = sphi 0, %s701
      %s716 = sphi 0, %s702
      %s722 = sphi 0, %s724
      %s725 = sphi 0, %s722
      %s726 = sphi 0, %s725
      %s742 = sphi 0, %s726
    $region4: #{transformer_model_forward.4} parent=1 // loop_header_branch
      %37 = sbr.rel (%p35) target = $region8
    $region5: #{transformer_model_forward.4} parent=1 // loop_body
      %s39 = ssub.s32 %s34, 1
      %s40 = ssub.s32 %s34, 2
      %s47 = sadd.s32 1, %s42
      %p48 = scmp.ge.s32.totalorder %s47, 2
      %s49 = scalar_select %p48, 0, %s47
      %s50 = sadd.s32 1, %s41
      %s51 = scalar_select %p48, %s50, %s41
      %p52 = scmp.ge.s32.totalorder %s51, 2
      %s53 = scalar_select %p52, 0, %s51
      %s54 = ssub.s32 %s41, %s53
      %p55 = scmp.eq.s32.totalorder %s54, 0
      %s57 = sadd.s32 %s56, 1
      %s58 = scalar_select %p55, %s56, %s57
      %p61 = pneg %p55
      %p62 = scmp.eq.s32.totalorder %s34, 3
      %p63 = por %p61, %p62
      %p64 = scmp.ne.s32.totalorder %s56, %s59
      %p65 = scmp.eq.s32.totalorder %s34, 0
      %p66 = por %p64, %p65
      %p67 = scmp.ne.s32.totalorder %s56, %s59
      %p68 = scmp.eq.s32.totalorder %s39, 3
      %p69 = por %p67, %p68
      %p70 = scmp.ne.s32.totalorder %s59, %s60
      %p71 = scmp.eq.s32.totalorder %s39, 0
      %p72 = por %p70, %p71
      %p73 = scmp.ne.s32.totalorder %s59, %s60
      %p74 = scmp.eq.s32.totalorder %s40, 3
      %p75 = por %p73, %p74
      %p77 = scmp.ne.s32.totalorder %s60, %s76
      %p78 = scmp.eq.s32.totalorder %s40, 0
      %p79 = por %p77, %p78
      %s80 = ssub.s32 %s41, %s53
      %p81 = scmp.eq.s32.totalorder %s80, 0
      %s83 = sadd.s32 %s82, 1
      %s84 = scalar_select %p81, %s82, %s83
      %p87 = pneg %p81
      %p88 = scmp.eq.s32.totalorder %s34, 3
      %p89 = por %p87, %p88
      %p90 = scmp.ne.s32.totalorder %s82, %s85
      %p91 = scmp.eq.s32.totalorder %s34, 0
      %p92 = por %p90, %p91
      %p93 = scmp.ne.s32.totalorder %s82, %s85
      %p94 = scmp.eq.s32.totalorder %s39, 3
      %p95 = por %p93, %p94
      %p96 = scmp.ne.s32.totalorder %s85, %s86
      %p97 = scmp.eq.s32.totalorder %s39, 0
      %p98 = por %p96, %p97
      %p99 = scmp.ne.s32.totalorder %s85, %s86
      %p100 = scmp.eq.s32.totalorder %s40, 3
      %p101 = por %p99, %p100
      %p103 = scmp.ne.s32.totalorder %s86, %s102
      %p104 = scmp.eq.s32.totalorder %s40, 0
      %p105 = por %p103, %p104
      %s106 = ssub.s32 %s42, %s49
      %p107 = scmp.eq.s32.totalorder %s106, 0
      %s109 = sadd.s32 %s108, 1
      %s110 = scalar_select %p107, %s108, %s109
      %p113 = pneg %p107
      %p114 = scmp.eq.s32.totalorder %s34, 3
      %p115 = por %p113, %p114
      %p116 = scmp.ne.s32.totalorder %s108, %s111
      %p117 = scmp.eq.s32.totalorder %s34, 0
      %p118 = por %p116, %p117
      %p119 = scmp.ne.s32.totalorder %s108, %s111
      %p120 = scmp.eq.s32.totalorder %s39, 3
      %p121 = por %p119, %p120
      %p122 = scmp.ne.s32.totalorder %s111, %s112
      %p123 = scmp.eq.s32.totalorder %s39, 0
      %p124 = por %p122, %p123
      %p125 = scmp.ne.s32.totalorder %s111, %s112
      %p126 = scmp.eq.s32.totalorder %s40, 3
      %p127 = por %p125, %p126
      %p129 = scmp.ne.s32.totalorder %s112, %s128
      %p130 = scmp.eq.s32.totalorder %s40, 0
      %p131 = por %p129, %p130
      %s132 = ssub.s32 %s42, %s49
      %p133 = scmp.eq.s32.totalorder %s132, 0
      %s135 = sadd.s32 %s134, 1
      %s136 = scalar_select %p133, %s134, %s135
      %p139 = pneg %p133
      %p140 = scmp.eq.s32.totalorder %s34, 3
      %p141 = por %p139, %p140
      %p142 = scmp.ne.s32.totalorder %s134, %s137
      %p143 = scmp.eq.s32.totalorder %s34, 0
      %p144 = por %p142, %p143
      %p145 = scmp.ne.s32.totalorder %s134, %s137
      %p146 = scmp.eq.s32.totalorder %s39, 3
      %p147 = por %p145, %p146
      %p148 = scmp.ne.s32.totalorder %s137, %s138
      %p149 = scmp.eq.s32.totalorder %s39, 0
      %p150 = por %p148, %p149
      %p151 = scmp.ne.s32.totalorder %s137, %s138
      %p152 = scmp.eq.s32.totalorder %s40, 3
      %p153 = por %p151, %p152
      %p155 = scmp.ne.s32.totalorder %s138, %s154
      %p156 = scmp.eq.s32.totalorder %s40, 0
      %p157 = por %p155, %p156
      %s158 = ssub.s32 %s42, %s49
      %p159 = scmp.eq.s32.totalorder %s158, 0
      %s161 = sadd.s32 %s160, 1
      %s162 = scalar_select %p159, %s160, %s161
      %p165 = pneg %p159
      %p166 = scmp.eq.s32.totalorder %s34, 3
      %p167 = por %p165, %p166
      %p168 = scmp.ne.s32.totalorder %s160, %s163
      %p169 = scmp.eq.s32.totalorder %s34, 0
      %p170 = por %p168, %p169
      %p171 = scmp.ne.s32.totalorder %s160, %s163
      %p172 = scmp.eq.s32.totalorder %s39, 3
      %p173 = por %p171, %p172
      %p174 = scmp.ne.s32.totalorder %s163, %s164
      %p175 = scmp.eq.s32.totalorder %s39, 0
      %p176 = por %p174, %p175
      %p177 = scmp.ne.s32.totalorder %s163, %s164
      %p178 = scmp.eq.s32.totalorder %s40, 3
      %p179 = por %p177, %p178
      %p181 = scmp.ne.s32.totalorder %s164, %s180
      %p182 = scmp.eq.s32.totalorder %s40, 0
      %p183 = por %p181, %p182
      %s184 = ssub.s32 %s42, %s49
      %p185 = scmp.eq.s32.totalorder %s184, 0
      %s187 = sadd.s32 %s186, 1
      %s188 = scalar_select %p185, %s186, %s187
      %p191 = pneg %p185
      %p192 = scmp.eq.s32.totalorder %s34, 3
      %p193 = por %p191, %p192
      %p194 = scmp.ne.s32.totalorder %s186, %s189
      %p195 = scmp.eq.s32.totalorder %s34, 0
      %p196 = por %p194, %p195
      %p197 = scmp.ne.s32.totalorder %s186, %s189
      %p198 = scmp.eq.s32.totalorder %s39, 3
      %p199 = por %p197, %p198
      %p200 = scmp.ne.s32.totalorder %s189, %s190
      %p201 = scmp.eq.s32.totalorder %s39, 0
      %p202 = por %p200, %p201
      %p203 = scmp.ne.s32.totalorder %s189, %s190
      %p204 = scmp.eq.s32.totalorder %s40, 3
      %p205 = por %p203, %p204
      %p207 = scmp.ne.s32.totalorder %s190, %s206
      %p208 = scmp.eq.s32.totalorder %s40, 0
      %p209 = por %p207, %p208
      %s210 = ssub.s32 %s42, %s49
      %p211 = scmp.eq.s32.totalorder %s210, 0
      %s213 = sadd.s32 %s212, 1
      %s214 = scalar_select %p211, %s212, %s213
      %p217 = pneg %p211
      %p218 = scmp.eq.s32.totalorder %s34, 3
      %p219 = por %p217, %p218
      %p220 = scmp.ne.s32.totalorder %s212, %s215
      %p221 = scmp.eq.s32.totalorder %s34, 0
      %p222 = por %p220, %p221
      %p223 = scmp.ne.s32.totalorder %s212, %s215
      %p224 = scmp.eq.s32.totalorder %s39, 3
      %p225 = por %p223, %p224
      %p226 = scmp.ne.s32.totalorder %s215, %s216
      %p227 = scmp.eq.s32.totalorder %s39, 0
      %p228 = por %p226, %p227
      %p229 = scmp.ne.s32.totalorder %s215, %s216
      %p230 = scmp.eq.s32.totalorder %s40, 3
      %p231 = por %p229, %p230
      %p233 = scmp.ne.s32.totalorder %s216, %s232
      %p234 = scmp.eq.s32.totalorder %s40, 0
      %p235 = por %p233, %p234
      %s236 = ssub.s32 %s42, %s49
      %p237 = scmp.eq.s32.totalorder %s236, 0
      %s239 = sadd.s32 %s238, 1
      %s240 = scalar_select %p237, %s238, %s239
      %p243 = pneg %p237
      %p244 = scmp.eq.s32.totalorder %s34, 3
      %p245 = por %p243, %p244
      %p246 = scmp.ne.s32.totalorder %s238, %s241
      %p247 = scmp.eq.s32.totalorder %s34, 0
      %p248 = por %p246, %p247
      %p249 = scmp.ne.s32.totalorder %s238, %s241
      %p250 = scmp.eq.s32.totalorder %s39, 3
      %p251 = por %p249, %p250
      %p252 = scmp.ne.s32.totalorder %s241, %s242
      %p253 = scmp.eq.s32.totalorder %s39, 0
      %p254 = por %p252, %p253
      %p255 = scmp.ne.s32.totalorder %s241, %s242
      %p256 = scmp.eq.s32.totalorder %s40, 3
      %p257 = por %p255, %p256
      %p259 = scmp.ne.s32.totalorder %s242, %s258
      %p260 = scmp.eq.s32.totalorder %s40, 0
      %p261 = por %p259, %p260
      %s262 = ssub.s32 %s42, %s49
      %p263 = scmp.eq.s32.totalorder %s262, 0
      %s265 = sadd.s32 %s264, 1
      %s266 = scalar_select %p263, %s264, %s265
      %p269 = pneg %p263
      %p270 = scmp.eq.s32.totalorder %s34, 3
      %p271 = por %p269, %p270
      %p272 = scmp.ne.s32.totalorder %s264, %s267
      %p273 = scmp.eq.s32.totalorder %s34, 0
      %p274 = por %p272, %p273
      %p275 = scmp.ne.s32.totalorder %s264, %s267
      %p276 = scmp.eq.s32.totalorder %s39, 3
      %p277 = por %p275, %p276
      %p278 = scmp.ne.s32.totalorder %s267, %s268
      %p279 = scmp.eq.s32.totalorder %s39, 0
      %p280 = por %p278, %p279
      %p281 = scmp.ne.s32.totalorder %s267, %s268
      %p282 = scmp.eq.s32.totalorder %s40, 3
      %p283 = por %p281, %p282
      %p285 = scmp.ne.s32.totalorder %s268, %s284
      %p286 = scmp.eq.s32.totalorder %s40, 0
      %p287 = por %p285, %p286
      %s288 = ssub.s32 %s42, %s49
      %p289 = scmp.eq.s32.totalorder %s288, 0
      %s291 = sadd.s32 %s290, 1
      %s292 = scalar_select %p289, %s290, %s291
      %p295 = pneg %p289
      %p296 = scmp.eq.s32.totalorder %s34, 3
      %p297 = por %p295, %p296
      %p298 = scmp.ne.s32.totalorder %s290, %s293
      %p299 = scmp.eq.s32.totalorder %s34, 0
      %p300 = por %p298, %p299
      %p301 = scmp.ne.s32.totalorder %s290, %s293
      %p302 = scmp.eq.s32.totalorder %s39, 3
      %p303 = por %p301, %p302
      %p304 = scmp.ne.s32.totalorder %s293, %s294
      %p305 = scmp.eq.s32.totalorder %s39, 0
      %p306 = por %p304, %p305
      %p307 = scmp.ne.s32.totalorder %s293, %s294
      %p308 = scmp.eq.s32.totalorder %s40, 3
      %p309 = por %p307, %p308
      %p311 = scmp.ne.s32.totalorder %s294, %s310
      %p312 = scmp.eq.s32.totalorder %s40, 0
      %p313 = por %p311, %p312
      %s314 = ssub.s32 %s42, %s49
      %p315 = scmp.eq.s32.totalorder %s314, 0
      %s317 = sadd.s32 %s316, 1
      %s318 = scalar_select %p315, %s316, %s317
      %p321 = pneg %p315
      %p322 = scmp.eq.s32.totalorder %s34, 3
      %p323 = por %p321, %p322
      %p324 = scmp.ne.s32.totalorder %s316, %s319
      %p325 = scmp.eq.s32.totalorder %s34, 0
      %p326 = por %p324, %p325
      %p327 = scmp.ne.s32.totalorder %s316, %s319
      %p328 = scmp.eq.s32.totalorder %s39, 3
      %p329 = por %p327, %p328
      %p330 = scmp.ne.s32.totalorder %s319, %s320
      %p331 = scmp.eq.s32.totalorder %s39, 0
      %p332 = por %p330, %p331
      %p333 = scmp.ne.s32.totalorder %s319, %s320
      %p334 = scmp.eq.s32.totalorder %s40, 3
      %p335 = por %p333, %p334
      %p337 = scmp.ne.s32.totalorder %s320, %s336
      %p338 = scmp.eq.s32.totalorder %s40, 0
      %p339 = por %p337, %p338
      %s340 = ssub.s32 %s42, %s49
      %p341 = scmp.eq.s32.totalorder %s340, 0
      %s343 = sadd.s32 %s342, 1
      %s344 = scalar_select %p341, %s342, %s343
      %p347 = pneg %p341
      %p348 = scmp.eq.s32.totalorder %s34, 3
      %p349 = por %p347, %p348
      %p350 = scmp.ne.s32.totalorder %s342, %s345
      %p351 = scmp.eq.s32.totalorder %s34, 0
      %p352 = por %p350, %p351
      %p353 = scmp.ne.s32.totalorder %s342, %s345
      %p354 = scmp.eq.s32.totalorder %s39, 3
      %p355 = por %p353, %p354
      %p356 = scmp.ne.s32.totalorder %s345, %s346
      %p357 = scmp.eq.s32.totalorder %s39, 0
      %p358 = por %p356, %p357
      %p359 = scmp.ne.s32.totalorder %s345, %s346
      %p360 = scmp.eq.s32.totalorder %s40, 3
      %p361 = por %p359, %p360
      %p363 = scmp.ne.s32.totalorder %s346, %s362
      %p364 = scmp.eq.s32.totalorder %s40, 0
      %p365 = por %p363, %p364
      %s366 = ssub.s32 %s42, %s49
      %p367 = scmp.eq.s32.totalorder %s366, 0
      %s369 = sadd.s32 %s368, 1
      %s370 = scalar_select %p367, %s368, %s369
      %p373 = pneg %p367
      %p374 = scmp.eq.s32.totalorder %s34, 3
      %p375 = por %p373, %p374
      %p376 = scmp.ne.s32.totalorder %s368, %s371
      %p377 = scmp.eq.s32.totalorder %s34, 0
      %p378 = por %p376, %p377
      %p379 = scmp.ne.s32.totalorder %s368, %s371
      %p380 = scmp.eq.s32.totalorder %s39, 3
      %p381 = por %p379, %p380
      %p382 = scmp.ne.s32.totalorder %s371, %s372
      %p383 = scmp.eq.s32.totalorder %s39, 0
      %p384 = por %p382, %p383
      %p385 = scmp.ne.s32.totalorder %s371, %s372
      %p386 = scmp.eq.s32.totalorder %s40, 3
      %p387 = por %p385, %p386
      %p389 = scmp.ne.s32.totalorder %s372, %s388
      %p390 = scmp.eq.s32.totalorder %s40, 0
      %p391 = por %p389, %p390
      %s392 = ssub.s32 %s42, %s49
      %p393 = scmp.eq.s32.totalorder %s392, 0
      %s395 = sadd.s32 %s394, 1
      %s396 = scalar_select %p393, %s394, %s395
      %p399 = pneg %p393
      %p400 = scmp.eq.s32.totalorder %s34, 3
      %p401 = por %p399, %p400
      %p402 = scmp.ne.s32.totalorder %s394, %s397
      %p403 = scmp.eq.s32.totalorder %s34, 0
      %p404 = por %p402, %p403
      %p405 = scmp.ne.s32.totalorder %s394, %s397
      %p406 = scmp.eq.s32.totalorder %s39, 3
      %p407 = por %p405, %p406
      %p408 = scmp.ne.s32.totalorder %s397, %s398
      %p409 = scmp.eq.s32.totalorder %s39, 0
      %p410 = por %p408, %p409
      %p411 = scmp.ne.s32.totalorder %s397, %s398
      %p412 = scmp.eq.s32.totalorder %s40, 3
      %p413 = por %p411, %p412
      %p415 = scmp.ne.s32.totalorder %s398, %s414
      %p416 = scmp.eq.s32.totalorder %s40, 0
      %p417 = por %p415, %p416
      %s418 = ssub.s32 %s42, %s49
      %p419 = scmp.eq.s32.totalorder %s418, 0
      %s421 = sadd.s32 %s420, 1
      %s422 = scalar_select %p419, %s420, %s421
      %p425 = pneg %p419
      %p426 = scmp.eq.s32.totalorder %s34, 3
      %p427 = por %p425, %p426
      %p428 = scmp.ne.s32.totalorder %s420, %s423
      %p429 = scmp.eq.s32.totalorder %s34, 0
      %p430 = por %p428, %p429
      %p431 = scmp.ne.s32.totalorder %s420, %s423
      %p432 = scmp.eq.s32.totalorder %s39, 3
      %p433 = por %p431, %p432
      %p434 = scmp.ne.s32.totalorder %s423, %s424
      %p435 = scmp.eq.s32.totalorder %s39, 0
      %p436 = por %p434, %p435
      %p437 = scmp.ne.s32.totalorder %s423, %s424
      %p438 = scmp.eq.s32.totalorder %s40, 3
      %p439 = por %p437, %p438
      %p441 = scmp.ne.s32.totalorder %s424, %s440
      %p442 = scmp.eq.s32.totalorder %s40, 0
      %p443 = por %p441, %p442
      %s444 = ssub.s32 %s42, %s49
      %p445 = scmp.eq.s32.totalorder %s444, 0
      %s447 = sadd.s32 %s446, 1
      %s448 = scalar_select %p445, %s446, %s447
      %p451 = pneg %p445
      %p452 = scmp.eq.s32.totalorder %s34, 3
      %p453 = por %p451, %p452
      %p454 = scmp.ne.s32.totalorder %s446, %s449
      %p455 = scmp.eq.s32.totalorder %s34, 0
      %p456 = por %p454, %p455
      %p457 = scmp.ne.s32.totalorder %s446, %s449
      %p458 = scmp.eq.s32.totalorder %s39, 3
      %p459 = por %p457, %p458
      %p460 = scmp.ne.s32.totalorder %s449, %s450
      %p461 = scmp.eq.s32.totalorder %s39, 0
      %p462 = por %p460, %p461
      %p463 = scmp.ne.s32.totalorder %s449, %s450
      %p464 = scmp.eq.s32.totalorder %s40, 3
      %p465 = por %p463, %p464
      %p467 = scmp.ne.s32.totalorder %s450, %s466
      %p468 = scmp.eq.s32.totalorder %s40, 0
      %p469 = por %p467, %p468
      %s470 = ssub.s32 %s42, %s49
      %p471 = scmp.eq.s32.totalorder %s470, 0
      %s473 = sadd.s32 %s472, 1
      %s474 = scalar_select %p471, %s472, %s473
      %p477 = pneg %p471
      %p478 = scmp.eq.s32.totalorder %s34, 3
      %p479 = por %p477, %p478
      %p480 = scmp.ne.s32.totalorder %s472, %s475
      %p481 = scmp.eq.s32.totalorder %s34, 0
      %p482 = por %p480, %p481
      %p483 = scmp.ne.s32.totalorder %s472, %s475
      %p484 = scmp.eq.s32.totalorder %s39, 3
      %p485 = por %p483, %p484
      %p486 = scmp.ne.s32.totalorder %s475, %s476
      %p487 = scmp.eq.s32.totalorder %s39, 0
      %p488 = por %p486, %p487
      %p489 = scmp.ne.s32.totalorder %s475, %s476
      %p490 = scmp.eq.s32.totalorder %s40, 3
      %p491 = por %p489, %p490
      %p493 = scmp.ne.s32.totalorder %s476, %s492
      %p494 = scmp.eq.s32.totalorder %s40, 0
      %p495 = por %p493, %p494
      %s496 = ssub.s32 %s42, %s49
      %p497 = scmp.eq.s32.totalorder %s496, 0
      %s499 = sadd.s32 %s498, 1
      %s500 = scalar_select %p497, %s498, %s499
      %p503 = pneg %p497
      %p504 = scmp.eq.s32.totalorder %s34, 3
      %p505 = por %p503, %p504
      %p506 = scmp.ne.s32.totalorder %s498, %s501
      %p507 = scmp.eq.s32.totalorder %s34, 0
      %p508 = por %p506, %p507
      %p509 = scmp.ne.s32.totalorder %s498, %s501
      %p510 = scmp.eq.s32.totalorder %s39, 3
      %p511 = por %p509, %p510
      %p512 = scmp.ne.s32.totalorder %s501, %s502
      %p513 = scmp.eq.s32.totalorder %s39, 0
      %p514 = por %p512, %p513
      %p515 = scmp.ne.s32.totalorder %s501, %s502
      %p516 = scmp.eq.s32.totalorder %s40, 3
      %p517 = por %p515, %p516
      %p519 = scmp.ne.s32.totalorder %s502, %s518
      %p520 = scmp.eq.s32.totalorder %s40, 0
      %p521 = por %p519, %p520
      %s522 = ssub.s32 %s42, %s49
      %p523 = scmp.eq.s32.totalorder %s522, 0
      %s525 = sadd.s32 %s524, 1
      %s526 = scalar_select %p523, %s524, %s525
      %p529 = pneg %p523
      %p530 = scmp.eq.s32.totalorder %s34, 3
      %p531 = por %p529, %p530
      %p532 = scmp.ne.s32.totalorder %s524, %s527
      %p533 = scmp.eq.s32.totalorder %s34, 0
      %p534 = por %p532, %p533
      %p535 = scmp.ne.s32.totalorder %s524, %s527
      %p536 = scmp.eq.s32.totalorder %s39, 3
      %p537 = por %p535, %p536
      %p538 = scmp.ne.s32.totalorder %s527, %s528
      %p539 = scmp.eq.s32.totalorder %s39, 0
      %p540 = por %p538, %p539
      %p541 = scmp.ne.s32.totalorder %s527, %s528
      %p542 = scmp.eq.s32.totalorder %s40, 3
      %p543 = por %p541, %p542
      %p545 = scmp.ne.s32.totalorder %s528, %s544
      %p546 = scmp.eq.s32.totalorder %s40, 0
      %p547 = por %p545, %p546
      %s548 = ssub.s32 %s42, %s49
      %p549 = scmp.eq.s32.totalorder %s548, 0
      %s551 = sadd.s32 %s550, 1
      %s552 = scalar_select %p549, %s550, %s551
      %p555 = pneg %p549
      %p556 = scmp.eq.s32.totalorder %s34, 3
      %p557 = por %p555, %p556
      %p558 = scmp.ne.s32.totalorder %s550, %s553
      %p559 = scmp.eq.s32.totalorder %s34, 0
      %p560 = por %p558, %p559
      %p561 = scmp.ne.s32.totalorder %s550, %s553
      %p562 = scmp.eq.s32.totalorder %s39, 3
      %p563 = por %p561, %p562
      %p564 = scmp.ne.s32.totalorder %s553, %s554
      %p565 = scmp.eq.s32.totalorder %s39, 0
      %p566 = por %p564, %p565
      %p567 = scmp.ne.s32.totalorder %s553, %s554
      %p568 = scmp.eq.s32.totalorder %s40, 3
      %p569 = por %p567, %p568
      %p571 = scmp.ne.s32.totalorder %s554, %s570
      %p572 = scmp.eq.s32.totalorder %s40, 0
      %p573 = por %p571, %p572
      %s574 = ssub.s32 %s42, %s49
      %p575 = scmp.eq.s32.totalorder %s574, 0
      %s577 = sadd.s32 %s576, 1
      %s578 = scalar_select %p575, %s576, %s577
      %p581 = pneg %p575
      %p582 = scmp.eq.s32.totalorder %s34, 3
      %p583 = por %p581, %p582
      %p584 = scmp.ne.s32.totalorder %s576, %s579
      %p585 = scmp.eq.s32.totalorder %s34, 0
      %p586 = por %p584, %p585
      %p587 = scmp.ne.s32.totalorder %s576, %s579
      %p588 = scmp.eq.s32.totalorder %s39, 3
      %p589 = por %p587, %p588
      %p590 = scmp.ne.s32.totalorder %s579, %s580
      %p591 = scmp.eq.s32.totalorder %s39, 0
      %p592 = por %p590, %p591
      %p593 = scmp.ne.s32.totalorder %s579, %s580
      %p594 = scmp.eq.s32.totalorder %s40, 3
      %p595 = por %p593, %p594
      %p597 = scmp.ne.s32.totalorder %s580, %s596
      %p598 = scmp.eq.s32.totalorder %s40, 0
      %p599 = por %p597, %p598
      %s600 = ssub.s32 %s42, %s49
      %p601 = scmp.eq.s32.totalorder %s600, 0
      %s603 = sadd.s32 %s602, 1
      %s604 = scalar_select %p601, %s602, %s603
      %p607 = pneg %p601
      %p608 = scmp.eq.s32.totalorder %s34, 3
      %p609 = por %p607, %p608
      %p610 = scmp.ne.s32.totalorder %s602, %s605
      %p611 = scmp.eq.s32.totalorder %s34, 0
      %p612 = por %p610, %p611
      %p613 = scmp.ne.s32.totalorder %s602, %s605
      %p614 = scmp.eq.s32.totalorder %s39, 3
      %p615 = por %p613, %p614
      %p616 = scmp.ne.s32.totalorder %s605, %s606
      %p617 = scmp.eq.s32.totalorder %s39, 0
      %p618 = por %p616, %p617
      %p619 = scmp.ne.s32.totalorder %s605, %s606
      %p620 = scmp.eq.s32.totalorder %s40, 3
      %p621 = por %p619, %p620
      %p623 = scmp.ne.s32.totalorder %s606, %s622
      %p624 = scmp.eq.s32.totalorder %s40, 0
      %p625 = por %p623, %p624
      %s626 = ssub.s32 %s42, %s49
      %p627 = scmp.eq.s32.totalorder %s626, 0
      %s629 = sadd.s32 %s628, 1
      %s630 = scalar_select %p627, %s628, %s629
      %p633 = pneg %p627
      %p634 = scmp.eq.s32.totalorder %s34, 3
      %p635 = por %p633, %p634
      %p636 = scmp.ne.s32.totalorder %s628, %s631
      %p637 = scmp.eq.s32.totalorder %s34, 0
      %p638 = por %p636, %p637
      %p639 = scmp.ne.s32.totalorder %s628, %s631
      %p640 = scmp.eq.s32.totalorder %s39, 3
      %p641 = por %p639, %p640
      %p642 = scmp.ne.s32.totalorder %s631, %s632
      %p643 = scmp.eq.s32.totalorder %s39, 0
      %p644 = por %p642, %p643
      %p645 = scmp.ne.s32.totalorder %s631, %s632
      %p646 = scmp.eq.s32.totalorder %s40, 3
      %p647 = por %p645, %p646
      %p649 = scmp.ne.s32.totalorder %s632, %s648
      %p650 = scmp.eq.s32.totalorder %s40, 0
      %p651 = por %p649, %p650
      %s652 = ssub.s32 %s42, %s49
      %p653 = scmp.eq.s32.totalorder %s652, 0
      %s655 = sadd.s32 %s654, 1
      %s656 = scalar_select %p653, %s654, %s655
      %p659 = pneg %p653
      %p660 = scmp.eq.s32.totalorder %s34, 3
      %p661 = por %p659, %p660
      %p662 = scmp.ne.s32.totalorder %s654, %s657
      %p663 = scmp.eq.s32.totalorder %s34, 0
      %p664 = por %p662, %p663
      %p665 = scmp.ne.s32.totalorder %s654, %s657
      %p666 = scmp.eq.s32.totalorder %s39, 3
      %p667 = por %p665, %p666
      %p668 = scmp.ne.s32.totalorder %s657, %s658
      %p669 = scmp.eq.s32.totalorder %s39, 0
      %p670 = por %p668, %p669
      %p671 = scmp.ne.s32.totalorder %s657, %s658
      %p672 = scmp.eq.s32.totalorder %s40, 3
      %p673 = por %p671, %p672
      %p675 = scmp.ne.s32.totalorder %s658, %s674
      %p676 = scmp.eq.s32.totalorder %s40, 0
      %p677 = por %p675, %p676
      %s679 = sadd.s32 %s678, 1
      %p682 = scmp.eq.s32.totalorder %s34, 3
      %p683 = scmp.ne.s32.totalorder %s678, %s680
      %p684 = scmp.eq.s32.totalorder %s34, 0
      %p685 = por %p683, %p684
      %p686 = scmp.ne.s32.totalorder %s678, %s680
      %p687 = scmp.eq.s32.totalorder %s39, 3
      %p688 = por %p686, %p687
      %p689 = scmp.ne.s32.totalorder %s680, %s681
      %p690 = scmp.eq.s32.totalorder %s39, 0
      %p691 = por %p689, %p690
      %p692 = scmp.ne.s32.totalorder %s680, %s681
      %p693 = scmp.eq.s32.totalorder %s40, 3
      %p694 = por %p692, %p693
      %p696 = scmp.ne.s32.totalorder %s681, %s695
      %p697 = scmp.eq.s32.totalorder %s40, 0
      %p698 = por %p696, %p697
      %s700 = sadd.s32 %s699, 1
      %p703 = scmp.eq.s32.totalorder %s34, 3
      %p704 = scmp.ne.s32.totalorder %s699, %s701
      %p705 = scmp.eq.s32.totalorder %s34, 0
      %p706 = por %p704, %p705
      %p707 = scmp.ne.s32.totalorder %s699, %s701
      %p708 = scmp.eq.s32.totalorder %s39, 3
      %p709 = por %p707, %p708
      %p710 = scmp.ne.s32.totalorder %s701, %s702
      %p711 = scmp.eq.s32.totalorder %s39, 0
      %p712 = por %p710, %p711
      %p713 = scmp.ne.s32.totalorder %s701, %s702
      %p714 = scmp.eq.s32.totalorder %s40, 3
      %p715 = por %p713, %p714
      %p717 = scmp.ne.s32.totalorder %s702, %s716
      %p718 = scmp.eq.s32.totalorder %s40, 0
      %p719 = por %p717, %p718
      %s720 = ssub.s32 %s41, %s53
      %p721 = scmp.eq.s32.totalorder %s720, 0
      %s723 = sadd.s32 %s722, 1
      %s724 = scalar_select %p721, %s722, %s723
      %p727 = pneg %p721
      %p728 = scmp.eq.s32.totalorder %s34, 3
      %p729 = por %p727, %p728
      %p730 = scmp.ne.s32.totalorder %s722, %s725
      %p731 = scmp.eq.s32.totalorder %s34, 0
      %p732 = por %p730, %p731
      %p733 = scmp.ne.s32.totalorder %s722, %s725
      %p734 = scmp.eq.s32.totalorder %s39, 3
      %p735 = por %p733, %p734
      %p736 = scmp.ne.s32.totalorder %s725, %s726
      %p737 = scmp.eq.s32.totalorder %s39, 0
      %p738 = por %p736, %p737
      %p739 = scmp.ne.s32.totalorder %s725, %s726
      %p740 = scmp.eq.s32.totalorder %s40, 3
      %p741 = por %p739, %p740
      %p743 = scmp.ne.s32.totalorder %s726, %s742
      %p744 = scmp.eq.s32.totalorder %s40, 0
      %p745 = por %p743, %p744
      %p746 = scmp.le.s32.totalorder 1, %s34
      %p747 = scmp.lt.s32.totalorder %s34, 5
      %p748 = pnand %p746, %p747
      %p749 = pneg %p748
      // Predicated region
      $region9: #{transformer_model_forward.4} parent=5 // pred_check
        _
      $region10: #{transformer_model_forward.4} parent=5 // pred_check_branch
        %751 = sbr.rel (%p748) target = $region12
      $region11: #{transformer_model_forward.4} parent=5 // pred_region
        %s752 = ssub.s32 %s34, 1
        // Predicated region
        $region13: #{transformer_model_forward.4} parent=11 // pred_check
          %p753 = pneg %p691
        $region14: #{transformer_model_forward.4} parent=11 // pred_check_branch
          %755 = sbr.rel (%p753) target = $region16
        $region15: #{transformer_model_forward.4} parent=11 // pred_region
          %s757 = ssub.s32 16, 16
          %758 = vsyncadd [#allocation4], %s757
          %s760 = sshll.u32 [#allocation3], 4
          %s761 = int_to_ptr.vmem [resolvable:$true] %s760
          %763 = dma.hbm_to_vmem [thread:$0]  %s24, 16, %s761, [#allocation4]
        $region16: #{transformer_model_forward.4} parent=11 // pred_fallthru
          _
        // Predicated region
        $region17: #{transformer_model_forward.4} parent=11 // pred_check
          %p764 = pneg %p712
        $region18: #{transformer_model_forward.4} parent=11 // pred_check_branch
          %766 = sbr.rel (%p764) target = $region20
        $region19: #{transformer_model_forward.4} parent=11 // pred_region
          %s768 = ssub.s32 16, 16
          %769 = vsyncadd [#allocation6], %s768
          %s771 = sshll.u32 [#allocation5], 4
          %s772 = int_to_ptr.vmem [resolvable:$true] %s771
          %774 = dma.hbm_to_vmem [thread:$0]  %s25, 16, %s772, [#allocation6]
        $region20: #{transformer_model_forward.4} parent=11 // pred_fallthru
          _
      $region12: #{transformer_model_forward.4} parent=5 // pred_fallthru
        _
      %p775 = scmp.lt.s32.totalorder %s34, 4
      // Predicated region
      $region21: #{transformer_model_forward.4} parent=5 // pred_check
        %p776 = pneg %p775
      $region22: #{transformer_model_forward.4} parent=5 // pred_check_branch
        %778 = sbr.rel (%p776) target = $region24
      $region23: #{transformer_model_forward.4} parent=5 // pred_region
        // Predicated region
        $region25: #{transformer_model_forward.4} parent=23 // pred_check
          %p779 = pneg %p66
        $region26: #{transformer_model_forward.4} parent=23 // pred_check_branch
          %781 = sbr.rel (%p779) target = $region28
        $region27: #{transformer_model_forward.4} parent=23 // pred_region
          %p782 = scmp.lt.s32.totalorder %s41, 1
          %s783 = scalar_select %p782, %s41, 1
          %s784 = smul.addr %s783, 8
          %s785 = scalar_lea.vmem %s0, %s784
        $region28: #{transformer_model_forward.4} parent=23 // pred_fallthru
          _
        // Predicated region
        $region29: #{transformer_model_forward.4} parent=23 // pred_check
          %p786 = pneg %p92
        $region30: #{transformer_model_forward.4} parent=23 // pred_check_branch
          %788 = sbr.rel (%p786) target = $region32
        $region31: #{transformer_model_forward.4} parent=23 // pred_region
          %p789 = scmp.lt.s32.totalorder %s41, 1
          %s790 = scalar_select %p789, %s41, 1
          %s791 = smul.addr %s790, 8
          %s792 = scalar_lea.vmem %s1, %s791
        $region32: #{transformer_model_forward.4} parent=23 // pred_fallthru
          _
        // Predicated region
        $region33: #{transformer_model_forward.4} parent=23 // pred_check
          %p793 = pneg %p118
        $region34: #{transformer_model_forward.4} parent=23 // pred_check_branch
          %795 = sbr.rel (%p793) target = $region36
        $region35: #{transformer_model_forward.4} parent=23 // pred_region
          %p796 = scmp.lt.s32.totalorder %s42, 1
          %s797 = scalar_select %p796, %s42, 1
          %s798 = smul.addr %s797, 4
          %s799 = smul.addr %s798, 4
          %s800 = scalar_lea.vmem %s2, %s799
        $region36: #{transformer_model_forward.4} parent=23 // pred_fallthru
          _
        // Predicated region
        $region37: #{transformer_model_forward.4} parent=23 // pred_check
          %p801 = pneg %p144
        $region38: #{transformer_model_forward.4} parent=23 // pred_check_branch
          %803 = sbr.rel (%p801) target = $region40
        $region39: #{transformer_model_forward.4} parent=23 // pred_region
          %p804 = scmp.lt.s32.totalorder %s42, 1
          %s805 = scalar_select %p804, %s42, 1
          %s806 = scalar_lea.vmem %s3, %s805
        $region40: #{transformer_model_forward.4} parent=23 // pred_fallthru
          _
        // Predicated region
        $region41: #{transformer_model_forward.4} parent=23 // pred_check
          %p807 = pneg %p170
        $region42: #{transformer_model_forward.4} parent=23 // pred_check_branch
          %809 = sbr.rel (%p807) target = $region44
        $region43: #{transformer_model_forward.4} parent=23 // pred_region
          %p810 = scmp.lt.s32.totalorder %s42, 1
          %s811 = scalar_select %p810, %s42, 1
          %s812 = smul.addr %s811, 4
          %s813 = smul.addr %s812, 4
          %s814 = scalar_lea.vmem %s4, %s813
        $region44: #{transformer_model_forward.4} parent=23 // pred_fallthru
          _
        // Predicated region
        $region45: #{transformer_model_forward.4} parent=23 // pred_check
          %p815 = pneg %p196
        $region46: #{transformer_model_forward.4} parent=23 // pred_check_branch
          %817 = sbr.rel (%p815) target = $region48
        $region47: #{transformer_model_forward.4} parent=23 // pred_region
          %p818 = scmp.lt.s32.totalorder %s42, 1
          %s819 = scalar_select %p818, %s42, 1
          %s820 = scalar_lea.vmem %s5, %s819
        $region48: #{transformer_model_forward.4} parent=23 // pred_fallthru
          _
        // Predicated region
        $region49: #{transformer_model_forward.4} parent=23 // pred_check
          %p821 = pneg %p222
        $region50: #{transformer_model_forward.4} parent=23 // pred_check_branch
          %823 = sbr.rel (%p821) target = $region52
        $region51: #{transformer_model_forward.4} parent=23 // pred_region
          %p824 = scmp.lt.s32.totalorder %s42, 1
          %s825 = scalar_select %p824, %s42, 1
          %s826 = smul.addr %s825, 4
          %s827 = smul.addr %s826, 4
          %s828 = scalar_lea.vmem %s6, %s827
        $region52: #{transformer_model_forward.4} parent=23 // pred_fallthru
          _
        // Predicated region
        $region53: #{transformer_model_forward.4} parent=23 // pred_check
          %p829 = pneg %p248
        $region54: #{transformer_model_forward.4} parent=23 // pred_check_branch
          %831 = sbr.rel (%p829) target = $region56
        $region55: #{transformer_model_forward.4} parent=23 // pred_region
          %p832 = scmp.lt.s32.totalorder %s42, 1
          %s833 = scalar_select %p832, %s42, 1
          %s834 = scalar_lea.vmem %s7, %s833
        $region56: #{transformer_model_forward.4} parent=23 // pred_fallthru
          _
        // Predicated region
        $region57: #{transformer_model_forward.4} parent=23 // pred_check
          %p835 = pneg %p274
        $region58: #{transformer_model_forward.4} parent=23 // pred_check_branch
          %837 = sbr.rel (%p835) target = $region60
        $region59: #{transformer_model_forward.4} parent=23 // pred_region
          %p838 = scmp.lt.s32.totalorder %s42, 1
          %s839 = scalar_select %p838, %s42, 1
          %s840 = scalar_lea.vmem %s8, %s839
        $region60: #{transformer_model_forward.4} parent=23 // pred_fallthru
          _
        // Predicated region
        $region61: #{transformer_model_forward.4} parent=23 // pred_check
          %p841 = pneg %p300
        $region62: #{transformer_model_forward.4} parent=23 // pred_check_branch
          %843 = sbr.rel (%p841) target = $region64
        $region63: #{transformer_model_forward.4} parent=23 // pred_region
          %p844 = scmp.lt.s32.totalorder %s42, 1
          %s845 = scalar_select %p844, %s42, 1
          %s846 = scalar_lea.vmem %s9, %s845
        $region64: #{transformer_model_forward.4} parent=23 // pred_fallthru
          _
        // Predicated region
        $region65: #{transformer_model_forward.4} parent=23 // pred_check
          %p847 = pneg %p326
        $region66: #{transformer_model_forward.4} parent=23 // pred_check_branch
          %849 = sbr.rel (%p847) target = $region68
        $region67: #{transformer_model_forward.4} parent=23 // pred_region
          %p850 = scmp.lt.s32.totalorder %s42, 1
          %s851 = scalar_select %p850, %s42, 1
          %s852 = smul.addr %s851, 4
          %s853 = smul.addr %s852, 4
          %s854 = scalar_lea.vmem %s10, %s853
        $region68: #{transformer_model_forward.4} parent=23 // pred_fallthru
          _
        // Predicated region
        $region69: #{transformer_model_forward.4} parent=23 // pred_check
          %p855 = pneg %p352
        $region70: #{transformer_model_forward.4} parent=23 // pred_check_branch
          %857 = sbr.rel (%p855) target = $region72
        $region71: #{transformer_model_forward.4} parent=23 // pred_region
          %p858 = scmp.lt.s32.totalorder %s42, 1
          %s859 = scalar_select %p858, %s42, 1
          %s860 = scalar_lea.vmem %s11, %s859
        $region72: #{transformer_model_forward.4} parent=23 // pred_fallthru
          _
        // Predicated region
        $region73: #{transformer_model_forward.4} parent=23 // pred_check
          %p861 = pneg %p378
        $region74: #{transformer_model_forward.4} parent=23 // pred_check_branch
          %863 = sbr.rel (%p861) target = $region76
        $region75: #{transformer_model_forward.4} parent=23 // pred_region
          %p864 = scmp.lt.s32.totalorder %s42, 1
          %s865 = scalar_select %p864, %s42, 1
          %s866 = smul.addr %s865, 4
          %s867 = smul.addr %s866, 4
          %s868 = scalar_lea.vmem %s12, %s867
        $region76: #{transformer_model_forward.4} parent=23 // pred_fallthru
          _
        // Predicated region
        $region77: #{transformer_model_forward.4} parent=23 // pred_check
          %p869 = pneg %p404
        $region78: #{transformer_model_forward.4} parent=23 // pred_check_branch
          %871 = sbr.rel (%p869) target = $region80
        $region79: #{transformer_model_forward.4} parent=23 // pred_region
          %p872 = scmp.lt.s32.totalorder %s42, 1
          %s873 = scalar_select %p872, %s42, 1
          %s874 = scalar_lea.vmem %s13, %s873
        $region80: #{transformer_model_forward.4} parent=23 // pred_fallthru
          _
        // Predicated region
        $region81: #{transformer_model_forward.4} parent=23 // pred_check
          %p875 = pneg %p430
        $region82: #{transformer_model_forward.4} parent=23 // pred_check_branch
          %877 = sbr.rel (%p875) target = $region84
        $region83: #{transformer_model_forward.4} parent=23 // pred_region
          %p878 = scmp.lt.s32.totalorder %s42, 1
          %s879 = scalar_select %p878, %s42, 1
          %s880 = smul.addr %s879, 4
          %s881 = smul.addr %s880, 4
          %s882 = scalar_lea.vmem %s14, %s881
        $region84: #{transformer_model_forward.4} parent=23 // pred_fallthru
          _
        // Predicated region
        $region85: #{transformer_model_forward.4} parent=23 // pred_check
          %p883 = pneg %p456
        $region86: #{transformer_model_forward.4} parent=23 // pred_check_branch
          %885 = sbr.rel (%p883) target = $region88
        $region87: #{transformer_model_forward.4} parent=23 // pred_region
          %p886 = scmp.lt.s32.totalorder %s42, 1
          %s887 = scalar_select %p886, %s42, 1
          %s888 = scalar_lea.vmem %s15, %s887
        $region88: #{transformer_model_forward.4} parent=23 // pred_fallthru
          _
        // Predicated region
        $region89: #{transformer_model_forward.4} parent=23 // pred_check
          %p889 = pneg %p482
        $region90: #{transformer_model_forward.4} parent=23 // pred_check_branch
          %891 = sbr.rel (%p889) target = $region92
        $region91: #{transformer_model_forward.4} parent=23 // pred_region
          %p892 = scmp.lt.s32.totalorder %s42, 1
          %s893 = scalar_select %p892, %s42, 1
          %s894 = scalar_lea.vmem %s16, %s893
        $region92: #{transformer_model_forward.4} parent=23 // pred_fallthru
          _
        // Predicated region
        $region93: #{transformer_model_forward.4} parent=23 // pred_check
          %p895 = pneg %p508
        $region94: #{transformer_model_forward.4} parent=23 // pred_check_branch
          %897 = sbr.rel (%p895) target = $region96
        $region95: #{transformer_model_forward.4} parent=23 // pred_region
          %p898 = scmp.lt.s32.totalorder %s42, 1
          %s899 = scalar_select %p898, %s42, 1
          %s900 = scalar_lea.vmem %s17, %s899
        $region96: #{transformer_model_forward.4} parent=23 // pred_fallthru
          _
        // Predicated region
        $region97: #{transformer_model_forward.4} parent=23 // pred_check
          %p901 = pneg %p534
        $region98: #{transformer_model_forward.4} parent=23 // pred_check_branch
          %903 = sbr.rel (%p901) target = $region100
        $region99: #{transformer_model_forward.4} parent=23 // pred_region
          %p904 = scmp.lt.s32.totalorder %s42, 1
          %s905 = scalar_select %p904, %s42, 1
          %s906 = smul.addr %s905, 4
          %s907 = smul.addr %s906, 4
          %s908 = scalar_lea.vmem %s18, %s907
        $region100: #{transformer_model_forward.4} parent=23 // pred_fallthru
          _
        // Predicated region
        $region101: #{transformer_model_forward.4} parent=23 // pred_check
          %p909 = pneg %p560
        $region102: #{transformer_model_forward.4} parent=23 // pred_check_branch
          %911 = sbr.rel (%p909) target = $region104
        $region103: #{transformer_model_forward.4} parent=23 // pred_region
          %p912 = scmp.lt.s32.totalorder %s42, 1
          %s913 = scalar_select %p912, %s42, 1
          %s914 = scalar_lea.vmem %s19, %s913
        $region104: #{transformer_model_forward.4} parent=23 // pred_fallthru
          _
        // Predicated region
        $region105: #{transformer_model_forward.4} parent=23 // pred_check
          %p915 = pneg %p586
        $region106: #{transformer_model_forward.4} parent=23 // pred_check_branch
          %917 = sbr.rel (%p915) target = $region108
        $region107: #{transformer_model_forward.4} parent=23 // pred_region
          %p918 = scmp.lt.s32.totalorder %s42, 1
          %s919 = scalar_select %p918, %s42, 1
          %s920 = smul.addr %s919, 8
          %s921 = smul.addr %s920, 4
          %s922 = scalar_lea.vmem %s20, %s921
        $region108: #{transformer_model_forward.4} parent=23 // pred_fallthru
          _
        // Predicated region
        $region109: #{transformer_model_forward.4} parent=23 // pred_check
          %p923 = pneg %p612
        $region110: #{transformer_model_forward.4} parent=23 // pred_check_branch
          %925 = sbr.rel (%p923) target = $region112
        $region111: #{transformer_model_forward.4} parent=23 // pred_region
          %p926 = scmp.lt.s32.totalorder %s42, 1
          %s927 = scalar_select %p926, %s42, 1
          %s928 = scalar_lea.vmem %s21, %s927
        $region112: #{transformer_model_forward.4} parent=23 // pred_fallthru
          _
        // Predicated region
        $region113: #{transformer_model_forward.4} parent=23 // pred_check
          %p929 = pneg %p638
        $region114: #{transformer_model_forward.4} parent=23 // pred_check_branch
          %931 = sbr.rel (%p929) target = $region116
        $region115: #{transformer_model_forward.4} parent=23 // pred_region
          %p932 = scmp.lt.s32.totalorder %s42, 1
          %s933 = scalar_select %p932, %s42, 1
          %s934 = scalar_lea.vmem %s22, %s933
        $region116: #{transformer_model_forward.4} parent=23 // pred_fallthru
          _
        // Predicated region
        $region117: #{transformer_model_forward.4} parent=23 // pred_check
          %p935 = pneg %p664
        $region118: #{transformer_model_forward.4} parent=23 // pred_check_branch
          %937 = sbr.rel (%p935) target = $region120
        $region119: #{transformer_model_forward.4} parent=23 // pred_region
          %p938 = scmp.lt.s32.totalorder %s42, 1
          %s939 = scalar_select %p938, %s42, 1
          %s940 = scalar_lea.vmem %s23, %s939
        $region120: #{transformer_model_forward.4} parent=23 // pred_fallthru
          _
      $region24: #{transformer_model_forward.4} parent=5 // pred_fallthru
        _
      %p941 = scmp.le.s32.totalorder 1, %s34
      %p942 = scmp.lt.s32.totalorder %s34, 5
      %p943 = pnand %p941, %p942
      %p944 = pneg %p943
      // Predicated region
      $region121: #{transformer_model_forward.4} parent=5 // pred_check
        _
      $region122: #{transformer_model_forward.4} parent=5 // pred_check_branch
        %946 = sbr.rel (%p943) target = $region124
      $region123: #{transformer_model_forward.4} parent=5 // pred_region
        %s947 = ssub.s32 %s34, 1
        // Predicated region
        $region125: #{transformer_model_forward.4} parent=123 // pred_check
          %p948 = pneg %p691
        $region126: #{transformer_model_forward.4} parent=123 // pred_check_branch
          %950 = sbr.rel (%p948) target = $region128
        $region127: #{transformer_model_forward.4} parent=123 // pred_region
          %951 = dma.done [#allocation4], 16
        $region128: #{transformer_model_forward.4} parent=123 // pred_fallthru
          _
        // Predicated region
        $region129: #{transformer_model_forward.4} parent=123 // pred_check
          %p952 = pneg %p712
        $region130: #{transformer_model_forward.4} parent=123 // pred_check_branch
          %954 = sbr.rel (%p952) target = $region132
        $region131: #{transformer_model_forward.4} parent=123 // pred_region
          %955 = dma.done [#allocation6], 16
        $region132: #{transformer_model_forward.4} parent=123 // pred_fallthru
          _
        %p956 = scmp.lt.s32.totalorder %s43, 1
        %s957 = scalar_select %p956, %s43, 1
        %s958 = smul.addr %s957, 8
        %s959 = scalar_lea.vmem %s0, %s958
        %p960 = pneg %p72
        %p961 = pneg %p69
        %p962 = scmp.lt.s32.totalorder %s43, 1
        %s963 = scalar_select %p962, %s43, 1
        %s964 = smul.addr %s963, 8
        %s965 = scalar_lea.vmem %s1, %s964
        %p966 = pneg %p98
        %p967 = pneg %p95
        %p968 = scmp.lt.s32.totalorder %s44, 1
        %s969 = scalar_select %p968, %s44, 1
        %s970 = smul.addr %s969, 4
        %s971 = smul.addr %s970, 4
        %s972 = scalar_lea.vmem %s2, %s971
        %p973 = pneg %p124
        %p974 = pneg %p121
        %p975 = scmp.lt.s32.totalorder %s44, 1
        %s976 = scalar_select %p975, %s44, 1
        %s977 = scalar_lea.vmem %s3, %s976
        %p978 = pneg %p150
        %p979 = pneg %p147
        %p980 = scmp.lt.s32.totalorder %s44, 1
        %s981 = scalar_select %p980, %s44, 1
        %s982 = smul.addr %s981, 4
        %s983 = smul.addr %s982, 4
        %s984 = scalar_lea.vmem %s4, %s983
        %p985 = pneg %p176
        %p986 = pneg %p173
        %p987 = scmp.lt.s32.totalorder %s44, 1
        %s988 = scalar_select %p987, %s44, 1
        %s989 = scalar_lea.vmem %s5, %s988
        %p990 = pneg %p202
        %p991 = pneg %p199
        %p992 = scmp.lt.s32.totalorder %s44, 1
        %s993 = scalar_select %p992, %s44, 1
        %s994 = smul.addr %s993, 4
        %s995 = smul.addr %s994, 4
        %s996 = scalar_lea.vmem %s6, %s995
        %p997 = pneg %p228
        %p998 = pneg %p225
        %p999 = scmp.lt.s32.totalorder %s44, 1
        %s1000 = scalar_select %p999, %s44, 1
        %s1001 = scalar_lea.vmem %s7, %s1000
        %p1002 = pneg %p254
        %p1003 = pneg %p251
        %p1004 = scmp.lt.s32.totalorder %s44, 1
        %s1005 = scalar_select %p1004, %s44, 1
        %s1006 = scalar_lea.vmem %s8, %s1005
        %p1007 = pneg %p280
        %p1008 = pneg %p277
        %p1009 = scmp.lt.s32.totalorder %s44, 1
        %s1010 = scalar_select %p1009, %s44, 1
        %s1011 = scalar_lea.vmem %s9, %s1010
        %p1012 = pneg %p306
        %p1013 = pneg %p303
        %p1014 = scmp.lt.s32.totalorder %s44, 1
        %s1015 = scalar_select %p1014, %s44, 1
        %s1016 = smul.addr %s1015, 4
        %s1017 = smul.addr %s1016, 4
        %s1018 = scalar_lea.vmem %s10, %s1017
        %p1019 = pneg %p332
        %p1020 = pneg %p329
        %p1021 = scmp.lt.s32.totalorder %s44, 1
        %s1022 = scalar_select %p1021, %s44, 1
        %s1023 = scalar_lea.vmem %s11, %s1022
        %p1024 = pneg %p358
        %p1025 = pneg %p355
        %p1026 = scmp.lt.s32.totalorder %s44, 1
        %s1027 = scalar_select %p1026, %s44, 1
        %s1028 = smul.addr %s1027, 4
        %s1029 = smul.addr %s1028, 4
        %s1030 = scalar_lea.vmem %s12, %s1029
        %p1031 = pneg %p384
        %p1032 = pneg %p381
        %p1033 = scmp.lt.s32.totalorder %s44, 1
        %s1034 = scalar_select %p1033, %s44, 1
        %s1035 = scalar_lea.vmem %s13, %s1034
        %p1036 = pneg %p410
        %p1037 = pneg %p407
        %p1038 = scmp.lt.s32.totalorder %s44, 1
        %s1039 = scalar_select %p1038, %s44, 1
        %s1040 = smul.addr %s1039, 4
        %s1041 = smul.addr %s1040, 4
        %s1042 = scalar_lea.vmem %s14, %s1041
        %p1043 = pneg %p436
        %p1044 = pneg %p433
        %p1045 = scmp.lt.s32.totalorder %s44, 1
        %s1046 = scalar_select %p1045, %s44, 1
        %s1047 = scalar_lea.vmem %s15, %s1046
        %p1048 = pneg %p462
        %p1049 = pneg %p459
        %p1050 = scmp.lt.s32.totalorder %s44, 1
        %s1051 = scalar_select %p1050, %s44, 1
        %s1052 = scalar_lea.vmem %s16, %s1051
        %p1053 = pneg %p488
        %p1054 = pneg %p485
        %p1055 = scmp.lt.s32.totalorder %s44, 1
        %s1056 = scalar_select %p1055, %s44, 1
        %s1057 = scalar_lea.vmem %s17, %s1056
        %p1058 = pneg %p514
        %p1059 = pneg %p511
        %p1060 = scmp.lt.s32.totalorder %s44, 1
        %s1061 = scalar_select %p1060, %s44, 1
        %s1062 = smul.addr %s1061, 4
        %s1063 = smul.addr %s1062, 4
        %s1064 = scalar_lea.vmem %s18, %s1063
        %p1065 = pneg %p540
        %p1066 = pneg %p537
        %p1067 = scmp.lt.s32.totalorder %s44, 1
        %s1068 = scalar_select %p1067, %s44, 1
        %s1069 = scalar_lea.vmem %s19, %s1068
        %p1070 = pneg %p566
        %p1071 = pneg %p563
        %p1072 = scmp.lt.s32.totalorder %s44, 1
        %s1073 = scalar_select %p1072, %s44, 1
        %s1074 = smul.addr %s1073, 8
        %s1075 = smul.addr %s1074, 4
        %s1076 = scalar_lea.vmem %s20, %s1075
        %p1077 = pneg %p592
        %p1078 = pneg %p589
        %p1079 = scmp.lt.s32.totalorder %s44, 1
        %s1080 = scalar_select %p1079, %s44, 1
        %s1081 = scalar_lea.vmem %s21, %s1080
        %p1082 = pneg %p618
        %p1083 = pneg %p615
        %p1084 = scmp.lt.s32.totalorder %s44, 1
        %s1085 = scalar_select %p1084, %s44, 1
        %s1086 = scalar_lea.vmem %s22, %s1085
        %p1087 = pneg %p644
        %p1088 = pneg %p641
        %p1089 = scmp.lt.s32.totalorder %s44, 1
        %s1090 = scalar_select %p1089, %s44, 1
        %s1091 = scalar_lea.vmem %s23, %s1090
        %p1092 = pneg %p670
        %p1093 = pneg %p667
        %p1094 = pneg %p691
        %p1095 = pneg %p688
        %p1096 = pneg %p712
        %p1097 = pneg %p709
        %p1098 = pneg %p738
        %p1099 = pneg %p735
        %p1100 = scmp.lt.s32.totalorder %s43, 1
        %s1101 = scalar_select %p1100, %s43, 1
        %s1102 = smul.addr %s1101, 8
        %s1103 = scalar_lea.vmem %s26, %s1102
        %p1104 = scmp.lt.s32.totalorder %s43, 1
        %s1105 = scalar_select %p1104, %s43, 1
        %s1106 = smul.addr %s1105, 8
        %s1107 = scalar_lea.vmem %s0, %s1106
        %p1108 = scmp.lt.s32.totalorder %s43, 1
        %s1109 = scalar_select %p1108, %s43, 1
        %s1110 = smul.addr %s1109, 8
        %s1111 = scalar_lea.vmem %s1, %s1110
        %p1112 = scmp.lt.s32.totalorder %s44, 1
        %s1113 = scalar_select %p1112, %s44, 1
        %s1114 = smul.addr %s1113, 4
        %s1115 = smul.addr %s1114, 4
        %s1116 = scalar_lea.vmem %s2, %s1115
        %p1117 = scmp.lt.s32.totalorder %s44, 1
        %s1118 = scalar_select %p1117, %s44, 1
        %s1119 = scalar_lea.vmem %s3, %s1118
        %p1120 = scmp.lt.s32.totalorder %s44, 1
        %s1121 = scalar_select %p1120, %s44, 1
        %s1122 = smul.addr %s1121, 4
        %s1123 = smul.addr %s1122, 4
        %s1124 = scalar_lea.vmem %s4, %s1123
        %p1125 = scmp.lt.s32.totalorder %s44, 1
        %s1126 = scalar_select %p1125, %s44, 1
        %s1127 = scalar_lea.vmem %s5, %s1126
        %p1128 = scmp.lt.s32.totalorder %s44, 1
        %s1129 = scalar_select %p1128, %s44, 1
        %s1130 = smul.addr %s1129, 4
        %s1131 = smul.addr %s1130, 4
        %s1132 = scalar_lea.vmem %s6, %s1131
        %p1133 = scmp.lt.s32.totalorder %s44, 1
        %s1134 = scalar_select %p1133, %s44, 1
        %s1135 = scalar_lea.vmem %s7, %s1134
        %p1136 = scmp.lt.s32.totalorder %s44, 1
        %s1137 = scalar_select %p1136, %s44, 1
        %s1138 = scalar_lea.vmem %s8, %s1137
        %p1139 = scmp.lt.s32.totalorder %s44, 1
        %s1140 = scalar_select %p1139, %s44, 1
        %s1141 = scalar_lea.vmem %s9, %s1140
        %p1142 = scmp.lt.s32.totalorder %s44, 1
        %s1143 = scalar_select %p1142, %s44, 1
        %s1144 = smul.addr %s1143, 4
        %s1145 = smul.addr %s1144, 4
        %s1146 = scalar_lea.vmem %s10, %s1145
        %p1147 = scmp.lt.s32.totalorder %s44, 1
        %s1148 = scalar_select %p1147, %s44, 1
        %s1149 = scalar_lea.vmem %s11, %s1148
        %p1150 = scmp.lt.s32.totalorder %s44, 1
        %s1151 = scalar_select %p1150, %s44, 1
        %s1152 = smul.addr %s1151, 4
        %s1153 = smul.addr %s1152, 4
        %s1154 = scalar_lea.vmem %s12, %s1153
        %p1155 = scmp.lt.s32.totalorder %s44, 1
        %s1156 = scalar_select %p1155, %s44, 1
        %s1157 = scalar_lea.vmem %s13, %s1156
        %p1158 = scmp.lt.s32.totalorder %s44, 1
        %s1159 = scalar_select %p1158, %s44, 1
        %s1160 = smul.addr %s1159, 4
        %s1161 = smul.addr %s1160, 4
        %s1162 = scalar_lea.vmem %s14, %s1161
        %p1163 = scmp.lt.s32.totalorder %s44, 1
        %s1164 = scalar_select %p1163, %s44, 1
        %s1165 = scalar_lea.vmem %s15, %s1164
        %p1166 = scmp.lt.s32.totalorder %s44, 1
        %s1167 = scalar_select %p1166, %s44, 1
        %s1168 = scalar_lea.vmem %s16, %s1167
        %p1169 = scmp.lt.s32.totalorder %s44, 1
        %s1170 = scalar_select %p1169, %s44, 1
        %s1171 = scalar_lea.vmem %s17, %s1170
        %p1172 = scmp.lt.s32.totalorder %s44, 1
        %s1173 = scalar_select %p1172, %s44, 1
        %s1174 = smul.addr %s1173, 4
        %s1175 = smul.addr %s1174, 4
        %s1176 = scalar_lea.vmem %s18, %s1175
        %p1177 = scmp.lt.s32.totalorder %s44, 1
        %s1178 = scalar_select %p1177, %s44, 1
        %s1179 = scalar_lea.vmem %s19, %s1178
        %p1180 = scmp.lt.s32.totalorder %s44, 1
        %s1181 = scalar_select %p1180, %s44, 1
        %s1182 = smul.addr %s1181, 8
        %s1183 = smul.addr %s1182, 4
        %s1184 = scalar_lea.vmem %s20, %s1183
        %p1185 = scmp.lt.s32.totalorder %s44, 1
        %s1186 = scalar_select %p1185, %s44, 1
        %s1187 = scalar_lea.vmem %s21, %s1186
        %p1188 = scmp.lt.s32.totalorder %s44, 1
        %s1189 = scalar_select %p1188, %s44, 1
        %s1190 = scalar_lea.vmem %s22, %s1189
        %p1191 = scmp.lt.s32.totalorder %s44, 1
        %s1192 = scalar_select %p1191, %s44, 1
        %s1193 = scalar_lea.vmem %s23, %s1192
        %p1194 = scmp.lt.s32.totalorder %s43, 1
        %s1195 = scalar_select %p1194, %s43, 1
        %s1196 = smul.addr %s1195, 8
        %s1197 = scalar_lea.vmem %s26, %s1196
        %p1199 = scmp.eq.s32.totalorder %s44, 0
        // Predicated region
        $region133: #{transformer_model_forward.4} parent=123 // pred_check
          %p1200 = pneg %p1199
        $region134: #{transformer_model_forward.4} parent=123 // pred_check_branch
          %1202 = sbr.rel (%p1200) target = $region136
        $region135: #{transformer_model_forward.4} parent=123 // pred_region
          %v1203 = vld [vmem:[%s1107] sm:$0xff]
          %vm1204 = vcmask 261120
          %1205 = vst.msk [vmem:[#allocation2] sm:$0xff] %vm1204, %v1203
        $region136: #{transformer_model_forward.4} parent=123 // pred_fallthru
          _
        %v1206 = vld [vmem:[#allocation2] sm:$0xff]
        %v1207 = vld [vmem:[%s1111] sm:$0xff]
        %v1208 = vld [vmem:[%s1116] sm:$0xf]
        %v1209 = vld [vmem:[%s1116 + $0x4] sm:$0xf]
        %v1210 = vld [vmem:[%s1116 + $0x8] sm:$0xf]
        %v1211 = vld [vmem:[%s1116 + $0xc] sm:$0xf]
        %v1212 = vld [vmem:[%s1119] sm:$0x1]
        %v1213 = vld [vmem:[%s1124] sm:$0xf]
        %v1214 = vld [vmem:[%s1124 + $0x4] sm:$0xf]
        %v1215 = vld [vmem:[%s1124 + $0x8] sm:$0xf]
        %v1216 = vld [vmem:[%s1124 + $0xc] sm:$0xf]
        %v1217 = vld [vmem:[%s1127] sm:$0x1]
        %v1218 = vld [vmem:[%s1132] sm:$0xf]
        %v1219 = vld [vmem:[%s1132 + $0x4] sm:$0xf]
        %v1220 = vld [vmem:[%s1132 + $0x8] sm:$0xf]
        %v1221 = vld [vmem:[%s1132 + $0xc] sm:$0xf]
        %v1222 = vld [vmem:[%s1135] sm:$0x1]
        %v1223 = vpack.c.bf16 %v1206, %v1206
        %v1225 = vlaneseq
        %v1226 = vshrl.u32 %v1225, 7
        %v1227 = vsub.s32 0, %v1226
        %v1228 = vrot.slane %v1212, %v1227
        %v1234 = vunpack.c.l.b16 %v1208
        %v1235 = vunpack.c.l.b16 %v1209
        %v1236 = vunpack.c.l.b16 %v1210
        %v1237 = vunpack.c.l.b16 %v1211
        %v1238 = vpack.c.b16 %v1235, %v1234
        %v1239 = vpack.c.b16 %v1237, %v1236
        %vm1242 = vcmask 261120
        %v1244 = vsel %vm1242, %v1223, 0
        %1246 = vmatprep.subr.bf16.mxu0 0
        %1247 = vmatpush1.bf16.msra.mxu0 %v1238
        %1248 = vmatprep.subr.bf16.mxu0 0
        %1249 = vmatpush1.bf16.msra.mxu0 %v1239
        %1250 = vmatprep.subr.bf16.mxu0 0
        %1251 = vmatpush1.bf16.msra.mxu0 0
        %1252 = vmatprep.subr.bf16.mxu0 0
        %1253 = vmatpush1.bf16.msra.mxu0 0
        %1254 = vmatprep.subr.bf16.mxu0 0
        %1255 = vmatpush1.bf16.msra.mxu0 0
        %1256 = vmatprep.subr.bf16.mxu0 0
        %1257 = vmatpush1.bf16.msra.mxu0 0
        %1258 = vmatprep.subr.bf16.mxu0 0
        %1259 = vmatpush1.bf16.msra.mxu0 0
        %1260 = vmatprep.subr.bf16.mxu0 0
        %1261 = vmatpush1.bf16.msra.mxu0 0
        %1262 = vmatprep.subr.bf16.mxu0 0
        %1263 = vmatpush1.bf16.msra.mxu0 0
        %1264 = vmatprep.subr.bf16.mxu0 0
        %1265 = vmatpush1.bf16.msra.mxu0 0
        %1266 = vmatprep.subr.bf16.mxu0 0
        %1267 = vmatpush1.bf16.msra.mxu0 0
        %1268 = vmatprep.subr.bf16.mxu0 0
        %1269 = vmatpush1.bf16.msra.mxu0 0
        %1270 = vmatprep.subr.bf16.mxu0 0
        %1271 = vmatpush1.bf16.msra.mxu0 0
        %1272 = vmatprep.subr.bf16.mxu0 0
        %1273 = vmatpush1.bf16.msra.mxu0 0
        %1274 = vmatprep.subr.bf16.mxu0 0
        %1275 = vmatpush1.bf16.msra.mxu0 0
        %1276 = vmatprep.subr.bf16.mxu0 0
        %1277 = vmatpush1.bf16.msra.mxu0 0
        %1278 = vmatprep.mubr.bf16.mxu0 0
        %1279 = vmatmul.mubr.bf16.gmra.mrb[0].mxu0 %v1244
        %v1280 = vpop.f32.mrb[0].mxu0
        %v1281 = vadd.f32 %v1228, %v1280
        %v1282 = vpop.f32.mrb[0].mxu0
        %v1283 = vpop.f32.mrb[0].mxu0
        %v1284 = vpop.f32.mrb[0].mxu0
        %1285 = vdwg.mxu0
        %v1286 = vmul.f32 %v1281, 0.35355338
        %v1288 = vlaneseq
        %v1289 = vshrl.u32 %v1288, 7
        %v1290 = vsub.s32 0, %v1289
        %v1291 = vrot.slane %v1217, %v1290
        %v1297 = vunpack.c.l.b16 %v1213
        %v1298 = vunpack.c.l.b16 %v1214
        %v1299 = vunpack.c.l.b16 %v1215
        %v1300 = vunpack.c.l.b16 %v1216
        %v1301 = vpack.c.b16 %v1298, %v1297
        %v1302 = vpack.c.b16 %v1300, %v1299
        %1305 = vmatprep.subr.bf16.mxu0 0
        %1306 = vmatpush1.bf16.msra.mxu0 %v1301
        %1307 = vmatprep.subr.bf16.mxu0 0
        %1308 = vmatpush1.bf16.msra.mxu0 %v1302
        %1309 = vmatprep.subr.bf16.mxu0 0
        %1310 = vmatpush1.bf16.msra.mxu0 0
        %1311 = vmatprep.subr.bf16.mxu0 0
        %1312 = vmatpush1.bf16.msra.mxu0 0
        %1313 = vmatprep.subr.bf16.mxu0 0
        %1314 = vmatpush1.bf16.msra.mxu0 0
        %1315 = vmatprep.subr.bf16.mxu0 0
        %1316 = vmatpush1.bf16.msra.mxu0 0
        %1317 = vmatprep.subr.bf16.mxu0 0
        %1318 = vmatpush1.bf16.msra.mxu0 0
        %1319 = vmatprep.subr.bf16.mxu0 0
        %1320 = vmatpush1.bf16.msra.mxu0 0
        %1321 = vmatprep.subr.bf16.mxu0 0
        %1322 = vmatpush1.bf16.msra.mxu0 0
        %1323 = vmatprep.subr.bf16.mxu0 0
        %1324 = vmatpush1.bf16.msra.mxu0 0
        %1325 = vmatprep.subr.bf16.mxu0 0
        %1326 = vmatpush1.bf16.msra.mxu0 0
        %1327 = vmatprep.subr.bf16.mxu0 0
        %1328 = vmatpush1.bf16.msra.mxu0 0
        %1329 = vmatprep.subr.bf16.mxu0 0
        %1330 = vmatpush1.bf16.msra.mxu0 0
        %1331 = vmatprep.subr.bf16.mxu0 0
        %1332 = vmatpush1.bf16.msra.mxu0 0
        %1333 = vmatprep.subr.bf16.mxu0 0
        %1334 = vmatpush1.bf16.msra.mxu0 0
        %1335 = vmatprep.subr.bf16.mxu0 0
        %1336 = vmatpush1.bf16.msra.mxu0 0
        %1337 = vmatprep.mubr.bf16.mxu0 0
        %1338 = vmatmul.mubr.bf16.gmra.mrb[0].mxu0 %v1244
        %v1339 = vpop.f32.mrb[0].mxu0
        %v1340 = vadd.f32 %v1291, %v1339
        %v1341 = vpop.f32.mrb[0].mxu0
        %v1342 = vpop.f32.mrb[0].mxu0
        %v1343 = vpop.f32.mrb[0].mxu0
        %1344 = vdwg.mxu0
        %v1345 = vpack.c.bf16 %v1286, %v1286
        %v1346 = vpack.c.bf16 %v1340, %v1340
        %vm1347 = vcmask 64512
        %v1349 = vsel %vm1347, %v1345, 0
        %v1352 = vsel %vm1347, %v1346, 0
        %1354 = vmatprep.subr.bf16.mxu0 0
        %1355 = vmatpush1.bf16.xpose.msra.mxu0 %v1352
        %1356 = vmatprep.subr.bf16.mxu0 0
        %1357 = vmatpush1.bf16.xpose.msra.mxu0 0
        %1358 = vmatprep.subr.bf16.mxu0 0
        %1359 = vmatpush1.bf16.xpose.msra.mxu0 0
        %1360 = vmatprep.subr.bf16.mxu0 0
        %1361 = vmatpush1.bf16.xpose.msra.mxu0 0
        %1362 = vmatprep.subr.bf16.mxu0 0
        %1363 = vmatpush1.bf16.xpose.msra.mxu0 0
        %1364 = vmatprep.subr.bf16.mxu0 0
        %1365 = vmatpush1.bf16.xpose.msra.mxu0 0
        %1366 = vmatprep.subr.bf16.mxu0 0
        %1367 = vmatpush1.bf16.xpose.msra.mxu0 0
        %1368 = vmatprep.subr.bf16.mxu0 0
        %1369 = vmatpush1.bf16.xpose.msra.mxu0 0
        %1370 = vmatprep.subr.bf16.mxu0 0
        %1371 = vmatpush1.bf16.xpose.msra.mxu0 0
        %1372 = vmatprep.subr.bf16.mxu0 0
        %1373 = vmatpush1.bf16.xpose.msra.mxu0 0
        %1374 = vmatprep.subr.bf16.mxu0 0
        %1375 = vmatpush1.bf16.xpose.msra.mxu0 0
        %1376 = vmatprep.subr.bf16.mxu0 0
        %1377 = vmatpush1.bf16.xpose.msra.mxu0 0
        %1378 = vmatprep.subr.bf16.mxu0 0
        %1379 = vmatpush1.bf16.xpose.msra.mxu0 0
        %1380 = vmatprep.subr.bf16.mxu0 0
        %1381 = vmatpush1.bf16.xpose.msra.mxu0 0
        %1382 = vmatprep.subr.bf16.mxu0 0
        %1383 = vmatpush1.bf16.xpose.msra.mxu0 0
        %1384 = vmatprep.subr.bf16.mxu0 0
        %1385 = vmatpush1.bf16.xpose.msra.mxu0 0
        %1386 = vmatprep.mubr.bf16.mxu0 0
        %1387 = vmatmul.mubr.bf16.gmra.mrb[0].mxu0 %v1349
        %v1388 = vpop.f32.mrb[0].mxu0
        %v1389 = vadd.f32 0.0, %v1388
        %v1390 = vpop.f32.mrb[0].mxu0
        %v1391 = vpop.f32.mrb[0].mxu0
        %v1392 = vpop.f32.mrb[0].mxu0
        %1393 = vdwg.mxu0
        %v1394 = vsel %vm1347, %v1389, -inf
        %1395 = vmax.xlane.f32.xlu0 %v1394
        %v1396 = vpop.xlane.xlu0 %1395
        %v1397 = vsub.f32 %v1389, %v1396
        %v1398 = vmul.f32 %v1397, 1.442695
        %v1399 = vpow.pop %v1398
        %v1400 = vsel %vm1347, %v1399, 0.0
        %1401 = vadd.xlane.f32.xlu0 %v1400
        %v1402 = vpop.xlane.xlu0 %1401
        %v1403 = vpack.c.bf16 %v1399, %v1399
        %1405 = vrot.lane.b32.xlu0 %v1346, 96
        %v1406 = vpop.permute.xlu0 %1405
        %v1408 = vsel %vm1347, %v1403, 0
        %vm1410 = vcmask 1043456
        %v1412 = vsel %vm1410, %v1406, 0
        %1414 = vmatprep.subr.bf16.mxu0 0
        %1415 = vmatpush1.bf16.msra.mxu0 %v1412
        %1416 = vmatprep.subr.bf16.mxu0 0
        %1417 = vmatpush1.bf16.msra.mxu0 0
        %1418 = vmatprep.subr.bf16.mxu0 0
        %1419 = vmatpush1.bf16.msra.mxu0 0
        %1420 = vmatprep.subr.bf16.mxu0 0
        %1421 = vmatpush1.bf16.msra.mxu0 0
        %1422 = vmatprep.subr.bf16.mxu0 0
        %1423 = vmatpush1.bf16.msra.mxu0 0
        %1424 = vmatprep.subr.bf16.mxu0 0
        %1425 = vmatpush1.bf16.msra.mxu0 0
        %1426 = vmatprep.subr.bf16.mxu0 0
        %1427 = vmatpush1.bf16.msra.mxu0 0
        %1428 = vmatprep.subr.bf16.mxu0 0
        %1429 = vmatpush1.bf16.msra.mxu0 0
        %1430 = vmatprep.subr.bf16.mxu0 0
        %1431 = vmatpush1.bf16.msra.mxu0 0
        %1432 = vmatprep.subr.bf16.mxu0 0
        %1433 = vmatpush1.bf16.msra.mxu0 0
        %1434 = vmatprep.subr.bf16.mxu0 0
        %1435 = vmatpush1.bf16.msra.mxu0 0
        %1436 = vmatprep.subr.bf16.mxu0 0
        %1437 = vmatpush1.bf16.msra.mxu0 0
        %1438 = vmatprep.subr.bf16.mxu0 0
        %1439 = vmatpush1.bf16.msra.mxu0 0
        %1440 = vmatprep.subr.bf16.mxu0 0
        %1441 = vmatpush1.bf16.msra.mxu0 0
        %1442 = vmatprep.subr.bf16.mxu0 0
        %1443 = vmatpush1.bf16.msra.mxu0 0
        %1444 = vmatprep.subr.bf16.mxu0 0
        %1445 = vmatpush1.bf16.msra.mxu0 0
        %1446 = vmatprep.mubr.bf16.mxu0 0
        %1447 = vmatmul.mubr.bf16.gmra.mrb[0].mxu0 %v1408
        %v1448 = vpop.f32.mrb[0].mxu0
        %v1449 = vadd.f32 0.0, %v1448
        %v1450 = vpop.f32.mrb[0].mxu0
        %v1451 = vpop.f32.mrb[0].mxu0
        %v1452 = vpop.f32.mrb[0].mxu0
        %1453 = vdwg.mxu0
        %v1454 = vrcp.pop %v1402
        %v1455 = vmul.f32 %v1449, %v1454
        %1457 = vrot.lane.b32.xlu0 %v1345, 120
        %v1458 = vpop.permute.xlu0 %1457
        %1459 = vrot.lane.b32.xlu0 %v1346, 120
        %v1460 = vpop.permute.xlu0 %1459
        %v1462 = vsel %vm1347, %v1458, 0
        %v1465 = vsel %vm1347, %v1460, 0
        %1467 = vmatprep.subr.bf16.mxu0 0
        %1468 = vmatpush1.bf16.xpose.msra.mxu0 %v1465
        %1469 = vmatprep.subr.bf16.mxu0 0
        %1470 = vmatpush1.bf16.xpose.msra.mxu0 0
        %1471 = vmatprep.subr.bf16.mxu0 0
        %1472 = vmatpush1.bf16.xpose.msra.mxu0 0
        %1473 = vmatprep.subr.bf16.mxu0 0
        %1474 = vmatpush1.bf16.xpose.msra.mxu0 0
        %1475 = vmatprep.subr.bf16.mxu0 0
        %1476 = vmatpush1.bf16.xpose.msra.mxu0 0
        %1477 = vmatprep.subr.bf16.mxu0 0
        %1478 = vmatpush1.bf16.xpose.msra.mxu0 0
        %1479 = vmatprep.subr.bf16.mxu0 0
        %1480 = vmatpush1.bf16.xpose.msra.mxu0 0
        %1481 = vmatprep.subr.bf16.mxu0 0
        %1482 = vmatpush1.bf16.xpose.msra.mxu0 0
        %1483 = vmatprep.subr.bf16.mxu0 0
        %1484 = vmatpush1.bf16.xpose.msra.mxu0 0
        %1485 = vmatprep.subr.bf16.mxu0 0
        %1486 = vmatpush1.bf16.xpose.msra.mxu0 0
        %1487 = vmatprep.subr.bf16.mxu0 0
        %1488 = vmatpush1.bf16.xpose.msra.mxu0 0
        %1489 = vmatprep.subr.bf16.mxu0 0
        %1490 = vmatpush1.bf16.xpose.msra.mxu0 0
        %1491 = vmatprep.subr.bf16.mxu0 0
        %1492 = vmatpush1.bf16.xpose.msra.mxu0 0
        %1493 = vmatprep.subr.bf16.mxu0 0
        %1494 = vmatpush1.bf16.xpose.msra.mxu0 0
        %1495 = vmatprep.subr.bf16.mxu0 0
        %1496 = vmatpush1.bf16.xpose.msra.mxu0 0
        %1497 = vmatprep.subr.bf16.mxu0 0
        %1498 = vmatpush1.bf16.xpose.msra.mxu0 0
        %1499 = vmatprep.mubr.bf16.mxu0 0
        %1500 = vmatmul.mubr.bf16.gmra.mrb[0].mxu0 %v1462
        %v1501 = vpop.f32.mrb[0].mxu0
        %v1502 = vadd.f32 0.0, %v1501
        %v1503 = vpop.f32.mrb[0].mxu0
        %v1504 = vpop.f32.mrb[0].mxu0
        %v1505 = vpop.f32.mrb[0].mxu0
        %1506 = vdwg.mxu0
        %v1507 = vsel %vm1347, %v1502, -inf
        %1508 = vmax.xlane.f32.xlu0 %v1507
        %v1509 = vpop.xlane.xlu0 %1508
        %v1510 = vsub.f32 %v1502, %v1509
        %v1511 = vmul.f32 %v1510, 1.442695
        %v1512 = vpow.pop %v1511
        %v1513 = vsel %vm1347, %v1512, 0.0
        %1514 = vadd.xlane.f32.xlu0 %v1513
        %v1515 = vpop.xlane.xlu0 %1514
        %v1516 = vpack.c.bf16 %v1512, %v1512
        %1517 = vrot.lane.b32.xlu0 %v1346, 88
        %v1518 = vpop.permute.xlu0 %1517
        %v1520 = vsel %vm1347, %v1516, 0
        %v1523 = vsel %vm1410, %v1518, 0
        %1525 = vmatprep.subr.bf16.mxu0 0
        %1526 = vmatpush1.bf16.msra.mxu0 %v1523
        %1527 = vmatprep.subr.bf16.mxu0 0
        %1528 = vmatpush1.bf16.msra.mxu0 0
        %1529 = vmatprep.subr.bf16.mxu0 0
        %1530 = vmatpush1.bf16.msra.mxu0 0
        %1531 = vmatprep.subr.bf16.mxu0 0
        %1532 = vmatpush1.bf16.msra.mxu0 0
        %1533 = vmatprep.subr.bf16.mxu0 0
        %1534 = vmatpush1.bf16.msra.mxu0 0
        %1535 = vmatprep.subr.bf16.mxu0 0
        %1536 = vmatpush1.bf16.msra.mxu0 0
        %1537 = vmatprep.subr.bf16.mxu0 0
        %1538 = vmatpush1.bf16.msra.mxu0 0
        %1539 = vmatprep.subr.bf16.mxu0 0
        %1540 = vmatpush1.bf16.msra.mxu0 0
        %1541 = vmatprep.subr.bf16.mxu0 0
        %1542 = vmatpush1.bf16.msra.mxu0 0
        %1543 = vmatprep.subr.bf16.mxu0 0
        %1544 = vmatpush1.bf16.msra.mxu0 0
        %1545 = vmatprep.subr.bf16.mxu0 0
        %1546 = vmatpush1.bf16.msra.mxu0 0
        %1547 = vmatprep.subr.bf16.mxu0 0
        %1548 = vmatpush1.bf16.msra.mxu0 0
        %1549 = vmatprep.subr.bf16.mxu0 0
        %1550 = vmatpush1.bf16.msra.mxu0 0
        %1551 = vmatprep.subr.bf16.mxu0 0
        %1552 = vmatpush1.bf16.msra.mxu0 0
        %1553 = vmatprep.subr.bf16.mxu0 0
        %1554 = vmatpush1.bf16.msra.mxu0 0
        %1555 = vmatprep.subr.bf16.mxu0 0
        %1556 = vmatpush1.bf16.msra.mxu0 0
        %1557 = vmatprep.mubr.bf16.mxu0 0
        %1558 = vmatmul.mubr.bf16.gmra.mrb[0].mxu0 %v1520
        %v1559 = vpop.f32.mrb[0].mxu0
        %v1560 = vadd.f32 0.0, %v1559
        %v1561 = vpop.f32.mrb[0].mxu0
        %v1562 = vpop.f32.mrb[0].mxu0
        %v1563 = vpop.f32.mrb[0].mxu0
        %1564 = vdwg.mxu0
        %v1565 = vrcp.pop %v1515
        %v1566 = vmul.f32 %v1560, %v1565
        %1567 = vrot.lane.b32.xlu0 %v1345, 112
        %v1568 = vpop.permute.xlu0 %1567
        %1569 = vrot.lane.b32.xlu0 %v1346, 112
        %v1570 = vpop.permute.xlu0 %1569
        %v1572 = vsel %vm1347, %v1568, 0
        %v1575 = vsel %vm1347, %v1570, 0
        %1577 = vmatprep.subr.bf16.mxu0 0
        %1578 = vmatpush1.bf16.xpose.msra.mxu0 %v1575
        %1579 = vmatprep.subr.bf16.mxu0 0
        %1580 = vmatpush1.bf16.xpose.msra.mxu0 0
        %1581 = vmatprep.subr.bf16.mxu0 0
        %1582 = vmatpush1.bf16.xpose.msra.mxu0 0
        %1583 = vmatprep.subr.bf16.mxu0 0
        %1584 = vmatpush1.bf16.xpose.msra.mxu0 0
        %1585 = vmatprep.subr.bf16.mxu0 0
        %1586 = vmatpush1.bf16.xpose.msra.mxu0 0
        %1587 = vmatprep.subr.bf16.mxu0 0
        %1588 = vmatpush1.bf16.xpose.msra.mxu0 0
        %1589 = vmatprep.subr.bf16.mxu0 0
        %1590 = vmatpush1.bf16.xpose.msra.mxu0 0
        %1591 = vmatprep.subr.bf16.mxu0 0
        %1592 = vmatpush1.bf16.xpose.msra.mxu0 0
        %1593 = vmatprep.subr.bf16.mxu0 0
        %1594 = vmatpush1.bf16.xpose.msra.mxu0 0
        %1595 = vmatprep.subr.bf16.mxu0 0
        %1596 = vmatpush1.bf16.xpose.msra.mxu0 0
        %1597 = vmatprep.subr.bf16.mxu0 0
        %1598 = vmatpush1.bf16.xpose.msra.mxu0 0
        %1599 = vmatprep.subr.bf16.mxu0 0
        %1600 = vmatpush1.bf16.xpose.msra.mxu0 0
        %1601 = vmatprep.subr.bf16.mxu0 0
        %1602 = vmatpush1.bf16.xpose.msra.mxu0 0
        %1603 = vmatprep.subr.bf16.mxu0 0
        %1604 = vmatpush1.bf16.xpose.msra.mxu0 0
        %1605 = vmatprep.subr.bf16.mxu0 0
        %1606 = vmatpush1.bf16.xpose.msra.mxu0 0
        %1607 = vmatprep.subr.bf16.mxu0 0
        %1608 = vmatpush1.bf16.xpose.msra.mxu0 0
        %1609 = vmatprep.mubr.bf16.mxu0 0
        %1610 = vmatmul.mubr.bf16.gmra.mrb[0].mxu0 %v1572
        %v1611 = vpop.f32.mrb[0].mxu0
        %v1612 = vadd.f32 0.0, %v1611
        %v1613 = vpop.f32.mrb[0].mxu0
        %v1614 = vpop.f32.mrb[0].mxu0
        %v1615 = vpop.f32.mrb[0].mxu0
        %1616 = vdwg.mxu0
        %v1617 = vsel %vm1347, %v1612, -inf
        %1618 = vmax.xlane.f32.xlu0 %v1617
        %v1619 = vpop.xlane.xlu0 %1618
        %v1620 = vsub.f32 %v1612, %v1619
        %v1621 = vmul.f32 %v1620, 1.442695
        %v1622 = vpow.pop %v1621
        %v1623 = vsel %vm1347, %v1622, 0.0
        %1624 = vadd.xlane.f32.xlu0 %v1623
        %v1625 = vpop.xlane.xlu0 %1624
        %v1626 = vpack.c.bf16 %v1622, %v1622
        %1627 = vrot.lane.b32.xlu0 %v1346, 80
        %v1628 = vpop.permute.xlu0 %1627
        %v1630 = vsel %vm1347, %v1626, 0
        %v1633 = vsel %vm1410, %v1628, 0
        %1635 = vmatprep.subr.bf16.mxu0 0
        %1636 = vmatpush1.bf16.msra.mxu0 %v1633
        %1637 = vmatprep.subr.bf16.mxu0 0
        %1638 = vmatpush1.bf16.msra.mxu0 0
        %1639 = vmatprep.subr.bf16.mxu0 0
        %1640 = vmatpush1.bf16.msra.mxu0 0
        %1641 = vmatprep.subr.bf16.mxu0 0
        %1642 = vmatpush1.bf16.msra.mxu0 0
        %1643 = vmatprep.subr.bf16.mxu0 0
        %1644 = vmatpush1.bf16.msra.mxu0 0
        %1645 = vmatprep.subr.bf16.mxu0 0
        %1646 = vmatpush1.bf16.msra.mxu0 0
        %1647 = vmatprep.subr.bf16.mxu0 0
        %1648 = vmatpush1.bf16.msra.mxu0 0
        %1649 = vmatprep.subr.bf16.mxu0 0
        %1650 = vmatpush1.bf16.msra.mxu0 0
        %1651 = vmatprep.subr.bf16.mxu0 0
        %1652 = vmatpush1.bf16.msra.mxu0 0
        %1653 = vmatprep.subr.bf16.mxu0 0
        %1654 = vmatpush1.bf16.msra.mxu0 0
        %1655 = vmatprep.subr.bf16.mxu0 0
        %1656 = vmatpush1.bf16.msra.mxu0 0
        %1657 = vmatprep.subr.bf16.mxu0 0
        %1658 = vmatpush1.bf16.msra.mxu0 0
        %1659 = vmatprep.subr.bf16.mxu0 0
        %1660 = vmatpush1.bf16.msra.mxu0 0
        %1661 = vmatprep.subr.bf16.mxu0 0
        %1662 = vmatpush1.bf16.msra.mxu0 0
        %1663 = vmatprep.subr.bf16.mxu0 0
        %1664 = vmatpush1.bf16.msra.mxu0 0
        %1665 = vmatprep.subr.bf16.mxu0 0
        %1666 = vmatpush1.bf16.msra.mxu0 0
        %1667 = vmatprep.mubr.bf16.mxu0 0
        %1668 = vmatmul.mubr.bf16.gmra.mrb[0].mxu0 %v1630
        %v1669 = vpop.f32.mrb[0].mxu0
        %v1670 = vadd.f32 0.0, %v1669
        %v1671 = vpop.f32.mrb[0].mxu0
        %v1672 = vpop.f32.mrb[0].mxu0
        %v1673 = vpop.f32.mrb[0].mxu0
        %1674 = vdwg.mxu0
        %v1675 = vrcp.pop %v1625
        %v1676 = vmul.f32 %v1670, %v1675
        %1677 = vrot.lane.b32.xlu0 %v1345, 104
        %v1678 = vpop.permute.xlu0 %1677
        %1679 = vrot.lane.b32.xlu0 %v1346, 104
        %v1680 = vpop.permute.xlu0 %1679
        %v1682 = vsel %vm1347, %v1678, 0
        %v1685 = vsel %vm1347, %v1680, 0
        %1687 = vmatprep.subr.bf16.mxu0 0
        %1688 = vmatpush1.bf16.xpose.msra.mxu0 %v1685
        %1689 = vmatprep.subr.bf16.mxu0 0
        %1690 = vmatpush1.bf16.xpose.msra.mxu0 0
        %1691 = vmatprep.subr.bf16.mxu0 0
        %1692 = vmatpush1.bf16.xpose.msra.mxu0 0
        %1693 = vmatprep.subr.bf16.mxu0 0
        %1694 = vmatpush1.bf16.xpose.msra.mxu0 0
        %1695 = vmatprep.subr.bf16.mxu0 0
        %1696 = vmatpush1.bf16.xpose.msra.mxu0 0
        %1697 = vmatprep.subr.bf16.mxu0 0
        %1698 = vmatpush1.bf16.xpose.msra.mxu0 0
        %1699 = vmatprep.subr.bf16.mxu0 0
        %1700 = vmatpush1.bf16.xpose.msra.mxu0 0
        %1701 = vmatprep.subr.bf16.mxu0 0
        %1702 = vmatpush1.bf16.xpose.msra.mxu0 0
        %1703 = vmatprep.subr.bf16.mxu0 0
        %1704 = vmatpush1.bf16.xpose.msra.mxu0 0
        %1705 = vmatprep.subr.bf16.mxu0 0
        %1706 = vmatpush1.bf16.xpose.msra.mxu0 0
        %1707 = vmatprep.subr.bf16.mxu0 0
        %1708 = vmatpush1.bf16.xpose.msra.mxu0 0
        %1709 = vmatprep.subr.bf16.mxu0 0
        %1710 = vmatpush1.bf16.xpose.msra.mxu0 0
        %1711 = vmatprep.subr.bf16.mxu0 0
        %1712 = vmatpush1.bf16.xpose.msra.mxu0 0
        %1713 = vmatprep.subr.bf16.mxu0 0
        %1714 = vmatpush1.bf16.xpose.msra.mxu0 0
        %1715 = vmatprep.subr.bf16.mxu0 0
        %1716 = vmatpush1.bf16.xpose.msra.mxu0 0
        %1717 = vmatprep.subr.bf16.mxu0 0
        %1718 = vmatpush1.bf16.xpose.msra.mxu0 0
        %1719 = vmatprep.mubr.bf16.mxu0 0
        %1720 = vmatmul.mubr.bf16.gmra.mrb[0].mxu0 %v1682
        %v1721 = vpop.f32.mrb[0].mxu0
        %v1722 = vadd.f32 0.0, %v1721
        %v1723 = vpop.f32.mrb[0].mxu0
        %v1724 = vpop.f32.mrb[0].mxu0
        %v1725 = vpop.f32.mrb[0].mxu0
        %1726 = vdwg.mxu0
        %v1727 = vsel %vm1347, %v1722, -inf
        %1728 = vmax.xlane.f32.xlu0 %v1727
        %v1729 = vpop.xlane.xlu0 %1728
        %v1730 = vsub.f32 %v1722, %v1729
        %v1731 = vmul.f32 %v1730, 1.442695
        %v1732 = vpow.pop %v1731
        %v1733 = vsel %vm1347, %v1732, 0.0
        %1734 = vadd.xlane.f32.xlu0 %v1733
        %v1735 = vpop.xlane.xlu0 %1734
        %v1736 = vpack.c.bf16 %v1732, %v1732
        %1737 = vrot.lane.b32.xlu0 %v1346, 72
        %v1738 = vpop.permute.xlu0 %1737
        %v1740 = vsel %vm1347, %v1736, 0
        %v1743 = vsel %vm1410, %v1738, 0
        %1745 = vmatprep.subr.bf16.mxu0 0
        %1746 = vmatpush1.bf16.msra.mxu0 %v1743
        %1747 = vmatprep.subr.bf16.mxu0 0
        %1748 = vmatpush1.bf16.msra.mxu0 0
        %1749 = vmatprep.subr.bf16.mxu0 0
        %1750 = vmatpush1.bf16.msra.mxu0 0
        %1751 = vmatprep.subr.bf16.mxu0 0
        %1752 = vmatpush1.bf16.msra.mxu0 0
        %1753 = vmatprep.subr.bf16.mxu0 0
        %1754 = vmatpush1.bf16.msra.mxu0 0
        %1755 = vmatprep.subr.bf16.mxu0 0
        %1756 = vmatpush1.bf16.msra.mxu0 0
        %1757 = vmatprep.subr.bf16.mxu0 0
        %1758 = vmatpush1.bf16.msra.mxu0 0
        %1759 = vmatprep.subr.bf16.mxu0 0
        %1760 = vmatpush1.bf16.msra.mxu0 0
        %1761 = vmatprep.subr.bf16.mxu0 0
        %1762 = vmatpush1.bf16.msra.mxu0 0
        %1763 = vmatprep.subr.bf16.mxu0 0
        %1764 = vmatpush1.bf16.msra.mxu0 0
        %1765 = vmatprep.subr.bf16.mxu0 0
        %1766 = vmatpush1.bf16.msra.mxu0 0
        %1767 = vmatprep.subr.bf16.mxu0 0
        %1768 = vmatpush1.bf16.msra.mxu0 0
        %1769 = vmatprep.subr.bf16.mxu0 0
        %1770 = vmatpush1.bf16.msra.mxu0 0
        %1771 = vmatprep.subr.bf16.mxu0 0
        %1772 = vmatpush1.bf16.msra.mxu0 0
        %1773 = vmatprep.subr.bf16.mxu0 0
        %1774 = vmatpush1.bf16.msra.mxu0 0
        %1775 = vmatprep.subr.bf16.mxu0 0
        %1776 = vmatpush1.bf16.msra.mxu0 0
        %1777 = vmatprep.mubr.bf16.mxu0 0
        %1778 = vmatmul.mubr.bf16.gmra.mrb[0].mxu0 %v1740
        %v1779 = vpop.f32.mrb[0].mxu0
        %v1780 = vadd.f32 0.0, %v1779
        %v1781 = vpop.f32.mrb[0].mxu0
        %v1782 = vpop.f32.mrb[0].mxu0
        %v1783 = vpop.f32.mrb[0].mxu0
        %1784 = vdwg.mxu0
        %v1785 = vrcp.pop %v1735
        %v1786 = vmul.f32 %v1780, %v1785
        %1788 = vrot.lane.b32.xlu0 %v1566, 8
        %v1789 = vpop.permute.xlu0 %1788
        %1792 = vrot.lane.b32.xlu0 %v1676, 16
        %v1793 = vpop.permute.xlu0 %1792
        %1796 = vrot.lane.b32.xlu0 %v1786, 24
        %v1797 = vpop.permute.xlu0 %1796
        %v1799 = vsel %vm1347, %v1455, %v1789
        %vm1800 = vcmask 130048
        %v1801 = vsel %vm1800, %v1799, %v1793
        %vm1802 = vcmask 195584
        %v1803 = vsel %vm1802, %v1801, %v1797
        %v1804 = vpack.c.bf16 %v1803, %v1803
        %v1806 = vlaneseq
        %v1807 = vshrl.u32 %v1806, 7
        %v1808 = vsub.s32 0, %v1807
        %v1809 = vrot.slane %v1222, %v1808
        %v1815 = vunpack.c.l.b16 %v1218
        %v1816 = vunpack.c.l.b16 %v1219
        %v1817 = vunpack.c.l.b16 %v1220
        %v1818 = vunpack.c.l.b16 %v1221
        %v1819 = vpack.c.b16 %v1816, %v1815
        %v1820 = vpack.c.b16 %v1818, %v1817
        %v1824 = vsel %vm1242, %v1804, 0
        %1826 = vmatprep.subr.bf16.mxu0 0
        %1827 = vmatpush1.bf16.msra.mxu0 %v1819
        %1828 = vmatprep.subr.bf16.mxu0 0
        %1829 = vmatpush1.bf16.msra.mxu0 %v1820
        %1830 = vmatprep.subr.bf16.mxu0 0
        %1831 = vmatpush1.bf16.msra.mxu0 0
        %1832 = vmatprep.subr.bf16.mxu0 0
        %1833 = vmatpush1.bf16.msra.mxu0 0
        %1834 = vmatprep.subr.bf16.mxu0 0
        %1835 = vmatpush1.bf16.msra.mxu0 0
        %1836 = vmatprep.subr.bf16.mxu0 0
        %1837 = vmatpush1.bf16.msra.mxu0 0
        %1838 = vmatprep.subr.bf16.mxu0 0
        %1839 = vmatpush1.bf16.msra.mxu0 0
        %1840 = vmatprep.subr.bf16.mxu0 0
        %1841 = vmatpush1.bf16.msra.mxu0 0
        %1842 = vmatprep.subr.bf16.mxu0 0
        %1843 = vmatpush1.bf16.msra.mxu0 0
        %1844 = vmatprep.subr.bf16.mxu0 0
        %1845 = vmatpush1.bf16.msra.mxu0 0
        %1846 = vmatprep.subr.bf16.mxu0 0
        %1847 = vmatpush1.bf16.msra.mxu0 0
        %1848 = vmatprep.subr.bf16.mxu0 0
        %1849 = vmatpush1.bf16.msra.mxu0 0
        %1850 = vmatprep.subr.bf16.mxu0 0
        %1851 = vmatpush1.bf16.msra.mxu0 0
        %1852 = vmatprep.subr.bf16.mxu0 0
        %1853 = vmatpush1.bf16.msra.mxu0 0
        %1854 = vmatprep.subr.bf16.mxu0 0
        %1855 = vmatpush1.bf16.msra.mxu0 0
        %1856 = vmatprep.subr.bf16.mxu0 0
        %1857 = vmatpush1.bf16.msra.mxu0 0
        %1858 = vmatprep.mubr.bf16.mxu0 0
        %1859 = vmatmul.mubr.bf16.gmra.mrb[0].mxu0 %v1824
        %v1860 = vpop.f32.mrb[0].mxu0
        %v1861 = vadd.f32 %v1809, %v1860
        %v1862 = vpop.f32.mrb[0].mxu0
        %v1863 = vpop.f32.mrb[0].mxu0
        %v1864 = vpop.f32.mrb[0].mxu0
        %1865 = vdwg.mxu0
        %v1866 = vadd.f32 %v1206, %v1861
        %v1867 = vld [vmem:[%s1138] sm:$0x1]
        %v1868 = vld [vmem:[%s1141] sm:$0x1]
        %v1869 = vsel %vm1242, %v1866, 0.0
        %1870 = vadd.xlane.f32.xlu0 %v1869
        %v1871 = vpop.xlane.xlu0 %1870
        %v1872 = vrcp.pop 32.0
        %v1873 = vmul.f32 %v1871, %v1872
        %v1874 = vsub.f32 %v1866, %v1873
        %v1875 = vmul.f32 %v1874, %v1874
        %v1876 = vsel %vm1242, %v1875, 0.0
        %1877 = vadd.xlane.f32.xlu0 %v1876
        %v1878 = vpop.xlane.xlu0 %1877
        %v1879 = vmul.f32 %v1878, %v1872
        %v1880 = vadd.f32 %v1879, 1e-05
        %v1881 = vrsqrt.pop %v1880
        %v1882 = vmul.f32 %v1874, %v1881
        %v1884 = vlaneseq
        %v1885 = vshrl.u32 %v1884, 7
        %v1886 = vsub.s32 0, %v1885
        %v1887 = vrot.slane %v1867, %v1886
        %v1889 = vmul.f32 %v1882, %v1887
        %v1891 = vlaneseq
        %v1892 = vshrl.u32 %v1891, 7
        %v1893 = vsub.s32 0, %v1892
        %v1894 = vrot.slane %v1868, %v1893
        %v1896 = vadd.f32 %v1889, %v1894
        %v1897 = vld [vmem:[%s1146] sm:$0xf]
        %v1898 = vld [vmem:[%s1146 + $0x4] sm:$0xf]
        %v1899 = vld [vmem:[%s1146 + $0x8] sm:$0xf]
        %v1900 = vld [vmem:[%s1146 + $0xc] sm:$0xf]
        %v1901 = vld [vmem:[%s1149] sm:$0x1]
        %v1902 = vld [vmem:[%s1154] sm:$0xf]
        %v1903 = vld [vmem:[%s1154 + $0x4] sm:$0xf]
        %v1904 = vld [vmem:[%s1154 + $0x8] sm:$0xf]
        %v1905 = vld [vmem:[%s1154 + $0xc] sm:$0xf]
        %v1906 = vld [vmem:[%s1157] sm:$0x1]
        %v1907 = vld [vmem:[%s1162] sm:$0xf]
        %v1908 = vld [vmem:[%s1162 + $0x4] sm:$0xf]
        %v1909 = vld [vmem:[%s1162 + $0x8] sm:$0xf]
        %v1910 = vld [vmem:[%s1162 + $0xc] sm:$0xf]
        %v1911 = vld [vmem:[%s1165] sm:$0x1]
        %v1912 = vpack.c.bf16 %v1896, %v1896
        %v1914 = vlaneseq
        %v1915 = vshrl.u32 %v1914, 7
        %v1916 = vsub.s32 0, %v1915
        %v1917 = vrot.slane %v1901, %v1916
        %v1923 = vunpack.c.l.b16 %v1897
        %v1924 = vunpack.c.l.b16 %v1898
        %v1925 = vunpack.c.l.b16 %v1899
        %v1926 = vunpack.c.l.b16 %v1900
        %v1927 = vpack.c.b16 %v1924, %v1923
        %v1928 = vpack.c.b16 %v1926, %v1925
        %v1932 = vsel %vm1242, %v1912, 0
        %1934 = vmatprep.subr.bf16.mxu0 0
        %1935 = vmatpush1.bf16.msra.mxu0 %v1927
        %1936 = vmatprep.subr.bf16.mxu0 0
        %1937 = vmatpush1.bf16.msra.mxu0 %v1928
        %1938 = vmatprep.subr.bf16.mxu0 0
        %1939 = vmatpush1.bf16.msra.mxu0 0
        %1940 = vmatprep.subr.bf16.mxu0 0
        %1941 = vmatpush1.bf16.msra.mxu0 0
        %1942 = vmatprep.subr.bf16.mxu0 0
        %1943 = vmatpush1.bf16.msra.mxu0 0
        %1944 = vmatprep.subr.bf16.mxu0 0
        %1945 = vmatpush1.bf16.msra.mxu0 0
        %1946 = vmatprep.subr.bf16.mxu0 0
        %1947 = vmatpush1.bf16.msra.mxu0 0
        %1948 = vmatprep.subr.bf16.mxu0 0
        %1949 = vmatpush1.bf16.msra.mxu0 0
        %1950 = vmatprep.subr.bf16.mxu0 0
        %1951 = vmatpush1.bf16.msra.mxu0 0
        %1952 = vmatprep.subr.bf16.mxu0 0
        %1953 = vmatpush1.bf16.msra.mxu0 0
        %1954 = vmatprep.subr.bf16.mxu0 0
        %1955 = vmatpush1.bf16.msra.mxu0 0
        %1956 = vmatprep.subr.bf16.mxu0 0
        %1957 = vmatpush1.bf16.msra.mxu0 0
        %1958 = vmatprep.subr.bf16.mxu0 0
        %1959 = vmatpush1.bf16.msra.mxu0 0
        %1960 = vmatprep.subr.bf16.mxu0 0
        %1961 = vmatpush1.bf16.msra.mxu0 0
        %1962 = vmatprep.subr.bf16.mxu0 0
        %1963 = vmatpush1.bf16.msra.mxu0 0
        %1964 = vmatprep.subr.bf16.mxu0 0
        %1965 = vmatpush1.bf16.msra.mxu0 0
        %1966 = vmatprep.mubr.bf16.mxu0 0
        %1967 = vmatmul.mubr.bf16.gmra.mrb[0].mxu0 %v1932
        %v1968 = vpop.f32.mrb[0].mxu0
        %v1969 = vadd.f32 %v1917, %v1968
        %v1970 = vpop.f32.mrb[0].mxu0
        %v1971 = vpop.f32.mrb[0].mxu0
        %v1972 = vpop.f32.mrb[0].mxu0
        %1973 = vdwg.mxu0
        %v1974 = vmul.f32 %v1969, 0.35355338
        %v1975 = vpack.c.bf16 %v1207, %v1207
        %v1977 = vlaneseq
        %v1978 = vshrl.u32 %v1977, 7
        %v1979 = vsub.s32 0, %v1978
        %v1980 = vrot.slane %v1906, %v1979
        %v1986 = vunpack.c.l.b16 %v1902
        %v1987 = vunpack.c.l.b16 %v1903
        %v1988 = vunpack.c.l.b16 %v1904
        %v1989 = vunpack.c.l.b16 %v1905
        %v1990 = vpack.c.b16 %v1987, %v1986
        %v1991 = vpack.c.b16 %v1989, %v1988
        %v1995 = vsel %vm1242, %v1975, 0
        %1997 = vmatprep.subr.bf16.mxu0 0
        %1998 = vmatpush1.bf16.msra.mxu0 %v1990
        %1999 = vmatprep.subr.bf16.mxu0 0
        %2000 = vmatpush1.bf16.msra.mxu0 %v1991
        %2001 = vmatprep.subr.bf16.mxu0 0
        %2002 = vmatpush1.bf16.msra.mxu0 0
        %2003 = vmatprep.subr.bf16.mxu0 0
        %2004 = vmatpush1.bf16.msra.mxu0 0
        %2005 = vmatprep.subr.bf16.mxu0 0
        %2006 = vmatpush1.bf16.msra.mxu0 0
        %2007 = vmatprep.subr.bf16.mxu0 0
        %2008 = vmatpush1.bf16.msra.mxu0 0
        %2009 = vmatprep.subr.bf16.mxu0 0
        %2010 = vmatpush1.bf16.msra.mxu0 0
        %2011 = vmatprep.subr.bf16.mxu0 0
        %2012 = vmatpush1.bf16.msra.mxu0 0
        %2013 = vmatprep.subr.bf16.mxu0 0
        %2014 = vmatpush1.bf16.msra.mxu0 0
        %2015 = vmatprep.subr.bf16.mxu0 0
        %2016 = vmatpush1.bf16.msra.mxu0 0
        %2017 = vmatprep.subr.bf16.mxu0 0
        %2018 = vmatpush1.bf16.msra.mxu0 0
        %2019 = vmatprep.subr.bf16.mxu0 0
        %2020 = vmatpush1.bf16.msra.mxu0 0
        %2021 = vmatprep.subr.bf16.mxu0 0
        %2022 = vmatpush1.bf16.msra.mxu0 0
        %2023 = vmatprep.subr.bf16.mxu0 0
        %2024 = vmatpush1.bf16.msra.mxu0 0
        %2025 = vmatprep.subr.bf16.mxu0 0
        %2026 = vmatpush1.bf16.msra.mxu0 0
        %2027 = vmatprep.subr.bf16.mxu0 0
        %2028 = vmatpush1.bf16.msra.mxu0 0
        %2029 = vmatprep.mubr.bf16.mxu0 0
        %2030 = vmatmul.mubr.bf16.gmra.mrb[0].mxu0 %v1995
        %v2031 = vpop.f32.mrb[0].mxu0
        %v2032 = vadd.f32 %v1980, %v2031
        %v2033 = vpop.f32.mrb[0].mxu0
        %v2034 = vpop.f32.mrb[0].mxu0
        %v2035 = vpop.f32.mrb[0].mxu0
        %2036 = vdwg.mxu0
        %v2037 = vpack.c.bf16 %v1974, %v1974
        %v2038 = vpack.c.bf16 %v2032, %v2032
        %v2040 = vsel %vm1347, %v2037, 0
        %v2043 = vsel %vm1347, %v2038, 0
        %2045 = vmatprep.subr.bf16.mxu0 0
        %2046 = vmatpush1.bf16.xpose.msra.mxu0 %v2043
        %2047 = vmatprep.subr.bf16.mxu0 0
        %2048 = vmatpush1.bf16.xpose.msra.mxu0 0
        %2049 = vmatprep.subr.bf16.mxu0 0
        %2050 = vmatpush1.bf16.xpose.msra.mxu0 0
        %2051 = vmatprep.subr.bf16.mxu0 0
        %2052 = vmatpush1.bf16.xpose.msra.mxu0 0
        %2053 = vmatprep.subr.bf16.mxu0 0
        %2054 = vmatpush1.bf16.xpose.msra.mxu0 0
        %2055 = vmatprep.subr.bf16.mxu0 0
        %2056 = vmatpush1.bf16.xpose.msra.mxu0 0
        %2057 = vmatprep.subr.bf16.mxu0 0
        %2058 = vmatpush1.bf16.xpose.msra.mxu0 0
        %2059 = vmatprep.subr.bf16.mxu0 0
        %2060 = vmatpush1.bf16.xpose.msra.mxu0 0
        %2061 = vmatprep.subr.bf16.mxu0 0
        %2062 = vmatpush1.bf16.xpose.msra.mxu0 0
        %2063 = vmatprep.subr.bf16.mxu0 0
        %2064 = vmatpush1.bf16.xpose.msra.mxu0 0
        %2065 = vmatprep.subr.bf16.mxu0 0
        %2066 = vmatpush1.bf16.xpose.msra.mxu0 0
        %2067 = vmatprep.subr.bf16.mxu0 0
        %2068 = vmatpush1.bf16.xpose.msra.mxu0 0
        %2069 = vmatprep.subr.bf16.mxu0 0
        %2070 = vmatpush1.bf16.xpose.msra.mxu0 0
        %2071 = vmatprep.subr.bf16.mxu0 0
        %2072 = vmatpush1.bf16.xpose.msra.mxu0 0
        %2073 = vmatprep.subr.bf16.mxu0 0
        %2074 = vmatpush1.bf16.xpose.msra.mxu0 0
        %2075 = vmatprep.subr.bf16.mxu0 0
        %2076 = vmatpush1.bf16.xpose.msra.mxu0 0
        %2077 = vmatprep.mubr.bf16.mxu0 0
        %2078 = vmatmul.mubr.bf16.gmra.mrb[0].mxu0 %v2040
        %v2079 = vpop.f32.mrb[0].mxu0
        %v2080 = vadd.f32 0.0, %v2079
        %v2081 = vpop.f32.mrb[0].mxu0
        %v2082 = vpop.f32.mrb[0].mxu0
        %v2083 = vpop.f32.mrb[0].mxu0
        %2084 = vdwg.mxu0
        %v2085 = vsel %vm1347, %v2080, -inf
        %2086 = vmax.xlane.f32.xlu0 %v2085
        %v2087 = vpop.xlane.xlu0 %2086
        %v2088 = vsub.f32 %v2080, %v2087
        %v2089 = vmul.f32 %v2088, 1.442695
        %v2090 = vpow.pop %v2089
        %v2091 = vsel %vm1347, %v2090, 0.0
        %2092 = vadd.xlane.f32.xlu0 %v2091
        %v2093 = vpop.xlane.xlu0 %2092
        %v2094 = vpack.c.bf16 %v2090, %v2090
        %2096 = vrot.lane.b32.xlu0 %v2038, 96
        %v2097 = vpop.permute.xlu0 %2096
        %v2099 = vsel %vm1347, %v2094, 0
        %v2102 = vsel %vm1410, %v2097, 0
        %2104 = vmatprep.subr.bf16.mxu0 0
        %2105 = vmatpush1.bf16.msra.mxu0 %v2102
        %2106 = vmatprep.subr.bf16.mxu0 0
        %2107 = vmatpush1.bf16.msra.mxu0 0
        %2108 = vmatprep.subr.bf16.mxu0 0
        %2109 = vmatpush1.bf16.msra.mxu0 0
        %2110 = vmatprep.subr.bf16.mxu0 0
        %2111 = vmatpush1.bf16.msra.mxu0 0
        %2112 = vmatprep.subr.bf16.mxu0 0
        %2113 = vmatpush1.bf16.msra.mxu0 0
        %2114 = vmatprep.subr.bf16.mxu0 0
        %2115 = vmatpush1.bf16.msra.mxu0 0
        %2116 = vmatprep.subr.bf16.mxu0 0
        %2117 = vmatpush1.bf16.msra.mxu0 0
        %2118 = vmatprep.subr.bf16.mxu0 0
        %2119 = vmatpush1.bf16.msra.mxu0 0
        %2120 = vmatprep.subr.bf16.mxu0 0
        %2121 = vmatpush1.bf16.msra.mxu0 0
        %2122 = vmatprep.subr.bf16.mxu0 0
        %2123 = vmatpush1.bf16.msra.mxu0 0
        %2124 = vmatprep.subr.bf16.mxu0 0
        %2125 = vmatpush1.bf16.msra.mxu0 0
        %2126 = vmatprep.subr.bf16.mxu0 0
        %2127 = vmatpush1.bf16.msra.mxu0 0
        %2128 = vmatprep.subr.bf16.mxu0 0
        %2129 = vmatpush1.bf16.msra.mxu0 0
        %2130 = vmatprep.subr.bf16.mxu0 0
        %2131 = vmatpush1.bf16.msra.mxu0 0
        %2132 = vmatprep.subr.bf16.mxu0 0
        %2133 = vmatpush1.bf16.msra.mxu0 0
        %2134 = vmatprep.subr.bf16.mxu0 0
        %2135 = vmatpush1.bf16.msra.mxu0 0
        %2136 = vmatprep.mubr.bf16.mxu0 0
        %2137 = vmatmul.mubr.bf16.gmra.mrb[0].mxu0 %v2099
        %v2138 = vpop.f32.mrb[0].mxu0
        %v2139 = vadd.f32 0.0, %v2138
        %v2140 = vpop.f32.mrb[0].mxu0
        %v2141 = vpop.f32.mrb[0].mxu0
        %v2142 = vpop.f32.mrb[0].mxu0
        %2143 = vdwg.mxu0
        %v2144 = vrcp.pop %v2093
        %v2145 = vmul.f32 %v2139, %v2144
        %2147 = vrot.lane.b32.xlu0 %v2037, 120
        %v2148 = vpop.permute.xlu0 %2147
        %2149 = vrot.lane.b32.xlu0 %v2038, 120
        %v2150 = vpop.permute.xlu0 %2149
        %v2152 = vsel %vm1347, %v2148, 0
        %v2155 = vsel %vm1347, %v2150, 0
        %2157 = vmatprep.subr.bf16.mxu0 0
        %2158 = vmatpush1.bf16.xpose.msra.mxu0 %v2155
        %2159 = vmatprep.subr.bf16.mxu0 0
        %2160 = vmatpush1.bf16.xpose.msra.mxu0 0
        %2161 = vmatprep.subr.bf16.mxu0 0
        %2162 = vmatpush1.bf16.xpose.msra.mxu0 0
        %2163 = vmatprep.subr.bf16.mxu0 0
        %2164 = vmatpush1.bf16.xpose.msra.mxu0 0
        %2165 = vmatprep.subr.bf16.mxu0 0
        %2166 = vmatpush1.bf16.xpose.msra.mxu0 0
        %2167 = vmatprep.subr.bf16.mxu0 0
        %2168 = vmatpush1.bf16.xpose.msra.mxu0 0
        %2169 = vmatprep.subr.bf16.mxu0 0
        %2170 = vmatpush1.bf16.xpose.msra.mxu0 0
        %2171 = vmatprep.subr.bf16.mxu0 0
        %2172 = vmatpush1.bf16.xpose.msra.mxu0 0
        %2173 = vmatprep.subr.bf16.mxu0 0
        %2174 = vmatpush1.bf16.xpose.msra.mxu0 0
        %2175 = vmatprep.subr.bf16.mxu0 0
        %2176 = vmatpush1.bf16.xpose.msra.mxu0 0
        %2177 = vmatprep.subr.bf16.mxu0 0
        %2178 = vmatpush1.bf16.xpose.msra.mxu0 0
        %2179 = vmatprep.subr.bf16.mxu0 0
        %2180 = vmatpush1.bf16.xpose.msra.mxu0 0
        %2181 = vmatprep.subr.bf16.mxu0 0
        %2182 = vmatpush1.bf16.xpose.msra.mxu0 0
        %2183 = vmatprep.subr.bf16.mxu0 0
        %2184 = vmatpush1.bf16.xpose.msra.mxu0 0
        %2185 = vmatprep.subr.bf16.mxu0 0
        %2186 = vmatpush1.bf16.xpose.msra.mxu0 0
        %2187 = vmatprep.subr.bf16.mxu0 0
        %2188 = vmatpush1.bf16.xpose.msra.mxu0 0
        %2189 = vmatprep.mubr.bf16.mxu0 0
        %2190 = vmatmul.mubr.bf16.gmra.mrb[0].mxu0 %v2152
        %v2191 = vpop.f32.mrb[0].mxu0
        %v2192 = vadd.f32 0.0, %v2191
        %v2193 = vpop.f32.mrb[0].mxu0
        %v2194 = vpop.f32.mrb[0].mxu0
        %v2195 = vpop.f32.mrb[0].mxu0
        %2196 = vdwg.mxu0
        %v2197 = vsel %vm1347, %v2192, -inf
        %2198 = vmax.xlane.f32.xlu0 %v2197
        %v2199 = vpop.xlane.xlu0 %2198
        %v2200 = vsub.f32 %v2192, %v2199
        %v2201 = vmul.f32 %v2200, 1.442695
        %v2202 = vpow.pop %v2201
        %v2203 = vsel %vm1347, %v2202, 0.0
        %2204 = vadd.xlane.f32.xlu0 %v2203
        %v2205 = vpop.xlane.xlu0 %2204
        %v2206 = vpack.c.bf16 %v2202, %v2202
        %2207 = vrot.lane.b32.xlu0 %v2038, 88
        %v2208 = vpop.permute.xlu0 %2207
        %v2210 = vsel %vm1347, %v2206, 0
        %v2213 = vsel %vm1410, %v2208, 0
        %2215 = vmatprep.subr.bf16.mxu0 0
        %2216 = vmatpush1.bf16.msra.mxu0 %v2213
        %2217 = vmatprep.subr.bf16.mxu0 0
        %2218 = vmatpush1.bf16.msra.mxu0 0
        %2219 = vmatprep.subr.bf16.mxu0 0
        %2220 = vmatpush1.bf16.msra.mxu0 0
        %2221 = vmatprep.subr.bf16.mxu0 0
        %2222 = vmatpush1.bf16.msra.mxu0 0
        %2223 = vmatprep.subr.bf16.mxu0 0
        %2224 = vmatpush1.bf16.msra.mxu0 0
        %2225 = vmatprep.subr.bf16.mxu0 0
        %2226 = vmatpush1.bf16.msra.mxu0 0
        %2227 = vmatprep.subr.bf16.mxu0 0
        %2228 = vmatpush1.bf16.msra.mxu0 0
        %2229 = vmatprep.subr.bf16.mxu0 0
        %2230 = vmatpush1.bf16.msra.mxu0 0
        %2231 = vmatprep.subr.bf16.mxu0 0
        %2232 = vmatpush1.bf16.msra.mxu0 0
        %2233 = vmatprep.subr.bf16.mxu0 0
        %2234 = vmatpush1.bf16.msra.mxu0 0
        %2235 = vmatprep.subr.bf16.mxu0 0
        %2236 = vmatpush1.bf16.msra.mxu0 0
        %2237 = vmatprep.subr.bf16.mxu0 0
        %2238 = vmatpush1.bf16.msra.mxu0 0
        %2239 = vmatprep.subr.bf16.mxu0 0
        %2240 = vmatpush1.bf16.msra.mxu0 0
        %2241 = vmatprep.subr.bf16.mxu0 0
        %2242 = vmatpush1.bf16.msra.mxu0 0
        %2243 = vmatprep.subr.bf16.mxu0 0
        %2244 = vmatpush1.bf16.msra.mxu0 0
        %2245 = vmatprep.subr.bf16.mxu0 0
        %2246 = vmatpush1.bf16.msra.mxu0 0
        %2247 = vmatprep.mubr.bf16.mxu0 0
        %2248 = vmatmul.mubr.bf16.gmra.mrb[0].mxu0 %v2210
        %v2249 = vpop.f32.mrb[0].mxu0
        %v2250 = vadd.f32 0.0, %v2249
        %v2251 = vpop.f32.mrb[0].mxu0
        %v2252 = vpop.f32.mrb[0].mxu0
        %v2253 = vpop.f32.mrb[0].mxu0
        %2254 = vdwg.mxu0
        %v2255 = vrcp.pop %v2205
        %v2256 = vmul.f32 %v2250, %v2255
        %2257 = vrot.lane.b32.xlu0 %v2037, 112
        %v2258 = vpop.permute.xlu0 %2257
        %2259 = vrot.lane.b32.xlu0 %v2038, 112
        %v2260 = vpop.permute.xlu0 %2259
        %v2262 = vsel %vm1347, %v2258, 0
        %v2265 = vsel %vm1347, %v2260, 0
        %2267 = vmatprep.subr.bf16.mxu0 0
        %2268 = vmatpush1.bf16.xpose.msra.mxu0 %v2265
        %2269 = vmatprep.subr.bf16.mxu0 0
        %2270 = vmatpush1.bf16.xpose.msra.mxu0 0
        %2271 = vmatprep.subr.bf16.mxu0 0
        %2272 = vmatpush1.bf16.xpose.msra.mxu0 0
        %2273 = vmatprep.subr.bf16.mxu0 0
        %2274 = vmatpush1.bf16.xpose.msra.mxu0 0
        %2275 = vmatprep.subr.bf16.mxu0 0
        %2276 = vmatpush1.bf16.xpose.msra.mxu0 0
        %2277 = vmatprep.subr.bf16.mxu0 0
        %2278 = vmatpush1.bf16.xpose.msra.mxu0 0
        %2279 = vmatprep.subr.bf16.mxu0 0
        %2280 = vmatpush1.bf16.xpose.msra.mxu0 0
        %2281 = vmatprep.subr.bf16.mxu0 0
        %2282 = vmatpush1.bf16.xpose.msra.mxu0 0
        %2283 = vmatprep.subr.bf16.mxu0 0
        %2284 = vmatpush1.bf16.xpose.msra.mxu0 0
        %2285 = vmatprep.subr.bf16.mxu0 0
        %2286 = vmatpush1.bf16.xpose.msra.mxu0 0
        %2287 = vmatprep.subr.bf16.mxu0 0
        %2288 = vmatpush1.bf16.xpose.msra.mxu0 0
        %2289 = vmatprep.subr.bf16.mxu0 0
        %2290 = vmatpush1.bf16.xpose.msra.mxu0 0
        %2291 = vmatprep.subr.bf16.mxu0 0
        %2292 = vmatpush1.bf16.xpose.msra.mxu0 0
        %2293 = vmatprep.subr.bf16.mxu0 0
        %2294 = vmatpush1.bf16.xpose.msra.mxu0 0
        %2295 = vmatprep.subr.bf16.mxu0 0
        %2296 = vmatpush1.bf16.xpose.msra.mxu0 0
        %2297 = vmatprep.subr.bf16.mxu0 0
        %2298 = vmatpush1.bf16.xpose.msra.mxu0 0
        %2299 = vmatprep.mubr.bf16.mxu0 0
        %2300 = vmatmul.mubr.bf16.gmra.mrb[0].mxu0 %v2262
        %v2301 = vpop.f32.mrb[0].mxu0
        %v2302 = vadd.f32 0.0, %v2301
        %v2303 = vpop.f32.mrb[0].mxu0
        %v2304 = vpop.f32.mrb[0].mxu0
        %v2305 = vpop.f32.mrb[0].mxu0
        %2306 = vdwg.mxu0
        %v2307 = vsel %vm1347, %v2302, -inf
        %2308 = vmax.xlane.f32.xlu0 %v2307
        %v2309 = vpop.xlane.xlu0 %2308
        %v2310 = vsub.f32 %v2302, %v2309
        %v2311 = vmul.f32 %v2310, 1.442695
        %v2312 = vpow.pop %v2311
        %v2313 = vsel %vm1347, %v2312, 0.0
        %2314 = vadd.xlane.f32.xlu0 %v2313
        %v2315 = vpop.xlane.xlu0 %2314
        %v2316 = vpack.c.bf16 %v2312, %v2312
        %2317 = vrot.lane.b32.xlu0 %v2038, 80
        %v2318 = vpop.permute.xlu0 %2317
        %v2320 = vsel %vm1347, %v2316, 0
        %v2323 = vsel %vm1410, %v2318, 0
        %2325 = vmatprep.subr.bf16.mxu0 0
        %2326 = vmatpush1.bf16.msra.mxu0 %v2323
        %2327 = vmatprep.subr.bf16.mxu0 0
        %2328 = vmatpush1.bf16.msra.mxu0 0
        %2329 = vmatprep.subr.bf16.mxu0 0
        %2330 = vmatpush1.bf16.msra.mxu0 0
        %2331 = vmatprep.subr.bf16.mxu0 0
        %2332 = vmatpush1.bf16.msra.mxu0 0
        %2333 = vmatprep.subr.bf16.mxu0 0
        %2334 = vmatpush1.bf16.msra.mxu0 0
        %2335 = vmatprep.subr.bf16.mxu0 0
        %2336 = vmatpush1.bf16.msra.mxu0 0
        %2337 = vmatprep.subr.bf16.mxu0 0
        %2338 = vmatpush1.bf16.msra.mxu0 0
        %2339 = vmatprep.subr.bf16.mxu0 0
        %2340 = vmatpush1.bf16.msra.mxu0 0
        %2341 = vmatprep.subr.bf16.mxu0 0
        %2342 = vmatpush1.bf16.msra.mxu0 0
        %2343 = vmatprep.subr.bf16.mxu0 0
        %2344 = vmatpush1.bf16.msra.mxu0 0
        %2345 = vmatprep.subr.bf16.mxu0 0
        %2346 = vmatpush1.bf16.msra.mxu0 0
        %2347 = vmatprep.subr.bf16.mxu0 0
        %2348 = vmatpush1.bf16.msra.mxu0 0
        %2349 = vmatprep.subr.bf16.mxu0 0
        %2350 = vmatpush1.bf16.msra.mxu0 0
        %2351 = vmatprep.subr.bf16.mxu0 0
        %2352 = vmatpush1.bf16.msra.mxu0 0
        %2353 = vmatprep.subr.bf16.mxu0 0
        %2354 = vmatpush1.bf16.msra.mxu0 0
        %2355 = vmatprep.subr.bf16.mxu0 0
        %2356 = vmatpush1.bf16.msra.mxu0 0
        %2357 = vmatprep.mubr.bf16.mxu0 0
        %2358 = vmatmul.mubr.bf16.gmra.mrb[0].mxu0 %v2320
        %v2359 = vpop.f32.mrb[0].mxu0
        %v2360 = vadd.f32 0.0, %v2359
        %v2361 = vpop.f32.mrb[0].mxu0
        %v2362 = vpop.f32.mrb[0].mxu0
        %v2363 = vpop.f32.mrb[0].mxu0
        %2364 = vdwg.mxu0
        %v2365 = vrcp.pop %v2315
        %v2366 = vmul.f32 %v2360, %v2365
        %2367 = vrot.lane.b32.xlu0 %v2037, 104
        %v2368 = vpop.permute.xlu0 %2367
        %2369 = vrot.lane.b32.xlu0 %v2038, 104
        %v2370 = vpop.permute.xlu0 %2369
        %v2372 = vsel %vm1347, %v2368, 0
        %v2375 = vsel %vm1347, %v2370, 0
        %2377 = vmatprep.subr.bf16.mxu0 0
        %2378 = vmatpush1.bf16.xpose.msra.mxu0 %v2375
        %2379 = vmatprep.subr.bf16.mxu0 0
        %2380 = vmatpush1.bf16.xpose.msra.mxu0 0
        %2381 = vmatprep.subr.bf16.mxu0 0
        %2382 = vmatpush1.bf16.xpose.msra.mxu0 0
        %2383 = vmatprep.subr.bf16.mxu0 0
        %2384 = vmatpush1.bf16.xpose.msra.mxu0 0
        %2385 = vmatprep.subr.bf16.mxu0 0
        %2386 = vmatpush1.bf16.xpose.msra.mxu0 0
        %2387 = vmatprep.subr.bf16.mxu0 0
        %2388 = vmatpush1.bf16.xpose.msra.mxu0 0
        %2389 = vmatprep.subr.bf16.mxu0 0
        %2390 = vmatpush1.bf16.xpose.msra.mxu0 0
        %2391 = vmatprep.subr.bf16.mxu0 0
        %2392 = vmatpush1.bf16.xpose.msra.mxu0 0
        %2393 = vmatprep.subr.bf16.mxu0 0
        %2394 = vmatpush1.bf16.xpose.msra.mxu0 0
        %2395 = vmatprep.subr.bf16.mxu0 0
        %2396 = vmatpush1.bf16.xpose.msra.mxu0 0
        %2397 = vmatprep.subr.bf16.mxu0 0
        %2398 = vmatpush1.bf16.xpose.msra.mxu0 0
        %2399 = vmatprep.subr.bf16.mxu0 0
        %2400 = vmatpush1.bf16.xpose.msra.mxu0 0
        %2401 = vmatprep.subr.bf16.mxu0 0
        %2402 = vmatpush1.bf16.xpose.msra.mxu0 0
        %2403 = vmatprep.subr.bf16.mxu0 0
        %2404 = vmatpush1.bf16.xpose.msra.mxu0 0
        %2405 = vmatprep.subr.bf16.mxu0 0
        %2406 = vmatpush1.bf16.xpose.msra.mxu0 0
        %2407 = vmatprep.subr.bf16.mxu0 0
        %2408 = vmatpush1.bf16.xpose.msra.mxu0 0
        %2409 = vmatprep.mubr.bf16.mxu0 0
        %2410 = vmatmul.mubr.bf16.gmra.mrb[0].mxu0 %v2372
        %v2411 = vpop.f32.mrb[0].mxu0
        %v2412 = vadd.f32 0.0, %v2411
        %v2413 = vpop.f32.mrb[0].mxu0
        %v2414 = vpop.f32.mrb[0].mxu0
        %v2415 = vpop.f32.mrb[0].mxu0
        %2416 = vdwg.mxu0
        %v2417 = vsel %vm1347, %v2412, -inf
        %2418 = vmax.xlane.f32.xlu0 %v2417
        %v2419 = vpop.xlane.xlu0 %2418
        %v2420 = vsub.f32 %v2412, %v2419
        %v2421 = vmul.f32 %v2420, 1.442695
        %v2422 = vpow.pop %v2421
        %v2423 = vsel %vm1347, %v2422, 0.0
        %2424 = vadd.xlane.f32.xlu0 %v2423
        %v2425 = vpop.xlane.xlu0 %2424
        %v2426 = vpack.c.bf16 %v2422, %v2422
        %2427 = vrot.lane.b32.xlu0 %v2038, 72
        %v2428 = vpop.permute.xlu0 %2427
        %v2430 = vsel %vm1347, %v2426, 0
        %v2433 = vsel %vm1410, %v2428, 0
        %2435 = vmatprep.subr.bf16.mxu0 0
        %2436 = vmatpush1.bf16.msra.mxu0 %v2433
        %2437 = vmatprep.subr.bf16.mxu0 0
        %2438 = vmatpush1.bf16.msra.mxu0 0
        %2439 = vmatprep.subr.bf16.mxu0 0
        %2440 = vmatpush1.bf16.msra.mxu0 0
        %2441 = vmatprep.subr.bf16.mxu0 0
        %2442 = vmatpush1.bf16.msra.mxu0 0
        %2443 = vmatprep.subr.bf16.mxu0 0
        %2444 = vmatpush1.bf16.msra.mxu0 0
        %2445 = vmatprep.subr.bf16.mxu0 0
        %2446 = vmatpush1.bf16.msra.mxu0 0
        %2447 = vmatprep.subr.bf16.mxu0 0
        %2448 = vmatpush1.bf16.msra.mxu0 0
        %2449 = vmatprep.subr.bf16.mxu0 0
        %2450 = vmatpush1.bf16.msra.mxu0 0
        %2451 = vmatprep.subr.bf16.mxu0 0
        %2452 = vmatpush1.bf16.msra.mxu0 0
        %2453 = vmatprep.subr.bf16.mxu0 0
        %2454 = vmatpush1.bf16.msra.mxu0 0
        %2455 = vmatprep.subr.bf16.mxu0 0
        %2456 = vmatpush1.bf16.msra.mxu0 0
        %2457 = vmatprep.subr.bf16.mxu0 0
        %2458 = vmatpush1.bf16.msra.mxu0 0
        %2459 = vmatprep.subr.bf16.mxu0 0
        %2460 = vmatpush1.bf16.msra.mxu0 0
        %2461 = vmatprep.subr.bf16.mxu0 0
        %2462 = vmatpush1.bf16.msra.mxu0 0
        %2463 = vmatprep.subr.bf16.mxu0 0
        %2464 = vmatpush1.bf16.msra.mxu0 0
        %2465 = vmatprep.subr.bf16.mxu0 0
        %2466 = vmatpush1.bf16.msra.mxu0 0
        %2467 = vmatprep.mubr.bf16.mxu0 0
        %2468 = vmatmul.mubr.bf16.gmra.mrb[0].mxu0 %v2430
        %v2469 = vpop.f32.mrb[0].mxu0
        %v2470 = vadd.f32 0.0, %v2469
        %v2471 = vpop.f32.mrb[0].mxu0
        %v2472 = vpop.f32.mrb[0].mxu0
        %v2473 = vpop.f32.mrb[0].mxu0
        %2474 = vdwg.mxu0
        %v2475 = vrcp.pop %v2425
        %v2476 = vmul.f32 %v2470, %v2475
        %2478 = vrot.lane.b32.xlu0 %v2256, 8
        %v2479 = vpop.permute.xlu0 %2478
        %2482 = vrot.lane.b32.xlu0 %v2366, 16
        %v2483 = vpop.permute.xlu0 %2482
        %2486 = vrot.lane.b32.xlu0 %v2476, 24
        %v2487 = vpop.permute.xlu0 %2486
        %v2489 = vsel %vm1347, %v2145, %v2479
        %v2490 = vsel %vm1800, %v2489, %v2483
        %v2491 = vsel %vm1802, %v2490, %v2487
        %v2492 = vpack.c.bf16 %v2491, %v2491
        %v2494 = vlaneseq
        %v2495 = vshrl.u32 %v2494, 7
        %v2496 = vsub.s32 0, %v2495
        %v2497 = vrot.slane %v1911, %v2496
        %v2503 = vunpack.c.l.b16 %v1907
        %v2504 = vunpack.c.l.b16 %v1908
        %v2505 = vunpack.c.l.b16 %v1909
        %v2506 = vunpack.c.l.b16 %v1910
        %v2507 = vpack.c.b16 %v2504, %v2503
        %v2508 = vpack.c.b16 %v2506, %v2505
        %v2512 = vsel %vm1242, %v2492, 0
        %2514 = vmatprep.subr.bf16.mxu0 0
        %2515 = vmatpush1.bf16.msra.mxu0 %v2507
        %2516 = vmatprep.subr.bf16.mxu0 0
        %2517 = vmatpush1.bf16.msra.mxu0 %v2508
        %2518 = vmatprep.subr.bf16.mxu0 0
        %2519 = vmatpush1.bf16.msra.mxu0 0
        %2520 = vmatprep.subr.bf16.mxu0 0
        %2521 = vmatpush1.bf16.msra.mxu0 0
        %2522 = vmatprep.subr.bf16.mxu0 0
        %2523 = vmatpush1.bf16.msra.mxu0 0
        %2524 = vmatprep.subr.bf16.mxu0 0
        %2525 = vmatpush1.bf16.msra.mxu0 0
        %2526 = vmatprep.subr.bf16.mxu0 0
        %2527 = vmatpush1.bf16.msra.mxu0 0
        %2528 = vmatprep.subr.bf16.mxu0 0
        %2529 = vmatpush1.bf16.msra.mxu0 0
        %2530 = vmatprep.subr.bf16.mxu0 0
        %2531 = vmatpush1.bf16.msra.mxu0 0
        %2532 = vmatprep.subr.bf16.mxu0 0
        %2533 = vmatpush1.bf16.msra.mxu0 0
        %2534 = vmatprep.subr.bf16.mxu0 0
        %2535 = vmatpush1.bf16.msra.mxu0 0
        %2536 = vmatprep.subr.bf16.mxu0 0
        %2537 = vmatpush1.bf16.msra.mxu0 0
        %2538 = vmatprep.subr.bf16.mxu0 0
        %2539 = vmatpush1.bf16.msra.mxu0 0
        %2540 = vmatprep.subr.bf16.mxu0 0
        %2541 = vmatpush1.bf16.msra.mxu0 0
        %2542 = vmatprep.subr.bf16.mxu0 0
        %2543 = vmatpush1.bf16.msra.mxu0 0
        %2544 = vmatprep.subr.bf16.mxu0 0
        %2545 = vmatpush1.bf16.msra.mxu0 0
        %2546 = vmatprep.mubr.bf16.mxu0 0
        %2547 = vmatmul.mubr.bf16.gmra.mrb[0].mxu0 %v2512
        %v2548 = vpop.f32.mrb[0].mxu0
        %v2549 = vadd.f32 %v2497, %v2548
        %v2550 = vpop.f32.mrb[0].mxu0
        %v2551 = vpop.f32.mrb[0].mxu0
        %v2552 = vpop.f32.mrb[0].mxu0
        %2553 = vdwg.mxu0
        %v2554 = vadd.f32 %v1896, %v2549
        %v2555 = vld [vmem:[%s1168] sm:$0x1]
        %v2556 = vld [vmem:[%s1171] sm:$0x1]
        %v2557 = vsel %vm1242, %v2554, 0.0
        %2558 = vadd.xlane.f32.xlu0 %v2557
        %v2559 = vpop.xlane.xlu0 %2558
        %v2560 = vmul.f32 %v2559, %v1872
        %v2561 = vsub.f32 %v2554, %v2560
        %v2562 = vmul.f32 %v2561, %v2561
        %v2563 = vsel %vm1242, %v2562, 0.0
        %2564 = vadd.xlane.f32.xlu0 %v2563
        %v2565 = vpop.xlane.xlu0 %2564
        %v2566 = vmul.f32 %v2565, %v1872
        %v2567 = vadd.f32 %v2566, 1e-05
        %v2568 = vrsqrt.pop %v2567
        %v2569 = vmul.f32 %v2561, %v2568
        %v2571 = vlaneseq
        %v2572 = vshrl.u32 %v2571, 7
        %v2573 = vsub.s32 0, %v2572
        %v2574 = vrot.slane %v2555, %v2573
        %v2576 = vmul.f32 %v2569, %v2574
        %v2578 = vlaneseq
        %v2579 = vshrl.u32 %v2578, 7
        %v2580 = vsub.s32 0, %v2579
        %v2581 = vrot.slane %v2556, %v2580
        %v2583 = vadd.f32 %v2576, %v2581
        %v2584 = vld [vmem:[%s1176] sm:$0xf]
        %v2585 = vld [vmem:[%s1176 + $0x4] sm:$0xf]
        %v2586 = vld [vmem:[%s1176 + $0x8] sm:$0xf]
        %v2587 = vld [vmem:[%s1176 + $0xc] sm:$0xf]
        %v2588 = vld [vmem:[%s1179] sm:$0x1]
        %v2589 = vld [vmem:[%s1184] sm:$0xf]
        %v2590 = vld [vmem:[%s1184 + $0x4] sm:$0xf]
        %v2591 = vld [vmem:[%s1184 + $0x8] sm:$0xf]
        %v2592 = vld [vmem:[%s1184 + $0xc] sm:$0xf]
        %v2593 = vld [vmem:[%s1184 + $0x10] sm:$0xf]
        %v2594 = vld [vmem:[%s1184 + $0x14] sm:$0xf]
        %v2595 = vld [vmem:[%s1184 + $0x18] sm:$0xf]
        %v2596 = vld [vmem:[%s1184 + $0x1c] sm:$0xf]
        %v2597 = vld [vmem:[%s1187] sm:$0x1]
        %v2598 = vpack.c.bf16 %v2583, %v2583
        %v2600 = vlaneseq
        %v2601 = vshrl.u32 %v2600, 7
        %v2602 = vsub.s32 0, %v2601
        %v2603 = vrot.slane %v2588, %v2602
        %v2609 = vunpack.c.l.b16 %v2584
        %v2610 = vunpack.c.l.b16 %v2585
        %v2611 = vunpack.c.l.b16 %v2586
        %v2612 = vunpack.c.l.b16 %v2587
        %v2613 = vpack.c.b16 %v2610, %v2609
        %v2614 = vpack.c.b16 %v2612, %v2611
        %v2618 = vsel %vm1242, %v2598, 0
        %2620 = vmatprep.subr.bf16.mxu0 0
        %2621 = vmatpush1.bf16.msra.mxu0 %v2613
        %2622 = vmatprep.subr.bf16.mxu0 0
        %2623 = vmatpush1.bf16.msra.mxu0 %v2614
        %2624 = vmatprep.subr.bf16.mxu0 0
        %2625 = vmatpush1.bf16.msra.mxu0 0
        %2626 = vmatprep.subr.bf16.mxu0 0
        %2627 = vmatpush1.bf16.msra.mxu0 0
        %2628 = vmatprep.subr.bf16.mxu0 0
        %2629 = vmatpush1.bf16.msra.mxu0 0
        %2630 = vmatprep.subr.bf16.mxu0 0
        %2631 = vmatpush1.bf16.msra.mxu0 0
        %2632 = vmatprep.subr.bf16.mxu0 0
        %2633 = vmatpush1.bf16.msra.mxu0 0
        %2634 = vmatprep.subr.bf16.mxu0 0
        %2635 = vmatpush1.bf16.msra.mxu0 0
        %2636 = vmatprep.subr.bf16.mxu0 0
        %2637 = vmatpush1.bf16.msra.mxu0 0
        %2638 = vmatprep.subr.bf16.mxu0 0
        %2639 = vmatpush1.bf16.msra.mxu0 0
        %2640 = vmatprep.subr.bf16.mxu0 0
        %2641 = vmatpush1.bf16.msra.mxu0 0
        %2642 = vmatprep.subr.bf16.mxu0 0
        %2643 = vmatpush1.bf16.msra.mxu0 0
        %2644 = vmatprep.subr.bf16.mxu0 0
        %2645 = vmatpush1.bf16.msra.mxu0 0
        %2646 = vmatprep.subr.bf16.mxu0 0
        %2647 = vmatpush1.bf16.msra.mxu0 0
        %2648 = vmatprep.subr.bf16.mxu0 0
        %2649 = vmatpush1.bf16.msra.mxu0 0
        %2650 = vmatprep.subr.bf16.mxu0 0
        %2651 = vmatpush1.bf16.msra.mxu0 0
        %2652 = vmatprep.mubr.bf16.mxu0 0
        %2653 = vmatmul.mubr.bf16.gmra.mrb[0].mxu0 %v2618
        %v2654 = vpop.f32.mrb[0].mxu0
        %v2655 = vadd.f32 %v2603, %v2654
        %v2656 = vpop.f32.mrb[0].mxu0
        %v2657 = vpop.f32.mrb[0].mxu0
        %v2658 = vpop.f32.mrb[0].mxu0
        %2659 = vdwg.mxu0
        %v2660 = vmax.f32 %v2655, 0.0
        %v2661 = vpack.c.bf16 %v2660, %v2660
        %v2663 = vlaneseq
        %v2664 = vshrl.u32 %v2663, 7
        %v2665 = vsub.s32 0, %v2664
        %v2666 = vrot.slane %v2597, %v2665
        %v2676 = vunpack.c.l.b16 %v2589
        %v2677 = vunpack.c.l.b16 %v2590
        %v2678 = vunpack.c.l.b16 %v2591
        %v2679 = vunpack.c.l.b16 %v2592
        %v2680 = vunpack.c.l.b16 %v2593
        %v2681 = vunpack.c.l.b16 %v2594
        %v2682 = vunpack.c.l.b16 %v2595
        %v2683 = vunpack.c.l.b16 %v2596
        %v2684 = vpack.c.b16 %v2677, %v2676
        %v2685 = vpack.c.b16 %v2679, %v2678
        %v2686 = vpack.c.b16 %v2681, %v2680
        %v2687 = vpack.c.b16 %v2683, %v2682
        %vm2692 = vcmask 523264
        %v2694 = vsel %vm2692, %v2661, 0
        %2696 = vmatprep.subr.bf16.mxu0 0
        %2697 = vmatpush1.bf16.msra.mxu0 %v2684
        %2698 = vmatprep.subr.bf16.mxu0 0
        %2699 = vmatpush1.bf16.msra.mxu0 %v2685
        %2700 = vmatprep.subr.bf16.mxu0 0
        %2701 = vmatpush1.bf16.msra.mxu0 %v2686
        %2702 = vmatprep.subr.bf16.mxu0 0
        %2703 = vmatpush1.bf16.msra.mxu0 %v2687
        %2704 = vmatprep.subr.bf16.mxu0 0
        %2705 = vmatpush1.bf16.msra.mxu0 0
        %2706 = vmatprep.subr.bf16.mxu0 0
        %2707 = vmatpush1.bf16.msra.mxu0 0
        %2708 = vmatprep.subr.bf16.mxu0 0
        %2709 = vmatpush1.bf16.msra.mxu0 0
        %2710 = vmatprep.subr.bf16.mxu0 0
        %2711 = vmatpush1.bf16.msra.mxu0 0
        %2712 = vmatprep.subr.bf16.mxu0 0
        %2713 = vmatpush1.bf16.msra.mxu0 0
        %2714 = vmatprep.subr.bf16.mxu0 0
        %2715 = vmatpush1.bf16.msra.mxu0 0
        %2716 = vmatprep.subr.bf16.mxu0 0
        %2717 = vmatpush1.bf16.msra.mxu0 0
        %2718 = vmatprep.subr.bf16.mxu0 0
        %2719 = vmatpush1.bf16.msra.mxu0 0
        %2720 = vmatprep.subr.bf16.mxu0 0
        %2721 = vmatpush1.bf16.msra.mxu0 0
        %2722 = vmatprep.subr.bf16.mxu0 0
        %2723 = vmatpush1.bf16.msra.mxu0 0
        %2724 = vmatprep.subr.bf16.mxu0 0
        %2725 = vmatpush1.bf16.msra.mxu0 0
        %2726 = vmatprep.subr.bf16.mxu0 0
        %2727 = vmatpush1.bf16.msra.mxu0 0
        %2728 = vmatprep.mubr.bf16.mxu0 0
        %2729 = vmatmul.mubr.bf16.gmra.mrb[0].mxu0 %v2694
        %v2730 = vpop.f32.mrb[0].mxu0
        %v2731 = vadd.f32 %v2666, %v2730
        %v2732 = vpop.f32.mrb[0].mxu0
        %v2733 = vpop.f32.mrb[0].mxu0
        %v2734 = vpop.f32.mrb[0].mxu0
        %2735 = vdwg.mxu0
        %v2736 = vadd.f32 %v2583, %v2731
        %v2737 = vld [vmem:[%s1190] sm:$0x1]
        %v2738 = vld [vmem:[%s1193] sm:$0x1]
        %v2739 = vsel %vm1242, %v2736, 0.0
        %2740 = vadd.xlane.f32.xlu0 %v2739
        %v2741 = vpop.xlane.xlu0 %2740
        %v2742 = vmul.f32 %v2741, %v1872
        %v2743 = vsub.f32 %v2736, %v2742
        %v2744 = vmul.f32 %v2743, %v2743
        %v2745 = vsel %vm1242, %v2744, 0.0
        %2746 = vadd.xlane.f32.xlu0 %v2745
        %v2747 = vpop.xlane.xlu0 %2746
        %v2748 = vmul.f32 %v2747, %v1872
        %v2749 = vadd.f32 %v2748, 1e-05
        %v2750 = vrsqrt.pop %v2749
        %v2751 = vmul.f32 %v2743, %v2750
        %v2753 = vlaneseq
        %v2754 = vshrl.u32 %v2753, 7
        %v2755 = vsub.s32 0, %v2754
        %v2756 = vrot.slane %v2737, %v2755
        %v2758 = vmul.f32 %v2751, %v2756
        %v2760 = vlaneseq
        %v2761 = vshrl.u32 %v2760, 7
        %v2762 = vsub.s32 0, %v2761
        %v2763 = vrot.slane %v2738, %v2762
        %v2765 = vadd.f32 %v2758, %v2763
        %2766 = vst.msk [vmem:[#allocation2] sm:$0xff] %vm1242, %v2765
        %p2767 = scmp.eq.s32.totalorder %s44, 1
        // Predicated region
        $region137: #{transformer_model_forward.4} parent=123 // pred_check
          %p2768 = pneg %p2767
        $region138: #{transformer_model_forward.4} parent=123 // pred_check_branch
          %2770 = sbr.rel (%p2768) target = $region140
        $region139: #{transformer_model_forward.4} parent=123 // pred_region
          %v2771 = vld [vmem:[#allocation2] sm:$0xff]
          %v2772 = vld [vmem:[#allocation3] sm:$0x1]
          %v2773 = vld [vmem:[#allocation5] sm:$0x1]
          %v2774 = vsel %vm1242, %v2771, 0.0
          %2775 = vadd.xlane.f32.xlu0 %v2774
          %v2776 = vpop.xlane.xlu0 %2775
          %v2777 = vmul.f32 %v2776, %v1872
          %v2778 = vsub.f32 %v2771, %v2777
          %v2779 = vmul.f32 %v2778, %v2778
          %v2780 = vsel %vm1242, %v2779, 0.0
          %2781 = vadd.xlane.f32.xlu0 %v2780
          %v2782 = vpop.xlane.xlu0 %2781
          %v2783 = vmul.f32 %v2782, %v1872
          %v2784 = vadd.f32 %v2783, 1e-05
          %v2785 = vrsqrt.pop %v2784
          %v2786 = vmul.f32 %v2778, %v2785
          %v2788 = vlaneseq
          %v2789 = vshrl.u32 %v2788, 7
          %v2790 = vsub.s32 0, %v2789
          %v2791 = vrot.slane %v2772, %v2790
          %v2793 = vmul.f32 %v2786, %v2791
          %v2795 = vlaneseq
          %v2796 = vshrl.u32 %v2795, 7
          %v2797 = vsub.s32 0, %v2796
          %v2798 = vrot.slane %v2773, %v2797
          %v2800 = vadd.f32 %v2793, %v2798
          %2801 = vst.msk [vmem:[%s1197] sm:$0xff] %vm1242, %v2800
        $region140: #{transformer_model_forward.4} parent=123 // pred_fallthru
          _
        %p2802 = scmp.lt.s32.totalorder %s43, 1
        %s2803 = scalar_select %p2802, %s43, 1
        %s2804 = smul.addr %s2803, 8
        %s2805 = scalar_lea.vmem %s26, %s2804
        // Predicated region
        $region141: #{transformer_model_forward.4} parent=123 // pred_check
          %p2806 = pneg %p735
        $region142: #{transformer_model_forward.4} parent=123 // pred_check_branch
          %2808 = sbr.rel (%p2806) target = $region144
        $region143: #{transformer_model_forward.4} parent=123 // pred_region
          _
        $region144: #{transformer_model_forward.4} parent=123 // pred_fallthru
          _
      $region124: #{transformer_model_forward.4} parent=5 // pred_fallthru
        _
      %p2809 = scmp.le.s32.totalorder 2, %s34
      // Predicated region
      $region145: #{transformer_model_forward.4} parent=5 // pred_check
        %p2810 = pneg %p2809
      $region146: #{transformer_model_forward.4} parent=5 // pred_check_branch
        %2812 = sbr.rel (%p2810) target = $region148
      $region147: #{transformer_model_forward.4} parent=5 // pred_region
        %s2813 = ssub.s32 %s34, 2
        // Predicated region
        $region149: #{transformer_model_forward.4} parent=147 // pred_check
          %p2814 = pneg %p741
        $region150: #{transformer_model_forward.4} parent=147 // pred_check_branch
          %2816 = sbr.rel (%p2814) target = $region152
        $region151: #{transformer_model_forward.4} parent=147 // pred_region
          %p2817 = scmp.lt.s32.totalorder %s45, 1
          %s2818 = scalar_select %p2817, %s45, 1
          %s2819 = smul.addr %s2818, 8
          %s2820 = scalar_lea.vmem %s26, %s2819
        $region152: #{transformer_model_forward.4} parent=147 // pred_fallthru
          _
      $region148: #{transformer_model_forward.4} parent=5 // pred_fallthru
        _
    $region6: #{transformer_model_forward.4} parent=1 // loop_footer
      %s38 = sadd.s32 1, %s34
    $region7: #{transformer_model_forward.4} parent=1 // loop_footer_branch
      %33 = sbr.rel target = $region3
    $region8: #{transformer_model_forward.4} parent=1 // loop_exit
      _
    %2821 = vsyncpa [#allocation4], 1
    %s2822 = scalar_lea.sflag [#allocation4], 1
    %2823 = vsyncpa %s2822, 1
    %2824 = vsyncpa [#allocation6], 1

</llo_original>
